<compile_context>
chip_gen: v6e
topology: v6e:2x2x1
jax: 0.10.0
libtpu: 0.0.40
codegen_flags: <defaults>
</compile_context>

<pallas_src>
import jax
import jax.numpy as jnp
from jax import lax
from jax.experimental import pallas as pl
from jax.experimental.pallas import tpu as pltpu


# ----------------------------------------------------------------------------
# Small helpers (f32 elementwise math)
# ----------------------------------------------------------------------------

def _sigmoid(x):
    # One EUP pass (tanh) + cheap VPU ops instead of exp + divide.
    return 0.5 * jnp.tanh(0.5 * x) + 0.5


def _leaky_relu(x):
    return jnp.where(x > 0, x, 0.2 * x)


# ----------------------------------------------------------------------------
# Fused kernel
# ----------------------------------------------------------------------------

def _actor_fused_kernel(
    xx_ref, mr_ref,
    wih1_ref, whh1_ref, b1_ref,
    w2d_ref, w2c_ref, whh2_ref, b2_ref,
    w1f_ref, w1b_ref, w1m_ref, bh1_ref,
    w2h_ref, bh2_ref,
    wms_ref, bms_ref,
    out_ref,
    gx_ref, y_ref, yrev_ref,
):
    Bp = mr_ref.shape[0]            # padded batch, multiple of 8
    TB, H2 = y_ref.shape            # (T*Bp, 2H)
    T = TB // Bp
    H = H2 // 2
    _ = gx_ref.shape[-1]            # 8H, layout [i_f|i_b|f_f|f_b|g_f|g_b|o_f|o_b]

    def run_layer(whh_ref, store_rev):
        """One bidirectional layer.  gx_ref row-block s holds the input-projection
        pre-activations for the fwd direction at time s and the bwd direction at
        time T-1-s, already in the interleaved per-gate layout.  h/c are carried
        as (Bp, 2H) = [fwd | bwd] fori_loop values (vregs)."""

        def step(s, carry):
            h, c = carry
            rec = jnp.dot(h.astype(jnp.bfloat16), whh_ref[...],
                          preferred_element_type=jnp.float32)          # (Bp, 8H)
            off = pl.multiple_of(s * Bp, Bp)
            gates = rec + gx_ref[pl.ds(off, Bp), :]
            i_g = _sigmoid(gates[:, 0 * H2:1 * H2])                     # (Bp, 2H)
            f_g = _sigmoid(gates[:, 1 * H2:2 * H2])
            g_g = jnp.tanh(gates[:, 2 * H2:3 * H2])
            o_g = _sigmoid(gates[:, 3 * H2:4 * H2])
            c_new = f_g * c + i_g * g_g
            h_new = o_g * jnp.tanh(c_new)
            y_ref[pl.ds(off, Bp), :] = h_new                            # y[s] = [h_f(s) | h_b(T-1-s)]
            if store_rev:
                roff = pl.multiple_of((T - 1 - s) * Bp, Bp)
                yrev_ref[pl.ds(roff, Bp), :] = h_new                    # y_rev[u] = y[T-1-u]
            return h_new, c_new

        zeros = jnp.zeros((Bp, H2), jnp.float32)
        lax.fori_loop(0, T, step, (zeros, zeros), unroll=True)

    # ---- Layer 1: hoisted input projection (xx already carries [x(s) | x(T-1-s)]) ----
    gx_ref[...] = (
        jnp.dot(xx_ref[...].astype(jnp.bfloat16), wih1_ref[...],
                preferred_element_type=jnp.float32)
        + b1_ref[...]
    )
    run_layer(whh1_ref, store_rev=True)

    # ---- Layer 2: projection consumes layer-1 y / y_rev straight from VMEM ----
    y16 = y_ref[...].astype(jnp.bfloat16)
    yr16 = yrev_ref[...].astype(jnp.bfloat16)
    gx_ref[...] = (
        jnp.dot(y16, w2d_ref[...], preferred_element_type=jnp.float32)
        + jnp.dot(yr16, w2c_ref[...], preferred_element_type=jnp.float32)
        + b2_ref[...]
    )
    run_layer(whh2_ref, store_rev=False)

    # ---- Fused MLP head on last-timestep features (== lstm_out[:, -1, :]) ----
    last = y_ref[pl.ds((T - 1) * Bp, Bp), :]     # [h2_f(T-1) | h2_b(0)]
    first = y_ref[pl.ds(0, Bp), :]               # [h2_f(0)   | h2_b(T-1)]
    feat_f = last[:, :H].astype(jnp.bfloat16)    # h2_f(T-1)
    feat_b = first[:, H:].astype(jnp.bfloat16)   # h2_b(T-1)
    h = (
        jnp.dot(feat_f, w1f_ref[...], preferred_element_type=jnp.float32)
        + jnp.dot(feat_b, w1b_ref[...], preferred_element_type=jnp.float32)
        + jnp.dot(mr_ref[...], w1m_ref[...], preferred_element_type=jnp.float32)
        + bh1_ref[...]
    )
    h = _leaky_relu(h)
    h = jnp.dot(h.astype(jnp.bfloat16), w2h_ref[...],
                preferred_element_type=jnp.float32) + bh2_ref[...]
    h = _leaky_relu(h)
    # Fused [mean | log_std] head (single dot); clip happens in the wrapper.
    out_ref[...] = jnp.dot(h.astype(jnp.bfloat16), wms_ref[...],
                           preferred_element_type=jnp.float32) + bms_ref[...]


# ----------------------------------------------------------------------------
# Wrapper
# ----------------------------------------------------------------------------

_VMEM = pl.BlockSpec(memory_space=pltpu.MemorySpace.VMEM)


def _run_fused(params, x_tbi, money_and_ratio):
    """x_tbi: (T, B, I) time-major input. Returns (mean, log_std), each (B, A)."""
    T, B, I = x_tbi.shape
    H2, G = params["whh1"].shape            # (2H, 8H)
    H = H2 // 2
    A2 = params["w_ms"].shape[1]
    A = A2 // 2
    Bp = max(8, ((B + 7) // 8) * 8)         # pad batch to a full sublane group

    # Wrapper-side layout plumbing (free XLA ops): pad batch, pre-assemble the
    # fwd(t)/bwd(T-1-t) input pairing, flatten to 2D.
    x_pad = jnp.zeros((T, Bp, I), jnp.float32).at[:, :B, :].set(x_tbi)
    xx = jnp.concatenate([x_pad, x_pad[::-1]], axis=-1).reshape(T * Bp, 2 * I)
    mr_pad = jnp.zeros((Bp, money_and_ratio.shape[1]),
                       jnp.float32).at[:B, :].set(money_and_ratio)

    flops = int(
        2 * 2 * T * Bp * H2 * G                      # recurrent matmuls, both layers
        + 2 * T * Bp * (2 * I) * G                   # layer-1 input projection
        + 2 * 2 * T * Bp * H2 * G                    # layer-2 input projection
        + 2 * Bp * (H2 * params["w1_ff"].shape[1]
                    + 2 * params["w1_mr"].shape[1]
                    + params["w2h"].shape[0] * params["w2h"].shape[1]
                    + params["w_ms"].shape[0] * A2))
    transcendentals = int(2 * T * Bp * H2 * 5)
    bytes_accessed = int(
        xx.size * 4 + mr_pad.size * 4 + Bp * A2 * 4
        + sum(int(p.size) * p.dtype.itemsize for p in params.values()))

    out = pl.pallas_call(
        _actor_fused_kernel,
        out_shape=jax.ShapeDtypeStruct((Bp, A2), jnp.float32),
        in_specs=[_VMEM] * 17,
        out_specs=_VMEM,
        scratch_shapes=[
            pltpu.VMEM((T * Bp, G), jnp.float32),    # gx: hoisted input projection
            pltpu.VMEM((T * Bp, H2), jnp.float32),   # y:     y[s]  = [h_f(s) | h_b(T-1-s)]
            pltpu.VMEM((T * Bp, H2), jnp.float32),   # y_rev: y_rev[u] = y[T-1-u]
        ],
        cost_estimate=pl.CostEstimate(
            flops=flops, transcendentals=transcendentals,
            bytes_accessed=bytes_accessed),
    )(
        xx, mr_pad,
        params["wih1"], params["whh1"], params["b1"],
        params["w2_direct"], params["w2_cross"], params["whh2"], params["b2"],
        params["w1_ff"], params["w1_fb"], params["w1_mr"], params["bh1"],
        params["w2h"], params["bh2"],
        params["w_ms"], params["b_ms"],
    )

    mean = out[:B, :A]
    log_std = jnp.clip(out[:B, A:], -20.0, 2.0)
    return mean, log_std


# ----------------------------------------------------------------------------
# Parameter initialization (PyTorch-style uniform init, fused/interleaved layout)
# ----------------------------------------------------------------------------

def _uniform(key, shape, bound):
    return jax.random.uniform(key, shape, jnp.float32, -bound, bound)


def init_params(key, state_dim, action_dim=1, hidden_list=(128, 64), lstm_hidden=64):
    H = lstm_hidden
    H2 = 2 * H
    G = 8 * H
    I = state_dim
    k_lstm = 1.0 / float(H) ** 0.5
    bf16 = jnp.bfloat16

    def gate_cols(g, d):                     # gate g in (i,f,g,o), direction d (0 fwd, 1 bwd)
        c0 = g * H2 + d * H
        return slice(c0, c0 + H)

    # ---- Layer 1 ----
    wih1 = jnp.zeros((2 * I, G), jnp.float32)    # rows 0:I -> x(s), rows I:2I -> x(T-1-s)
    whh1 = jnp.zeros((H2, G), jnp.float32)       # rows 0:H -> h_f, rows H:2H -> h_b
    b1 = jnp.zeros((1, G), jnp.float32)
    for d in range(2):
        for g in range(4):
            key, k1, k2, k3, k4 = jax.random.split(key, 5)
            cols = gate_cols(g, d)
            wih1 = wih1.at[d * I:(d + 1) * I, cols].set(_uniform(k1, (I, H), k_lstm))
            whh1 = whh1.at[d * H:(d + 1) * H, cols].set(_uniform(k2, (H, H), k_lstm))
            b1 = b1.at[:, cols].set(_uniform(k3, (1, H), k_lstm)
                                    + _uniform(k4, (1, H), k_lstm))     # b_ih + b_hh

    # ---- Layer 2 ----
    # y       row s = [h1_f(s)     | h1_b(T-1-s)]
    # y_rev   row s = [h1_f(T-1-s) | h1_b(s)    ]
    # fwd gates at step s need  h1_f(s)@A_f + h1_b(s)@B_f
    # bwd gates at step s need  h1_f(T-1-s)@A_b + h1_b(T-1-s)@B_b
    w2d = jnp.zeros((H2, G), jnp.float32)    # multiplies y
    w2c = jnp.zeros((H2, G), jnp.float32)    # multiplies y_rev
    whh2 = jnp.zeros((H2, G), jnp.float32)
    b2 = jnp.zeros((1, G), jnp.float32)
    for d in range(2):
        for g in range(4):
            key, kA, kB, k2, k3, k4 = jax.random.split(key, 6)
            cols = gate_cols(g, d)
            wA = _uniform(kA, (H, H), k_lstm)    # acts on h1_fwd features
            wB = _uniform(kB, (H, H), k_lstm)    # acts on h1_bwd features
            if d == 0:   # forward direction gates
                w2d = w2d.at[:H, cols].set(wA)   # h1_f(s) comes from y left half
                w2c = w2c.at[H:, cols].set(wB)   # h1_b(s) comes from y_rev right half
            else:        # backward direction gates
                w2c = w2c.at[:H, cols].set(wA)   # h1_f(T-1-s) from y_rev left half
                w2d = w2d.at[H:, cols].set(wB)   # h1_b(T-1-s) from y right half
            whh2 = whh2.at[d * H:(d + 1) * H, cols].set(_uniform(k2, (H, H), k_lstm))
            b2 = b2.at[:, cols].set(_uniform(k3, (1, H), k_lstm)
                                    + _uniform(k4, (1, H), k_lstm))

    # ---- MLP head ----
    mlp_in = H2 + 2
    bnd = 1.0 / float(mlp_in) ** 0.5
    key, k1, k2, k3, k4 = jax.random.split(key, 5)
    w1_ff = _uniform(k1, (H, hidden_list[0]), bnd)       # acts on h2_f(T-1)
    w1_fb = _uniform(k2, (H, hidden_list[0]), bnd)       # acts on h2_b(T-1)
    w1_mr = _uniform(k3, (2, hidden_list[0]), bnd)       # acts on moneyAndRatio
    bh1 = _uniform(k4, (1, hidden_list[0]), bnd)
    bnd = 1.0 / float(hidden_list[0]) ** 0.5
    key, k1, k2 = jax.random.split(key, 3)
    w2h = _uniform(k1, (hidden_list[0], hidden_list[1]), bnd)
    bh2 = _uniform(k2, (1, hidden_list[1]), bnd)
    bnd = 1.0 / float(hidden_list[1]) ** 0.5
    key, k1, k2 = jax.random.split(key, 3)
    w_ms = _uniform(k1, (hidden_list[1], 2 * action_dim), bnd)   # fused [mean | log_std]
    b_ms = _uniform(k2, (1, 2 * action_dim), bnd)

    return {
        # MXU operands stored bf16 (f32 accumulation in-kernel); biases stay f32.
        "wih1": wih1.astype(bf16), "whh1": whh1.astype(bf16), "b1": b1,
        "w2_direct": w2d.astype(bf16), "w2_cross": w2c.astype(bf16),
        "whh2": whh2.astype(bf16), "b2": b2,
        "w1_ff": w1_ff.astype(bf16), "w1_fb": w1_fb.astype(bf16),
        "w1_mr": w1_mr, "bh1": bh1,
        "w2h": w2h.astype(bf16), "bh2": bh2,
        "w_ms": w_ms.astype(bf16), "b_ms": b_ms,
    }


# ----------------------------------------------------------------------------
# Full forward pass (matches LSTM_SAC_Actor.forward semantics)
# ----------------------------------------------------------------------------

@jax.jit
def lstm_sac_actor_forward(params, state, money_and_ratio, sample_key):
    # state: (B, T, state_dim), batch_first like PyTorch.
    money_ratio = money_and_ratio[:, -1]          # (B,)
    stock_ratio = 1.0 - money_ratio

    x = jnp.transpose(state, (1, 0, 2))           # time-major (T, B, I)
    mean, log_std = _run_fused(params, x, money_and_ratio)
    std = jnp.exp(log_std)

    # TODO(synk): torch Normal(mean, std).sample() RNG stream cannot be matched
    # bit-for-bit; use jax.random.normal with a deterministic key instead.
    z = mean + std * jax.random.normal(sample_key, mean.shape, jnp.float32)
    true_action = jnp.tanh(z)

    zeros_action = jnp.zeros_like(true_action)
    # Faithfully reproduces the PyTorch broadcast: (B, 1) * (B,) -> (B, B).
    invest_action = (jnp.maximum(true_action, zeros_action) * money_ratio
                     + jnp.minimum(true_action, zeros_action) * stock_ratio)
    return true_action, mean, log_std, invest_action


# ----------------------------------------------------------------------------
# Demo
# ----------------------------------------------------------------------------

if __name__ == "__main__":
    B, T, STATE_DIM, ACTION_DIM = 2, 10, 8, 1

    root = jax.random.PRNGKey(0)
    k_params, k_state, k_money, k_sample = jax.random.split(root, 4)

    params = init_params(k_params, STATE_DIM, ACTION_DIM)

    state = jax.random.normal(k_state, (B, T, STATE_DIM), jnp.float32)
    money_and_ratio = jax.random.uniform(k_money, (B, 2), jnp.float32)

    outs = lstm_sac_actor_forward(params, state, money_and_ratio, k_sample)
    outs = jax.block_until_ready(outs)

    true_action, mean, log_std, invest_action = outs
    assert true_action.shape == (B, ACTION_DIM)
    assert mean.shape == (B, ACTION_DIM)
    assert log_std.shape == (B, ACTION_DIM)
    assert invest_action.shape == (B, B)  # PyTorch broadcasting of (B,1)*(B,)
    assert bool(jnp.all(jnp.isfinite(mean)))
    assert bool(jnp.all(jnp.isfinite(true_action)))
    assert bool(jnp.all(log_std <= 2.0)) and bool(jnp.all(log_std >= -20.0))

    print("KERNEL_OK")
</pallas_src>

<mosaic_0001>
module attributes {stable_mosaic.version = 11 : i64} {
  func.func @_actor_fused_kernel(%arg0: memref<80x16xf32, #tpu.memory_space<vmem>>, %arg1: memref<8x2xf32, #tpu.memory_space<vmem>>, %arg2: memref<16x512xbf16, #tpu.memory_space<vmem>>, %arg3: memref<128x512xbf16, #tpu.memory_space<vmem>>, %arg4: memref<1x512xf32, #tpu.memory_space<vmem>>, %arg5: memref<128x512xbf16, #tpu.memory_space<vmem>>, %arg6: memref<128x512xbf16, #tpu.memory_space<vmem>>, %arg7: memref<128x512xbf16, #tpu.memory_space<vmem>>, %arg8: memref<1x512xf32, #tpu.memory_space<vmem>>, %arg9: memref<64x128xbf16, #tpu.memory_space<vmem>>, %arg10: memref<64x128xbf16, #tpu.memory_space<vmem>>, %arg11: memref<2x128xf32, #tpu.memory_space<vmem>>, %arg12: memref<1x128xf32, #tpu.memory_space<vmem>>, %arg13: memref<128x64xbf16, #tpu.memory_space<vmem>>, %arg14: memref<1x64xf32, #tpu.memory_space<vmem>>, %arg15: memref<64x2xbf16, #tpu.memory_space<vmem>>, %arg16: memref<1x2xf32, #tpu.memory_space<vmem>>, %arg17: memref<8x2xf32, #tpu.memory_space<vmem>>, %arg18: memref<80x512xf32, #tpu.memory_space<vmem>>, %arg19: memref<80x128xf32, #tpu.memory_space<vmem>>, %arg20: memref<80x128xf32, #tpu.memory_space<vmem>>) attributes {dimension_semantics = [], scalar_prefetch = 0 : i64, scratch_operands = 3 : i64, tpu.core_type = #tpu.core_type<tc>} {
    %c0 = arith.constant 0 : index
    %c0_0 = arith.constant 0 : index
    %0 = vector.load %arg0[%c0, %c0_0] : memref<80x16xf32, #tpu.memory_space<vmem>>, vector<80x16xf32>
    %1 = arith.truncf %0 : vector<80x16xf32> to vector<80x16xbf16>
    %c0_1 = arith.constant 0 : index
    %c0_2 = arith.constant 0 : index
    %2 = vector.load %arg2[%c0_1, %c0_2] : memref<16x512xbf16, #tpu.memory_space<vmem>>, vector<16x512xbf16>
    %cst = arith.constant dense<0.000000e+00> : vector<80x512xf32>
    %3 = tpu.matmul %1, %2, %cst {dimension_numbers = #tpu.dot_dimension_numbers<[1], [0], [0], [1], [0, 0, 1, 1], [], []>} : vector<80x16xbf16>, vector<16x512xbf16>, vector<80x512xf32> -> vector<80x512xf32>
    %c0_3 = arith.constant 0 : index
    %c0_4 = arith.constant 0 : index
    %4 = vector.load %arg4[%c0_3, %c0_4] : memref<1x512xf32, #tpu.memory_space<vmem>>, vector<1x512xf32>
    %5 = vector.broadcast %4 : vector<1x512xf32> to vector<80x512xf32>
    %6 = arith.addf %3, %5 : vector<80x512xf32>
    %c0_5 = arith.constant 0 : index
    %c0_6 = arith.constant 0 : index
    %7 = vector.load %arg18[%c0_5, %c0_6] : memref<80x512xf32, #tpu.memory_space<vmem>>, vector<80x512xf32>
    tpu.vector_store %arg18[%c0_5, %c0_6], %6 {strides = array<i32>} : memref<80x512xf32, #tpu.memory_space<vmem>>, vector<80x512xf32>,
    %cst_7 = arith.constant 0.000000e+00 : f32
    %8 = vector.broadcast %cst_7 : f32 to vector<8x128xf32>
    %c0_i32 = arith.constant 0 : i32
    %9 = arith.truncf %8 : vector<8x128xf32> to vector<8x128xbf16>
    %c0_8 = arith.constant 0 : index
    %c0_9 = arith.constant 0 : index
    %10 = vector.load %arg3[%c0_8, %c0_9] : memref<128x512xbf16, #tpu.memory_space<vmem>>, vector<128x512xbf16>
    %cst_10 = arith.constant dense<0.000000e+00> : vector<8x512xf32>
    %11 = tpu.matmul %9, %10, %cst_10 {dimension_numbers = #tpu.dot_dimension_numbers<[1], [0], [0], [1], [0, 0, 1, 1], [], []>} : vector<8x128xbf16>, vector<128x512xbf16>, vector<8x512xf32> -> vector<8x512xf32>
    %c8_i32 = arith.constant 8 : i32
    %12 = arith.muli %c0_i32, %c8_i32 : i32
    %13 = tpu.assume_multiple %12, 8 : i32
    %14 = arith.index_cast %13 : i32 to index
    %c0_11 = arith.constant 0 : index
    %15 = vector.load %arg18[%14, %c0_11] : memref<80x512xf32, #tpu.memory_space<vmem>>, vector<8x512xf32>
    %16 = arith.addf %11, %15 : vector<8x512xf32>
    %17 = vector.extract_strided_slice %16 {offsets = [0, 0], sizes = [8, 128], strides = [1, 1]} : vector<8x512xf32> to vector<8x128xf32>
    %cst_12 = arith.constant 5.000000e-01 : f32
    %18 = vector.broadcast %cst_12 : f32 to vector<8x128xf32>
    %19 = arith.mulf %18, %17 : vector<8x128xf32>
    %20 = math.tanh %19 : vector<8x128xf32>
    %cst_13 = arith.constant 5.000000e-01 : f32
    %21 = vector.broadcast %cst_13 : f32 to vector<8x128xf32>
    %22 = arith.mulf %21, %20 : vector<8x128xf32>
    %cst_14 = arith.constant 5.000000e-01 : f32
    %23 = vector.broadcast %cst_14 : f32 to vector<8x128xf32>
    %24 = arith.addf %22, %23 : vector<8x128xf32>
    %25 = vector.extract_strided_slice %16 {offsets = [0, 128], sizes = [8, 128], strides = [1, 1]} : vector<8x512xf32> to vector<8x128xf32>
    %cst_15 = arith.constant 5.000000e-01 : f32
    %26 = vector.broadcast %cst_15 : f32 to vector<8x128xf32>
    %27 = arith.mulf %26, %25 : vector<8x128xf32>
    %28 = math.tanh %27 : vector<8x128xf32>
    %cst_16 = arith.constant 5.000000e-01 : f32
    %29 = vector.broadcast %cst_16 : f32 to vector<8x128xf32>
    %30 = arith.mulf %29, %28 : vector<8x128xf32>
    %cst_17 = arith.constant 5.000000e-01 : f32
    %31 = vector.broadcast %cst_17 : f32 to vector<8x128xf32>
    %32 = arith.addf %30, %31 : vector<8x128xf32>
    %33 = vector.extract_strided_slice %16 {offsets = [0, 256], sizes = [8, 128], strides = [1, 1]} : vector<8x512xf32> to vector<8x128xf32>
    %34 = math.tanh %33 : vector<8x128xf32>
    %35 = vector.extract_strided_slice %16 {offsets = [0, 384], sizes = [8, 128], strides = [1, 1]} : vector<8x512xf32> to vector<8x128xf32>
    %cst_18 = arith.constant 5.000000e-01 : f32
    %36 = vector.broadcast %cst_18 : f32 to vector<8x128xf32>
    %37 = arith.mulf %36, %35 : vector<8x128xf32>
    %38 = math.tanh %37 : vector<8x128xf32>
    %cst_19 = arith.constant 5.000000e-01 : f32
    %39 = vector.broadcast %cst_19 : f32 to vector<8x128xf32>
    %40 = arith.mulf %39, %38 : vector<8x128xf32>
    %cst_20 = arith.constant 5.000000e-01 : f32
    %41 = vector.broadcast %cst_20 : f32 to vector<8x128xf32>
    %42 = arith.addf %40, %41 : vector<8x128xf32>
    %43 = arith.mulf %32, %8 : vector<8x128xf32>
    %44 = arith.mulf %24, %34 : vector<8x128xf32>
    %45 = arith.addf %43, %44 : vector<8x128xf32>
    %46 = math.tanh %45 : vector<8x128xf32>
    %47 = arith.mulf %42, %46 : vector<8x128xf32>
    %48 = arith.index_cast %13 : i32 to index
    %c0_21 = arith.constant 0 : index
    %49 = vector.load %arg19[%48, %c0_21] : memref<80x128xf32, #tpu.memory_space<vmem>>, vector<8x128xf32>
    tpu.vector_store %arg19[%48, %c0_21], %47 {strides = array<i32>} : memref<80x128xf32, #tpu.memory_space<vmem>>, vector<8x128xf32>,
    %c9_i32 = arith.constant 9 : i32
    %50 = arith.subi %c9_i32, %c0_i32 : i32
    %c8_i32_22 = arith.constant 8 : i32
    %51 = arith.muli %50, %c8_i32_22 : i32
    %52 = tpu.assume_multiple %51, 8 : i32
    %53 = arith.index_cast %52 : i32 to index
    %c0_23 = arith.constant 0 : index
    %54 = vector.load %arg20[%53, %c0_23] : memref<80x128xf32, #tpu.memory_space<vmem>>, vector<8x128xf32>
    tpu.vector_store %arg20[%53, %c0_23], %47 {strides = array<i32>} : memref<80x128xf32, #tpu.memory_space<vmem>>, vector<8x128xf32>,
    %c1_i32 = arith.constant 1 : i32
    %55 = arith.truncf %47 : vector<8x128xf32> to vector<8x128xbf16>
    %c0_24 = arith.constant 0 : index
    %c0_25 = arith.constant 0 : index
    %56 = vector.load %arg3[%c0_24, %c0_25] : memref<128x512xbf16, #tpu.memory_space<vmem>>, vector<128x512xbf16>
    %cst_26 = arith.constant dense<0.000000e+00> : vector<8x512xf32>
    %57 = tpu.matmul %55, %56, %cst_26 {dimension_numbers = #tpu.dot_dimension_numbers<[1], [0], [0], [1], [0, 0, 1, 1], [], []>} : vector<8x128xbf16>, vector<128x512xbf16>, vector<8x512xf32> -> vector<8x512xf32>
    %c8_i32_27 = arith.constant 8 : i32
    %58 = arith.muli %c1_i32, %c8_i32_27 : i32
    %59 = tpu.assume_multiple %58, 8 : i32
    %60 = arith.index_cast %59 : i32 to index
    %c0_28 = arith.constant 0 : index
    %61 = vector.load %arg18[%60, %c0_28] : memref<80x512xf32, #tpu.memory_space<vmem>>, vector<8x512xf32>
    %62 = arith.addf %57, %61 : vector<8x512xf32>
    %63 = vector.extract_strided_slice %62 {offsets = [0, 0], sizes = [8, 128], strides = [1, 1]} : vector<8x512xf32> to vector<8x128xf32>
    %cst_29 = arith.constant 5.000000e-01 : f32
    %64 = vector.broadcast %cst_29 : f32 to vector<8x128xf32>
    %65 = arith.mulf %64, %63 : vector<8x128xf32>
    %66 = math.tanh %65 : vector<8x128xf32>
    %cst_30 = arith.constant 5.000000e-01 : f32
    %67 = vector.broadcast %cst_30 : f32 to vector<8x128xf32>
    %68 = arith.mulf %67, %66 : vector<8x128xf32>
    %cst_31 = arith.constant 5.000000e-01 : f32
    %69 = vector.broadcast %cst_31 : f32 to vector<8x128xf32>
    %70 = arith.addf %68, %69 : vector<8x128xf32>
    %71 = vector.extract_strided_slice %62 {offsets = [0, 128], sizes = [8, 128], strides = [1, 1]} : vector<8x512xf32> to vector<8x128xf32>
    %cst_32 = arith.constant 5.000000e-01 : f32
    %72 = vector.broadcast %cst_32 : f32 to vector<8x128xf32>
    %73 = arith.mulf %72, %71 : vector<8x128xf32>
    %74 = math.tanh %73 : vector<8x128xf32>
    %cst_33 = arith.constant 5.000000e-01 : f32
    %75 = vector.broadcast %cst_33 : f32 to vector<8x128xf32>
    %76 = arith.mulf %75, %74 : vector<8x128xf32>
    %cst_34 = arith.constant 5.000000e-01 : f32
    %77 = vector.broadcast %cst_34 : f32 to vector<8x128xf32>
    %78 = arith.addf %76, %77 : vector<8x128xf32>
    %79 = vector.extract_strided_slice %62 {offsets = [0, 256], sizes = [8, 128], strides = [1, 1]} : vector<8x512xf32> to vector<8x128xf32>
    %80 = math.tanh %79 : vector<8x128xf32>
    %81 = vector.extract_strided_slice %62 {offsets = [0, 384], sizes = [8, 128], strides = [1, 1]} : vector<8x512xf32> to vector<8x128xf32>
    %cst_35 = arith.constant 5.000000e-01 : f32
    %82 = vector.broadcast %cst_35 : f32 to vector<8x128xf32>
    %83 = arith.mulf %82, %81 : vector<8x128xf32>
    %84 = math.tanh %83 : vector<8x128xf32>
    %cst_36 = arith.constant 5.000000e-01 : f32
    %85 = vector.broadcast %cst_36 : f32 to vector<8x128xf32>
    %86 = arith.mulf %85, %84 : vector<8x128xf32>
    %cst_37 = arith.constant 5.000000e-01 : f32
    %87 = vector.broadcast %cst_37 : f32 to vector<8x128xf32>
    %88 = arith.addf %86, %87 : vector<8x128xf32>
    %89 = arith.mulf %78, %45 : vector<8x128xf32>
    %90 = arith.mulf %70, %80 : vector<8x128xf32>
    %91 = arith.addf %89, %90 : vector<8x128xf32>
    %92 = math.tanh %91 : vector<8x128xf32>
    %93 = arith.mulf %88, %92 : vector<8x128xf32>
    %94 = arith.index_cast %59 : i32 to index
    %c0_38 = arith.constant 0 : index
    %95 = vector.load %arg19[%94, %c0_38] : memref<80x128xf32, #tpu.memory_space<vmem>>, vector<8x128xf32>
    tpu.vector_store %arg19[%94, %c0_38], %93 {strides = array<i32>} : memref<80x128xf32, #tpu.memory_space<vmem>>, vector<8x128xf32>,
    %c9_i32_39 = arith.constant 9 : i32
    %96 = arith.subi %c9_i32_39, %c1_i32 : i32
    %c8_i32_40 = arith.constant 8 : i32
    %97 = arith.muli %96, %c8_i32_40 : i32
    %98 = tpu.assume_multiple %97, 8 : i32
    %99 = arith.index_cast %98 : i32 to index
    %c0_41 = arith.constant 0 : index
    %100 = vector.load %arg20[%99, %c0_41] : memref<80x128xf32, #tpu.memory_space<vmem>>, vector<8x128xf32>
    tpu.vector_store %arg20[%99, %c0_41], %93 {strides = array<i32>} : memref<80x128xf32, #tpu.memory_space<vmem>>, vector<8x128xf32>,
    %c2_i32 = arith.constant 2 : i32
    %101 = arith.truncf %93 : vector<8x128xf32> to vector<8x128xbf16>
    %c0_42 = arith.constant 0 : index
    %c0_43 = arith.constant 0 : index
    %102 = vector.load %arg3[%c0_42, %c0_43] : memref<128x512xbf16, #tpu.memory_space<vmem>>, vector<128x512xbf16>
    %cst_44 = arith.constant dense<0.000000e+00> : vector<8x512xf32>
    %103 = tpu.matmul %101, %102, %cst_44 {dimension_numbers = #tpu.dot_dimension_numbers<[1], [0], [0], [1], [0, 0, 1, 1], [], []>} : vector<8x128xbf16>, vector<128x512xbf16>, vector<8x512xf32> -> vector<8x512xf32>
    %c8_i32_45 = arith.constant 8 : i32
    %104 = arith.muli %c2_i32, %c8_i32_45 : i32
    %105 = tpu.assume_multiple %104, 8 : i32
    %106 = arith.index_cast %105 : i32 to index
    %c0_46 = arith.constant 0 : index
    %107 = vector.load %arg18[%106, %c0_46] : memref<80x512xf32, #tpu.memory_space<vmem>>, vector<8x512xf32>
    %108 = arith.addf %103, %107 : vector<8x512xf32>
    %109 = vector.extract_strided_slice %108 {offsets = [0, 0], sizes = [8, 128], strides = [1, 1]} : vector<8x512xf32> to vector<8x128xf32>
    %cst_47 = arith.constant 5.000000e-01 : f32
    %110 = vector.broadcast %cst_47 : f32 to vector<8x128xf32>
    %111 = arith.mulf %110, %109 : vector<8x128xf32>
    %112 = math.tanh %111 : vector<8x128xf32>
    %cst_48 = arith.constant 5.000000e-01 : f32
    %113 = vector.broadcast %cst_48 : f32 to vector<8x128xf32>
    %114 = arith.mulf %113, %112 : vector<8x128xf32>
    %cst_49 = arith.constant 5.000000e-01 : f32
    %115 = vector.broadcast %cst_49 : f32 to vector<8x128xf32>
    %116 = arith.addf %114, %115 : vector<8x128xf32>
    %117 = vector.extract_strided_slice %108 {offsets = [0, 128], sizes = [8, 128], strides = [1, 1]} : vector<8x512xf32> to vector<8x128xf32>
    %cst_50 = arith.constant 5.000000e-01 : f32
    %118 = vector.broadcast %cst_50 : f32 to vector<8x128xf32>
    %119 = arith.mulf %118, %117 : vector<8x128xf32>
    %120 = math.tanh %119 : vector<8x128xf32>
    %cst_51 = arith.constant 5.000000e-01 : f32
    %121 = vector.broadcast %cst_51 : f32 to vector<8x128xf32>
    %122 = arith.mulf %121, %120 : vector<8x128xf32>
    %cst_52 = arith.constant 5.000000e-01 : f32
    %123 = vector.broadcast %cst_52 : f32 to vector<8x128xf32>
    %124 = arith.addf %122, %123 : vector<8x128xf32>
    %125 = vector.extract_strided_slice %108 {offsets = [0, 256], sizes = [8, 128], strides = [1, 1]} : vector<8x512xf32> to vector<8x128xf32>
    %126 = math.tanh %125 : vector<8x128xf32>
    %127 = vector.extract_strided_slice %108 {offsets = [0, 384], sizes = [8, 128], strides = [1, 1]} : vector<8x512xf32> to vector<8x128xf32>
    %cst_53 = arith.constant 5.000000e-01 : f32
    %128 = vector.broadcast %cst_53 : f32 to vector<8x128xf32>
    %129 = arith.mulf %128, %127 : vector<8x128xf32>
    %130 = math.tanh %129 : vector<8x128xf32>
    %cst_54 = arith.constant 5.000000e-01 : f32
    %131 = vector.broadcast %cst_54 : f32 to vector<8x128xf32>
    %132 = arith.mulf %131, %130 : vector<8x128xf32>
    %cst_55 = arith.constant 5.000000e-01 : f32
    %133 = vector.broadcast %cst_55 : f32 to vector<8x128xf32>
    %134 = arith.addf %132, %133 : vector<8x128xf32>
    %135 = arith.mulf %124, %91 : vector<8x128xf32>
    %136 = arith.mulf %116, %126 : vector<8x128xf32>
    %137 = arith.addf %135, %136 : vector<8x128xf32>
    %138 = math.tanh %137 : vector<8x128xf32>
    %139 = arith.mulf %134, %138 : vector<8x128xf32>
    %140 = arith.index_cast %105 : i32 to index
    %c0_56 = arith.constant 0 : index
    %141 = vector.load %arg19[%140, %c0_56] : memref<80x128xf32, #tpu.memory_space<vmem>>, vector<8x128xf32>
    tpu.vector_store %arg19[%140, %c0_56], %139 {strides = array<i32>} : memref<80x128xf32, #tpu.memory_space<vmem>>, vector<8x128xf32>,
    %c9_i32_57 = arith.constant 9 : i32
    %142 = arith.subi %c9_i32_57, %c2_i32 : i32
    %c8_i32_58 = arith.constant 8 : i32
    %143 = arith.muli %142, %c8_i32_58 : i32
    %144 = tpu.assume_multiple %143, 8 : i32
    %145 = arith.index_cast %144 : i32 to index
    %c0_59 = arith.constant 0 : index
    %146 = vector.load %arg20[%145, %c0_59] : memref<80x128xf32, #tpu.memory_space<vmem>>, vector<8x128xf32>
    tpu.vector_store %arg20[%145, %c0_59], %139 {strides = array<i32>} : memref<80x128xf32, #tpu.memory_space<vmem>>, vector<8x128xf32>,
    %c3_i32 = arith.constant 3 : i32
    %147 = arith.truncf %139 : vector<8x128xf32> to vector<8x128xbf16>
    %c0_60 = arith.constant 0 : index
    %c0_61 = arith.constant 0 : index
    %148 = vector.load %arg3[%c0_60, %c0_61] : memref<128x512xbf16, #tpu.memory_space<vmem>>, vector<128x512xbf16>
    %cst_62 = arith.constant dense<0.000000e+00> : vector<8x512xf32>
    %149 = tpu.matmul %147, %148, %cst_62 {dimension_numbers = #tpu.dot_dimension_numbers<[1], [0], [0], [1], [0, 0, 1, 1], [], []>} : vector<8x128xbf16>, vector<128x512xbf16>, vector<8x512xf32> -> vector<8x512xf32>
    %c8_i32_63 = arith.constant 8 : i32
    %150 = arith.muli %c3_i32, %c8_i32_63 : i32
    %151 = tpu.assume_multiple %150, 8 : i32
    %152 = arith.index_cast %151 : i32 to index
    %c0_64 = arith.constant 0 : index
    %153 = vector.load %arg18[%152, %c0_64] : memref<80x512xf32, #tpu.memory_space<vmem>>, vector<8x512xf32>
    %154 = arith.addf %149, %153 : vector<8x512xf32>
    %155 = vector.extract_strided_slice %154 {offsets = [0, 0], sizes = [8, 128], strides = [1, 1]} : vector<8x512xf32> to vector<8x128xf32>
    %cst_65 = arith.constant 5.000000e-01 : f32
    %156 = vector.broadcast %cst_65 : f32 to vector<8x128xf32>
    %157 = arith.mulf %156, %155 : vector<8x128xf32>
    %158 = math.tanh %157 : vector<8x128xf32>
    %cst_66 = arith.constant 5.000000e-01 : f32
    %159 = vector.broadcast %cst_66 : f32 to vector<8x128xf32>
    %160 = arith.mulf %159, %158 : vector<8x128xf32>
    %cst_67 = arith.constant 5.000000e-01 : f32
    %161 = vector.broadcast %cst_67 : f32 to vector<8x128xf32>
    %162 = arith.addf %160, %161 : vector<8x128xf32>
    %163 = vector.extract_strided_slice %154 {offsets = [0, 128], sizes = [8, 128], strides = [1, 1]} : vector<8x512xf32> to vector<8x128xf32>
    %cst_68 = arith.constant 5.000000e-01 : f32
    %164 = vector.broadcast %cst_68 : f32 to vector<8x128xf32>
    %165 = arith.mulf %164, %163 : vector<8x128xf32>
    %166 = math.tanh %165 : vector<8x128xf32>
    %cst_69 = arith.constant 5.000000e-01 : f32
    %167 = vector.broadcast %cst_69 : f32 to vector<8x128xf32>
    %168 = arith.mulf %167, %166 : vector<8x128xf32>
    %cst_70 = arith.constant 5.000000e-01 : f32
    %169 = vector.broadcast %cst_70 : f32 to vector<8x128xf32>
    %170 = arith.addf %168, %169 : vector<8x128xf32>
    %171 = vector.extract_strided_slice %154 {offsets = [0, 256], sizes = [8, 128], strides = [1, 1]} : vector<8x512xf32> to vector<8x128xf32>
    %172 = math.tanh %171 : vector<8x128xf32>
    %173 = vector.extract_strided_slice %154 {offsets = [0, 384], sizes = [8, 128], strides = [1, 1]} : vector<8x512xf32> to vector<8x128xf32>
    %cst_71 = arith.constant 5.000000e-01 : f32
    %174 = vector.broadcast %cst_71 : f32 to vector<8x128xf32>
    %175 = arith.mulf %174, %173 : vector<8x128xf32>
    %176 = math.tanh %175 : vector<8x128xf32>
    %cst_72 = arith.constant 5.000000e-01 : f32
    %177 = vector.broadcast %cst_72 : f32 to vector<8x128xf32>
    %178 = arith.mulf %177, %176 : vector<8x128xf32>
    %cst_73 = arith.constant 5.000000e-01 : f32
    %179 = vector.broadcast %cst_73 : f32 to vector<8x128xf32>
    %180 = arith.addf %178, %179 : vector<8x128xf32>
    %181 = arith.mulf %170, %137 : vector<8x128xf32>
    %182 = arith.mulf %162, %172 : vector<8x128xf32>
    %183 = arith.addf %181, %182 : vector<8x128xf32>
    %184 = math.tanh %183 : vector<8x128xf32>
    %185 = arith.mulf %180, %184 : vector<8x128xf32>
    %186 = arith.index_cast %151 : i32 to index
    %c0_74 = arith.constant 0 : index
    %187 = vector.load %arg19[%186, %c0_74] : memref<80x128xf32, #tpu.memory_space<vmem>>, vector<8x128xf32>
    tpu.vector_store %arg19[%186, %c0_74], %185 {strides = array<i32>} : memref<80x128xf32, #tpu.memory_space<vmem>>, vector<8x128xf32>,
    %c9_i32_75 = arith.constant 9 : i32
    %188 = arith.subi %c9_i32_75, %c3_i32 : i32
    %c8_i32_76 = arith.constant 8 : i32
    %189 = arith.muli %188, %c8_i32_76 : i32
    %190 = tpu.assume_multiple %189, 8 : i32
    %191 = arith.index_cast %190 : i32 to index
    %c0_77 = arith.constant 0 : index
    %192 = vector.load %arg20[%191, %c0_77] : memref<80x128xf32, #tpu.memory_space<vmem>>, vector<8x128xf32>
    tpu.vector_store %arg20[%191, %c0_77], %185 {strides = array<i32>} : memref<80x128xf32, #tpu.memory_space<vmem>>, vector<8x128xf32>,
    %c4_i32 = arith.constant 4 : i32
    %193 = arith.truncf %185 : vector<8x128xf32> to vector<8x128xbf16>
    %c0_78 = arith.constant 0 : index
    %c0_79 = arith.constant 0 : index
    %194 = vector.load %arg3[%c0_78, %c0_79] : memref<128x512xbf16, #tpu.memory_space<vmem>>, vector<128x512xbf16>
    %cst_80 = arith.constant dense<0.000000e+00> : vector<8x512xf32>
    %195 = tpu.matmul %193, %194, %cst_80 {dimension_numbers = #tpu.dot_dimension_numbers<[1], [0], [0], [1], [0, 0, 1, 1], [], []>} : vector<8x128xbf16>, vector<128x512xbf16>, vector<8x512xf32> -> vector<8x512xf32>
    %c8_i32_81 = arith.constant 8 : i32
    %196 = arith.muli %c4_i32, %c8_i32_81 : i32
    %197 = tpu.assume_multiple %196, 8 : i32
    %198 = arith.index_cast %197 : i32 to index
    %c0_82 = arith.constant 0 : index
    %199 = vector.load %arg18[%198, %c0_82] : memref<80x512xf32, #tpu.memory_space<vmem>>, vector<8x512xf32>
    %200 = arith.addf %195, %199 : vector<8x512xf32>
    %201 = vector.extract_strided_slice %200 {offsets = [0, 0], sizes = [8, 128], strides = [1, 1]} : vector<8x512xf32> to vector<8x128xf32>
    %cst_83 = arith.constant 5.000000e-01 : f32
    %202 = vector.broadcast %cst_83 : f32 to vector<8x128xf32>
    %203 = arith.mulf %202, %201 : vector<8x128xf32>
    %204 = math.tanh %203 : vector<8x128xf32>
    %cst_84 = arith.constant 5.000000e-01 : f32
    %205 = vector.broadcast %cst_84 : f32 to vector<8x128xf32>
    %206 = arith.mulf %205, %204 : vector<8x128xf32>
    %cst_85 = arith.constant 5.000000e-01 : f32
    %207 = vector.broadcast %cst_85 : f32 to vector<8x128xf32>
    %208 = arith.addf %206, %207 : vector<8x128xf32>
    %209 = vector.extract_strided_slice %200 {offsets = [0, 128], sizes = [8, 128], strides = [1, 1]} : vector<8x512xf32> to vector<8x128xf32>
    %cst_86 = arith.constant 5.000000e-01 : f32
    %210 = vector.broadcast %cst_86 : f32 to vector<8x128xf32>
    %211 = arith.mulf %210, %209 : vector<8x128xf32>
    %212 = math.tanh %211 : vector<8x128xf32>
    %cst_87 = arith.constant 5.000000e-01 : f32
    %213 = vector.broadcast %cst_87 : f32 to vector<8x128xf32>
    %214 = arith.mulf %213, %212 : vector<8x128xf32>
    %cst_88 = arith.constant 5.000000e-01 : f32
    %215 = vector.broadcast %cst_88 : f32 to vector<8x128xf32>
    %216 = arith.addf %214, %215 : vector<8x128xf32>
    %217 = vector.extract_strided_slice %200 {offsets = [0, 256], sizes = [8, 128], strides = [1, 1]} : vector<8x512xf32> to vector<8x128xf32>
    %218 = math.tanh %217 : vector<8x128xf32>
    %219 = vector.extract_strided_slice %200 {offsets = [0, 384], sizes = [8, 128], strides = [1, 1]} : vector<8x512xf32> to vector<8x128xf32>
    %cst_89 = arith.constant 5.000000e-01 : f32
    %220 = vector.broadcast %cst_89 : f32 to vector<8x128xf32>
    %221 = arith.mulf %220, %219 : vector<8x128xf32>
    %222 = math.tanh %221 : vector<8x128xf32>
    %cst_90 = arith.constant 5.000000e-01 : f32
    %223 = vector.broadcast %cst_90 : f32 to vector<8x128xf32>
    %224 = arith.mulf %223, %222 : vector<8x128xf32>
    %cst_91 = arith.constant 5.000000e-01 : f32
    %225 = vector.broadcast %cst_91 : f32 to vector<8x128xf32>
    %226 = arith.addf %224, %225 : vector<8x128xf32>
    %227 = arith.mulf %216, %183 : vector<8x128xf32>
    %228 = arith.mulf %208, %218 : vector<8x128xf32>
    %229 = arith.addf %227, %228 : vector<8x128xf32>
    %230 = math.tanh %229 : vector<8x128xf32>
    %231 = arith.mulf %226, %230 : vector<8x128xf32>
    %232 = arith.index_cast %197 : i32 to index
    %c0_92 = arith.constant 0 : index
    %233 = vector.load %arg19[%232, %c0_92] : memref<80x128xf32, #tpu.memory_space<vmem>>, vector<8x128xf32>
    tpu.vector_store %arg19[%232, %c0_92], %231 {strides = array<i32>} : memref<80x128xf32, #tpu.memory_space<vmem>>, vector<8x128xf32>,
    %c9_i32_93 = arith.constant 9 : i32
    %234 = arith.subi %c9_i32_93, %c4_i32 : i32
    %c8_i32_94 = arith.constant 8 : i32
    %235 = arith.muli %234, %c8_i32_94 : i32
    %236 = tpu.assume_multiple %235, 8 : i32
    %237 = arith.index_cast %236 : i32 to index
    %c0_95 = arith.constant 0 : index
    %238 = vector.load %arg20[%237, %c0_95] : memref<80x128xf32, #tpu.memory_space<vmem>>, vector<8x128xf32>
    tpu.vector_store %arg20[%237, %c0_95], %231 {strides = array<i32>} : memref<80x128xf32, #tpu.memory_space<vmem>>, vector<8x128xf32>,
    %c5_i32 = arith.constant 5 : i32
    %239 = arith.truncf %231 : vector<8x128xf32> to vector<8x128xbf16>
    %c0_96 = arith.constant 0 : index
    %c0_97 = arith.constant 0 : index
    %240 = vector.load %arg3[%c0_96, %c0_97] : memref<128x512xbf16, #tpu.memory_space<vmem>>, vector<128x512xbf16>
    %cst_98 = arith.constant dense<0.000000e+00> : vector<8x512xf32>
    %241 = tpu.matmul %239, %240, %cst_98 {dimension_numbers = #tpu.dot_dimension_numbers<[1], [0], [0], [1], [0, 0, 1, 1], [], []>} : vector<8x128xbf16>, vector<128x512xbf16>, vector<8x512xf32> -> vector<8x512xf32>
    %c8_i32_99 = arith.constant 8 : i32
    %242 = arith.muli %c5_i32, %c8_i32_99 : i32
    %243 = tpu.assume_multiple %242, 8 : i32
    %244 = arith.index_cast %243 : i32 to index
    %c0_100 = arith.constant 0 : index
    %245 = vector.load %arg18[%244, %c0_100] : memref<80x512xf32, #tpu.memory_space<vmem>>, vector<8x512xf32>
    %246 = arith.addf %241, %245 : vector<8x512xf32>
    %247 = vector.extract_strided_slice %246 {offsets = [0, 0], sizes = [8, 128], strides = [1, 1]} : vector<8x512xf32> to vector<8x128xf32>
    %cst_101 = arith.constant 5.000000e-01 : f32
    %248 = vector.broadcast %cst_101 : f32 to vector<8x128xf32>
    %249 = arith.mulf %248, %247 : vector<8x128xf32>
    %250 = math.tanh %249 : vector<8x128xf32>
    %cst_102 = arith.constant 5.000000e-01 : f32
    %251 = vector.broadcast %cst_102 : f32 to vector<8x128xf32>
    %252 = arith.mulf %251, %250 : vector<8x128xf32>
    %cst_103 = arith.constant 5.000000e-01 : f32
    %253 = vector.broadcast %cst_103 : f32 to vector<8x128xf32>
    %254 = arith.addf %252, %253 : vector<8x128xf32>
    %255 = vector.extract_strided_slice %246 {offsets = [0, 128], sizes = [8, 128], strides = [1, 1]} : vector<8x512xf32> to vector<8x128xf32>
    %cst_104 = arith.constant 5.000000e-01 : f32
    %256 = vector.broadcast %cst_104 : f32 to vector<8x128xf32>
    %257 = arith.mulf %256, %255 : vector<8x128xf32>
    %258 = math.tanh %257 : vector<8x128xf32>
    %cst_105 = arith.constant 5.000000e-01 : f32
    %259 = vector.broadcast %cst_105 : f32 to vector<8x128xf32>
    %260 = arith.mulf %259, %258 : vector<8x128xf32>
    %cst_106 = arith.constant 5.000000e-01 : f32
    %261 = vector.broadcast %cst_106 : f32 to vector<8x128xf32>
    %262 = arith.addf %260, %261 : vector<8x128xf32>
    %263 = vector.extract_strided_slice %246 {offsets = [0, 256], sizes = [8, 128], strides = [1, 1]} : vector<8x512xf32> to vector<8x128xf32>
    %264 = math.tanh %263 : vector<8x128xf32>
    %265 = vector.extract_strided_slice %246 {offsets = [0, 384], sizes = [8, 128], strides = [1, 1]} : vector<8x512xf32> to vector<8x128xf32>
    %cst_107 = arith.constant 5.000000e-01 : f32
    %266 = vector.broadcast %cst_107 : f32 to vector<8x128xf32>
    %267 = arith.mulf %266, %265 : vector<8x128xf32>
    %268 = math.tanh %267 : vector<8x128xf32>
    %cst_108 = arith.constant 5.000000e-01 : f32
    %269 = vector.broadcast %cst_108 : f32 to vector<8x128xf32>
    %270 = arith.mulf %269, %268 : vector<8x128xf32>
    %cst_109 = arith.constant 5.000000e-01 : f32
    %271 = vector.broadcast %cst_109 : f32 to vector<8x128xf32>
    %272 = arith.addf %270, %271 : vector<8x128xf32>
    %273 = arith.mulf %262, %229 : vector<8x128xf32>
    %274 = arith.mulf %254, %264 : vector<8x128xf32>
    %275 = arith.addf %273, %274 : vector<8x128xf32>
    %276 = math.tanh %275 : vector<8x128xf32>
    %277 = arith.mulf %272, %276 : vector<8x128xf32>
    %278 = arith.index_cast %243 : i32 to index
    %c0_110 = arith.constant 0 : index
    %279 = vector.load %arg19[%278, %c0_110] : memref<80x128xf32, #tpu.memory_space<vmem>>, vector<8x128xf32>
    tpu.vector_store %arg19[%278, %c0_110], %277 {strides = array<i32>} : memref<80x128xf32, #tpu.memory_space<vmem>>, vector<8x128xf32>,
    %c9_i32_111 = arith.constant 9 : i32
    %280 = arith.subi %c9_i32_111, %c5_i32 : i32
    %c8_i32_112 = arith.constant 8 : i32
    %281 = arith.muli %280, %c8_i32_112 : i32
    %282 = tpu.assume_multiple %281, 8 : i32
    %283 = arith.index_cast %282 : i32 to index
    %c0_113 = arith.constant 0 : index
    %284 = vector.load %arg20[%283, %c0_113] : memref<80x128xf32, #tpu.memory_space<vmem>>, vector<8x128xf32>
    tpu.vector_store %arg20[%283, %c0_113], %277 {strides = array<i32>} : memref<80x128xf32, #tpu.memory_space<vmem>>, vector<8x128xf32>,
    %c6_i32 = arith.constant 6 : i32
    %285 = arith.truncf %277 : vector<8x128xf32> to vector<8x128xbf16>
    %c0_114 = arith.constant 0 : index
    %c0_115 = arith.constant 0 : index
    %286 = vector.load %arg3[%c0_114, %c0_115] : memref<128x512xbf16, #tpu.memory_space<vmem>>, vector<128x512xbf16>
    %cst_116 = arith.constant dense<0.000000e+00> : vector<8x512xf32>
    %287 = tpu.matmul %285, %286, %cst_116 {dimension_numbers = #tpu.dot_dimension_numbers<[1], [0], [0], [1], [0, 0, 1, 1], [], []>} : vector<8x128xbf16>, vector<128x512xbf16>, vector<8x512xf32> -> vector<8x512xf32>
    %c8_i32_117 = arith.constant 8 : i32
    %288 = arith.muli %c6_i32, %c8_i32_117 : i32
    %289 = tpu.assume_multiple %288, 8 : i32
    %290 = arith.index_cast %289 : i32 to index
    %c0_118 = arith.constant 0 : index
    %291 = vector.load %arg18[%290, %c0_118] : memref<80x512xf32, #tpu.memory_space<vmem>>, vector<8x512xf32>
    %292 = arith.addf %287, %291 : vector<8x512xf32>
    %293 = vector.extract_strided_slice %292 {offsets = [0, 0], sizes = [8, 128], strides = [1, 1]} : vector<8x512xf32> to vector<8x128xf32>
    %cst_119 = arith.constant 5.000000e-01 : f32
    %294 = vector.broadcast %cst_119 : f32 to vector<8x128xf32>
    %295 = arith.mulf %294, %293 : vector<8x128xf32>
    %296 = math.tanh %295 : vector<8x128xf32>
    %cst_120 = arith.constant 5.000000e-01 : f32
    %297 = vector.broadcast %cst_120 : f32 to vector<8x128xf32>
    %298 = arith.mulf %297, %296 : vector<8x128xf32>
    %cst_121 = arith.constant 5.000000e-01 : f32
    %299 = vector.broadcast %cst_121 : f32 to vector<8x128xf32>
    %300 = arith.addf %298, %299 : vector<8x128xf32>
    %301 = vector.extract_strided_slice %292 {offsets = [0, 128], sizes = [8, 128], strides = [1, 1]} : vector<8x512xf32> to vector<8x128xf32>
    %cst_122 = arith.constant 5.000000e-01 : f32
    %302 = vector.broadcast %cst_122 : f32 to vector<8x128xf32>
    %303 = arith.mulf %302, %301 : vector<8x128xf32>
    %304 = math.tanh %303 : vector<8x128xf32>
    %cst_123 = arith.constant 5.000000e-01 : f32
    %305 = vector.broadcast %cst_123 : f32 to vector<8x128xf32>
    %306 = arith.mulf %305, %304 : vector<8x128xf32>
    %cst_124 = arith.constant 5.000000e-01 : f32
    %307 = vector.broadcast %cst_124 : f32 to vector<8x128xf32>
    %308 = arith.addf %306, %307 : vector<8x128xf32>
    %309 = vector.extract_strided_slice %292 {offsets = [0, 256], sizes = [8, 128], strides = [1, 1]} : vector<8x512xf32> to vector<8x128xf32>
    %310 = math.tanh %309 : vector<8x128xf32>
    %311 = vector.extract_strided_slice %292 {offsets = [0, 384], sizes = [8, 128], strides = [1, 1]} : vector<8x512xf32> to vector<8x128xf32>
    %cst_125 = arith.constant 5.000000e-01 : f32
    %312 = vector.broadcast %cst_125 : f32 to vector<8x128xf32>
    %313 = arith.mulf %312, %311 : vector<8x128xf32>
    %314 = math.tanh %313 : vector<8x128xf32>
    %cst_126 = arith.constant 5.000000e-01 : f32
    %315 = vector.broadcast %cst_126 : f32 to vector<8x128xf32>
    %316 = arith.mulf %315, %314 : vector<8x128xf32>
    %cst_127 = arith.constant 5.000000e-01 : f32
    %317 = vector.broadcast %cst_127 : f32 to vector<8x128xf32>
    %318 = arith.addf %316, %317 : vector<8x128xf32>
    %319 = arith.mulf %308, %275 : vector<8x128xf32>
    %320 = arith.mulf %300, %310 : vector<8x128xf32>
    %321 = arith.addf %319, %320 : vector<8x128xf32>
    %322 = math.tanh %321 : vector<8x128xf32>
    %323 = arith.mulf %318, %322 : vector<8x128xf32>
    %324 = arith.index_cast %289 : i32 to index
    %c0_128 = arith.constant 0 : index
    %325 = vector.load %arg19[%324, %c0_128] : memref<80x128xf32, #tpu.memory_space<vmem>>, vector<8x128xf32>
    tpu.vector_store %arg19[%324, %c0_128], %323 {strides = array<i32>} : memref<80x128xf32, #tpu.memory_space<vmem>>, vector<8x128xf32>,
    %c9_i32_129 = arith.constant 9 : i32
    %326 = arith.subi %c9_i32_129, %c6_i32 : i32
    %c8_i32_130 = arith.constant 8 : i32
    %327 = arith.muli %326, %c8_i32_130 : i32
    %328 = tpu.assume_multiple %327, 8 : i32
    %329 = arith.index_cast %328 : i32 to index
    %c0_131 = arith.constant 0 : index
    %330 = vector.load %arg20[%329, %c0_131] : memref<80x128xf32, #tpu.memory_space<vmem>>, vector<8x128xf32>
    tpu.vector_store %arg20[%329, %c0_131], %323 {strides = array<i32>} : memref<80x128xf32, #tpu.memory_space<vmem>>, vector<8x128xf32>,
    %c7_i32 = arith.constant 7 : i32
    %331 = arith.truncf %323 : vector<8x128xf32> to vector<8x128xbf16>
    %c0_132 = arith.constant 0 : index
    %c0_133 = arith.constant 0 : index
    %332 = vector.load %arg3[%c0_132, %c0_133] : memref<128x512xbf16, #tpu.memory_space<vmem>>, vector<128x512xbf16>
    %cst_134 = arith.constant dense<0.000000e+00> : vector<8x512xf32>
    %333 = tpu.matmul %331, %332, %cst_134 {dimension_numbers = #tpu.dot_dimension_numbers<[1], [0], [0], [1], [0, 0, 1, 1], [], []>} : vector<8x128xbf16>, vector<128x512xbf16>, vector<8x512xf32> -> vector<8x512xf32>
    %c8_i32_135 = arith.constant 8 : i32
    %334 = arith.muli %c7_i32, %c8_i32_135 : i32
    %335 = tpu.assume_multiple %334, 8 : i32
    %336 = arith.index_cast %335 : i32 to index
    %c0_136 = arith.constant 0 : index
    %337 = vector.load %arg18[%336, %c0_136] : memref<80x512xf32, #tpu.memory_space<vmem>>, vector<8x512xf32>
    %338 = arith.addf %333, %337 : vector<8x512xf32>
    %339 = vector.extract_strided_slice %338 {offsets = [0, 0], sizes = [8, 128], strides = [1, 1]} : vector<8x512xf32> to vector<8x128xf32>
    %cst_137 = arith.constant 5.000000e-01 : f32
    %340 = vector.broadcast %cst_137 : f32 to vector<8x128xf32>
    %341 = arith.mulf %340, %339 : vector<8x128xf32>
    %342 = math.tanh %341 : vector<8x128xf32>
    %cst_138 = arith.constant 5.000000e-01 : f32
    %343 = vector.broadcast %cst_138 : f32 to vector<8x128xf32>
    %344 = arith.mulf %343, %342 : vector<8x128xf32>
    %cst_139 = arith.constant 5.000000e-01 : f32
    %345 = vector.broadcast %cst_139 : f32 to vector<8x128xf32>
    %346 = arith.addf %344, %345 : vector<8x128xf32>
    %347 = vector.extract_strided_slice %338 {offsets = [0, 128], sizes = [8, 128], strides = [1, 1]} : vector<8x512xf32> to vector<8x128xf32>
    %cst_140 = arith.constant 5.000000e-01 : f32
    %348 = vector.broadcast %cst_140 : f32 to vector<8x128xf32>
    %349 = arith.mulf %348, %347 : vector<8x128xf32>
    %350 = math.tanh %349 : vector<8x128xf32>
    %cst_141 = arith.constant 5.000000e-01 : f32
    %351 = vector.broadcast %cst_141 : f32 to vector<8x128xf32>
    %352 = arith.mulf %351, %350 : vector<8x128xf32>
    %cst_142 = arith.constant 5.000000e-01 : f32
    %353 = vector.broadcast %cst_142 : f32 to vector<8x128xf32>
    %354 = arith.addf %352, %353 : vector<8x128xf32>
    %355 = vector.extract_strided_slice %338 {offsets = [0, 256], sizes = [8, 128], strides = [1, 1]} : vector<8x512xf32> to vector<8x128xf32>
    %356 = math.tanh %355 : vector<8x128xf32>
    %357 = vector.extract_strided_slice %338 {offsets = [0, 384], sizes = [8, 128], strides = [1, 1]} : vector<8x512xf32> to vector<8x128xf32>
    %cst_143 = arith.constant 5.000000e-01 : f32
    %358 = vector.broadcast %cst_143 : f32 to vector<8x128xf32>
    %359 = arith.mulf %358, %357 : vector<8x128xf32>
    %360 = math.tanh %359 : vector<8x128xf32>
    %cst_144 = arith.constant 5.000000e-01 : f32
    %361 = vector.broadcast %cst_144 : f32 to vector<8x128xf32>
    %362 = arith.mulf %361, %360 : vector<8x128xf32>
    %cst_145 = arith.constant 5.000000e-01 : f32
    %363 = vector.broadcast %cst_145 : f32 to vector<8x128xf32>
    %364 = arith.addf %362, %363 : vector<8x128xf32>
    %365 = arith.mulf %354, %321 : vector<8x128xf32>
    %366 = arith.mulf %346, %356 : vector<8x128xf32>
    %367 = arith.addf %365, %366 : vector<8x128xf32>
    %368 = math.tanh %367 : vector<8x128xf32>
    %369 = arith.mulf %364, %368 : vector<8x128xf32>
    %370 = arith.index_cast %335 : i32 to index
    %c0_146 = arith.constant 0 : index
    %371 = vector.load %arg19[%370, %c0_146] : memref<80x128xf32, #tpu.memory_space<vmem>>, vector<8x128xf32>
    tpu.vector_store %arg19[%370, %c0_146], %369 {strides = array<i32>} : memref<80x128xf32, #tpu.memory_space<vmem>>, vector<8x128xf32>,
    %c9_i32_147 = arith.constant 9 : i32
    %372 = arith.subi %c9_i32_147, %c7_i32 : i32
    %c8_i32_148 = arith.constant 8 : i32
    %373 = arith.muli %372, %c8_i32_148 : i32
    %374 = tpu.assume_multiple %373, 8 : i32
    %375 = arith.index_cast %374 : i32 to index
    %c0_149 = arith.constant 0 : index
    %376 = vector.load %arg20[%375, %c0_149] : memref<80x128xf32, #tpu.memory_space<vmem>>, vector<8x128xf32>
    tpu.vector_store %arg20[%375, %c0_149], %369 {strides = array<i32>} : memref<80x128xf32, #tpu.memory_space<vmem>>, vector<8x128xf32>,
    %c8_i32_150 = arith.constant 8 : i32
    %377 = arith.truncf %369 : vector<8x128xf32> to vector<8x128xbf16>
    %c0_151 = arith.constant 0 : index
    %c0_152 = arith.constant 0 : index
    %378 = vector.load %arg3[%c0_151, %c0_152] : memref<128x512xbf16, #tpu.memory_space<vmem>>, vector<128x512xbf16>
    %cst_153 = arith.constant dense<0.000000e+00> : vector<8x512xf32>
    %379 = tpu.matmul %377, %378, %cst_153 {dimension_numbers = #tpu.dot_dimension_numbers<[1], [0], [0], [1], [0, 0, 1, 1], [], []>} : vector<8x128xbf16>, vector<128x512xbf16>, vector<8x512xf32> -> vector<8x512xf32>
    %c8_i32_154 = arith.constant 8 : i32
    %380 = arith.muli %c8_i32_150, %c8_i32_154 : i32
    %381 = tpu.assume_multiple %380, 8 : i32
    %382 = arith.index_cast %381 : i32 to index
    %c0_155 = arith.constant 0 : index
    %383 = vector.load %arg18[%382, %c0_155] : memref<80x512xf32, #tpu.memory_space<vmem>>, vector<8x512xf32>
    %384 = arith.addf %379, %383 : vector<8x512xf32>
    %385 = vector.extract_strided_slice %384 {offsets = [0, 0], sizes = [8, 128], strides = [1, 1]} : vector<8x512xf32> to vector<8x128xf32>
    %cst_156 = arith.constant 5.000000e-01 : f32
    %386 = vector.broadcast %cst_156 : f32 to vector<8x128xf32>
    %387 = arith.mulf %386, %385 : vector<8x128xf32>
    %388 = math.tanh %387 : vector<8x128xf32>
    %cst_157 = arith.constant 5.000000e-01 : f32
    %389 = vector.broadcast %cst_157 : f32 to vector<8x128xf32>
    %390 = arith.mulf %389, %388 : vector<8x128xf32>
    %cst_158 = arith.constant 5.000000e-01 : f32
    %391 = vector.broadcast %cst_158 : f32 to vector<8x128xf32>
    %392 = arith.addf %390, %391 : vector<8x128xf32>
    %393 = vector.extract_strided_slice %384 {offsets = [0, 128], sizes = [8, 128], strides = [1, 1]} : vector<8x512xf32> to vector<8x128xf32>
    %cst_159 = arith.constant 5.000000e-01 : f32
    %394 = vector.broadcast %cst_159 : f32 to vector<8x128xf32>
    %395 = arith.mulf %394, %393 : vector<8x128xf32>
    %396 = math.tanh %395 : vector<8x128xf32>
    %cst_160 = arith.constant 5.000000e-01 : f32
    %397 = vector.broadcast %cst_160 : f32 to vector<8x128xf32>
    %398 = arith.mulf %397, %396 : vector<8x128xf32>
    %cst_161 = arith.constant 5.000000e-01 : f32
    %399 = vector.broadcast %cst_161 : f32 to vector<8x128xf32>
    %400 = arith.addf %398, %399 : vector<8x128xf32>
    %401 = vector.extract_strided_slice %384 {offsets = [0, 256], sizes = [8, 128], strides = [1, 1]} : vector<8x512xf32> to vector<8x128xf32>
    %402 = math.tanh %401 : vector<8x128xf32>
    %403 = vector.extract_strided_slice %384 {offsets = [0, 384], sizes = [8, 128], strides = [1, 1]} : vector<8x512xf32> to vector<8x128xf32>
    %cst_162 = arith.constant 5.000000e-01 : f32
    %404 = vector.broadcast %cst_162 : f32 to vector<8x128xf32>
    %405 = arith.mulf %404, %403 : vector<8x128xf32>
    %406 = math.tanh %405 : vector<8x128xf32>
    %cst_163 = arith.constant 5.000000e-01 : f32
    %407 = vector.broadcast %cst_163 : f32 to vector<8x128xf32>
    %408 = arith.mulf %407, %406 : vector<8x128xf32>
    %cst_164 = arith.constant 5.000000e-01 : f32
    %409 = vector.broadcast %cst_164 : f32 to vector<8x128xf32>
    %410 = arith.addf %408, %409 : vector<8x128xf32>
    %411 = arith.mulf %400, %367 : vector<8x128xf32>
    %412 = arith.mulf %392, %402 : vector<8x128xf32>
    %413 = arith.addf %411, %412 : vector<8x128xf32>
    %414 = math.tanh %413 : vector<8x128xf32>
    %415 = arith.mulf %410, %414 : vector<8x128xf32>
    %416 = arith.index_cast %381 : i32 to index
    %c0_165 = arith.constant 0 : index
    %417 = vector.load %arg19[%416, %c0_165] : memref<80x128xf32, #tpu.memory_space<vmem>>, vector<8x128xf32>
    tpu.vector_store %arg19[%416, %c0_165], %415 {strides = array<i32>} : memref<80x128xf32, #tpu.memory_space<vmem>>, vector<8x128xf32>,
    %c9_i32_166 = arith.constant 9 : i32
    %418 = arith.subi %c9_i32_166, %c8_i32_150 : i32
    %c8_i32_167 = arith.constant 8 : i32
    %419 = arith.muli %418, %c8_i32_167 : i32
    %420 = tpu.assume_multiple %419, 8 : i32
    %421 = arith.index_cast %420 : i32 to index
    %c0_168 = arith.constant 0 : index
    %422 = vector.load %arg20[%421, %c0_168] : memref<80x128xf32, #tpu.memory_space<vmem>>, vector<8x128xf32>
    tpu.vector_store %arg20[%421, %c0_168], %415 {strides = array<i32>} : memref<80x128xf32, #tpu.memory_space<vmem>>, vector<8x128xf32>,
    %c9_i32_169 = arith.constant 9 : i32
    %423 = arith.truncf %415 : vector<8x128xf32> to vector<8x128xbf16>
    %c0_170 = arith.constant 0 : index
    %c0_171 = arith.constant 0 : index
    %424 = vector.load %arg3[%c0_170, %c0_171] : memref<128x512xbf16, #tpu.memory_space<vmem>>, vector<128x512xbf16>
    %cst_172 = arith.constant dense<0.000000e+00> : vector<8x512xf32>
    %425 = tpu.matmul %423, %424, %cst_172 {dimension_numbers = #tpu.dot_dimension_numbers<[1], [0], [0], [1], [0, 0, 1, 1], [], []>} : vector<8x128xbf16>, vector<128x512xbf16>, vector<8x512xf32> -> vector<8x512xf32>
    %c8_i32_173 = arith.constant 8 : i32
    %426 = arith.muli %c9_i32_169, %c8_i32_173 : i32
    %427 = tpu.assume_multiple %426, 8 : i32
    %428 = arith.index_cast %427 : i32 to index
    %c0_174 = arith.constant 0 : index
    %429 = vector.load %arg18[%428, %c0_174] : memref<80x512xf32, #tpu.memory_space<vmem>>, vector<8x512xf32>
    %430 = arith.addf %425, %429 : vector<8x512xf32>
    %431 = vector.extract_strided_slice %430 {offsets = [0, 0], sizes = [8, 128], strides = [1, 1]} : vector<8x512xf32> to vector<8x128xf32>
    %cst_175 = arith.constant 5.000000e-01 : f32
    %432 = vector.broadcast %cst_175 : f32 to vector<8x128xf32>
    %433 = arith.mulf %432, %431 : vector<8x128xf32>
    %434 = math.tanh %433 : vector<8x128xf32>
    %cst_176 = arith.constant 5.000000e-01 : f32
    %435 = vector.broadcast %cst_176 : f32 to vector<8x128xf32>
    %436 = arith.mulf %435, %434 : vector<8x128xf32>
    %cst_177 = arith.constant 5.000000e-01 : f32
    %437 = vector.broadcast %cst_177 : f32 to vector<8x128xf32>
    %438 = arith.addf %436, %437 : vector<8x128xf32>
    %439 = vector.extract_strided_slice %430 {offsets = [0, 128], sizes = [8, 128], strides = [1, 1]} : vector<8x512xf32> to vector<8x128xf32>
    %cst_178 = arith.constant 5.000000e-01 : f32
    %440 = vector.broadcast %cst_178 : f32 to vector<8x128xf32>
    %441 = arith.mulf %440, %439 : vector<8x128xf32>
    %442 = math.tanh %441 : vector<8x128xf32>
    %cst_179 = arith.constant 5.000000e-01 : f32
    %443 = vector.broadcast %cst_179 : f32 to vector<8x128xf32>
    %444 = arith.mulf %443, %442 : vector<8x128xf32>
    %cst_180 = arith.constant 5.000000e-01 : f32
    %445 = vector.broadcast %cst_180 : f32 to vector<8x128xf32>
    %446 = arith.addf %444, %445 : vector<8x128xf32>
    %447 = vector.extract_strided_slice %430 {offsets = [0, 256], sizes = [8, 128], strides = [1, 1]} : vector<8x512xf32> to vector<8x128xf32>
    %448 = math.tanh %447 : vector<8x128xf32>
    %449 = vector.extract_strided_slice %430 {offsets = [0, 384], sizes = [8, 128], strides = [1, 1]} : vector<8x512xf32> to vector<8x128xf32>
    %cst_181 = arith.constant 5.000000e-01 : f32
    %450 = vector.broadcast %cst_181 : f32 to vector<8x128xf32>
    %451 = arith.mulf %450, %449 : vector<8x128xf32>
    %452 = math.tanh %451 : vector<8x128xf32>
    %cst_182 = arith.constant 5.000000e-01 : f32
    %453 = vector.broadcast %cst_182 : f32 to vector<8x128xf32>
    %454 = arith.mulf %453, %452 : vector<8x128xf32>
    %cst_183 = arith.constant 5.000000e-01 : f32
    %455 = vector.broadcast %cst_183 : f32 to vector<8x128xf32>
    %456 = arith.addf %454, %455 : vector<8x128xf32>
    %457 = arith.mulf %446, %413 : vector<8x128xf32>
    %458 = arith.mulf %438, %448 : vector<8x128xf32>
    %459 = arith.addf %457, %458 : vector<8x128xf32>
    %460 = math.tanh %459 : vector<8x128xf32>
    %461 = arith.mulf %456, %460 : vector<8x128xf32>
    %462 = arith.index_cast %427 : i32 to index
    %c0_184 = arith.constant 0 : index
    %463 = vector.load %arg19[%462, %c0_184] : memref<80x128xf32, #tpu.memory_space<vmem>>, vector<8x128xf32>
    tpu.vector_store %arg19[%462, %c0_184], %461 {strides = array<i32>} : memref<80x128xf32, #tpu.memory_space<vmem>>, vector<8x128xf32>,
    %c9_i32_185 = arith.constant 9 : i32
    %464 = arith.subi %c9_i32_185, %c9_i32_169 : i32
    %c8_i32_186 = arith.constant 8 : i32
    %465 = arith.muli %464, %c8_i32_186 : i32
    %466 = tpu.assume_multiple %465, 8 : i32
    %467 = arith.index_cast %466 : i32 to index
    %c0_187 = arith.constant 0 : index
    %468 = vector.load %arg20[%467, %c0_187] : memref<80x128xf32, #tpu.memory_space<vmem>>, vector<8x128xf32>
    tpu.vector_store %arg20[%467, %c0_187], %461 {strides = array<i32>} : memref<80x128xf32, #tpu.memory_space<vmem>>, vector<8x128xf32>,
    %c10_i32 = arith.constant 10 : i32
    %c0_188 = arith.constant 0 : index
    %c0_189 = arith.constant 0 : index
    %469 = vector.load %arg19[%c0_188, %c0_189] : memref<80x128xf32, #tpu.memory_space<vmem>>, vector<80x128xf32>
    %470 = arith.truncf %469 : vector<80x128xf32> to vector<80x128xbf16>
    %c0_190 = arith.constant 0 : index
    %c0_191 = arith.constant 0 : index
    %471 = vector.load %arg20[%c0_190, %c0_191] : memref<80x128xf32, #tpu.memory_space<vmem>>, vector<80x128xf32>
    %472 = arith.truncf %471 : vector<80x128xf32> to vector<80x128xbf16>
    %c0_192 = arith.constant 0 : index
    %c0_193 = arith.constant 0 : index
    %473 = vector.load %arg5[%c0_192, %c0_193] : memref<128x512xbf16, #tpu.memory_space<vmem>>, vector<128x512xbf16>
    %cst_194 = arith.constant dense<0.000000e+00> : vector<80x512xf32>
    %474 = tpu.matmul %470, %473, %cst_194 {dimension_numbers = #tpu.dot_dimension_numbers<[1], [0], [0], [1], [0, 0, 1, 1], [], []>} : vector<80x128xbf16>, vector<128x512xbf16>, vector<80x512xf32> -> vector<80x512xf32>
    %c0_195 = arith.constant 0 : index
    %c0_196 = arith.constant 0 : index
    %475 = vector.load %arg6[%c0_195, %c0_196] : memref<128x512xbf16, #tpu.memory_space<vmem>>, vector<128x512xbf16>
    %cst_197 = arith.constant dense<0.000000e+00> : vector<80x512xf32>
    %476 = tpu.matmul %472, %475, %cst_197 {dimension_numbers = #tpu.dot_dimension_numbers<[1], [0], [0], [1], [0, 0, 1, 1], [], []>} : vector<80x128xbf16>, vector<128x512xbf16>, vector<80x512xf32> -> vector<80x512xf32>
    %477 = arith.addf %474, %476 : vector<80x512xf32>
    %c0_198 = arith.constant 0 : index
    %c0_199 = arith.constant 0 : index
    %478 = vector.load %arg8[%c0_198, %c0_199] : memref<1x512xf32, #tpu.memory_space<vmem>>, vector<1x512xf32>
    %479 = vector.broadcast %478 : vector<1x512xf32> to vector<80x512xf32>
    %480 = arith.addf %477, %479 : vector<80x512xf32>
    %c0_200 = arith.constant 0 : index
    %c0_201 = arith.constant 0 : index
    %481 = vector.load %arg18[%c0_200, %c0_201] : memref<80x512xf32, #tpu.memory_space<vmem>>, vector<80x512xf32>
    tpu.vector_store %arg18[%c0_200, %c0_201], %480 {strides = array<i32>} : memref<80x512xf32, #tpu.memory_space<vmem>>, vector<80x512xf32>,
    %cst_202 = arith.constant 0.000000e+00 : f32
    %482 = vector.broadcast %cst_202 : f32 to vector<8x128xf32>
    %c0_i32_203 = arith.constant 0 : i32
    %483 = arith.truncf %482 : vector<8x128xf32> to vector<8x128xbf16>
    %c0_204 = arith.constant 0 : index
    %c0_205 = arith.constant 0 : index
    %484 = vector.load %arg7[%c0_204, %c0_205] : memref<128x512xbf16, #tpu.memory_space<vmem>>, vector<128x512xbf16>
    %cst_206 = arith.constant dense<0.000000e+00> : vector<8x512xf32>
    %485 = tpu.matmul %483, %484, %cst_206 {dimension_numbers = #tpu.dot_dimension_numbers<[1], [0], [0], [1], [0, 0, 1, 1], [], []>} : vector<8x128xbf16>, vector<128x512xbf16>, vector<8x512xf32> -> vector<8x512xf32>
    %c8_i32_207 = arith.constant 8 : i32
    %486 = arith.muli %c0_i32_203, %c8_i32_207 : i32
    %487 = tpu.assume_multiple %486, 8 : i32
    %488 = arith.index_cast %487 : i32 to index
    %c0_208 = arith.constant 0 : index
    %489 = vector.load %arg18[%488, %c0_208] : memref<80x512xf32, #tpu.memory_space<vmem>>, vector<8x512xf32>
    %490 = arith.addf %485, %489 : vector<8x512xf32>
    %491 = vector.extract_strided_slice %490 {offsets = [0, 0], sizes = [8, 128], strides = [1, 1]} : vector<8x512xf32> to vector<8x128xf32>
    %cst_209 = arith.constant 5.000000e-01 : f32
    %492 = vector.broadcast %cst_209 : f32 to vector<8x128xf32>
    %493 = arith.mulf %492, %491 : vector<8x128xf32>
    %494 = math.tanh %493 : vector<8x128xf32>
    %cst_210 = arith.constant 5.000000e-01 : f32
    %495 = vector.broadcast %cst_210 : f32 to vector<8x128xf32>
    %496 = arith.mulf %495, %494 : vector<8x128xf32>
    %cst_211 = arith.constant 5.000000e-01 : f32
    %497 = vector.broadcast %cst_211 : f32 to vector<8x128xf32>
    %498 = arith.addf %496, %497 : vector<8x128xf32>
    %499 = vector.extract_strided_slice %490 {offsets = [0, 128], sizes = [8, 128], strides = [1, 1]} : vector<8x512xf32> to vector<8x128xf32>
    %cst_212 = arith.constant 5.000000e-01 : f32
    %500 = vector.broadcast %cst_212 : f32 to vector<8x128xf32>
    %501 = arith.mulf %500, %499 : vector<8x128xf32>
    %502 = math.tanh %501 : vector<8x128xf32>
    %cst_213 = arith.constant 5.000000e-01 : f32
    %503 = vector.broadcast %cst_213 : f32 to vector<8x128xf32>
    %504 = arith.mulf %503, %502 : vector<8x128xf32>
    %cst_214 = arith.constant 5.000000e-01 : f32
    %505 = vector.broadcast %cst_214 : f32 to vector<8x128xf32>
    %506 = arith.addf %504, %505 : vector<8x128xf32>
    %507 = vector.extract_strided_slice %490 {offsets = [0, 256], sizes = [8, 128], strides = [1, 1]} : vector<8x512xf32> to vector<8x128xf32>
    %508 = math.tanh %507 : vector<8x128xf32>
    %509 = vector.extract_strided_slice %490 {offsets = [0, 384], sizes = [8, 128], strides = [1, 1]} : vector<8x512xf32> to vector<8x128xf32>
    %cst_215 = arith.constant 5.000000e-01 : f32
    %510 = vector.broadcast %cst_215 : f32 to vector<8x128xf32>
    %511 = arith.mulf %510, %509 : vector<8x128xf32>
    %512 = math.tanh %511 : vector<8x128xf32>
    %cst_216 = arith.constant 5.000000e-01 : f32
    %513 = vector.broadcast %cst_216 : f32 to vector<8x128xf32>
    %514 = arith.mulf %513, %512 : vector<8x128xf32>
    %cst_217 = arith.constant 5.000000e-01 : f32
    %515 = vector.broadcast %cst_217 : f32 to vector<8x128xf32>
    %516 = arith.addf %514, %515 : vector<8x128xf32>
    %517 = arith.mulf %506, %482 : vector<8x128xf32>
    %518 = arith.mulf %498, %508 : vector<8x128xf32>
    %519 = arith.addf %517, %518 : vector<8x128xf32>
    %520 = math.tanh %519 : vector<8x128xf32>
    %521 = arith.mulf %516, %520 : vector<8x128xf32>
    %522 = arith.index_cast %487 : i32 to index
    %c0_218 = arith.constant 0 : index
    %523 = vector.load %arg19[%522, %c0_218] : memref<80x128xf32, #tpu.memory_space<vmem>>, vector<8x128xf32>
    tpu.vector_store %arg19[%522, %c0_218], %521 {strides = array<i32>} : memref<80x128xf32, #tpu.memory_space<vmem>>, vector<8x128xf32>,
    %c1_i32_219 = arith.constant 1 : i32
    %524 = arith.truncf %521 : vector<8x128xf32> to vector<8x128xbf16>
    %c0_220 = arith.constant 0 : index
    %c0_221 = arith.constant 0 : index
    %525 = vector.load %arg7[%c0_220, %c0_221] : memref<128x512xbf16, #tpu.memory_space<vmem>>, vector<128x512xbf16>
    %cst_222 = arith.constant dense<0.000000e+00> : vector<8x512xf32>
    %526 = tpu.matmul %524, %525, %cst_222 {dimension_numbers = #tpu.dot_dimension_numbers<[1], [0], [0], [1], [0, 0, 1, 1], [], []>} : vector<8x128xbf16>, vector<128x512xbf16>, vector<8x512xf32> -> vector<8x512xf32>
    %c8_i32_223 = arith.constant 8 : i32
    %527 = arith.muli %c1_i32_219, %c8_i32_223 : i32
    %528 = tpu.assume_multiple %527, 8 : i32
    %529 = arith.index_cast %528 : i32 to index
    %c0_224 = arith.constant 0 : index
    %530 = vector.load %arg18[%529, %c0_224] : memref<80x512xf32, #tpu.memory_space<vmem>>, vector<8x512xf32>
    %531 = arith.addf %526, %530 : vector<8x512xf32>
    %532 = vector.extract_strided_slice %531 {offsets = [0, 0], sizes = [8, 128], strides = [1, 1]} : vector<8x512xf32> to vector<8x128xf32>
    %cst_225 = arith.constant 5.000000e-01 : f32
    %533 = vector.broadcast %cst_225 : f32 to vector<8x128xf32>
    %534 = arith.mulf %533, %532 : vector<8x128xf32>
    %535 = math.tanh %534 : vector<8x128xf32>
    %cst_226 = arith.constant 5.000000e-01 : f32
    %536 = vector.broadcast %cst_226 : f32 to vector<8x128xf32>
    %537 = arith.mulf %536, %535 : vector<8x128xf32>
    %cst_227 = arith.constant 5.000000e-01 : f32
    %538 = vector.broadcast %cst_227 : f32 to vector<8x128xf32>
    %539 = arith.addf %537, %538 : vector<8x128xf32>
    %540 = vector.extract_strided_slice %531 {offsets = [0, 128], sizes = [8, 128], strides = [1, 1]} : vector<8x512xf32> to vector<8x128xf32>
    %cst_228 = arith.constant 5.000000e-01 : f32
    %541 = vector.broadcast %cst_228 : f32 to vector<8x128xf32>
    %542 = arith.mulf %541, %540 : vector<8x128xf32>
    %543 = math.tanh %542 : vector<8x128xf32>
    %cst_229 = arith.constant 5.000000e-01 : f32
    %544 = vector.broadcast %cst_229 : f32 to vector<8x128xf32>
    %545 = arith.mulf %544, %543 : vector<8x128xf32>
    %cst_230 = arith.constant 5.000000e-01 : f32
    %546 = vector.broadcast %cst_230 : f32 to vector<8x128xf32>
    %547 = arith.addf %545, %546 : vector<8x128xf32>
    %548 = vector.extract_strided_slice %531 {offsets = [0, 256], sizes = [8, 128], strides = [1, 1]} : vector<8x512xf32> to vector<8x128xf32>
    %549 = math.tanh %548 : vector<8x128xf32>
    %550 = vector.extract_strided_slice %531 {offsets = [0, 384], sizes = [8, 128], strides = [1, 1]} : vector<8x512xf32> to vector<8x128xf32>
    %cst_231 = arith.constant 5.000000e-01 : f32
    %551 = vector.broadcast %cst_231 : f32 to vector<8x128xf32>
    %552 = arith.mulf %551, %550 : vector<8x128xf32>
    %553 = math.tanh %552 : vector<8x128xf32>
    %cst_232 = arith.constant 5.000000e-01 : f32
    %554 = vector.broadcast %cst_232 : f32 to vector<8x128xf32>
    %555 = arith.mulf %554, %553 : vector<8x128xf32>
    %cst_233 = arith.constant 5.000000e-01 : f32
    %556 = vector.broadcast %cst_233 : f32 to vector<8x128xf32>
    %557 = arith.addf %555, %556 : vector<8x128xf32>
    %558 = arith.mulf %547, %519 : vector<8x128xf32>
    %559 = arith.mulf %539, %549 : vector<8x128xf32>
    %560 = arith.addf %558, %559 : vector<8x128xf32>
    %561 = math.tanh %560 : vector<8x128xf32>
    %562 = arith.mulf %557, %561 : vector<8x128xf32>
    %563 = arith.index_cast %528 : i32 to index
    %c0_234 = arith.constant 0 : index
    %564 = vector.load %arg19[%563, %c0_234] : memref<80x128xf32, #tpu.memory_space<vmem>>, vector<8x128xf32>
    tpu.vector_store %arg19[%563, %c0_234], %562 {strides = array<i32>} : memref<80x128xf32, #tpu.memory_space<vmem>>, vector<8x128xf32>,
    %c2_i32_235 = arith.constant 2 : i32
    %565 = arith.truncf %562 : vector<8x128xf32> to vector<8x128xbf16>
    %c0_236 = arith.constant 0 : index
    %c0_237 = arith.constant 0 : index
    %566 = vector.load %arg7[%c0_236, %c0_237] : memref<128x512xbf16, #tpu.memory_space<vmem>>, vector<128x512xbf16>
    %cst_238 = arith.constant dense<0.000000e+00> : vector<8x512xf32>
    %567 = tpu.matmul %565, %566, %cst_238 {dimension_numbers = #tpu.dot_dimension_numbers<[1], [0], [0], [1], [0, 0, 1, 1], [], []>} : vector<8x128xbf16>, vector<128x512xbf16>, vector<8x512xf32> -> vector<8x512xf32>
    %c8_i32_239 = arith.constant 8 : i32
    %568 = arith.muli %c2_i32_235, %c8_i32_239 : i32
    %569 = tpu.assume_multiple %568, 8 : i32
    %570 = arith.index_cast %569 : i32 to index
    %c0_240 = arith.constant 0 : index
    %571 = vector.load %arg18[%570, %c0_240] : memref<80x512xf32, #tpu.memory_space<vmem>>, vector<8x512xf32>
    %572 = arith.addf %567, %571 : vector<8x512xf32>
    %573 = vector.extract_strided_slice %572 {offsets = [0, 0], sizes = [8, 128], strides = [1, 1]} : vector<8x512xf32> to vector<8x128xf32>
    %cst_241 = arith.constant 5.000000e-01 : f32
    %574 = vector.broadcast %cst_241 : f32 to vector<8x128xf32>
    %575 = arith.mulf %574, %573 : vector<8x128xf32>
    %576 = math.tanh %575 : vector<8x128xf32>
    %cst_242 = arith.constant 5.000000e-01 : f32
    %577 = vector.broadcast %cst_242 : f32 to vector<8x128xf32>
    %578 = arith.mulf %577, %576 : vector<8x128xf32>
    %cst_243 = arith.constant 5.000000e-01 : f32
    %579 = vector.broadcast %cst_243 : f32 to vector<8x128xf32>
    %580 = arith.addf %578, %579 : vector<8x128xf32>
    %581 = vector.extract_strided_slice %572 {offsets = [0, 128], sizes = [8, 128], strides = [1, 1]} : vector<8x512xf32> to vector<8x128xf32>
    %cst_244 = arith.constant 5.000000e-01 : f32
    %582 = vector.broadcast %cst_244 : f32 to vector<8x128xf32>
    %583 = arith.mulf %582, %581 : vector<8x128xf32>
    %584 = math.tanh %583 : vector<8x128xf32>
    %cst_245 = arith.constant 5.000000e-01 : f32
    %585 = vector.broadcast %cst_245 : f32 to vector<8x128xf32>
    %586 = arith.mulf %585, %584 : vector<8x128xf32>
    %cst_246 = arith.constant 5.000000e-01 : f32
    %587 = vector.broadcast %cst_246 : f32 to vector<8x128xf32>
    %588 = arith.addf %586, %587 : vector<8x128xf32>
    %589 = vector.extract_strided_slice %572 {offsets = [0, 256], sizes = [8, 128], strides = [1, 1]} : vector<8x512xf32> to vector<8x128xf32>
    %590 = math.tanh %589 : vector<8x128xf32>
    %591 = vector.extract_strided_slice %572 {offsets = [0, 384], sizes = [8, 128], strides = [1, 1]} : vector<8x512xf32> to vector<8x128xf32>
    %cst_247 = arith.constant 5.000000e-01 : f32
    %592 = vector.broadcast %cst_247 : f32 to vector<8x128xf32>
    %593 = arith.mulf %592, %591 : vector<8x128xf32>
    %594 = math.tanh %593 : vector<8x128xf32>
    %cst_248 = arith.constant 5.000000e-01 : f32
    %595 = vector.broadcast %cst_248 : f32 to vector<8x128xf32>
    %596 = arith.mulf %595, %594 : vector<8x128xf32>
    %cst_249 = arith.constant 5.000000e-01 : f32
    %597 = vector.broadcast %cst_249 : f32 to vector<8x128xf32>
    %598 = arith.addf %596, %597 : vector<8x128xf32>
    %599 = arith.mulf %588, %560 : vector<8x128xf32>
    %600 = arith.mulf %580, %590 : vector<8x128xf32>
    %601 = arith.addf %599, %600 : vector<8x128xf32>
    %602 = math.tanh %601 : vector<8x128xf32>
    %603 = arith.mulf %598, %602 : vector<8x128xf32>
    %604 = arith.index_cast %569 : i32 to index
    %c0_250 = arith.constant 0 : index
    %605 = vector.load %arg19[%604, %c0_250] : memref<80x128xf32, #tpu.memory_space<vmem>>, vector<8x128xf32>
    tpu.vector_store %arg19[%604, %c0_250], %603 {strides = array<i32>} : memref<80x128xf32, #tpu.memory_space<vmem>>, vector<8x128xf32>,
    %c3_i32_251 = arith.constant 3 : i32
    %606 = arith.truncf %603 : vector<8x128xf32> to vector<8x128xbf16>
    %c0_252 = arith.constant 0 : index
    %c0_253 = arith.constant 0 : index
    %607 = vector.load %arg7[%c0_252, %c0_253] : memref<128x512xbf16, #tpu.memory_space<vmem>>, vector<128x512xbf16>
    %cst_254 = arith.constant dense<0.000000e+00> : vector<8x512xf32>
    %608 = tpu.matmul %606, %607, %cst_254 {dimension_numbers = #tpu.dot_dimension_numbers<[1], [0], [0], [1], [0, 0, 1, 1], [], []>} : vector<8x128xbf16>, vector<128x512xbf16>, vector<8x512xf32> -> vector<8x512xf32>
    %c8_i32_255 = arith.constant 8 : i32
    %609 = arith.muli %c3_i32_251, %c8_i32_255 : i32
    %610 = tpu.assume_multiple %609, 8 : i32
    %611 = arith.index_cast %610 : i32 to index
    %c0_256 = arith.constant 0 : index
    %612 = vector.load %arg18[%611, %c0_256] : memref<80x512xf32, #tpu.memory_space<vmem>>, vector<8x512xf32>
    %613 = arith.addf %608, %612 : vector<8x512xf32>
    %614 = vector.extract_strided_slice %613 {offsets = [0, 0], sizes = [8, 128], strides = [1, 1]} : vector<8x512xf32> to vector<8x128xf32>
    %cst_257 = arith.constant 5.000000e-01 : f32
    %615 = vector.broadcast %cst_257 : f32 to vector<8x128xf32>
    %616 = arith.mulf %615, %614 : vector<8x128xf32>
    %617 = math.tanh %616 : vector<8x128xf32>
    %cst_258 = arith.constant 5.000000e-01 : f32
    %618 = vector.broadcast %cst_258 : f32 to vector<8x128xf32>
    %619 = arith.mulf %618, %617 : vector<8x128xf32>
    %cst_259 = arith.constant 5.000000e-01 : f32
    %620 = vector.broadcast %cst_259 : f32 to vector<8x128xf32>
    %621 = arith.addf %619, %620 : vector<8x128xf32>
    %622 = vector.extract_strided_slice %613 {offsets = [0, 128], sizes = [8, 128], strides = [1, 1]} : vector<8x512xf32> to vector<8x128xf32>
    %cst_260 = arith.constant 5.000000e-01 : f32
    %623 = vector.broadcast %cst_260 : f32 to vector<8x128xf32>
    %624 = arith.mulf %623, %622 : vector<8x128xf32>
    %625 = math.tanh %624 : vector<8x128xf32>
    %cst_261 = arith.constant 5.000000e-01 : f32
    %626 = vector.broadcast %cst_261 : f32 to vector<8x128xf32>
    %627 = arith.mulf %626, %625 : vector<8x128xf32>
    %cst_262 = arith.constant 5.000000e-01 : f32
    %628 = vector.broadcast %cst_262 : f32 to vector<8x128xf32>
    %629 = arith.addf %627, %628 : vector<8x128xf32>
    %630 = vector.extract_strided_slice %613 {offsets = [0, 256], sizes = [8, 128], strides = [1, 1]} : vector<8x512xf32> to vector<8x128xf32>
    %631 = math.tanh %630 : vector<8x128xf32>
    %632 = vector.extract_strided_slice %613 {offsets = [0, 384], sizes = [8, 128], strides = [1, 1]} : vector<8x512xf32> to vector<8x128xf32>
    %cst_263 = arith.constant 5.000000e-01 : f32
    %633 = vector.broadcast %cst_263 : f32 to vector<8x128xf32>
    %634 = arith.mulf %633, %632 : vector<8x128xf32>
    %635 = math.tanh %634 : vector<8x128xf32>
    %cst_264 = arith.constant 5.000000e-01 : f32
    %636 = vector.broadcast %cst_264 : f32 to vector<8x128xf32>
    %637 = arith.mulf %636, %635 : vector<8x128xf32>
    %cst_265 = arith.constant 5.000000e-01 : f32
    %638 = vector.broadcast %cst_265 : f32 to vector<8x128xf32>
    %639 = arith.addf %637, %638 : vector<8x128xf32>
    %640 = arith.mulf %629, %601 : vector<8x128xf32>
    %641 = arith.mulf %621, %631 : vector<8x128xf32>
    %642 = arith.addf %640, %641 : vector<8x128xf32>
    %643 = math.tanh %642 : vector<8x128xf32>
    %644 = arith.mulf %639, %643 : vector<8x128xf32>
    %645 = arith.index_cast %610 : i32 to index
    %c0_266 = arith.constant 0 : index
    %646 = vector.load %arg19[%645, %c0_266] : memref<80x128xf32, #tpu.memory_space<vmem>>, vector<8x128xf32>
    tpu.vector_store %arg19[%645, %c0_266], %644 {strides = array<i32>} : memref<80x128xf32, #tpu.memory_space<vmem>>, vector<8x128xf32>,
    %c4_i32_267 = arith.constant 4 : i32
    %647 = arith.truncf %644 : vector<8x128xf32> to vector<8x128xbf16>
    %c0_268 = arith.constant 0 : index
    %c0_269 = arith.constant 0 : index
    %648 = vector.load %arg7[%c0_268, %c0_269] : memref<128x512xbf16, #tpu.memory_space<vmem>>, vector<128x512xbf16>
    %cst_270 = arith.constant dense<0.000000e+00> : vector<8x512xf32>
    %649 = tpu.matmul %647, %648, %cst_270 {dimension_numbers = #tpu.dot_dimension_numbers<[1], [0], [0], [1], [0, 0, 1, 1], [], []>} : vector<8x128xbf16>, vector<128x512xbf16>, vector<8x512xf32> -> vector<8x512xf32>
    %c8_i32_271 = arith.constant 8 : i32
    %650 = arith.muli %c4_i32_267, %c8_i32_271 : i32
    %651 = tpu.assume_multiple %650, 8 : i32
    %652 = arith.index_cast %651 : i32 to index
    %c0_272 = arith.constant 0 : index
    %653 = vector.load %arg18[%652, %c0_272] : memref<80x512xf32, #tpu.memory_space<vmem>>, vector<8x512xf32>
    %654 = arith.addf %649, %653 : vector<8x512xf32>
    %655 = vector.extract_strided_slice %654 {offsets = [0, 0], sizes = [8, 128], strides = [1, 1]} : vector<8x512xf32> to vector<8x128xf32>
    %cst_273 = arith.constant 5.000000e-01 : f32
    %656 = vector.broadcast %cst_273 : f32 to vector<8x128xf32>
    %657 = arith.mulf %656, %655 : vector<8x128xf32>
    %658 = math.tanh %657 : vector<8x128xf32>
    %cst_274 = arith.constant 5.000000e-01 : f32
    %659 = vector.broadcast %cst_274 : f32 to vector<8x128xf32>
    %660 = arith.mulf %659, %658 : vector<8x128xf32>
    %cst_275 = arith.constant 5.000000e-01 : f32
    %661 = vector.broadcast %cst_275 : f32 to vector<8x128xf32>
    %662 = arith.addf %660, %661 : vector<8x128xf32>
    %663 = vector.extract_strided_slice %654 {offsets = [0, 128], sizes = [8, 128], strides = [1, 1]} : vector<8x512xf32> to vector<8x128xf32>
    %cst_276 = arith.constant 5.000000e-01 : f32
    %664 = vector.broadcast %cst_276 : f32 to vector<8x128xf32>
    %665 = arith.mulf %664, %663 : vector<8x128xf32>
    %666 = math.tanh %665 : vector<8x128xf32>
    %cst_277 = arith.constant 5.000000e-01 : f32
    %667 = vector.broadcast %cst_277 : f32 to vector<8x128xf32>
    %668 = arith.mulf %667, %666 : vector<8x128xf32>
    %cst_278 = arith.constant 5.000000e-01 : f32
    %669 = vector.broadcast %cst_278 : f32 to vector<8x128xf32>
    %670 = arith.addf %668, %669 : vector<8x128xf32>
    %671 = vector.extract_strided_slice %654 {offsets = [0, 256], sizes = [8, 128], strides = [1, 1]} : vector<8x512xf32> to vector<8x128xf32>
    %672 = math.tanh %671 : vector<8x128xf32>
    %673 = vector.extract_strided_slice %654 {offsets = [0, 384], sizes = [8, 128], strides = [1, 1]} : vector<8x512xf32> to vector<8x128xf32>
    %cst_279 = arith.constant 5.000000e-01 : f32
    %674 = vector.broadcast %cst_279 : f32 to vector<8x128xf32>
    %675 = arith.mulf %674, %673 : vector<8x128xf32>
    %676 = math.tanh %675 : vector<8x128xf32>
    %cst_280 = arith.constant 5.000000e-01 : f32
    %677 = vector.broadcast %cst_280 : f32 to vector<8x128xf32>
    %678 = arith.mulf %677, %676 : vector<8x128xf32>
    %cst_281 = arith.constant 5.000000e-01 : f32
    %679 = vector.broadcast %cst_281 : f32 to vector<8x128xf32>
    %680 = arith.addf %678, %679 : vector<8x128xf32>
    %681 = arith.mulf %670, %642 : vector<8x128xf32>
    %682 = arith.mulf %662, %672 : vector<8x128xf32>
    %683 = arith.addf %681, %682 : vector<8x128xf32>
    %684 = math.tanh %683 : vector<8x128xf32>
    %685 = arith.mulf %680, %684 : vector<8x128xf32>
    %686 = arith.index_cast %651 : i32 to index
    %c0_282 = arith.constant 0 : index
    %687 = vector.load %arg19[%686, %c0_282] : memref<80x128xf32, #tpu.memory_space<vmem>>, vector<8x128xf32>
    tpu.vector_store %arg19[%686, %c0_282], %685 {strides = array<i32>} : memref<80x128xf32, #tpu.memory_space<vmem>>, vector<8x128xf32>,
    %c5_i32_283 = arith.constant 5 : i32
    %688 = arith.truncf %685 : vector<8x128xf32> to vector<8x128xbf16>
    %c0_284 = arith.constant 0 : index
    %c0_285 = arith.constant 0 : index
    %689 = vector.load %arg7[%c0_284, %c0_285] : memref<128x512xbf16, #tpu.memory_space<vmem>>, vector<128x512xbf16>
    %cst_286 = arith.constant dense<0.000000e+00> : vector<8x512xf32>
    %690 = tpu.matmul %688, %689, %cst_286 {dimension_numbers = #tpu.dot_dimension_numbers<[1], [0], [0], [1], [0, 0, 1, 1], [], []>} : vector<8x128xbf16>, vector<128x512xbf16>, vector<8x512xf32> -> vector<8x512xf32>
    %c8_i32_287 = arith.constant 8 : i32
    %691 = arith.muli %c5_i32_283, %c8_i32_287 : i32
    %692 = tpu.assume_multiple %691, 8 : i32
    %693 = arith.index_cast %692 : i32 to index
    %c0_288 = arith.constant 0 : index
    %694 = vector.load %arg18[%693, %c0_288] : memref<80x512xf32, #tpu.memory_space<vmem>>, vector<8x512xf32>
    %695 = arith.addf %690, %694 : vector<8x512xf32>
    %696 = vector.extract_strided_slice %695 {offsets = [0, 0], sizes = [8, 128], strides = [1, 1]} : vector<8x512xf32> to vector<8x128xf32>
    %cst_289 = arith.constant 5.000000e-01 : f32
    %697 = vector.broadcast %cst_289 : f32 to vector<8x128xf32>
    %698 = arith.mulf %697, %696 : vector<8x128xf32>
    %699 = math.tanh %698 : vector<8x128xf32>
    %cst_290 = arith.constant 5.000000e-01 : f32
    %700 = vector.broadcast %cst_290 : f32 to vector<8x128xf32>
    %701 = arith.mulf %700, %699 : vector<8x128xf32>
    %cst_291 = arith.constant 5.000000e-01 : f32
    %702 = vector.broadcast %cst_291 : f32 to vector<8x128xf32>
    %703 = arith.addf %701, %702 : vector<8x128xf32>
    %704 = vector.extract_strided_slice %695 {offsets = [0, 128], sizes = [8, 128], strides = [1, 1]} : vector<8x512xf32> to vector<8x128xf32>
    %cst_292 = arith.constant 5.000000e-01 : f32
    %705 = vector.broadcast %cst_292 : f32 to vector<8x128xf32>
    %706 = arith.mulf %705, %704 : vector<8x128xf32>
    %707 = math.tanh %706 : vector<8x128xf32>
    %cst_293 = arith.constant 5.000000e-01 : f32
    %708 = vector.broadcast %cst_293 : f32 to vector<8x128xf32>
    %709 = arith.mulf %708, %707 : vector<8x128xf32>
    %cst_294 = arith.constant 5.000000e-01 : f32
    %710 = vector.broadcast %cst_294 : f32 to vector<8x128xf32>
    %711 = arith.addf %709, %710 : vector<8x128xf32>
    %712 = vector.extract_strided_slice %695 {offsets = [0, 256], sizes = [8, 128], strides = [1, 1]} : vector<8x512xf32> to vector<8x128xf32>
    %713 = math.tanh %712 : vector<8x128xf32>
    %714 = vector.extract_strided_slice %695 {offsets = [0, 384], sizes = [8, 128], strides = [1, 1]} : vector<8x512xf32> to vector<8x128xf32>
    %cst_295 = arith.constant 5.000000e-01 : f32
    %715 = vector.broadcast %cst_295 : f32 to vector<8x128xf32>
    %716 = arith.mulf %715, %714 : vector<8x128xf32>
    %717 = math.tanh %716 : vector<8x128xf32>
    %cst_296 = arith.constant 5.000000e-01 : f32
    %718 = vector.broadcast %cst_296 : f32 to vector<8x128xf32>
    %719 = arith.mulf %718, %717 : vector<8x128xf32>
    %cst_297 = arith.constant 5.000000e-01 : f32
    %720 = vector.broadcast %cst_297 : f32 to vector<8x128xf32>
    %721 = arith.addf %719, %720 : vector<8x128xf32>
    %722 = arith.mulf %711, %683 : vector<8x128xf32>
    %723 = arith.mulf %703, %713 : vector<8x128xf32>
    %724 = arith.addf %722, %723 : vector<8x128xf32>
    %725 = math.tanh %724 : vector<8x128xf32>
    %726 = arith.mulf %721, %725 : vector<8x128xf32>
    %727 = arith.index_cast %692 : i32 to index
    %c0_298 = arith.constant 0 : index
    %728 = vector.load %arg19[%727, %c0_298] : memref<80x128xf32, #tpu.memory_space<vmem>>, vector<8x128xf32>
    tpu.vector_store %arg19[%727, %c0_298], %726 {strides = array<i32>} : memref<80x128xf32, #tpu.memory_space<vmem>>, vector<8x128xf32>,
    %c6_i32_299 = arith.constant 6 : i32
    %729 = arith.truncf %726 : vector<8x128xf32> to vector<8x128xbf16>
    %c0_300 = arith.constant 0 : index
    %c0_301 = arith.constant 0 : index
    %730 = vector.load %arg7[%c0_300, %c0_301] : memref<128x512xbf16, #tpu.memory_space<vmem>>, vector<128x512xbf16>
    %cst_302 = arith.constant dense<0.000000e+00> : vector<8x512xf32>
    %731 = tpu.matmul %729, %730, %cst_302 {dimension_numbers = #tpu.dot_dimension_numbers<[1], [0], [0], [1], [0, 0, 1, 1], [], []>} : vector<8x128xbf16>, vector<128x512xbf16>, vector<8x512xf32> -> vector<8x512xf32>
    %c8_i32_303 = arith.constant 8 : i32
    %732 = arith.muli %c6_i32_299, %c8_i32_303 : i32
    %733 = tpu.assume_multiple %732, 8 : i32
    %734 = arith.index_cast %733 : i32 to index
    %c0_304 = arith.constant 0 : index
    %735 = vector.load %arg18[%734, %c0_304] : memref<80x512xf32, #tpu.memory_space<vmem>>, vector<8x512xf32>
    %736 = arith.addf %731, %735 : vector<8x512xf32>
    %737 = vector.extract_strided_slice %736 {offsets = [0, 0], sizes = [8, 128], strides = [1, 1]} : vector<8x512xf32> to vector<8x128xf32>
    %cst_305 = arith.constant 5.000000e-01 : f32
    %738 = vector.broadcast %cst_305 : f32 to vector<8x128xf32>
    %739 = arith.mulf %738, %737 : vector<8x128xf32>
    %740 = math.tanh %739 : vector<8x128xf32>
    %cst_306 = arith.constant 5.000000e-01 : f32
    %741 = vector.broadcast %cst_306 : f32 to vector<8x128xf32>
    %742 = arith.mulf %741, %740 : vector<8x128xf32>
    %cst_307 = arith.constant 5.000000e-01 : f32
    %743 = vector.broadcast %cst_307 : f32 to vector<8x128xf32>
    %744 = arith.addf %742, %743 : vector<8x128xf32>
    %745 = vector.extract_strided_slice %736 {offsets = [0, 128], sizes = [8, 128], strides = [1, 1]} : vector<8x512xf32> to vector<8x128xf32>
    %cst_308 = arith.constant 5.000000e-01 : f32
    %746 = vector.broadcast %cst_308 : f32 to vector<8x128xf32>
    %747 = arith.mulf %746, %745 : vector<8x128xf32>
    %748 = math.tanh %747 : vector<8x128xf32>
    %cst_309 = arith.constant 5.000000e-01 : f32
    %749 = vector.broadcast %cst_309 : f32 to vector<8x128xf32>
    %750 = arith.mulf %749, %748 : vector<8x128xf32>
    %cst_310 = arith.constant 5.000000e-01 : f32
    %751 = vector.broadcast %cst_310 : f32 to vector<8x128xf32>
    %752 = arith.addf %750, %751 : vector<8x128xf32>
    %753 = vector.extract_strided_slice %736 {offsets = [0, 256], sizes = [8, 128], strides = [1, 1]} : vector<8x512xf32> to vector<8x128xf32>
    %754 = math.tanh %753 : vector<8x128xf32>
    %755 = vector.extract_strided_slice %736 {offsets = [0, 384], sizes = [8, 128], strides = [1, 1]} : vector<8x512xf32> to vector<8x128xf32>
    %cst_311 = arith.constant 5.000000e-01 : f32
    %756 = vector.broadcast %cst_311 : f32 to vector<8x128xf32>
    %757 = arith.mulf %756, %755 : vector<8x128xf32>
    %758 = math.tanh %757 : vector<8x128xf32>
    %cst_312 = arith.constant 5.000000e-01 : f32
    %759 = vector.broadcast %cst_312 : f32 to vector<8x128xf32>
    %760 = arith.mulf %759, %758 : vector<8x128xf32>
    %cst_313 = arith.constant 5.000000e-01 : f32
    %761 = vector.broadcast %cst_313 : f32 to vector<8x128xf32>
    %762 = arith.addf %760, %761 : vector<8x128xf32>
    %763 = arith.mulf %752, %724 : vector<8x128xf32>
    %764 = arith.mulf %744, %754 : vector<8x128xf32>
    %765 = arith.addf %763, %764 : vector<8x128xf32>
    %766 = math.tanh %765 : vector<8x128xf32>
    %767 = arith.mulf %762, %766 : vector<8x128xf32>
    %768 = arith.index_cast %733 : i32 to index
    %c0_314 = arith.constant 0 : index
    %769 = vector.load %arg19[%768, %c0_314] : memref<80x128xf32, #tpu.memory_space<vmem>>, vector<8x128xf32>
    tpu.vector_store %arg19[%768, %c0_314], %767 {strides = array<i32>} : memref<80x128xf32, #tpu.memory_space<vmem>>, vector<8x128xf32>,
    %c7_i32_315 = arith.constant 7 : i32
    %770 = arith.truncf %767 : vector<8x128xf32> to vector<8x128xbf16>
    %c0_316 = arith.constant 0 : index
    %c0_317 = arith.constant 0 : index
    %771 = vector.load %arg7[%c0_316, %c0_317] : memref<128x512xbf16, #tpu.memory_space<vmem>>, vector<128x512xbf16>
    %cst_318 = arith.constant dense<0.000000e+00> : vector<8x512xf32>
    %772 = tpu.matmul %770, %771, %cst_318 {dimension_numbers = #tpu.dot_dimension_numbers<[1], [0], [0], [1], [0, 0, 1, 1], [], []>} : vector<8x128xbf16>, vector<128x512xbf16>, vector<8x512xf32> -> vector<8x512xf32>
    %c8_i32_319 = arith.constant 8 : i32
    %773 = arith.muli %c7_i32_315, %c8_i32_319 : i32
    %774 = tpu.assume_multiple %773, 8 : i32
    %775 = arith.index_cast %774 : i32 to index
    %c0_320 = arith.constant 0 : index
    %776 = vector.load %arg18[%775, %c0_320] : memref<80x512xf32, #tpu.memory_space<vmem>>, vector<8x512xf32>
    %777 = arith.addf %772, %776 : vector<8x512xf32>
    %778 = vector.extract_strided_slice %777 {offsets = [0, 0], sizes = [8, 128], strides = [1, 1]} : vector<8x512xf32> to vector<8x128xf32>
    %cst_321 = arith.constant 5.000000e-01 : f32
    %779 = vector.broadcast %cst_321 : f32 to vector<8x128xf32>
    %780 = arith.mulf %779, %778 : vector<8x128xf32>
    %781 = math.tanh %780 : vector<8x128xf32>
    %cst_322 = arith.constant 5.000000e-01 : f32
    %782 = vector.broadcast %cst_322 : f32 to vector<8x128xf32>
    %783 = arith.mulf %782, %781 : vector<8x128xf32>
    %cst_323 = arith.constant 5.000000e-01 : f32
    %784 = vector.broadcast %cst_323 : f32 to vector<8x128xf32>
    %785 = arith.addf %783, %784 : vector<8x128xf32>
    %786 = vector.extract_strided_slice %777 {offsets = [0, 128], sizes = [8, 128], strides = [1, 1]} : vector<8x512xf32> to vector<8x128xf32>
    %cst_324 = arith.constant 5.000000e-01 : f32
    %787 = vector.broadcast %cst_324 : f32 to vector<8x128xf32>
    %788 = arith.mulf %787, %786 : vector<8x128xf32>
    %789 = math.tanh %788 : vector<8x128xf32>
    %cst_325 = arith.constant 5.000000e-01 : f32
    %790 = vector.broadcast %cst_325 : f32 to vector<8x128xf32>
    %791 = arith.mulf %790, %789 : vector<8x128xf32>
    %cst_326 = arith.constant 5.000000e-01 : f32
    %792 = vector.broadcast %cst_326 : f32 to vector<8x128xf32>
    %793 = arith.addf %791, %792 : vector<8x128xf32>
    %794 = vector.extract_strided_slice %777 {offsets = [0, 256], sizes = [8, 128], strides = [1, 1]} : vector<8x512xf32> to vector<8x128xf32>
    %795 = math.tanh %794 : vector<8x128xf32>
    %796 = vector.extract_strided_slice %777 {offsets = [0, 384], sizes = [8, 128], strides = [1, 1]} : vector<8x512xf32> to vector<8x128xf32>
    %cst_327 = arith.constant 5.000000e-01 : f32
    %797 = vector.broadcast %cst_327 : f32 to vector<8x128xf32>
    %798 = arith.mulf %797, %796 : vector<8x128xf32>
    %799 = math.tanh %798 : vector<8x128xf32>
    %cst_328 = arith.constant 5.000000e-01 : f32
    %800 = vector.broadcast %cst_328 : f32 to vector<8x128xf32>
    %801 = arith.mulf %800, %799 : vector<8x128xf32>
    %cst_329 = arith.constant 5.000000e-01 : f32
    %802 = vector.broadcast %cst_329 : f32 to vector<8x128xf32>
    %803 = arith.addf %801, %802 : vector<8x128xf32>
    %804 = arith.mulf %793, %765 : vector<8x128xf32>
    %805 = arith.mulf %785, %795 : vector<8x128xf32>
    %806 = arith.addf %804, %805 : vector<8x128xf32>
    %807 = math.tanh %806 : vector<8x128xf32>
    %808 = arith.mulf %803, %807 : vector<8x128xf32>
    %809 = arith.index_cast %774 : i32 to index
    %c0_330 = arith.constant 0 : index
    %810 = vector.load %arg19[%809, %c0_330] : memref<80x128xf32, #tpu.memory_space<vmem>>, vector<8x128xf32>
    tpu.vector_store %arg19[%809, %c0_330], %808 {strides = array<i32>} : memref<80x128xf32, #tpu.memory_space<vmem>>, vector<8x128xf32>,
    %c8_i32_331 = arith.constant 8 : i32
    %811 = arith.truncf %808 : vector<8x128xf32> to vector<8x128xbf16>
    %c0_332 = arith.constant 0 : index
    %c0_333 = arith.constant 0 : index
    %812 = vector.load %arg7[%c0_332, %c0_333] : memref<128x512xbf16, #tpu.memory_space<vmem>>, vector<128x512xbf16>
    %cst_334 = arith.constant dense<0.000000e+00> : vector<8x512xf32>
    %813 = tpu.matmul %811, %812, %cst_334 {dimension_numbers = #tpu.dot_dimension_numbers<[1], [0], [0], [1], [0, 0, 1, 1], [], []>} : vector<8x128xbf16>, vector<128x512xbf16>, vector<8x512xf32> -> vector<8x512xf32>
    %c8_i32_335 = arith.constant 8 : i32
    %814 = arith.muli %c8_i32_331, %c8_i32_335 : i32
    %815 = tpu.assume_multiple %814, 8 : i32
    %816 = arith.index_cast %815 : i32 to index
    %c0_336 = arith.constant 0 : index
    %817 = vector.load %arg18[%816, %c0_336] : memref<80x512xf32, #tpu.memory_space<vmem>>, vector<8x512xf32>
    %818 = arith.addf %813, %817 : vector<8x512xf32>
    %819 = vector.extract_strided_slice %818 {offsets = [0, 0], sizes = [8, 128], strides = [1, 1]} : vector<8x512xf32> to vector<8x128xf32>
    %cst_337 = arith.constant 5.000000e-01 : f32
    %820 = vector.broadcast %cst_337 : f32 to vector<8x128xf32>
    %821 = arith.mulf %820, %819 : vector<8x128xf32>
    %822 = math.tanh %821 : vector<8x128xf32>
    %cst_338 = arith.constant 5.000000e-01 : f32
    %823 = vector.broadcast %cst_338 : f32 to vector<8x128xf32>
    %824 = arith.mulf %823, %822 : vector<8x128xf32>
    %cst_339 = arith.constant 5.000000e-01 : f32
    %825 = vector.broadcast %cst_339 : f32 to vector<8x128xf32>
    %826 = arith.addf %824, %825 : vector<8x128xf32>
    %827 = vector.extract_strided_slice %818 {offsets = [0, 128], sizes = [8, 128], strides = [1, 1]} : vector<8x512xf32> to vector<8x128xf32>
    %cst_340 = arith.constant 5.000000e-01 : f32
    %828 = vector.broadcast %cst_340 : f32 to vector<8x128xf32>
    %829 = arith.mulf %828, %827 : vector<8x128xf32>
    %830 = math.tanh %829 : vector<8x128xf32>
    %cst_341 = arith.constant 5.000000e-01 : f32
    %831 = vector.broadcast %cst_341 : f32 to vector<8x128xf32>
    %832 = arith.mulf %831, %830 : vector<8x128xf32>
    %cst_342 = arith.constant 5.000000e-01 : f32
    %833 = vector.broadcast %cst_342 : f32 to vector<8x128xf32>
    %834 = arith.addf %832, %833 : vector<8x128xf32>
    %835 = vector.extract_strided_slice %818 {offsets = [0, 256], sizes = [8, 128], strides = [1, 1]} : vector<8x512xf32> to vector<8x128xf32>
    %836 = math.tanh %835 : vector<8x128xf32>
    %837 = vector.extract_strided_slice %818 {offsets = [0, 384], sizes = [8, 128], strides = [1, 1]} : vector<8x512xf32> to vector<8x128xf32>
    %cst_343 = arith.constant 5.000000e-01 : f32
    %838 = vector.broadcast %cst_343 : f32 to vector<8x128xf32>
    %839 = arith.mulf %838, %837 : vector<8x128xf32>
    %840 = math.tanh %839 : vector<8x128xf32>
    %cst_344 = arith.constant 5.000000e-01 : f32
    %841 = vector.broadcast %cst_344 : f32 to vector<8x128xf32>
    %842 = arith.mulf %841, %840 : vector<8x128xf32>
    %cst_345 = arith.constant 5.000000e-01 : f32
    %843 = vector.broadcast %cst_345 : f32 to vector<8x128xf32>
    %844 = arith.addf %842, %843 : vector<8x128xf32>
    %845 = arith.mulf %834, %806 : vector<8x128xf32>
    %846 = arith.mulf %826, %836 : vector<8x128xf32>
    %847 = arith.addf %845, %846 : vector<8x128xf32>
    %848 = math.tanh %847 : vector<8x128xf32>
    %849 = arith.mulf %844, %848 : vector<8x128xf32>
    %850 = arith.index_cast %815 : i32 to index
    %c0_346 = arith.constant 0 : index
    %851 = vector.load %arg19[%850, %c0_346] : memref<80x128xf32, #tpu.memory_space<vmem>>, vector<8x128xf32>
    tpu.vector_store %arg19[%850, %c0_346], %849 {strides = array<i32>} : memref<80x128xf32, #tpu.memory_space<vmem>>, vector<8x128xf32>,
    %c9_i32_347 = arith.constant 9 : i32
    %852 = arith.truncf %849 : vector<8x128xf32> to vector<8x128xbf16>
    %c0_348 = arith.constant 0 : index
    %c0_349 = arith.constant 0 : index
    %853 = vector.load %arg7[%c0_348, %c0_349] : memref<128x512xbf16, #tpu.memory_space<vmem>>, vector<128x512xbf16>
    %cst_350 = arith.constant dense<0.000000e+00> : vector<8x512xf32>
    %854 = tpu.matmul %852, %853, %cst_350 {dimension_numbers = #tpu.dot_dimension_numbers<[1], [0], [0], [1], [0, 0, 1, 1], [], []>} : vector<8x128xbf16>, vector<128x512xbf16>, vector<8x512xf32> -> vector<8x512xf32>
    %c8_i32_351 = arith.constant 8 : i32
    %855 = arith.muli %c9_i32_347, %c8_i32_351 : i32
    %856 = tpu.assume_multiple %855, 8 : i32
    %857 = arith.index_cast %856 : i32 to index
    %c0_352 = arith.constant 0 : index
    %858 = vector.load %arg18[%857, %c0_352] : memref<80x512xf32, #tpu.memory_space<vmem>>, vector<8x512xf32>
    %859 = arith.addf %854, %858 : vector<8x512xf32>
    %860 = vector.extract_strided_slice %859 {offsets = [0, 0], sizes = [8, 128], strides = [1, 1]} : vector<8x512xf32> to vector<8x128xf32>
    %cst_353 = arith.constant 5.000000e-01 : f32
    %861 = vector.broadcast %cst_353 : f32 to vector<8x128xf32>
    %862 = arith.mulf %861, %860 : vector<8x128xf32>
    %863 = math.tanh %862 : vector<8x128xf32>
    %cst_354 = arith.constant 5.000000e-01 : f32
    %864 = vector.broadcast %cst_354 : f32 to vector<8x128xf32>
    %865 = arith.mulf %864, %863 : vector<8x128xf32>
    %cst_355 = arith.constant 5.000000e-01 : f32
    %866 = vector.broadcast %cst_355 : f32 to vector<8x128xf32>
    %867 = arith.addf %865, %866 : vector<8x128xf32>
    %868 = vector.extract_strided_slice %859 {offsets = [0, 128], sizes = [8, 128], strides = [1, 1]} : vector<8x512xf32> to vector<8x128xf32>
    %cst_356 = arith.constant 5.000000e-01 : f32
    %869 = vector.broadcast %cst_356 : f32 to vector<8x128xf32>
    %870 = arith.mulf %869, %868 : vector<8x128xf32>
    %871 = math.tanh %870 : vector<8x128xf32>
    %cst_357 = arith.constant 5.000000e-01 : f32
    %872 = vector.broadcast %cst_357 : f32 to vector<8x128xf32>
    %873 = arith.mulf %872, %871 : vector<8x128xf32>
    %cst_358 = arith.constant 5.000000e-01 : f32
    %874 = vector.broadcast %cst_358 : f32 to vector<8x128xf32>
    %875 = arith.addf %873, %874 : vector<8x128xf32>
    %876 = vector.extract_strided_slice %859 {offsets = [0, 256], sizes = [8, 128], strides = [1, 1]} : vector<8x512xf32> to vector<8x128xf32>
    %877 = math.tanh %876 : vector<8x128xf32>
    %878 = vector.extract_strided_slice %859 {offsets = [0, 384], sizes = [8, 128], strides = [1, 1]} : vector<8x512xf32> to vector<8x128xf32>
    %cst_359 = arith.constant 5.000000e-01 : f32
    %879 = vector.broadcast %cst_359 : f32 to vector<8x128xf32>
    %880 = arith.mulf %879, %878 : vector<8x128xf32>
    %881 = math.tanh %880 : vector<8x128xf32>
    %cst_360 = arith.constant 5.000000e-01 : f32
    %882 = vector.broadcast %cst_360 : f32 to vector<8x128xf32>
    %883 = arith.mulf %882, %881 : vector<8x128xf32>
    %cst_361 = arith.constant 5.000000e-01 : f32
    %884 = vector.broadcast %cst_361 : f32 to vector<8x128xf32>
    %885 = arith.addf %883, %884 : vector<8x128xf32>
    %886 = arith.mulf %875, %847 : vector<8x128xf32>
    %887 = arith.mulf %867, %877 : vector<8x128xf32>
    %888 = arith.addf %886, %887 : vector<8x128xf32>
    %889 = math.tanh %888 : vector<8x128xf32>
    %890 = arith.mulf %885, %889 : vector<8x128xf32>
    %891 = arith.index_cast %856 : i32 to index
    %c0_362 = arith.constant 0 : index
    %892 = vector.load %arg19[%891, %c0_362] : memref<80x128xf32, #tpu.memory_space<vmem>>, vector<8x128xf32>
    tpu.vector_store %arg19[%891, %c0_362], %890 {strides = array<i32>} : memref<80x128xf32, #tpu.memory_space<vmem>>, vector<8x128xf32>,
    %c10_i32_363 = arith.constant 10 : i32
    %c72 = arith.constant 72 : index
    %c0_364 = arith.constant 0 : index
    %893 = vector.load %arg19[%c72, %c0_364] : memref<80x128xf32, #tpu.memory_space<vmem>>, vector<8x128xf32>
    %c0_365 = arith.constant 0 : index
    %c0_366 = arith.constant 0 : index
    %894 = vector.load %arg19[%c0_365, %c0_366] : memref<80x128xf32, #tpu.memory_space<vmem>>, vector<8x128xf32>
    %895 = vector.extract_strided_slice %893 {offsets = [0, 0], sizes = [8, 64], strides = [1, 1]} : vector<8x128xf32> to vector<8x64xf32>
    %896 = arith.truncf %895 : vector<8x64xf32> to vector<8x64xbf16>
    %897 = vector.extract_strided_slice %894 {offsets = [0, 64], sizes = [8, 64], strides = [1, 1]} : vector<8x128xf32> to vector<8x64xf32>
    %898 = arith.truncf %897 : vector<8x64xf32> to vector<8x64xbf16>
    %c0_367 = arith.constant 0 : index
    %c0_368 = arith.constant 0 : index
    %899 = vector.load %arg9[%c0_367, %c0_368] : memref<64x128xbf16, #tpu.memory_space<vmem>>, vector<64x128xbf16>
    %cst_369 = arith.constant dense<0.000000e+00> : vector<8x128xf32>
    %900 = tpu.matmul %896, %899, %cst_369 {dimension_numbers = #tpu.dot_dimension_numbers<[1], [0], [0], [1], [0, 0, 1, 1], [], []>} : vector<8x64xbf16>, vector<64x128xbf16>, vector<8x128xf32> -> vector<8x128xf32>
    %c0_370 = arith.constant 0 : index
    %c0_371 = arith.constant 0 : index
    %901 = vector.load %arg10[%c0_370, %c0_371] : memref<64x128xbf16, #tpu.memory_space<vmem>>, vector<64x128xbf16>
    %cst_372 = arith.constant dense<0.000000e+00> : vector<8x128xf32>
    %902 = tpu.matmul %898, %901, %cst_372 {dimension_numbers = #tpu.dot_dimension_numbers<[1], [0], [0], [1], [0, 0, 1, 1], [], []>} : vector<8x64xbf16>, vector<64x128xbf16>, vector<8x128xf32> -> vector<8x128xf32>
    %903 = arith.addf %900, %902 : vector<8x128xf32>
    %c0_373 = arith.constant 0 : index
    %c0_374 = arith.constant 0 : index
    %904 = vector.load %arg1[%c0_373, %c0_374] : memref<8x2xf32, #tpu.memory_space<vmem>>, vector<8x2xf32>
    %c0_375 = arith.constant 0 : index
    %c0_376 = arith.constant 0 : index
    %905 = vector.load %arg11[%c0_375, %c0_376] : memref<2x128xf32, #tpu.memory_space<vmem>>, vector<2x128xf32>
    %cst_377 = arith.constant dense<0.000000e+00> : vector<8x128xf32>
    %906 = tpu.matmul %904, %905, %cst_377 {dimension_numbers = #tpu.dot_dimension_numbers<[1], [0], [0], [1], [0, 0, 1, 1], [], []>} : vector<8x2xf32>, vector<2x128xf32>, vector<8x128xf32> -> vector<8x128xf32>
    %907 = arith.addf %903, %906 : vector<8x128xf32>
    %c0_378 = arith.constant 0 : index
    %c0_379 = arith.constant 0 : index
    %908 = vector.load %arg12[%c0_378, %c0_379] : memref<1x128xf32, #tpu.memory_space<vmem>>, vector<1x128xf32>
    %909 = vector.broadcast %908 : vector<1x128xf32> to vector<8x128xf32>
    %910 = arith.addf %907, %909 : vector<8x128xf32>
    %cst_380 = arith.constant 0.000000e+00 : f32
    %911 = vector.broadcast %cst_380 : f32 to vector<8x128xf32>
    %912 = arith.cmpf ogt, %910, %911 : vector<8x128xf32>
    %cst_381 = arith.constant 2.000000e-01 : f32
    %913 = vector.broadcast %cst_381 : f32 to vector<8x128xf32>
    %914 = arith.mulf %913, %910 : vector<8x128xf32>
    %915 = arith.select %912, %910, %914 : vector<8x128xi1>, vector<8x128xf32>
    %916 = arith.truncf %915 : vector<8x128xf32> to vector<8x128xbf16>
    %c0_382 = arith.constant 0 : index
    %c0_383 = arith.constant 0 : index
    %917 = vector.load %arg13[%c0_382, %c0_383] : memref<128x64xbf16, #tpu.memory_space<vmem>>, vector<128x64xbf16>
    %cst_384 = arith.constant dense<0.000000e+00> : vector<8x64xf32>
    %918 = tpu.matmul %916, %917, %cst_384 {dimension_numbers = #tpu.dot_dimension_numbers<[1], [0], [0], [1], [0, 0, 1, 1], [], []>} : vector<8x128xbf16>, vector<128x64xbf16>, vector<8x64xf32> -> vector<8x64xf32>
    %c0_385 = arith.constant 0 : index
    %c0_386 = arith.constant 0 : index
    %919 = vector.load %arg14[%c0_385, %c0_386] : memref<1x64xf32, #tpu.memory_space<vmem>>, vector<1x64xf32>
    %920 = vector.broadcast %919 : vector<1x64xf32> to vector<8x64xf32>
    %921 = arith.addf %918, %920 : vector<8x64xf32>
    %cst_387 = arith.constant 0.000000e+00 : f32
    %922 = vector.broadcast %cst_387 : f32 to vector<8x64xf32>
    %923 = arith.cmpf ogt, %921, %922 : vector<8x64xf32>
    %cst_388 = arith.constant 2.000000e-01 : f32
    %924 = vector.broadcast %cst_388 : f32 to vector<8x64xf32>
    %925 = arith.mulf %924, %921 : vector<8x64xf32>
    %926 = arith.select %923, %921, %925 : vector<8x64xi1>, vector<8x64xf32>
    %927 = arith.truncf %926 : vector<8x64xf32> to vector<8x64xbf16>
    %c0_389 = arith.constant 0 : index
    %c0_390 = arith.constant 0 : index
    %928 = vector.load %arg15[%c0_389, %c0_390] : memref<64x2xbf16, #tpu.memory_space<vmem>>, vector<64x2xbf16>
    %cst_391 = arith.constant dense<0.000000e+00> : vector<8x2xf32>
    %929 = tpu.matmul %927, %928, %cst_391 {dimension_numbers = #tpu.dot_dimension_numbers<[1], [0], [0], [1], [0, 0, 1, 1], [], []>} : vector<8x64xbf16>, vector<64x2xbf16>, vector<8x2xf32> -> vector<8x2xf32>
    %c0_392 = arith.constant 0 : index
    %c0_393 = arith.constant 0 : index
    %930 = vector.load %arg16[%c0_392, %c0_393] : memref<1x2xf32, #tpu.memory_space<vmem>>, vector<1x2xf32>
    %931 = vector.broadcast %930 : vector<1x2xf32> to vector<8x2xf32>
    %932 = arith.addf %929, %931 : vector<8x2xf32>
    %c0_394 = arith.constant 0 : index
    %c0_395 = arith.constant 0 : index
    %933 = vector.load %arg17[%c0_394, %c0_395] : memref<8x2xf32, #tpu.memory_space<vmem>>, vector<8x2xf32>
    tpu.vector_store %arg17[%c0_394, %c0_395], %932 {strides = array<i32>} : memref<8x2xf32, #tpu.memory_space<vmem>>, vector<8x2xf32>,
    return
  }
}

</mosaic_0001>

<llo_original>
// kernel: lstm_sac_actor_forward.1
$region0: #{lstm_sac_actor_forward.1}
  #allocation0 [shape = 'u32[]', space=smem, size = 0x4, offset = 0x4, fixed_abs, tag = 'smem constant byte address 0x4 - core index']
  #allocation1 [shape = 'u32[144,128]{1,0:T(1,128)}', space=vmem, size = 0x12000, scoped, tag = 'internal scratch']
  #allocation2 [shape = 'f32[80,512]{1,0:T(8,128)}', space=vmem, size = 0x28000, scoped, tag = 'scratch operand']
  #allocation3 [shape = 'f32[80,128]{1,0:T(8,128)}', space=vmem, size = 0xa000, scoped, tag = 'scratch operand']
  #allocation4 [shape = 'f32[80,128]{1,0:T(8,128)}', space=vmem, size = 0xa000, scoped, tag = 'scratch operand']
  %s0 = inlined_call_operand.vmem [shape: f32[80,16], index: 0, kind: input, shape index: {}]
  %s1 = inlined_call_operand.vmem [shape: f32[8,2], index: 1, kind: input, shape index: {}]
  %s2 = inlined_call_operand.vmem [shape: bf16[16,512], index: 2, kind: input, shape index: {}]
  %s3 = inlined_call_operand.vmem [shape: bf16[128,512], index: 3, kind: input, shape index: {}]
  %s4 = inlined_call_operand.hbm [shape: f32[1,512], index: 4, kind: input, shape index: {}]
  %s5 = inlined_call_operand.vmem [shape: bf16[128,512], index: 5, kind: input, shape index: {}]
  %s6 = inlined_call_operand.vmem [shape: bf16[128,512], index: 6, kind: input, shape index: {}]
  %s7 = inlined_call_operand.hbm [shape: bf16[128,512], index: 7, kind: input, shape index: {}]
  %s8 = inlined_call_operand.hbm [shape: f32[1,512], index: 8, kind: input, shape index: {}]
  %s9 = inlined_call_operand.hbm [shape: bf16[64,128], index: 9, kind: input, shape index: {}]
  %s10 = inlined_call_operand.hbm [shape: bf16[64,128], index: 10, kind: input, shape index: {}]
  %s11 = inlined_call_operand.hbm [shape: f32[2,128], index: 11, kind: input, shape index: {}]
  %s12 = inlined_call_operand.hbm [shape: f32[1,128], index: 12, kind: input, shape index: {}]
  %s13 = inlined_call_operand.vmem [shape: bf16[128,64], index: 13, kind: input, shape index: {}]
  %s14 = inlined_call_operand.hbm [shape: f32[1,64], index: 14, kind: input, shape index: {}]
  %s15 = inlined_call_operand.vmem [shape: bf16[64,2], index: 15, kind: input, shape index: {}]
  %s16 = inlined_call_operand.vmem [shape: f32[1,2], index: 16, kind: input, shape index: {}]
  %s17 = inlined_call_operand.vmem [shape: f32[8,2], index: 17, kind: output, shape index: {}]
  %s18 = sld [smem:[#allocation0]]
  $region110: #{lstm_sac_actor_forward.1} parent=0
    _
  %s20 = ssub.s32 1, %s18
  %s21 = scalar_select 0, %s20, %s18
  $region1: #{lstm_sac_actor_forward.1} parent=0
    #allocation5 [shape = 'u8[2048]{0}', space=vmem, size = 0x800, scoped, tag = 'input window, operand 4, single buffered']
    #allocation6 [shape = 's32[1]{0}', space=sflag, size = 0x4, scoped, tag = 'scoped memory for lstm_sac_actor_forward.1']
    #allocation7 [shape = 'u8[131072]{0}', space=vmem, size = 0x20000, scoped, tag = 'input window, operand 7, single buffered']
    #allocation8 [shape = 's32[1]{0}', space=sflag, size = 0x4, scoped, tag = 'scoped memory for lstm_sac_actor_forward.1']
    #allocation9 [shape = 'u8[2048]{0}', space=vmem, size = 0x800, scoped, tag = 'input window, operand 8, single buffered']
    #allocation10 [shape = 'u8[16384]{0}', space=vmem, size = 0x4000, scoped, tag = 'input window, operand 9, single buffered']
    #allocation11 [shape = 's32[1]{0}', space=sflag, size = 0x4, scoped, tag = 'scoped memory for lstm_sac_actor_forward.1']
    #allocation12 [shape = 'u8[16384]{0}', space=vmem, size = 0x4000, scoped, tag = 'input window, operand 10, single buffered']
    #allocation13 [shape = 'u8[1024]{0}', space=vmem, size = 0x400, scoped, tag = 'input window, operand 11, single buffered']
    #allocation14 [shape = 's32[1]{0}', space=sflag, size = 0x4, scoped, tag = 'scoped memory for lstm_sac_actor_forward.1']
    #allocation15 [shape = 'u8[512]{0}', space=vmem, size = 0x400, scoped, tag = 'input window, operand 12, single buffered']
    #allocation16 [shape = 'u8[512]{0}', space=vmem, size = 0x400, scoped, tag = 'input window, operand 14, single buffered']
    #allocation17 [shape = 's32[1]{0}', space=sflag, size = 0x4, scoped, tag = 'scoped memory for lstm_sac_actor_forward.1']
    %22 = vsyncpa [#allocation6], 0
    %23 = vsyncpa [#allocation8], 0
    %24 = vsyncpa [#allocation11], 0
    %25 = vsyncpa [#allocation14], 0
    %26 = vsyncpa [#allocation17], 0
    // Predicated region
    $region2: #{lstm_sac_actor_forward.1} parent=1 // pred_check
      _
    $region3: #{lstm_sac_actor_forward.1} parent=1 // pred_check_branch
      %28 = sbr.rel (0) target = $region5
    $region4: #{lstm_sac_actor_forward.1} parent=1 // pred_region
      _
    $region5: #{lstm_sac_actor_forward.1} parent=1 // pred_fallthru
      _
    // Predicated region
    $region6: #{lstm_sac_actor_forward.1} parent=1 // pred_check
      _
    $region7: #{lstm_sac_actor_forward.1} parent=1 // pred_check_branch
      %30 = sbr.rel (0) target = $region9
    $region8: #{lstm_sac_actor_forward.1} parent=1 // pred_region
      _
    $region9: #{lstm_sac_actor_forward.1} parent=1 // pred_fallthru
      _
    // Predicated region
    $region10: #{lstm_sac_actor_forward.1} parent=1 // pred_check
      _
    $region11: #{lstm_sac_actor_forward.1} parent=1 // pred_check_branch
      %32 = sbr.rel (0) target = $region13
    $region12: #{lstm_sac_actor_forward.1} parent=1 // pred_region
      _
    $region13: #{lstm_sac_actor_forward.1} parent=1 // pred_fallthru
      _
    // Predicated region
    $region14: #{lstm_sac_actor_forward.1} parent=1 // pred_check
      _
    $region15: #{lstm_sac_actor_forward.1} parent=1 // pred_check_branch
      %34 = sbr.rel (0) target = $region17
    $region16: #{lstm_sac_actor_forward.1} parent=1 // pred_region
      _
    $region17: #{lstm_sac_actor_forward.1} parent=1 // pred_fallthru
      _
    // Predicated region
    $region18: #{lstm_sac_actor_forward.1} parent=1 // pred_check
      _
    $region19: #{lstm_sac_actor_forward.1} parent=1 // pred_check_branch
      %36 = sbr.rel (0) target = $region21
    $region20: #{lstm_sac_actor_forward.1} parent=1 // pred_region
      %s38 = ssub.s32 64, 64
      %39 = vsyncadd [#allocation6], %s38
      %s41 = sshll.u32 [#allocation5], 4
      %s42 = int_to_ptr.vmem [resolvable:$true] %s41
      %44 = dma.hbm_to_vmem [thread:$0]  %s4, 64, %s42, [#allocation6]
    $region21: #{lstm_sac_actor_forward.1} parent=1 // pred_fallthru
      _
    // Predicated region
    $region22: #{lstm_sac_actor_forward.1} parent=1 // pred_check
      _
    $region23: #{lstm_sac_actor_forward.1} parent=1 // pred_check_branch
      %46 = sbr.rel (0) target = $region25
    $region24: #{lstm_sac_actor_forward.1} parent=1 // pred_region
      _
    $region25: #{lstm_sac_actor_forward.1} parent=1 // pred_fallthru
      _
    // Predicated region
    $region26: #{lstm_sac_actor_forward.1} parent=1 // pred_check
      _
    $region27: #{lstm_sac_actor_forward.1} parent=1 // pred_check_branch
      %48 = sbr.rel (0) target = $region29
    $region28: #{lstm_sac_actor_forward.1} parent=1 // pred_region
      _
    $region29: #{lstm_sac_actor_forward.1} parent=1 // pred_fallthru
      _
    // Predicated region
    $region30: #{lstm_sac_actor_forward.1} parent=1 // pred_check
      _
    $region31: #{lstm_sac_actor_forward.1} parent=1 // pred_check_branch
      %50 = sbr.rel (0) target = $region33
    $region32: #{lstm_sac_actor_forward.1} parent=1 // pred_region
      %s52 = ssub.s32 4096, 4096
      %53 = vsyncadd [#allocation8], %s52
      %s54 = sshll.u32 [#allocation7], 4
      %s55 = int_to_ptr.vmem [resolvable:$true] %s54
      %60 = dma.hbm_to_vmem [thread:$0]  %s7, 4096, %s55, [#allocation8], 256, 256, 16
    $region33: #{lstm_sac_actor_forward.1} parent=1 // pred_fallthru
      _
    // Predicated region
    $region34: #{lstm_sac_actor_forward.1} parent=1 // pred_check
      _
    $region35: #{lstm_sac_actor_forward.1} parent=1 // pred_check_branch
      %62 = sbr.rel (0) target = $region37
    $region36: #{lstm_sac_actor_forward.1} parent=1 // pred_region
      %s64 = ssub.s32 64, 64
      %65 = vsyncadd [#allocation8], %s64
      %s67 = sshll.u32 [#allocation9], 4
      %s68 = int_to_ptr.vmem [resolvable:$true] %s67
      %70 = dma.hbm_to_vmem [thread:$0]  %s8, 64, %s68, [#allocation8]
    $region37: #{lstm_sac_actor_forward.1} parent=1 // pred_fallthru
      _
    // Predicated region
    $region38: #{lstm_sac_actor_forward.1} parent=1 // pred_check
      _
    $region39: #{lstm_sac_actor_forward.1} parent=1 // pred_check_branch
      %72 = sbr.rel (0) target = $region41
    $region40: #{lstm_sac_actor_forward.1} parent=1 // pred_region
      %s74 = ssub.s32 512, 512
      %75 = vsyncadd [#allocation11], %s74
      %s76 = sshll.u32 [#allocation10], 4
      %s77 = int_to_ptr.vmem [resolvable:$true] %s76
      %82 = dma.hbm_to_vmem [thread:$0]  %s9, 512, %s77, [#allocation11], 64, 64, 4
    $region41: #{lstm_sac_actor_forward.1} parent=1 // pred_fallthru
      _
    // Predicated region
    $region42: #{lstm_sac_actor_forward.1} parent=1 // pred_check
      _
    $region43: #{lstm_sac_actor_forward.1} parent=1 // pred_check_branch
      %84 = sbr.rel (0) target = $region45
    $region44: #{lstm_sac_actor_forward.1} parent=1 // pred_region
      %s86 = ssub.s32 512, 512
      %87 = vsyncadd [#allocation11], %s86
      %s88 = sshll.u32 [#allocation12], 4
      %s89 = int_to_ptr.vmem [resolvable:$true] %s88
      %94 = dma.hbm_to_vmem [thread:$0]  %s10, 512, %s89, [#allocation11], 64, 64, 4
    $region45: #{lstm_sac_actor_forward.1} parent=1 // pred_fallthru
      _
    // Predicated region
    $region46: #{lstm_sac_actor_forward.1} parent=1 // pred_check
      _
    $region47: #{lstm_sac_actor_forward.1} parent=1 // pred_check_branch
      %96 = sbr.rel (0) target = $region49
    $region48: #{lstm_sac_actor_forward.1} parent=1 // pred_region
      %s98 = ssub.s32 32, 32
      %99 = vsyncadd [#allocation14], %s98
      %s101 = sshll.u32 [#allocation13], 4
      %s102 = int_to_ptr.vmem [resolvable:$true] %s101
      %104 = dma.hbm_to_vmem [thread:$0]  %s11, 32, %s102, [#allocation14]
    $region49: #{lstm_sac_actor_forward.1} parent=1 // pred_fallthru
      _
    // Predicated region
    $region50: #{lstm_sac_actor_forward.1} parent=1 // pred_check
      _
    $region51: #{lstm_sac_actor_forward.1} parent=1 // pred_check_branch
      %106 = sbr.rel (0) target = $region53
    $region52: #{lstm_sac_actor_forward.1} parent=1 // pred_region
      %s108 = ssub.s32 16, 16
      %109 = vsyncadd [#allocation14], %s108
      %s111 = sshll.u32 [#allocation15], 4
      %s112 = int_to_ptr.vmem [resolvable:$true] %s111
      %114 = dma.hbm_to_vmem [thread:$0]  %s12, 16, %s112, [#allocation14]
    $region53: #{lstm_sac_actor_forward.1} parent=1 // pred_fallthru
      _
    // Predicated region
    $region54: #{lstm_sac_actor_forward.1} parent=1 // pred_check
      _
    $region55: #{lstm_sac_actor_forward.1} parent=1 // pred_check_branch
      %116 = sbr.rel (0) target = $region57
    $region56: #{lstm_sac_actor_forward.1} parent=1 // pred_region
      _
    $region57: #{lstm_sac_actor_forward.1} parent=1 // pred_fallthru
      _
    // Predicated region
    $region58: #{lstm_sac_actor_forward.1} parent=1 // pred_check
      _
    $region59: #{lstm_sac_actor_forward.1} parent=1 // pred_check_branch
      %118 = sbr.rel (0) target = $region61
    $region60: #{lstm_sac_actor_forward.1} parent=1 // pred_region
      %s120 = ssub.s32 16, 16
      %121 = vsyncadd [#allocation17], %s120
      %s123 = sshll.u32 [#allocation16], 4
      %s124 = int_to_ptr.vmem [resolvable:$true] %s123
      %126 = dma.hbm_to_vmem [thread:$0]  %s14, 16, %s124, [#allocation17]
    $region61: #{lstm_sac_actor_forward.1} parent=1 // pred_fallthru
      _
    // Predicated region
    $region62: #{lstm_sac_actor_forward.1} parent=1 // pred_check
      _
    $region63: #{lstm_sac_actor_forward.1} parent=1 // pred_check_branch
      %128 = sbr.rel (0) target = $region65
    $region64: #{lstm_sac_actor_forward.1} parent=1 // pred_region
      _
    $region65: #{lstm_sac_actor_forward.1} parent=1 // pred_fallthru
      _
    // Predicated region
    $region66: #{lstm_sac_actor_forward.1} parent=1 // pred_check
      _
    $region67: #{lstm_sac_actor_forward.1} parent=1 // pred_check_branch
      %130 = sbr.rel (0) target = $region69
    $region68: #{lstm_sac_actor_forward.1} parent=1 // pred_region
      _
    $region69: #{lstm_sac_actor_forward.1} parent=1 // pred_fallthru
      _
    // Predicated region
    $region70: #{lstm_sac_actor_forward.1} parent=1 // pred_check
      _
    $region71: #{lstm_sac_actor_forward.1} parent=1 // pred_check_branch
      %132 = sbr.rel (0) target = $region73
    $region72: #{lstm_sac_actor_forward.1} parent=1 // pred_region
      %133 = dma.done [#allocation6], 64
    $region73: #{lstm_sac_actor_forward.1} parent=1 // pred_fallthru
      _
    // Predicated region
    $region74: #{lstm_sac_actor_forward.1} parent=1 // pred_check
      _
    $region75: #{lstm_sac_actor_forward.1} parent=1 // pred_check_branch
      %135 = sbr.rel (0) target = $region77
    $region76: #{lstm_sac_actor_forward.1} parent=1 // pred_region
      %136 = dma.done [#allocation8], 4096
    $region77: #{lstm_sac_actor_forward.1} parent=1 // pred_fallthru
      _
    // Predicated region
    $region78: #{lstm_sac_actor_forward.1} parent=1 // pred_check
      _
    $region79: #{lstm_sac_actor_forward.1} parent=1 // pred_check_branch
      %138 = sbr.rel (0) target = $region81
    $region80: #{lstm_sac_actor_forward.1} parent=1 // pred_region
      %139 = dma.done [#allocation8], 64
    $region81: #{lstm_sac_actor_forward.1} parent=1 // pred_fallthru
      _
    // Predicated region
    $region82: #{lstm_sac_actor_forward.1} parent=1 // pred_check
      _
    $region83: #{lstm_sac_actor_forward.1} parent=1 // pred_check_branch
      %141 = sbr.rel (0) target = $region85
    $region84: #{lstm_sac_actor_forward.1} parent=1 // pred_region
      %142 = dma.done [#allocation11], 512
    $region85: #{lstm_sac_actor_forward.1} parent=1 // pred_fallthru
      _
    // Predicated region
    $region86: #{lstm_sac_actor_forward.1} parent=1 // pred_check
      _
    $region87: #{lstm_sac_actor_forward.1} parent=1 // pred_check_branch
      %144 = sbr.rel (0) target = $region89
    $region88: #{lstm_sac_actor_forward.1} parent=1 // pred_region
      %145 = dma.done [#allocation11], 512
    $region89: #{lstm_sac_actor_forward.1} parent=1 // pred_fallthru
      _
    // Predicated region
    $region90: #{lstm_sac_actor_forward.1} parent=1 // pred_check
      _
    $region91: #{lstm_sac_actor_forward.1} parent=1 // pred_check_branch
      %147 = sbr.rel (0) target = $region93
    $region92: #{lstm_sac_actor_forward.1} parent=1 // pred_region
      %148 = dma.done [#allocation14], 32
    $region93: #{lstm_sac_actor_forward.1} parent=1 // pred_fallthru
      _
    // Predicated region
    $region94: #{lstm_sac_actor_forward.1} parent=1 // pred_check
      _
    $region95: #{lstm_sac_actor_forward.1} parent=1 // pred_check_branch
      %150 = sbr.rel (0) target = $region97
    $region96: #{lstm_sac_actor_forward.1} parent=1 // pred_region
      %151 = dma.done [#allocation14], 16
    $region97: #{lstm_sac_actor_forward.1} parent=1 // pred_fallthru
      _
    // Predicated region
    $region98: #{lstm_sac_actor_forward.1} parent=1 // pred_check
      _
    $region99: #{lstm_sac_actor_forward.1} parent=1 // pred_check_branch
      %153 = sbr.rel (0) target = $region101
    $region100: #{lstm_sac_actor_forward.1} parent=1 // pred_region
      %154 = dma.done [#allocation17], 16
    $region101: #{lstm_sac_actor_forward.1} parent=1 // pred_fallthru
      _
    %v156 = vld [vmem:[%s0] sm:$0xff]
    %v157 = vld [vmem:[%s0 + $0x8] sm:$0xff]
    %v158 = vld [vmem:[%s0 + $0x10] sm:$0xff]
    %v159 = vld [vmem:[%s0 + $0x18] sm:$0xff]
    %v160 = vld [vmem:[%s0 + $0x20] sm:$0xff]
    %v161 = vld [vmem:[%s0 + $0x28] sm:$0xff]
    %v162 = vld [vmem:[%s0 + $0x30] sm:$0xff]
    %v163 = vld [vmem:[%s0 + $0x38] sm:$0xff]
    %v164 = vld [vmem:[%s0 + $0x40] sm:$0xff]
    %v165 = vld [vmem:[%s0 + $0x48] sm:$0xff]
    %v166 = vpack.c.bf16 %v157, %v156
    %v167 = vpack.c.bf16 %v159, %v158
    %v168 = vpack.c.bf16 %v161, %v160
    %v169 = vpack.c.bf16 %v163, %v162
    %v170 = vpack.c.bf16 %v165, %v164
    %v171 = vld [vmem:[%s2] sm:$0xff]
    %v172 = vld [vmem:[%s2 + $0x8] sm:$0xff]
    %v173 = vld [vmem:[%s2 + $0x10] sm:$0xff]
    %v174 = vld [vmem:[%s2 + $0x18] sm:$0xff]
    %v175 = vld [vmem:[#allocation5] sm:$0xf]
    %v177 = vlaneseq
    %v178 = vshrl.u32 %v177, 7
    %v179 = vsub.s32 0, %v178
    %v180 = vrot.slane %v175, %v179
    %v181 = vlaneseq
    %v182 = vshrl.u32 %v181, 7
    %v183 = vsub.s32 1, %v182
    %v184 = vrot.slane %v175, %v183
    %v185 = vlaneseq
    %v186 = vshrl.u32 %v185, 7
    %v187 = vsub.s32 2, %v186
    %v188 = vrot.slane %v175, %v187
    %v189 = vlaneseq
    %v190 = vshrl.u32 %v189, 7
    %v191 = vsub.s32 3, %v190
    %v192 = vrot.slane %v175, %v191
    %v201 = vunpack.c.l.b16 %v171
    %v202 = vunpack.c.h.b16 %v171
    %v203 = vunpack.c.l.b16 %v172
    %v204 = vunpack.c.h.b16 %v172
    %v205 = vunpack.c.l.b16 %v173
    %v206 = vunpack.c.h.b16 %v173
    %v207 = vunpack.c.l.b16 %v174
    %v208 = vunpack.c.h.b16 %v174
    %v209 = vpack.c.b16 %v205, %v201
    %v210 = vpack.c.b16 %v206, %v202
    %v211 = vpack.c.b16 %v207, %v203
    %v212 = vpack.c.b16 %v208, %v204
    %vm217 = vcmask 130048
    %v219 = vsel %vm217, %v166, 0
    %v222 = vsel %vm217, %v167, 0
    %v225 = vsel %vm217, %v168, 0
    %v228 = vsel %vm217, %v169, 0
    %v231 = vsel %vm217, %v170, 0
    %233 = vmatprep.subr.bf16.mxu0 0
    %234 = vmatpush1.bf16.msra.mxu0 0
    %235 = vmatprep.subr.bf16.mxu0 0
    %236 = vmatpush1.bf16.msra.mxu0 0
    %237 = vmatprep.subr.bf16.mxu0 0
    %238 = vmatpush1.bf16.msra.mxu0 0
    %239 = vmatprep.subr.bf16.mxu0 0
    %240 = vmatpush1.bf16.msra.mxu0 0
    %241 = vmatprep.subr.bf16.mxu0 0
    %242 = vmatpush1.bf16.msra.mxu0 0
    %243 = vmatprep.subr.bf16.mxu0 0
    %244 = vmatpush1.bf16.msra.mxu0 0
    %245 = vmatprep.subr.bf16.mxu0 0
    %246 = vmatpush1.bf16.msra.mxu0 0
    %247 = vmatprep.subr.bf16.mxu0 %v210
    %248 = vmatpush1.bf16.msra.mxu0 %v209
    %249 = vmatprep.subr.bf16.mxu0 0
    %250 = vmatpush2.bf16.msra.mxu0 0
    %251 = vmatprep.subr.bf16.mxu0 0
    %252 = vmatpush2.bf16.msra.mxu0 0
    %253 = vmatprep.subr.bf16.mxu0 0
    %254 = vmatpush2.bf16.msra.mxu0 0
    %255 = vmatprep.subr.bf16.mxu0 0
    %256 = vmatpush2.bf16.msra.mxu0 0
    %257 = vmatprep.subr.bf16.mxu0 0
    %258 = vmatpush2.bf16.msra.mxu0 0
    %259 = vmatprep.subr.bf16.mxu0 0
    %260 = vmatpush2.bf16.msra.mxu0 0
    %261 = vmatprep.subr.bf16.mxu0 0
    %262 = vmatpush2.bf16.msra.mxu0 0
    %263 = vmatprep.subr.bf16.mxu0 0
    %264 = vmatpush2.bf16.msra.mxu0 0
    %265 = vmatprep.mubr.bf16.mxu0 0
    %266 = vmatmul.mubr.bf16.gmra.mxu0 %v219
    %v267 = vpop.f32.mrf.mxu0
    %v268 = vadd.f32 %v180, %v267
    %v269 = vpop.f32.mrf.mxu0
    %v270 = vadd.f32 %v184, %v269
    %v271 = vpop.f32.mrf.mxu0
    %v272 = vadd.f32 %v180, %v271
    %v273 = vpop.f32.mrf.mxu0
    %v274 = vadd.f32 %v184, %v273
    %275 = vmatprep.mubr.bf16.mxu0 0
    %276 = vmatmul.mubr.bf16.gmra.mxu0 %v222
    %v277 = vpop.f32.mrf.mxu0
    %v278 = vadd.f32 %v180, %v277
    %v279 = vpop.f32.mrf.mxu0
    %v280 = vadd.f32 %v184, %v279
    %v281 = vpop.f32.mrf.mxu0
    %v282 = vadd.f32 %v180, %v281
    %v283 = vpop.f32.mrf.mxu0
    %v284 = vadd.f32 %v184, %v283
    %285 = vmatprep.mubr.bf16.mxu0 0
    %286 = vmatmul.mubr.bf16.gmra.mxu0 %v225
    %v287 = vpop.f32.mrf.mxu0
    %v288 = vadd.f32 %v180, %v287
    %v289 = vpop.f32.mrf.mxu0
    %v290 = vadd.f32 %v184, %v289
    %v291 = vpop.f32.mrf.mxu0
    %v292 = vadd.f32 %v180, %v291
    %v293 = vpop.f32.mrf.mxu0
    %v294 = vadd.f32 %v184, %v293
    %295 = vmatprep.mubr.bf16.mxu0 0
    %296 = vmatmul.mubr.bf16.gmra.mxu0 %v228
    %v297 = vpop.f32.mrf.mxu0
    %v298 = vadd.f32 %v180, %v297
    %v299 = vpop.f32.mrf.mxu0
    %v300 = vadd.f32 %v184, %v299
    %v301 = vpop.f32.mrf.mxu0
    %v302 = vadd.f32 %v180, %v301
    %v303 = vpop.f32.mrf.mxu0
    %v304 = vadd.f32 %v184, %v303
    %305 = vmatprep.mubr.bf16.mxu0 0
    %306 = vmatmul.mubr.bf16.gmra.mxu0 %v231
    %v307 = vpop.f32.mrf.mxu0
    %v308 = vadd.f32 %v180, %v307
    %v309 = vpop.f32.mrf.mxu0
    %v310 = vadd.f32 %v184, %v309
    %v311 = vpop.f32.mrf.mxu0
    %v312 = vadd.f32 %v180, %v311
    %v313 = vpop.f32.mrf.mxu0
    %v314 = vadd.f32 %v184, %v313
    %315 = vdwg.mxu0
    %316 = vmatprep.subr.bf16.mxu0 0
    %317 = vmatpush1.bf16.msra.mxu0 0
    %318 = vmatprep.subr.bf16.mxu0 0
    %319 = vmatpush1.bf16.msra.mxu0 0
    %320 = vmatprep.subr.bf16.mxu0 0
    %321 = vmatpush1.bf16.msra.mxu0 0
    %322 = vmatprep.subr.bf16.mxu0 0
    %323 = vmatpush1.bf16.msra.mxu0 0
    %324 = vmatprep.subr.bf16.mxu0 0
    %325 = vmatpush1.bf16.msra.mxu0 0
    %326 = vmatprep.subr.bf16.mxu0 0
    %327 = vmatpush1.bf16.msra.mxu0 0
    %328 = vmatprep.subr.bf16.mxu0 0
    %329 = vmatpush1.bf16.msra.mxu0 0
    %330 = vmatprep.subr.bf16.mxu0 %v212
    %331 = vmatpush1.bf16.msra.mxu0 %v211
    %332 = vmatprep.subr.bf16.mxu0 0
    %333 = vmatpush2.bf16.msra.mxu0 0
    %334 = vmatprep.subr.bf16.mxu0 0
    %335 = vmatpush2.bf16.msra.mxu0 0
    %336 = vmatprep.subr.bf16.mxu0 0
    %337 = vmatpush2.bf16.msra.mxu0 0
    %338 = vmatprep.subr.bf16.mxu0 0
    %339 = vmatpush2.bf16.msra.mxu0 0
    %340 = vmatprep.subr.bf16.mxu0 0
    %341 = vmatpush2.bf16.msra.mxu0 0
    %342 = vmatprep.subr.bf16.mxu0 0
    %343 = vmatpush2.bf16.msra.mxu0 0
    %344 = vmatprep.subr.bf16.mxu0 0
    %345 = vmatpush2.bf16.msra.mxu0 0
    %346 = vmatprep.subr.bf16.mxu0 0
    %347 = vmatpush2.bf16.msra.mxu0 0
    %348 = vmatprep.mubr.bf16.mxu0 0
    %349 = vmatmul.mubr.bf16.gmra.mxu0 %v219
    %v350 = vpop.f32.mrf.mxu0
    %v351 = vadd.f32 %v188, %v350
    %v352 = vpop.f32.mrf.mxu0
    %v353 = vadd.f32 %v192, %v352
    %v354 = vpop.f32.mrf.mxu0
    %v355 = vadd.f32 %v188, %v354
    %v356 = vpop.f32.mrf.mxu0
    %v357 = vadd.f32 %v192, %v356
    %358 = vmatprep.mubr.bf16.mxu0 0
    %359 = vmatmul.mubr.bf16.gmra.mxu0 %v222
    %v360 = vpop.f32.mrf.mxu0
    %v361 = vadd.f32 %v188, %v360
    %v362 = vpop.f32.mrf.mxu0
    %v363 = vadd.f32 %v192, %v362
    %v364 = vpop.f32.mrf.mxu0
    %v365 = vadd.f32 %v188, %v364
    %v366 = vpop.f32.mrf.mxu0
    %v367 = vadd.f32 %v192, %v366
    %368 = vmatprep.mubr.bf16.mxu0 0
    %369 = vmatmul.mubr.bf16.gmra.mxu0 %v225
    %v370 = vpop.f32.mrf.mxu0
    %v371 = vadd.f32 %v188, %v370
    %v372 = vpop.f32.mrf.mxu0
    %v373 = vadd.f32 %v192, %v372
    %v374 = vpop.f32.mrf.mxu0
    %v375 = vadd.f32 %v188, %v374
    %v376 = vpop.f32.mrf.mxu0
    %v377 = vadd.f32 %v192, %v376
    %378 = vmatprep.mubr.bf16.mxu0 0
    %379 = vmatmul.mubr.bf16.gmra.mxu0 %v228
    %v380 = vpop.f32.mrf.mxu0
    %v381 = vadd.f32 %v188, %v380
    %v382 = vpop.f32.mrf.mxu0
    %v383 = vadd.f32 %v192, %v382
    %v384 = vpop.f32.mrf.mxu0
    %v385 = vadd.f32 %v188, %v384
    %v386 = vpop.f32.mrf.mxu0
    %v387 = vadd.f32 %v192, %v386
    %388 = vmatprep.mubr.bf16.mxu0 0
    %389 = vmatmul.mubr.bf16.gmra.mxu0 %v231
    %v390 = vpop.f32.mrf.mxu0
    %v391 = vadd.f32 %v188, %v390
    %v392 = vpop.f32.mrf.mxu0
    %v393 = vadd.f32 %v192, %v392
    %v394 = vpop.f32.mrf.mxu0
    %v395 = vadd.f32 %v188, %v394
    %v396 = vpop.f32.mrf.mxu0
    %v397 = vadd.f32 %v192, %v396
    %398 = vdwg.mxu0
    %399 = vst [vmem:[#allocation2] sm:$0xff] %v268
    %400 = vst [vmem:[#allocation2 + $0x8] sm:$0xff] %v270
    %401 = vst [vmem:[#allocation2 + $0x10] sm:$0xff] %v351
    %402 = vst [vmem:[#allocation2 + $0x18] sm:$0xff] %v353
    %403 = vst [vmem:[#allocation2 + $0x20] sm:$0xff] %v272
    %404 = vst [vmem:[#allocation2 + $0x28] sm:$0xff] %v274
    %405 = vst [vmem:[#allocation2 + $0x30] sm:$0xff] %v355
    %406 = vst [vmem:[#allocation2 + $0x38] sm:$0xff] %v357
    %407 = vst [vmem:[#allocation2 + $0x40] sm:$0xff] %v278
    %408 = vst [vmem:[#allocation2 + $0x48] sm:$0xff] %v280
    %409 = vst [vmem:[#allocation2 + $0x50] sm:$0xff] %v361
    %410 = vst [vmem:[#allocation2 + $0x58] sm:$0xff] %v363
    %411 = vst [vmem:[#allocation2 + $0x60] sm:$0xff] %v282
    %412 = vst [vmem:[#allocation2 + $0x68] sm:$0xff] %v284
    %413 = vst [vmem:[#allocation2 + $0x70] sm:$0xff] %v365
    %414 = vst [vmem:[#allocation2 + $0x78] sm:$0xff] %v367
    %415 = vst [vmem:[#allocation2 + $0x80] sm:$0xff] %v288
    %416 = vst [vmem:[#allocation2 + $0x88] sm:$0xff] %v290
    %417 = vst [vmem:[#allocation2 + $0x90] sm:$0xff] %v371
    %418 = vst [vmem:[#allocation2 + $0x98] sm:$0xff] %v373
    %419 = vst [vmem:[#allocation2 + $0xa0] sm:$0xff] %v292
    %420 = vst [vmem:[#allocation2 + $0xa8] sm:$0xff] %v294
    %421 = vst [vmem:[#allocation2 + $0xb0] sm:$0xff] %v375
    %422 = vst [vmem:[#allocation2 + $0xb8] sm:$0xff] %v377
    %423 = vst [vmem:[#allocation2 + $0xc0] sm:$0xff] %v298
    %424 = vst [vmem:[#allocation2 + $0xc8] sm:$0xff] %v300
    %425 = vst [vmem:[#allocation2 + $0xd0] sm:$0xff] %v381
    %426 = vst [vmem:[#allocation2 + $0xd8] sm:$0xff] %v383
    %427 = vst [vmem:[#allocation2 + $0xe0] sm:$0xff] %v302
    %428 = vst [vmem:[#allocation2 + $0xe8] sm:$0xff] %v304
    %429 = vst [vmem:[#allocation2 + $0xf0] sm:$0xff] %v385
    %430 = vst [vmem:[#allocation2 + $0xf8] sm:$0xff] %v387
    %431 = vst [vmem:[#allocation2 + $0x100] sm:$0xff] %v308
    %432 = vst [vmem:[#allocation2 + $0x108] sm:$0xff] %v310
    %433 = vst [vmem:[#allocation2 + $0x110] sm:$0xff] %v391
    %434 = vst [vmem:[#allocation2 + $0x118] sm:$0xff] %v393
    %435 = vst [vmem:[#allocation2 + $0x120] sm:$0xff] %v312
    %436 = vst [vmem:[#allocation2 + $0x128] sm:$0xff] %v314
    %437 = vst [vmem:[#allocation2 + $0x130] sm:$0xff] %v395
    %438 = vst [vmem:[#allocation2 + $0x138] sm:$0xff] %v397
    %v439 = vld [vmem:[%s3] sm:$0xff]
    %v440 = vld [vmem:[%s3 + $0x8] sm:$0xff]
    %v441 = vld [vmem:[%s3 + $0x10] sm:$0xff]
    %v442 = vld [vmem:[%s3 + $0x18] sm:$0xff]
    %v443 = vld [vmem:[%s3 + $0x20] sm:$0xff]
    %v444 = vld [vmem:[%s3 + $0x28] sm:$0xff]
    %v445 = vld [vmem:[%s3 + $0x30] sm:$0xff]
    %v446 = vld [vmem:[%s3 + $0x38] sm:$0xff]
    %v447 = vld [vmem:[%s3 + $0x40] sm:$0xff]
    %v448 = vld [vmem:[%s3 + $0x48] sm:$0xff]
    %v449 = vld [vmem:[%s3 + $0x50] sm:$0xff]
    %v450 = vld [vmem:[%s3 + $0x58] sm:$0xff]
    %v451 = vld [vmem:[%s3 + $0x60] sm:$0xff]
    %v452 = vld [vmem:[%s3 + $0x68] sm:$0xff]
    %v453 = vld [vmem:[%s3 + $0x70] sm:$0xff]
    %v454 = vld [vmem:[%s3 + $0x78] sm:$0xff]
    %v455 = vld [vmem:[%s3 + $0x80] sm:$0xff]
    %v456 = vld [vmem:[%s3 + $0x88] sm:$0xff]
    %v457 = vld [vmem:[%s3 + $0x90] sm:$0xff]
    %v458 = vld [vmem:[%s3 + $0x98] sm:$0xff]
    %v459 = vld [vmem:[%s3 + $0xa0] sm:$0xff]
    %v460 = vld [vmem:[%s3 + $0xa8] sm:$0xff]
    %v461 = vld [vmem:[%s3 + $0xb0] sm:$0xff]
    %v462 = vld [vmem:[%s3 + $0xb8] sm:$0xff]
    %v463 = vld [vmem:[%s3 + $0xc0] sm:$0xff]
    %v464 = vld [vmem:[%s3 + $0xc8] sm:$0xff]
    %v465 = vld [vmem:[%s3 + $0xd0] sm:$0xff]
    %v466 = vld [vmem:[%s3 + $0xd8] sm:$0xff]
    %v467 = vld [vmem:[%s3 + $0xe0] sm:$0xff]
    %v468 = vld [vmem:[%s3 + $0xe8] sm:$0xff]
    %v469 = vld [vmem:[%s3 + $0xf0] sm:$0xff]
    %v470 = vld [vmem:[%s3 + $0xf8] sm:$0xff]
    %s471 = smul.u32 0, 4
    %s472 = smul.addr %s471, 8
    %s473 = scalar_lea.vmem [#allocation2], %s472
    %v474 = vld [vmem:[%s473] sm:$0xff]
    %v475 = vld [vmem:[%s473 + $0x8] sm:$0xff]
    %v476 = vld [vmem:[%s473 + $0x10] sm:$0xff]
    %v477 = vld [vmem:[%s473 + $0x18] sm:$0xff]
    %v510 = vunpack.c.l.b16 %v439
    %v511 = vunpack.c.h.b16 %v439
    %v512 = vunpack.c.l.b16 %v440
    %v513 = vunpack.c.h.b16 %v440
    %v514 = vunpack.c.l.b16 %v441
    %v515 = vunpack.c.h.b16 %v441
    %v516 = vunpack.c.l.b16 %v442
    %v517 = vunpack.c.h.b16 %v442
    %v518 = vunpack.c.l.b16 %v443
    %v519 = vunpack.c.h.b16 %v443
    %v520 = vunpack.c.l.b16 %v444
    %v521 = vunpack.c.h.b16 %v444
    %v522 = vunpack.c.l.b16 %v445
    %v523 = vunpack.c.h.b16 %v445
    %v524 = vunpack.c.l.b16 %v446
    %v525 = vunpack.c.h.b16 %v446
    %v526 = vunpack.c.l.b16 %v447
    %v527 = vunpack.c.h.b16 %v447
    %v528 = vunpack.c.l.b16 %v448
    %v529 = vunpack.c.h.b16 %v448
    %v530 = vunpack.c.l.b16 %v449
    %v531 = vunpack.c.h.b16 %v449
    %v532 = vunpack.c.l.b16 %v450
    %v533 = vunpack.c.h.b16 %v450
    %v534 = vunpack.c.l.b16 %v451
    %v535 = vunpack.c.h.b16 %v451
    %v536 = vunpack.c.l.b16 %v452
    %v537 = vunpack.c.h.b16 %v452
    %v538 = vunpack.c.l.b16 %v453
    %v539 = vunpack.c.h.b16 %v453
    %v540 = vunpack.c.l.b16 %v454
    %v541 = vunpack.c.h.b16 %v454
    %v542 = vunpack.c.l.b16 %v455
    %v543 = vunpack.c.h.b16 %v455
    %v544 = vunpack.c.l.b16 %v456
    %v545 = vunpack.c.h.b16 %v456
    %v546 = vunpack.c.l.b16 %v457
    %v547 = vunpack.c.h.b16 %v457
    %v548 = vunpack.c.l.b16 %v458
    %v549 = vunpack.c.h.b16 %v458
    %v550 = vunpack.c.l.b16 %v459
    %v551 = vunpack.c.h.b16 %v459
    %v552 = vunpack.c.l.b16 %v460
    %v553 = vunpack.c.h.b16 %v460
    %v554 = vunpack.c.l.b16 %v461
    %v555 = vunpack.c.h.b16 %v461
    %v556 = vunpack.c.l.b16 %v462
    %v557 = vunpack.c.h.b16 %v462
    %v558 = vunpack.c.l.b16 %v463
    %v559 = vunpack.c.h.b16 %v463
    %v560 = vunpack.c.l.b16 %v464
    %v561 = vunpack.c.h.b16 %v464
    %v562 = vunpack.c.l.b16 %v465
    %v563 = vunpack.c.h.b16 %v465
    %v564 = vunpack.c.l.b16 %v466
    %v565 = vunpack.c.h.b16 %v466
    %v566 = vunpack.c.l.b16 %v467
    %v567 = vunpack.c.h.b16 %v467
    %v568 = vunpack.c.l.b16 %v468
    %v569 = vunpack.c.h.b16 %v468
    %v570 = vunpack.c.l.b16 %v469
    %v571 = vunpack.c.h.b16 %v469
    %v572 = vunpack.c.l.b16 %v470
    %v573 = vunpack.c.h.b16 %v470
    %v574 = vpack.c.b16 %v514, %v510
    %v575 = vpack.c.b16 %v515, %v511
    %v576 = vpack.c.b16 %v516, %v512
    %v577 = vpack.c.b16 %v517, %v513
    %v578 = vpack.c.b16 %v522, %v518
    %v579 = vpack.c.b16 %v523, %v519
    %v580 = vpack.c.b16 %v524, %v520
    %v581 = vpack.c.b16 %v525, %v521
    %v582 = vpack.c.b16 %v530, %v526
    %v583 = vpack.c.b16 %v531, %v527
    %v584 = vpack.c.b16 %v532, %v528
    %v585 = vpack.c.b16 %v533, %v529
    %v586 = vpack.c.b16 %v538, %v534
    %v587 = vpack.c.b16 %v539, %v535
    %v588 = vpack.c.b16 %v540, %v536
    %v589 = vpack.c.b16 %v541, %v537
    %v590 = vpack.c.b16 %v546, %v542
    %v591 = vpack.c.b16 %v547, %v543
    %v592 = vpack.c.b16 %v548, %v544
    %v593 = vpack.c.b16 %v549, %v545
    %v594 = vpack.c.b16 %v554, %v550
    %v595 = vpack.c.b16 %v555, %v551
    %v596 = vpack.c.b16 %v556, %v552
    %v597 = vpack.c.b16 %v557, %v553
    %v598 = vpack.c.b16 %v562, %v558
    %v599 = vpack.c.b16 %v563, %v559
    %v600 = vpack.c.b16 %v564, %v560
    %v601 = vpack.c.b16 %v565, %v561
    %v602 = vpack.c.b16 %v570, %v566
    %v603 = vpack.c.b16 %v571, %v567
    %v604 = vpack.c.b16 %v572, %v568
    %v605 = vpack.c.b16 %v573, %v569
    %638 = vmatprep.subr.bf16.mxu0 %v603
    %639 = vmatpush1.bf16.msra.mxu0 %v602
    %640 = vmatprep.subr.bf16.mxu0 %v599
    %641 = vmatpush1.bf16.msra.mxu0 %v598
    %642 = vmatprep.subr.bf16.mxu0 %v595
    %643 = vmatpush1.bf16.msra.mxu0 %v594
    %644 = vmatprep.subr.bf16.mxu0 %v591
    %645 = vmatpush1.bf16.msra.mxu0 %v590
    %646 = vmatprep.subr.bf16.mxu0 %v587
    %647 = vmatpush1.bf16.msra.mxu0 %v586
    %648 = vmatprep.subr.bf16.mxu0 %v583
    %649 = vmatpush1.bf16.msra.mxu0 %v582
    %650 = vmatprep.subr.bf16.mxu0 %v579
    %651 = vmatpush1.bf16.msra.mxu0 %v578
    %652 = vmatprep.subr.bf16.mxu0 %v575
    %653 = vmatpush1.bf16.msra.mxu0 %v574
    %654 = vmatprep.subr.bf16.mxu0 0
    %655 = vmatpush2.bf16.msra.mxu0 0
    %656 = vmatprep.subr.bf16.mxu0 0
    %657 = vmatpush2.bf16.msra.mxu0 0
    %658 = vmatprep.subr.bf16.mxu0 0
    %659 = vmatpush2.bf16.msra.mxu0 0
    %660 = vmatprep.subr.bf16.mxu0 0
    %661 = vmatpush2.bf16.msra.mxu0 0
    %662 = vmatprep.subr.bf16.mxu0 0
    %663 = vmatpush2.bf16.msra.mxu0 0
    %664 = vmatprep.subr.bf16.mxu0 0
    %665 = vmatpush2.bf16.msra.mxu0 0
    %666 = vmatprep.subr.bf16.mxu0 0
    %667 = vmatpush2.bf16.msra.mxu0 0
    %668 = vmatprep.subr.bf16.mxu0 0
    %669 = vmatpush2.bf16.msra.mxu0 0
    %670 = vmatprep.mubr.bf16.mxu0 0
    %671 = vmatmul.mubr.bf16.gmra.mxu0 0
    %v672 = vpop.f32.mrf.mxu0
    %v673 = vadd.f32 %v474, %v672
    %v674 = vpop.f32.mrf.mxu0
    %v675 = vadd.f32 %v475, %v674
    %v676 = vpop.f32.mrf.mxu0
    %v677 = vpop.f32.mrf.mxu0
    %678 = vdwg.mxu0
    %679 = vmatprep.subr.bf16.mxu0 %v605
    %680 = vmatpush1.bf16.msra.mxu0 %v604
    %681 = vmatprep.subr.bf16.mxu0 %v601
    %682 = vmatpush1.bf16.msra.mxu0 %v600
    %683 = vmatprep.subr.bf16.mxu0 %v597
    %684 = vmatpush1.bf16.msra.mxu0 %v596
    %685 = vmatprep.subr.bf16.mxu0 %v593
    %686 = vmatpush1.bf16.msra.mxu0 %v592
    %687 = vmatprep.subr.bf16.mxu0 %v589
    %688 = vmatpush1.bf16.msra.mxu0 %v588
    %689 = vmatprep.subr.bf16.mxu0 %v585
    %690 = vmatpush1.bf16.msra.mxu0 %v584
    %691 = vmatprep.subr.bf16.mxu0 %v581
    %692 = vmatpush1.bf16.msra.mxu0 %v580
    %693 = vmatprep.subr.bf16.mxu0 %v577
    %694 = vmatpush1.bf16.msra.mxu0 %v576
    %695 = vmatprep.subr.bf16.mxu0 0
    %696 = vmatpush2.bf16.msra.mxu0 0
    %697 = vmatprep.subr.bf16.mxu0 0
    %698 = vmatpush2.bf16.msra.mxu0 0
    %699 = vmatprep.subr.bf16.mxu0 0
    %700 = vmatpush2.bf16.msra.mxu0 0
    %701 = vmatprep.subr.bf16.mxu0 0
    %702 = vmatpush2.bf16.msra.mxu0 0
    %703 = vmatprep.subr.bf16.mxu0 0
    %704 = vmatpush2.bf16.msra.mxu0 0
    %705 = vmatprep.subr.bf16.mxu0 0
    %706 = vmatpush2.bf16.msra.mxu0 0
    %707 = vmatprep.subr.bf16.mxu0 0
    %708 = vmatpush2.bf16.msra.mxu0 0
    %709 = vmatprep.subr.bf16.mxu0 0
    %710 = vmatpush2.bf16.msra.mxu0 0
    %711 = vmatprep.mubr.bf16.mxu0 0
    %712 = vmatmul.mubr.bf16.gmra.mxu0 0
    %v713 = vpop.f32.mrf.mxu0
    %v714 = vadd.f32 %v476, %v713
    %v715 = vpop.f32.mrf.mxu0
    %v716 = vadd.f32 %v477, %v715
    %v717 = vpop.f32.mrf.mxu0
    %v718 = vpop.f32.mrf.mxu0
    %719 = vdwg.mxu0
    %v720 = vmul.f32 %v673, 0.5
    %v721 = vtanh.pop %v720
    %v722 = vmul.f32 %v721, 0.5
    %v723 = vadd.f32 %v722, 0.5
    %v724 = vmul.f32 %v675, 0.5
    %v725 = vtanh.pop %v724
    %v726 = vmul.f32 %v725, 0.5
    %v727 = vadd.f32 %v726, 0.5
    %v728 = vtanh.pop %v714
    %v729 = vmul.f32 %v716, 0.5
    %v730 = vtanh.pop %v729
    %v731 = vmul.f32 %v730, 0.5
    %v732 = vadd.f32 %v731, 0.5
    %v733 = vmul.f32 %v727, 0.0
    %v734 = vmul.f32 %v723, %v728
    %v735 = vadd.f32 %v733, %v734
    %v736 = vtanh.pop %v735
    %v737 = vmul.f32 %v732, %v736
    %738 = vst [vmem:[#allocation3] sm:$0xff] %v737
    %s739 = scalar_lea.vmem [#allocation4], 72
    %740 = vst [vmem:[%s739] sm:$0xff] %v737
    %v741 = vpack.c.bf16 %v737, %v737
    %v742 = vld [vmem:[%s3] sm:$0xff]
    %v743 = vld [vmem:[%s3 + $0x8] sm:$0xff]
    %v744 = vld [vmem:[%s3 + $0x10] sm:$0xff]
    %v745 = vld [vmem:[%s3 + $0x18] sm:$0xff]
    %v746 = vld [vmem:[%s3 + $0x20] sm:$0xff]
    %v747 = vld [vmem:[%s3 + $0x28] sm:$0xff]
    %v748 = vld [vmem:[%s3 + $0x30] sm:$0xff]
    %v749 = vld [vmem:[%s3 + $0x38] sm:$0xff]
    %v750 = vld [vmem:[%s3 + $0x40] sm:$0xff]
    %v751 = vld [vmem:[%s3 + $0x48] sm:$0xff]
    %v752 = vld [vmem:[%s3 + $0x50] sm:$0xff]
    %v753 = vld [vmem:[%s3 + $0x58] sm:$0xff]
    %v754 = vld [vmem:[%s3 + $0x60] sm:$0xff]
    %v755 = vld [vmem:[%s3 + $0x68] sm:$0xff]
    %v756 = vld [vmem:[%s3 + $0x70] sm:$0xff]
    %v757 = vld [vmem:[%s3 + $0x78] sm:$0xff]
    %v758 = vld [vmem:[%s3 + $0x80] sm:$0xff]
    %v759 = vld [vmem:[%s3 + $0x88] sm:$0xff]
    %v760 = vld [vmem:[%s3 + $0x90] sm:$0xff]
    %v761 = vld [vmem:[%s3 + $0x98] sm:$0xff]
    %v762 = vld [vmem:[%s3 + $0xa0] sm:$0xff]
    %v763 = vld [vmem:[%s3 + $0xa8] sm:$0xff]
    %v764 = vld [vmem:[%s3 + $0xb0] sm:$0xff]
    %v765 = vld [vmem:[%s3 + $0xb8] sm:$0xff]
    %v766 = vld [vmem:[%s3 + $0xc0] sm:$0xff]
    %v767 = vld [vmem:[%s3 + $0xc8] sm:$0xff]
    %v768 = vld [vmem:[%s3 + $0xd0] sm:$0xff]
    %v769 = vld [vmem:[%s3 + $0xd8] sm:$0xff]
    %v770 = vld [vmem:[%s3 + $0xe0] sm:$0xff]
    %v771 = vld [vmem:[%s3 + $0xe8] sm:$0xff]
    %v772 = vld [vmem:[%s3 + $0xf0] sm:$0xff]
    %v773 = vld [vmem:[%s3 + $0xf8] sm:$0xff]
    %s774 = smul.u32 1, 4
    %s775 = smul.addr %s774, 8
    %s776 = scalar_lea.vmem [#allocation2], %s775
    %v777 = vld [vmem:[%s776] sm:$0xff]
    %v778 = vld [vmem:[%s776 + $0x8] sm:$0xff]
    %v779 = vld [vmem:[%s776 + $0x10] sm:$0xff]
    %v780 = vld [vmem:[%s776 + $0x18] sm:$0xff]
    %v813 = vunpack.c.l.b16 %v742
    %v814 = vunpack.c.h.b16 %v742
    %v815 = vunpack.c.l.b16 %v743
    %v816 = vunpack.c.h.b16 %v743
    %v817 = vunpack.c.l.b16 %v744
    %v818 = vunpack.c.h.b16 %v744
    %v819 = vunpack.c.l.b16 %v745
    %v820 = vunpack.c.h.b16 %v745
    %v821 = vunpack.c.l.b16 %v746
    %v822 = vunpack.c.h.b16 %v746
    %v823 = vunpack.c.l.b16 %v747
    %v824 = vunpack.c.h.b16 %v747
    %v825 = vunpack.c.l.b16 %v748
    %v826 = vunpack.c.h.b16 %v748
    %v827 = vunpack.c.l.b16 %v749
    %v828 = vunpack.c.h.b16 %v749
    %v829 = vunpack.c.l.b16 %v750
    %v830 = vunpack.c.h.b16 %v750
    %v831 = vunpack.c.l.b16 %v751
    %v832 = vunpack.c.h.b16 %v751
    %v833 = vunpack.c.l.b16 %v752
    %v834 = vunpack.c.h.b16 %v752
    %v835 = vunpack.c.l.b16 %v753
    %v836 = vunpack.c.h.b16 %v753
    %v837 = vunpack.c.l.b16 %v754
    %v838 = vunpack.c.h.b16 %v754
    %v839 = vunpack.c.l.b16 %v755
    %v840 = vunpack.c.h.b16 %v755
    %v841 = vunpack.c.l.b16 %v756
    %v842 = vunpack.c.h.b16 %v756
    %v843 = vunpack.c.l.b16 %v757
    %v844 = vunpack.c.h.b16 %v757
    %v845 = vunpack.c.l.b16 %v758
    %v846 = vunpack.c.h.b16 %v758
    %v847 = vunpack.c.l.b16 %v759
    %v848 = vunpack.c.h.b16 %v759
    %v849 = vunpack.c.l.b16 %v760
    %v850 = vunpack.c.h.b16 %v760
    %v851 = vunpack.c.l.b16 %v761
    %v852 = vunpack.c.h.b16 %v761
    %v853 = vunpack.c.l.b16 %v762
    %v854 = vunpack.c.h.b16 %v762
    %v855 = vunpack.c.l.b16 %v763
    %v856 = vunpack.c.h.b16 %v763
    %v857 = vunpack.c.l.b16 %v764
    %v858 = vunpack.c.h.b16 %v764
    %v859 = vunpack.c.l.b16 %v765
    %v860 = vunpack.c.h.b16 %v765
    %v861 = vunpack.c.l.b16 %v766
    %v862 = vunpack.c.h.b16 %v766
    %v863 = vunpack.c.l.b16 %v767
    %v864 = vunpack.c.h.b16 %v767
    %v865 = vunpack.c.l.b16 %v768
    %v866 = vunpack.c.h.b16 %v768
    %v867 = vunpack.c.l.b16 %v769
    %v868 = vunpack.c.h.b16 %v769
    %v869 = vunpack.c.l.b16 %v770
    %v870 = vunpack.c.h.b16 %v770
    %v871 = vunpack.c.l.b16 %v771
    %v872 = vunpack.c.h.b16 %v771
    %v873 = vunpack.c.l.b16 %v772
    %v874 = vunpack.c.h.b16 %v772
    %v875 = vunpack.c.l.b16 %v773
    %v876 = vunpack.c.h.b16 %v773
    %v877 = vpack.c.b16 %v817, %v813
    %v878 = vpack.c.b16 %v818, %v814
    %v879 = vpack.c.b16 %v819, %v815
    %v880 = vpack.c.b16 %v820, %v816
    %v881 = vpack.c.b16 %v825, %v821
    %v882 = vpack.c.b16 %v826, %v822
    %v883 = vpack.c.b16 %v827, %v823
    %v884 = vpack.c.b16 %v828, %v824
    %v885 = vpack.c.b16 %v833, %v829
    %v886 = vpack.c.b16 %v834, %v830
    %v887 = vpack.c.b16 %v835, %v831
    %v888 = vpack.c.b16 %v836, %v832
    %v889 = vpack.c.b16 %v841, %v837
    %v890 = vpack.c.b16 %v842, %v838
    %v891 = vpack.c.b16 %v843, %v839
    %v892 = vpack.c.b16 %v844, %v840
    %v893 = vpack.c.b16 %v849, %v845
    %v894 = vpack.c.b16 %v850, %v846
    %v895 = vpack.c.b16 %v851, %v847
    %v896 = vpack.c.b16 %v852, %v848
    %v897 = vpack.c.b16 %v857, %v853
    %v898 = vpack.c.b16 %v858, %v854
    %v899 = vpack.c.b16 %v859, %v855
    %v900 = vpack.c.b16 %v860, %v856
    %v901 = vpack.c.b16 %v865, %v861
    %v902 = vpack.c.b16 %v866, %v862
    %v903 = vpack.c.b16 %v867, %v863
    %v904 = vpack.c.b16 %v868, %v864
    %v905 = vpack.c.b16 %v873, %v869
    %v906 = vpack.c.b16 %v874, %v870
    %v907 = vpack.c.b16 %v875, %v871
    %v908 = vpack.c.b16 %v876, %v872
    %941 = vmatprep.subr.bf16.mxu0 %v906
    %942 = vmatpush1.bf16.msra.mxu0 %v905
    %943 = vmatprep.subr.bf16.mxu0 %v902
    %944 = vmatpush1.bf16.msra.mxu0 %v901
    %945 = vmatprep.subr.bf16.mxu0 %v898
    %946 = vmatpush1.bf16.msra.mxu0 %v897
    %947 = vmatprep.subr.bf16.mxu0 %v894
    %948 = vmatpush1.bf16.msra.mxu0 %v893
    %949 = vmatprep.subr.bf16.mxu0 %v890
    %950 = vmatpush1.bf16.msra.mxu0 %v889
    %951 = vmatprep.subr.bf16.mxu0 %v886
    %952 = vmatpush1.bf16.msra.mxu0 %v885
    %953 = vmatprep.subr.bf16.mxu0 %v882
    %954 = vmatpush1.bf16.msra.mxu0 %v881
    %955 = vmatprep.subr.bf16.mxu0 %v878
    %956 = vmatpush1.bf16.msra.mxu0 %v877
    %957 = vmatprep.subr.bf16.mxu0 0
    %958 = vmatpush2.bf16.msra.mxu0 0
    %959 = vmatprep.subr.bf16.mxu0 0
    %960 = vmatpush2.bf16.msra.mxu0 0
    %961 = vmatprep.subr.bf16.mxu0 0
    %962 = vmatpush2.bf16.msra.mxu0 0
    %963 = vmatprep.subr.bf16.mxu0 0
    %964 = vmatpush2.bf16.msra.mxu0 0
    %965 = vmatprep.subr.bf16.mxu0 0
    %966 = vmatpush2.bf16.msra.mxu0 0
    %967 = vmatprep.subr.bf16.mxu0 0
    %968 = vmatpush2.bf16.msra.mxu0 0
    %969 = vmatprep.subr.bf16.mxu0 0
    %970 = vmatpush2.bf16.msra.mxu0 0
    %971 = vmatprep.subr.bf16.mxu0 0
    %972 = vmatpush2.bf16.msra.mxu0 0
    %973 = vmatprep.mubr.bf16.mxu0 0
    %974 = vmatmul.mubr.bf16.gmra.mxu0 %v741
    %v975 = vpop.f32.mrf.mxu0
    %v976 = vadd.f32 %v777, %v975
    %v977 = vpop.f32.mrf.mxu0
    %v978 = vadd.f32 %v778, %v977
    %v979 = vpop.f32.mrf.mxu0
    %v980 = vpop.f32.mrf.mxu0
    %981 = vdwg.mxu0
    %982 = vmatprep.subr.bf16.mxu0 %v908
    %983 = vmatpush1.bf16.msra.mxu0 %v907
    %984 = vmatprep.subr.bf16.mxu0 %v904
    %985 = vmatpush1.bf16.msra.mxu0 %v903
    %986 = vmatprep.subr.bf16.mxu0 %v900
    %987 = vmatpush1.bf16.msra.mxu0 %v899
    %988 = vmatprep.subr.bf16.mxu0 %v896
    %989 = vmatpush1.bf16.msra.mxu0 %v895
    %990 = vmatprep.subr.bf16.mxu0 %v892
    %991 = vmatpush1.bf16.msra.mxu0 %v891
    %992 = vmatprep.subr.bf16.mxu0 %v888
    %993 = vmatpush1.bf16.msra.mxu0 %v887
    %994 = vmatprep.subr.bf16.mxu0 %v884
    %995 = vmatpush1.bf16.msra.mxu0 %v883
    %996 = vmatprep.subr.bf16.mxu0 %v880
    %997 = vmatpush1.bf16.msra.mxu0 %v879
    %998 = vmatprep.subr.bf16.mxu0 0
    %999 = vmatpush2.bf16.msra.mxu0 0
    %1000 = vmatprep.subr.bf16.mxu0 0
    %1001 = vmatpush2.bf16.msra.mxu0 0
    %1002 = vmatprep.subr.bf16.mxu0 0
    %1003 = vmatpush2.bf16.msra.mxu0 0
    %1004 = vmatprep.subr.bf16.mxu0 0
    %1005 = vmatpush2.bf16.msra.mxu0 0
    %1006 = vmatprep.subr.bf16.mxu0 0
    %1007 = vmatpush2.bf16.msra.mxu0 0
    %1008 = vmatprep.subr.bf16.mxu0 0
    %1009 = vmatpush2.bf16.msra.mxu0 0
    %1010 = vmatprep.subr.bf16.mxu0 0
    %1011 = vmatpush2.bf16.msra.mxu0 0
    %1012 = vmatprep.subr.bf16.mxu0 0
    %1013 = vmatpush2.bf16.msra.mxu0 0
    %1014 = vmatprep.mubr.bf16.mxu0 0
    %1015 = vmatmul.mubr.bf16.gmra.mxu0 %v741
    %v1016 = vpop.f32.mrf.mxu0
    %v1017 = vadd.f32 %v779, %v1016
    %v1018 = vpop.f32.mrf.mxu0
    %v1019 = vadd.f32 %v780, %v1018
    %v1020 = vpop.f32.mrf.mxu0
    %v1021 = vpop.f32.mrf.mxu0
    %1022 = vdwg.mxu0
    %v1023 = vmul.f32 %v976, 0.5
    %v1024 = vtanh.pop %v1023
    %v1025 = vmul.f32 %v1024, 0.5
    %v1026 = vadd.f32 %v1025, 0.5
    %v1027 = vmul.f32 %v978, 0.5
    %v1028 = vtanh.pop %v1027
    %v1029 = vmul.f32 %v1028, 0.5
    %v1030 = vadd.f32 %v1029, 0.5
    %v1031 = vtanh.pop %v1017
    %v1032 = vmul.f32 %v1019, 0.5
    %v1033 = vtanh.pop %v1032
    %v1034 = vmul.f32 %v1033, 0.5
    %v1035 = vadd.f32 %v1034, 0.5
    %v1036 = vmul.f32 %v1030, %v735
    %v1037 = vmul.f32 %v1026, %v1031
    %v1038 = vadd.f32 %v1036, %v1037
    %v1039 = vtanh.pop %v1038
    %v1040 = vmul.f32 %v1035, %v1039
    %s1041 = scalar_lea.vmem [#allocation3], 8
    %1042 = vst [vmem:[%s1041] sm:$0xff] %v1040
    %s1043 = scalar_lea.vmem [#allocation4], 64
    %1044 = vst [vmem:[%s1043] sm:$0xff] %v1040
    %v1045 = vpack.c.bf16 %v1040, %v1040
    %v1046 = vld [vmem:[%s3] sm:$0xff]
    %v1047 = vld [vmem:[%s3 + $0x8] sm:$0xff]
    %v1048 = vld [vmem:[%s3 + $0x10] sm:$0xff]
    %v1049 = vld [vmem:[%s3 + $0x18] sm:$0xff]
    %v1050 = vld [vmem:[%s3 + $0x20] sm:$0xff]
    %v1051 = vld [vmem:[%s3 + $0x28] sm:$0xff]
    %v1052 = vld [vmem:[%s3 + $0x30] sm:$0xff]
    %v1053 = vld [vmem:[%s3 + $0x38] sm:$0xff]
    %v1054 = vld [vmem:[%s3 + $0x40] sm:$0xff]
    %v1055 = vld [vmem:[%s3 + $0x48] sm:$0xff]
    %v1056 = vld [vmem:[%s3 + $0x50] sm:$0xff]
    %v1057 = vld [vmem:[%s3 + $0x58] sm:$0xff]
    %v1058 = vld [vmem:[%s3 + $0x60] sm:$0xff]
    %v1059 = vld [vmem:[%s3 + $0x68] sm:$0xff]
    %v1060 = vld [vmem:[%s3 + $0x70] sm:$0xff]
    %v1061 = vld [vmem:[%s3 + $0x78] sm:$0xff]
    %v1062 = vld [vmem:[%s3 + $0x80] sm:$0xff]
    %v1063 = vld [vmem:[%s3 + $0x88] sm:$0xff]
    %v1064 = vld [vmem:[%s3 + $0x90] sm:$0xff]
    %v1065 = vld [vmem:[%s3 + $0x98] sm:$0xff]
    %v1066 = vld [vmem:[%s3 + $0xa0] sm:$0xff]
    %v1067 = vld [vmem:[%s3 + $0xa8] sm:$0xff]
    %v1068 = vld [vmem:[%s3 + $0xb0] sm:$0xff]
    %v1069 = vld [vmem:[%s3 + $0xb8] sm:$0xff]
    %v1070 = vld [vmem:[%s3 + $0xc0] sm:$0xff]
    %v1071 = vld [vmem:[%s3 + $0xc8] sm:$0xff]
    %v1072 = vld [vmem:[%s3 + $0xd0] sm:$0xff]
    %v1073 = vld [vmem:[%s3 + $0xd8] sm:$0xff]
    %v1074 = vld [vmem:[%s3 + $0xe0] sm:$0xff]
    %v1075 = vld [vmem:[%s3 + $0xe8] sm:$0xff]
    %v1076 = vld [vmem:[%s3 + $0xf0] sm:$0xff]
    %v1077 = vld [vmem:[%s3 + $0xf8] sm:$0xff]
    %s1078 = smul.u32 2, 4
    %s1079 = smul.addr %s1078, 8
    %s1080 = scalar_lea.vmem [#allocation2], %s1079
    %v1081 = vld [vmem:[%s1080] sm:$0xff]
    %v1082 = vld [vmem:[%s1080 + $0x8] sm:$0xff]
    %v1083 = vld [vmem:[%s1080 + $0x10] sm:$0xff]
    %v1084 = vld [vmem:[%s1080 + $0x18] sm:$0xff]
    %v1117 = vunpack.c.l.b16 %v1046
    %v1118 = vunpack.c.h.b16 %v1046
    %v1119 = vunpack.c.l.b16 %v1047
    %v1120 = vunpack.c.h.b16 %v1047
    %v1121 = vunpack.c.l.b16 %v1048
    %v1122 = vunpack.c.h.b16 %v1048
    %v1123 = vunpack.c.l.b16 %v1049
    %v1124 = vunpack.c.h.b16 %v1049
    %v1125 = vunpack.c.l.b16 %v1050
    %v1126 = vunpack.c.h.b16 %v1050
    %v1127 = vunpack.c.l.b16 %v1051
    %v1128 = vunpack.c.h.b16 %v1051
    %v1129 = vunpack.c.l.b16 %v1052
    %v1130 = vunpack.c.h.b16 %v1052
    %v1131 = vunpack.c.l.b16 %v1053
    %v1132 = vunpack.c.h.b16 %v1053
    %v1133 = vunpack.c.l.b16 %v1054
    %v1134 = vunpack.c.h.b16 %v1054
    %v1135 = vunpack.c.l.b16 %v1055
    %v1136 = vunpack.c.h.b16 %v1055
    %v1137 = vunpack.c.l.b16 %v1056
    %v1138 = vunpack.c.h.b16 %v1056
    %v1139 = vunpack.c.l.b16 %v1057
    %v1140 = vunpack.c.h.b16 %v1057
    %v1141 = vunpack.c.l.b16 %v1058
    %v1142 = vunpack.c.h.b16 %v1058
    %v1143 = vunpack.c.l.b16 %v1059
    %v1144 = vunpack.c.h.b16 %v1059
    %v1145 = vunpack.c.l.b16 %v1060
    %v1146 = vunpack.c.h.b16 %v1060
    %v1147 = vunpack.c.l.b16 %v1061
    %v1148 = vunpack.c.h.b16 %v1061
    %v1149 = vunpack.c.l.b16 %v1062
    %v1150 = vunpack.c.h.b16 %v1062
    %v1151 = vunpack.c.l.b16 %v1063
    %v1152 = vunpack.c.h.b16 %v1063
    %v1153 = vunpack.c.l.b16 %v1064
    %v1154 = vunpack.c.h.b16 %v1064
    %v1155 = vunpack.c.l.b16 %v1065
    %v1156 = vunpack.c.h.b16 %v1065
    %v1157 = vunpack.c.l.b16 %v1066
    %v1158 = vunpack.c.h.b16 %v1066
    %v1159 = vunpack.c.l.b16 %v1067
    %v1160 = vunpack.c.h.b16 %v1067
    %v1161 = vunpack.c.l.b16 %v1068
    %v1162 = vunpack.c.h.b16 %v1068
    %v1163 = vunpack.c.l.b16 %v1069
    %v1164 = vunpack.c.h.b16 %v1069
    %v1165 = vunpack.c.l.b16 %v1070
    %v1166 = vunpack.c.h.b16 %v1070
    %v1167 = vunpack.c.l.b16 %v1071
    %v1168 = vunpack.c.h.b16 %v1071
    %v1169 = vunpack.c.l.b16 %v1072
    %v1170 = vunpack.c.h.b16 %v1072
    %v1171 = vunpack.c.l.b16 %v1073
    %v1172 = vunpack.c.h.b16 %v1073
    %v1173 = vunpack.c.l.b16 %v1074
    %v1174 = vunpack.c.h.b16 %v1074
    %v1175 = vunpack.c.l.b16 %v1075
    %v1176 = vunpack.c.h.b16 %v1075
    %v1177 = vunpack.c.l.b16 %v1076
    %v1178 = vunpack.c.h.b16 %v1076
    %v1179 = vunpack.c.l.b16 %v1077
    %v1180 = vunpack.c.h.b16 %v1077
    %v1181 = vpack.c.b16 %v1121, %v1117
    %v1182 = vpack.c.b16 %v1122, %v1118
    %v1183 = vpack.c.b16 %v1123, %v1119
    %v1184 = vpack.c.b16 %v1124, %v1120
    %v1185 = vpack.c.b16 %v1129, %v1125
    %v1186 = vpack.c.b16 %v1130, %v1126
    %v1187 = vpack.c.b16 %v1131, %v1127
    %v1188 = vpack.c.b16 %v1132, %v1128
    %v1189 = vpack.c.b16 %v1137, %v1133
    %v1190 = vpack.c.b16 %v1138, %v1134
    %v1191 = vpack.c.b16 %v1139, %v1135
    %v1192 = vpack.c.b16 %v1140, %v1136
    %v1193 = vpack.c.b16 %v1145, %v1141
    %v1194 = vpack.c.b16 %v1146, %v1142
    %v1195 = vpack.c.b16 %v1147, %v1143
    %v1196 = vpack.c.b16 %v1148, %v1144
    %v1197 = vpack.c.b16 %v1153, %v1149
    %v1198 = vpack.c.b16 %v1154, %v1150
    %v1199 = vpack.c.b16 %v1155, %v1151
    %v1200 = vpack.c.b16 %v1156, %v1152
    %v1201 = vpack.c.b16 %v1161, %v1157
    %v1202 = vpack.c.b16 %v1162, %v1158
    %v1203 = vpack.c.b16 %v1163, %v1159
    %v1204 = vpack.c.b16 %v1164, %v1160
    %v1205 = vpack.c.b16 %v1169, %v1165
    %v1206 = vpack.c.b16 %v1170, %v1166
    %v1207 = vpack.c.b16 %v1171, %v1167
    %v1208 = vpack.c.b16 %v1172, %v1168
    %v1209 = vpack.c.b16 %v1177, %v1173
    %v1210 = vpack.c.b16 %v1178, %v1174
    %v1211 = vpack.c.b16 %v1179, %v1175
    %v1212 = vpack.c.b16 %v1180, %v1176
    %1245 = vmatprep.subr.bf16.mxu0 %v1210
    %1246 = vmatpush1.bf16.msra.mxu0 %v1209
    %1247 = vmatprep.subr.bf16.mxu0 %v1206
    %1248 = vmatpush1.bf16.msra.mxu0 %v1205
    %1249 = vmatprep.subr.bf16.mxu0 %v1202
    %1250 = vmatpush1.bf16.msra.mxu0 %v1201
    %1251 = vmatprep.subr.bf16.mxu0 %v1198
    %1252 = vmatpush1.bf16.msra.mxu0 %v1197
    %1253 = vmatprep.subr.bf16.mxu0 %v1194
    %1254 = vmatpush1.bf16.msra.mxu0 %v1193
    %1255 = vmatprep.subr.bf16.mxu0 %v1190
    %1256 = vmatpush1.bf16.msra.mxu0 %v1189
    %1257 = vmatprep.subr.bf16.mxu0 %v1186
    %1258 = vmatpush1.bf16.msra.mxu0 %v1185
    %1259 = vmatprep.subr.bf16.mxu0 %v1182
    %1260 = vmatpush1.bf16.msra.mxu0 %v1181
    %1261 = vmatprep.subr.bf16.mxu0 0
    %1262 = vmatpush2.bf16.msra.mxu0 0
    %1263 = vmatprep.subr.bf16.mxu0 0
    %1264 = vmatpush2.bf16.msra.mxu0 0
    %1265 = vmatprep.subr.bf16.mxu0 0
    %1266 = vmatpush2.bf16.msra.mxu0 0
    %1267 = vmatprep.subr.bf16.mxu0 0
    %1268 = vmatpush2.bf16.msra.mxu0 0
    %1269 = vmatprep.subr.bf16.mxu0 0
    %1270 = vmatpush2.bf16.msra.mxu0 0
    %1271 = vmatprep.subr.bf16.mxu0 0
    %1272 = vmatpush2.bf16.msra.mxu0 0
    %1273 = vmatprep.subr.bf16.mxu0 0
    %1274 = vmatpush2.bf16.msra.mxu0 0
    %1275 = vmatprep.subr.bf16.mxu0 0
    %1276 = vmatpush2.bf16.msra.mxu0 0
    %1277 = vmatprep.mubr.bf16.mxu0 0
    %1278 = vmatmul.mubr.bf16.gmra.mxu0 %v1045
    %v1279 = vpop.f32.mrf.mxu0
    %v1280 = vadd.f32 %v1081, %v1279
    %v1281 = vpop.f32.mrf.mxu0
    %v1282 = vadd.f32 %v1082, %v1281
    %v1283 = vpop.f32.mrf.mxu0
    %v1284 = vpop.f32.mrf.mxu0
    %1285 = vdwg.mxu0
    %1286 = vmatprep.subr.bf16.mxu0 %v1212
    %1287 = vmatpush1.bf16.msra.mxu0 %v1211
    %1288 = vmatprep.subr.bf16.mxu0 %v1208
    %1289 = vmatpush1.bf16.msra.mxu0 %v1207
    %1290 = vmatprep.subr.bf16.mxu0 %v1204
    %1291 = vmatpush1.bf16.msra.mxu0 %v1203
    %1292 = vmatprep.subr.bf16.mxu0 %v1200
    %1293 = vmatpush1.bf16.msra.mxu0 %v1199
    %1294 = vmatprep.subr.bf16.mxu0 %v1196
    %1295 = vmatpush1.bf16.msra.mxu0 %v1195
    %1296 = vmatprep.subr.bf16.mxu0 %v1192
    %1297 = vmatpush1.bf16.msra.mxu0 %v1191
    %1298 = vmatprep.subr.bf16.mxu0 %v1188
    %1299 = vmatpush1.bf16.msra.mxu0 %v1187
    %1300 = vmatprep.subr.bf16.mxu0 %v1184
    %1301 = vmatpush1.bf16.msra.mxu0 %v1183
    %1302 = vmatprep.subr.bf16.mxu0 0
    %1303 = vmatpush2.bf16.msra.mxu0 0
    %1304 = vmatprep.subr.bf16.mxu0 0
    %1305 = vmatpush2.bf16.msra.mxu0 0
    %1306 = vmatprep.subr.bf16.mxu0 0
    %1307 = vmatpush2.bf16.msra.mxu0 0
    %1308 = vmatprep.subr.bf16.mxu0 0
    %1309 = vmatpush2.bf16.msra.mxu0 0
    %1310 = vmatprep.subr.bf16.mxu0 0
    %1311 = vmatpush2.bf16.msra.mxu0 0
    %1312 = vmatprep.subr.bf16.mxu0 0
    %1313 = vmatpush2.bf16.msra.mxu0 0
    %1314 = vmatprep.subr.bf16.mxu0 0
    %1315 = vmatpush2.bf16.msra.mxu0 0
    %1316 = vmatprep.subr.bf16.mxu0 0
    %1317 = vmatpush2.bf16.msra.mxu0 0
    %1318 = vmatprep.mubr.bf16.mxu0 0
    %1319 = vmatmul.mubr.bf16.gmra.mxu0 %v1045
    %v1320 = vpop.f32.mrf.mxu0
    %v1321 = vadd.f32 %v1083, %v1320
    %v1322 = vpop.f32.mrf.mxu0
    %v1323 = vadd.f32 %v1084, %v1322
    %v1324 = vpop.f32.mrf.mxu0
    %v1325 = vpop.f32.mrf.mxu0
    %1326 = vdwg.mxu0
    %v1327 = vmul.f32 %v1280, 0.5
    %v1328 = vtanh.pop %v1327
    %v1329 = vmul.f32 %v1328, 0.5
    %v1330 = vadd.f32 %v1329, 0.5
    %v1331 = vmul.f32 %v1282, 0.5
    %v1332 = vtanh.pop %v1331
    %v1333 = vmul.f32 %v1332, 0.5
    %v1334 = vadd.f32 %v1333, 0.5
    %v1335 = vtanh.pop %v1321
    %v1336 = vmul.f32 %v1323, 0.5
    %v1337 = vtanh.pop %v1336
    %v1338 = vmul.f32 %v1337, 0.5
    %v1339 = vadd.f32 %v1338, 0.5
    %v1340 = vmul.f32 %v1334, %v1038
    %v1341 = vmul.f32 %v1330, %v1335
    %v1342 = vadd.f32 %v1340, %v1341
    %v1343 = vtanh.pop %v1342
    %v1344 = vmul.f32 %v1339, %v1343
    %s1345 = scalar_lea.vmem [#allocation3], 16
    %1346 = vst [vmem:[%s1345] sm:$0xff] %v1344
    %s1347 = scalar_lea.vmem [#allocation4], 56
    %1348 = vst [vmem:[%s1347] sm:$0xff] %v1344
    %v1349 = vpack.c.bf16 %v1344, %v1344
    %v1350 = vld [vmem:[%s3] sm:$0xff]
    %v1351 = vld [vmem:[%s3 + $0x8] sm:$0xff]
    %v1352 = vld [vmem:[%s3 + $0x10] sm:$0xff]
    %v1353 = vld [vmem:[%s3 + $0x18] sm:$0xff]
    %v1354 = vld [vmem:[%s3 + $0x20] sm:$0xff]
    %v1355 = vld [vmem:[%s3 + $0x28] sm:$0xff]
    %v1356 = vld [vmem:[%s3 + $0x30] sm:$0xff]
    %v1357 = vld [vmem:[%s3 + $0x38] sm:$0xff]
    %v1358 = vld [vmem:[%s3 + $0x40] sm:$0xff]
    %v1359 = vld [vmem:[%s3 + $0x48] sm:$0xff]
    %v1360 = vld [vmem:[%s3 + $0x50] sm:$0xff]
    %v1361 = vld [vmem:[%s3 + $0x58] sm:$0xff]
    %v1362 = vld [vmem:[%s3 + $0x60] sm:$0xff]
    %v1363 = vld [vmem:[%s3 + $0x68] sm:$0xff]
    %v1364 = vld [vmem:[%s3 + $0x70] sm:$0xff]
    %v1365 = vld [vmem:[%s3 + $0x78] sm:$0xff]
    %v1366 = vld [vmem:[%s3 + $0x80] sm:$0xff]
    %v1367 = vld [vmem:[%s3 + $0x88] sm:$0xff]
    %v1368 = vld [vmem:[%s3 + $0x90] sm:$0xff]
    %v1369 = vld [vmem:[%s3 + $0x98] sm:$0xff]
    %v1370 = vld [vmem:[%s3 + $0xa0] sm:$0xff]
    %v1371 = vld [vmem:[%s3 + $0xa8] sm:$0xff]
    %v1372 = vld [vmem:[%s3 + $0xb0] sm:$0xff]
    %v1373 = vld [vmem:[%s3 + $0xb8] sm:$0xff]
    %v1374 = vld [vmem:[%s3 + $0xc0] sm:$0xff]
    %v1375 = vld [vmem:[%s3 + $0xc8] sm:$0xff]
    %v1376 = vld [vmem:[%s3 + $0xd0] sm:$0xff]
    %v1377 = vld [vmem:[%s3 + $0xd8] sm:$0xff]
    %v1378 = vld [vmem:[%s3 + $0xe0] sm:$0xff]
    %v1379 = vld [vmem:[%s3 + $0xe8] sm:$0xff]
    %v1380 = vld [vmem:[%s3 + $0xf0] sm:$0xff]
    %v1381 = vld [vmem:[%s3 + $0xf8] sm:$0xff]
    %s1382 = smul.u32 3, 4
    %s1383 = smul.addr %s1382, 8
    %s1384 = scalar_lea.vmem [#allocation2], %s1383
    %v1385 = vld [vmem:[%s1384] sm:$0xff]
    %v1386 = vld [vmem:[%s1384 + $0x8] sm:$0xff]
    %v1387 = vld [vmem:[%s1384 + $0x10] sm:$0xff]
    %v1388 = vld [vmem:[%s1384 + $0x18] sm:$0xff]
    %v1421 = vunpack.c.l.b16 %v1350
    %v1422 = vunpack.c.h.b16 %v1350
    %v1423 = vunpack.c.l.b16 %v1351
    %v1424 = vunpack.c.h.b16 %v1351
    %v1425 = vunpack.c.l.b16 %v1352
    %v1426 = vunpack.c.h.b16 %v1352
    %v1427 = vunpack.c.l.b16 %v1353
    %v1428 = vunpack.c.h.b16 %v1353
    %v1429 = vunpack.c.l.b16 %v1354
    %v1430 = vunpack.c.h.b16 %v1354
    %v1431 = vunpack.c.l.b16 %v1355
    %v1432 = vunpack.c.h.b16 %v1355
    %v1433 = vunpack.c.l.b16 %v1356
    %v1434 = vunpack.c.h.b16 %v1356
    %v1435 = vunpack.c.l.b16 %v1357
    %v1436 = vunpack.c.h.b16 %v1357
    %v1437 = vunpack.c.l.b16 %v1358
    %v1438 = vunpack.c.h.b16 %v1358
    %v1439 = vunpack.c.l.b16 %v1359
    %v1440 = vunpack.c.h.b16 %v1359
    %v1441 = vunpack.c.l.b16 %v1360
    %v1442 = vunpack.c.h.b16 %v1360
    %v1443 = vunpack.c.l.b16 %v1361
    %v1444 = vunpack.c.h.b16 %v1361
    %v1445 = vunpack.c.l.b16 %v1362
    %v1446 = vunpack.c.h.b16 %v1362
    %v1447 = vunpack.c.l.b16 %v1363
    %v1448 = vunpack.c.h.b16 %v1363
    %v1449 = vunpack.c.l.b16 %v1364
    %v1450 = vunpack.c.h.b16 %v1364
    %v1451 = vunpack.c.l.b16 %v1365
    %v1452 = vunpack.c.h.b16 %v1365
    %v1453 = vunpack.c.l.b16 %v1366
    %v1454 = vunpack.c.h.b16 %v1366
    %v1455 = vunpack.c.l.b16 %v1367
    %v1456 = vunpack.c.h.b16 %v1367
    %v1457 = vunpack.c.l.b16 %v1368
    %v1458 = vunpack.c.h.b16 %v1368
    %v1459 = vunpack.c.l.b16 %v1369
    %v1460 = vunpack.c.h.b16 %v1369
    %v1461 = vunpack.c.l.b16 %v1370
    %v1462 = vunpack.c.h.b16 %v1370
    %v1463 = vunpack.c.l.b16 %v1371
    %v1464 = vunpack.c.h.b16 %v1371
    %v1465 = vunpack.c.l.b16 %v1372
    %v1466 = vunpack.c.h.b16 %v1372
    %v1467 = vunpack.c.l.b16 %v1373
    %v1468 = vunpack.c.h.b16 %v1373
    %v1469 = vunpack.c.l.b16 %v1374
    %v1470 = vunpack.c.h.b16 %v1374
    %v1471 = vunpack.c.l.b16 %v1375
    %v1472 = vunpack.c.h.b16 %v1375
    %v1473 = vunpack.c.l.b16 %v1376
    %v1474 = vunpack.c.h.b16 %v1376
    %v1475 = vunpack.c.l.b16 %v1377
    %v1476 = vunpack.c.h.b16 %v1377
    %v1477 = vunpack.c.l.b16 %v1378
    %v1478 = vunpack.c.h.b16 %v1378
    %v1479 = vunpack.c.l.b16 %v1379
    %v1480 = vunpack.c.h.b16 %v1379
    %v1481 = vunpack.c.l.b16 %v1380
    %v1482 = vunpack.c.h.b16 %v1380
    %v1483 = vunpack.c.l.b16 %v1381
    %v1484 = vunpack.c.h.b16 %v1381
    %v1485 = vpack.c.b16 %v1425, %v1421
    %v1486 = vpack.c.b16 %v1426, %v1422
    %v1487 = vpack.c.b16 %v1427, %v1423
    %v1488 = vpack.c.b16 %v1428, %v1424
    %v1489 = vpack.c.b16 %v1433, %v1429
    %v1490 = vpack.c.b16 %v1434, %v1430
    %v1491 = vpack.c.b16 %v1435, %v1431
    %v1492 = vpack.c.b16 %v1436, %v1432
    %v1493 = vpack.c.b16 %v1441, %v1437
    %v1494 = vpack.c.b16 %v1442, %v1438
    %v1495 = vpack.c.b16 %v1443, %v1439
    %v1496 = vpack.c.b16 %v1444, %v1440
    %v1497 = vpack.c.b16 %v1449, %v1445
    %v1498 = vpack.c.b16 %v1450, %v1446
    %v1499 = vpack.c.b16 %v1451, %v1447
    %v1500 = vpack.c.b16 %v1452, %v1448
    %v1501 = vpack.c.b16 %v1457, %v1453
    %v1502 = vpack.c.b16 %v1458, %v1454
    %v1503 = vpack.c.b16 %v1459, %v1455
    %v1504 = vpack.c.b16 %v1460, %v1456
    %v1505 = vpack.c.b16 %v1465, %v1461
    %v1506 = vpack.c.b16 %v1466, %v1462
    %v1507 = vpack.c.b16 %v1467, %v1463
    %v1508 = vpack.c.b16 %v1468, %v1464
    %v1509 = vpack.c.b16 %v1473, %v1469
    %v1510 = vpack.c.b16 %v1474, %v1470
    %v1511 = vpack.c.b16 %v1475, %v1471
    %v1512 = vpack.c.b16 %v1476, %v1472
    %v1513 = vpack.c.b16 %v1481, %v1477
    %v1514 = vpack.c.b16 %v1482, %v1478
    %v1515 = vpack.c.b16 %v1483, %v1479
    %v1516 = vpack.c.b16 %v1484, %v1480
    %1549 = vmatprep.subr.bf16.mxu0 %v1514
    %1550 = vmatpush1.bf16.msra.mxu0 %v1513
    %1551 = vmatprep.subr.bf16.mxu0 %v1510
    %1552 = vmatpush1.bf16.msra.mxu0 %v1509
    %1553 = vmatprep.subr.bf16.mxu0 %v1506
    %1554 = vmatpush1.bf16.msra.mxu0 %v1505
    %1555 = vmatprep.subr.bf16.mxu0 %v1502
    %1556 = vmatpush1.bf16.msra.mxu0 %v1501
    %1557 = vmatprep.subr.bf16.mxu0 %v1498
    %1558 = vmatpush1.bf16.msra.mxu0 %v1497
    %1559 = vmatprep.subr.bf16.mxu0 %v1494
    %1560 = vmatpush1.bf16.msra.mxu0 %v1493
    %1561 = vmatprep.subr.bf16.mxu0 %v1490
    %1562 = vmatpush1.bf16.msra.mxu0 %v1489
    %1563 = vmatprep.subr.bf16.mxu0 %v1486
    %1564 = vmatpush1.bf16.msra.mxu0 %v1485
    %1565 = vmatprep.subr.bf16.mxu0 0
    %1566 = vmatpush2.bf16.msra.mxu0 0
    %1567 = vmatprep.subr.bf16.mxu0 0
    %1568 = vmatpush2.bf16.msra.mxu0 0
    %1569 = vmatprep.subr.bf16.mxu0 0
    %1570 = vmatpush2.bf16.msra.mxu0 0
    %1571 = vmatprep.subr.bf16.mxu0 0
    %1572 = vmatpush2.bf16.msra.mxu0 0
    %1573 = vmatprep.subr.bf16.mxu0 0
    %1574 = vmatpush2.bf16.msra.mxu0 0
    %1575 = vmatprep.subr.bf16.mxu0 0
    %1576 = vmatpush2.bf16.msra.mxu0 0
    %1577 = vmatprep.subr.bf16.mxu0 0
    %1578 = vmatpush2.bf16.msra.mxu0 0
    %1579 = vmatprep.subr.bf16.mxu0 0
    %1580 = vmatpush2.bf16.msra.mxu0 0
    %1581 = vmatprep.mubr.bf16.mxu0 0
    %1582 = vmatmul.mubr.bf16.gmra.mxu0 %v1349
    %v1583 = vpop.f32.mrf.mxu0
    %v1584 = vadd.f32 %v1385, %v1583
    %v1585 = vpop.f32.mrf.mxu0
    %v1586 = vadd.f32 %v1386, %v1585
    %v1587 = vpop.f32.mrf.mxu0
    %v1588 = vpop.f32.mrf.mxu0
    %1589 = vdwg.mxu0
    %1590 = vmatprep.subr.bf16.mxu0 %v1516
    %1591 = vmatpush1.bf16.msra.mxu0 %v1515
    %1592 = vmatprep.subr.bf16.mxu0 %v1512
    %1593 = vmatpush1.bf16.msra.mxu0 %v1511
    %1594 = vmatprep.subr.bf16.mxu0 %v1508
    %1595 = vmatpush1.bf16.msra.mxu0 %v1507
    %1596 = vmatprep.subr.bf16.mxu0 %v1504
    %1597 = vmatpush1.bf16.msra.mxu0 %v1503
    %1598 = vmatprep.subr.bf16.mxu0 %v1500
    %1599 = vmatpush1.bf16.msra.mxu0 %v1499
    %1600 = vmatprep.subr.bf16.mxu0 %v1496
    %1601 = vmatpush1.bf16.msra.mxu0 %v1495
    %1602 = vmatprep.subr.bf16.mxu0 %v1492
    %1603 = vmatpush1.bf16.msra.mxu0 %v1491
    %1604 = vmatprep.subr.bf16.mxu0 %v1488
    %1605 = vmatpush1.bf16.msra.mxu0 %v1487
    %1606 = vmatprep.subr.bf16.mxu0 0
    %1607 = vmatpush2.bf16.msra.mxu0 0
    %1608 = vmatprep.subr.bf16.mxu0 0
    %1609 = vmatpush2.bf16.msra.mxu0 0
    %1610 = vmatprep.subr.bf16.mxu0 0
    %1611 = vmatpush2.bf16.msra.mxu0 0
    %1612 = vmatprep.subr.bf16.mxu0 0
    %1613 = vmatpush2.bf16.msra.mxu0 0
    %1614 = vmatprep.subr.bf16.mxu0 0
    %1615 = vmatpush2.bf16.msra.mxu0 0
    %1616 = vmatprep.subr.bf16.mxu0 0
    %1617 = vmatpush2.bf16.msra.mxu0 0
    %1618 = vmatprep.subr.bf16.mxu0 0
    %1619 = vmatpush2.bf16.msra.mxu0 0
    %1620 = vmatprep.subr.bf16.mxu0 0
    %1621 = vmatpush2.bf16.msra.mxu0 0
    %1622 = vmatprep.mubr.bf16.mxu0 0
    %1623 = vmatmul.mubr.bf16.gmra.mxu0 %v1349
    %v1624 = vpop.f32.mrf.mxu0
    %v1625 = vadd.f32 %v1387, %v1624
    %v1626 = vpop.f32.mrf.mxu0
    %v1627 = vadd.f32 %v1388, %v1626
    %v1628 = vpop.f32.mrf.mxu0
    %v1629 = vpop.f32.mrf.mxu0
    %1630 = vdwg.mxu0
    %v1631 = vmul.f32 %v1584, 0.5
    %v1632 = vtanh.pop %v1631
    %v1633 = vmul.f32 %v1632, 0.5
    %v1634 = vadd.f32 %v1633, 0.5
    %v1635 = vmul.f32 %v1586, 0.5
    %v1636 = vtanh.pop %v1635
    %v1637 = vmul.f32 %v1636, 0.5
    %v1638 = vadd.f32 %v1637, 0.5
    %v1639 = vtanh.pop %v1625
    %v1640 = vmul.f32 %v1627, 0.5
    %v1641 = vtanh.pop %v1640
    %v1642 = vmul.f32 %v1641, 0.5
    %v1643 = vadd.f32 %v1642, 0.5
    %v1644 = vmul.f32 %v1638, %v1342
    %v1645 = vmul.f32 %v1634, %v1639
    %v1646 = vadd.f32 %v1644, %v1645
    %v1647 = vtanh.pop %v1646
    %v1648 = vmul.f32 %v1643, %v1647
    %s1649 = scalar_lea.vmem [#allocation3], 24
    %1650 = vst [vmem:[%s1649] sm:$0xff] %v1648
    %s1651 = scalar_lea.vmem [#allocation4], 48
    %1652 = vst [vmem:[%s1651] sm:$0xff] %v1648
    %v1653 = vpack.c.bf16 %v1648, %v1648
    %v1654 = vld [vmem:[%s3] sm:$0xff]
    %v1655 = vld [vmem:[%s3 + $0x8] sm:$0xff]
    %v1656 = vld [vmem:[%s3 + $0x10] sm:$0xff]
    %v1657 = vld [vmem:[%s3 + $0x18] sm:$0xff]
    %v1658 = vld [vmem:[%s3 + $0x20] sm:$0xff]
    %v1659 = vld [vmem:[%s3 + $0x28] sm:$0xff]
    %v1660 = vld [vmem:[%s3 + $0x30] sm:$0xff]
    %v1661 = vld [vmem:[%s3 + $0x38] sm:$0xff]
    %v1662 = vld [vmem:[%s3 + $0x40] sm:$0xff]
    %v1663 = vld [vmem:[%s3 + $0x48] sm:$0xff]
    %v1664 = vld [vmem:[%s3 + $0x50] sm:$0xff]
    %v1665 = vld [vmem:[%s3 + $0x58] sm:$0xff]
    %v1666 = vld [vmem:[%s3 + $0x60] sm:$0xff]
    %v1667 = vld [vmem:[%s3 + $0x68] sm:$0xff]
    %v1668 = vld [vmem:[%s3 + $0x70] sm:$0xff]
    %v1669 = vld [vmem:[%s3 + $0x78] sm:$0xff]
    %v1670 = vld [vmem:[%s3 + $0x80] sm:$0xff]
    %v1671 = vld [vmem:[%s3 + $0x88] sm:$0xff]
    %v1672 = vld [vmem:[%s3 + $0x90] sm:$0xff]
    %v1673 = vld [vmem:[%s3 + $0x98] sm:$0xff]
    %v1674 = vld [vmem:[%s3 + $0xa0] sm:$0xff]
    %v1675 = vld [vmem:[%s3 + $0xa8] sm:$0xff]
    %v1676 = vld [vmem:[%s3 + $0xb0] sm:$0xff]
    %v1677 = vld [vmem:[%s3 + $0xb8] sm:$0xff]
    %v1678 = vld [vmem:[%s3 + $0xc0] sm:$0xff]
    %v1679 = vld [vmem:[%s3 + $0xc8] sm:$0xff]
    %v1680 = vld [vmem:[%s3 + $0xd0] sm:$0xff]
    %v1681 = vld [vmem:[%s3 + $0xd8] sm:$0xff]
    %v1682 = vld [vmem:[%s3 + $0xe0] sm:$0xff]
    %v1683 = vld [vmem:[%s3 + $0xe8] sm:$0xff]
    %v1684 = vld [vmem:[%s3 + $0xf0] sm:$0xff]
    %v1685 = vld [vmem:[%s3 + $0xf8] sm:$0xff]
    %s1686 = smul.u32 4, 4
    %s1687 = smul.addr %s1686, 8
    %s1688 = scalar_lea.vmem [#allocation2], %s1687
    %v1689 = vld [vmem:[%s1688] sm:$0xff]
    %v1690 = vld [vmem:[%s1688 + $0x8] sm:$0xff]
    %v1691 = vld [vmem:[%s1688 + $0x10] sm:$0xff]
    %v1692 = vld [vmem:[%s1688 + $0x18] sm:$0xff]
    %v1725 = vunpack.c.l.b16 %v1654
    %v1726 = vunpack.c.h.b16 %v1654
    %v1727 = vunpack.c.l.b16 %v1655
    %v1728 = vunpack.c.h.b16 %v1655
    %v1729 = vunpack.c.l.b16 %v1656
    %v1730 = vunpack.c.h.b16 %v1656
    %v1731 = vunpack.c.l.b16 %v1657
    %v1732 = vunpack.c.h.b16 %v1657
    %v1733 = vunpack.c.l.b16 %v1658
    %v1734 = vunpack.c.h.b16 %v1658
    %v1735 = vunpack.c.l.b16 %v1659
    %v1736 = vunpack.c.h.b16 %v1659
    %v1737 = vunpack.c.l.b16 %v1660
    %v1738 = vunpack.c.h.b16 %v1660
    %v1739 = vunpack.c.l.b16 %v1661
    %v1740 = vunpack.c.h.b16 %v1661
    %v1741 = vunpack.c.l.b16 %v1662
    %v1742 = vunpack.c.h.b16 %v1662
    %v1743 = vunpack.c.l.b16 %v1663
    %v1744 = vunpack.c.h.b16 %v1663
    %v1745 = vunpack.c.l.b16 %v1664
    %v1746 = vunpack.c.h.b16 %v1664
    %v1747 = vunpack.c.l.b16 %v1665
    %v1748 = vunpack.c.h.b16 %v1665
    %v1749 = vunpack.c.l.b16 %v1666
    %v1750 = vunpack.c.h.b16 %v1666
    %v1751 = vunpack.c.l.b16 %v1667
    %v1752 = vunpack.c.h.b16 %v1667
    %v1753 = vunpack.c.l.b16 %v1668
    %v1754 = vunpack.c.h.b16 %v1668
    %v1755 = vunpack.c.l.b16 %v1669
    %v1756 = vunpack.c.h.b16 %v1669
    %v1757 = vunpack.c.l.b16 %v1670
    %v1758 = vunpack.c.h.b16 %v1670
    %v1759 = vunpack.c.l.b16 %v1671
    %v1760 = vunpack.c.h.b16 %v1671
    %v1761 = vunpack.c.l.b16 %v1672
    %v1762 = vunpack.c.h.b16 %v1672
    %v1763 = vunpack.c.l.b16 %v1673
    %v1764 = vunpack.c.h.b16 %v1673
    %v1765 = vunpack.c.l.b16 %v1674
    %v1766 = vunpack.c.h.b16 %v1674
    %v1767 = vunpack.c.l.b16 %v1675
    %v1768 = vunpack.c.h.b16 %v1675
    %v1769 = vunpack.c.l.b16 %v1676
    %v1770 = vunpack.c.h.b16 %v1676
    %v1771 = vunpack.c.l.b16 %v1677
    %v1772 = vunpack.c.h.b16 %v1677
    %v1773 = vunpack.c.l.b16 %v1678
    %v1774 = vunpack.c.h.b16 %v1678
    %v1775 = vunpack.c.l.b16 %v1679
    %v1776 = vunpack.c.h.b16 %v1679
    %v1777 = vunpack.c.l.b16 %v1680
    %v1778 = vunpack.c.h.b16 %v1680
    %v1779 = vunpack.c.l.b16 %v1681
    %v1780 = vunpack.c.h.b16 %v1681
    %v1781 = vunpack.c.l.b16 %v1682
    %v1782 = vunpack.c.h.b16 %v1682
    %v1783 = vunpack.c.l.b16 %v1683
    %v1784 = vunpack.c.h.b16 %v1683
    %v1785 = vunpack.c.l.b16 %v1684
    %v1786 = vunpack.c.h.b16 %v1684
    %v1787 = vunpack.c.l.b16 %v1685
    %v1788 = vunpack.c.h.b16 %v1685
    %v1789 = vpack.c.b16 %v1729, %v1725
    %v1790 = vpack.c.b16 %v1730, %v1726
    %v1791 = vpack.c.b16 %v1731, %v1727
    %v1792 = vpack.c.b16 %v1732, %v1728
    %v1793 = vpack.c.b16 %v1737, %v1733
    %v1794 = vpack.c.b16 %v1738, %v1734
    %v1795 = vpack.c.b16 %v1739, %v1735
    %v1796 = vpack.c.b16 %v1740, %v1736
    %v1797 = vpack.c.b16 %v1745, %v1741
    %v1798 = vpack.c.b16 %v1746, %v1742
    %v1799 = vpack.c.b16 %v1747, %v1743
    %v1800 = vpack.c.b16 %v1748, %v1744
    %v1801 = vpack.c.b16 %v1753, %v1749
    %v1802 = vpack.c.b16 %v1754, %v1750
    %v1803 = vpack.c.b16 %v1755, %v1751
    %v1804 = vpack.c.b16 %v1756, %v1752
    %v1805 = vpack.c.b16 %v1761, %v1757
    %v1806 = vpack.c.b16 %v1762, %v1758
    %v1807 = vpack.c.b16 %v1763, %v1759
    %v1808 = vpack.c.b16 %v1764, %v1760
    %v1809 = vpack.c.b16 %v1769, %v1765
    %v1810 = vpack.c.b16 %v1770, %v1766
    %v1811 = vpack.c.b16 %v1771, %v1767
    %v1812 = vpack.c.b16 %v1772, %v1768
    %v1813 = vpack.c.b16 %v1777, %v1773
    %v1814 = vpack.c.b16 %v1778, %v1774
    %v1815 = vpack.c.b16 %v1779, %v1775
    %v1816 = vpack.c.b16 %v1780, %v1776
    %v1817 = vpack.c.b16 %v1785, %v1781
    %v1818 = vpack.c.b16 %v1786, %v1782
    %v1819 = vpack.c.b16 %v1787, %v1783
    %v1820 = vpack.c.b16 %v1788, %v1784
    %1853 = vmatprep.subr.bf16.mxu0 %v1818
    %1854 = vmatpush1.bf16.msra.mxu0 %v1817
    %1855 = vmatprep.subr.bf16.mxu0 %v1814
    %1856 = vmatpush1.bf16.msra.mxu0 %v1813
    %1857 = vmatprep.subr.bf16.mxu0 %v1810
    %1858 = vmatpush1.bf16.msra.mxu0 %v1809
    %1859 = vmatprep.subr.bf16.mxu0 %v1806
    %1860 = vmatpush1.bf16.msra.mxu0 %v1805
    %1861 = vmatprep.subr.bf16.mxu0 %v1802
    %1862 = vmatpush1.bf16.msra.mxu0 %v1801
    %1863 = vmatprep.subr.bf16.mxu0 %v1798
    %1864 = vmatpush1.bf16.msra.mxu0 %v1797
    %1865 = vmatprep.subr.bf16.mxu0 %v1794
    %1866 = vmatpush1.bf16.msra.mxu0 %v1793
    %1867 = vmatprep.subr.bf16.mxu0 %v1790
    %1868 = vmatpush1.bf16.msra.mxu0 %v1789
    %1869 = vmatprep.subr.bf16.mxu0 0
    %1870 = vmatpush2.bf16.msra.mxu0 0
    %1871 = vmatprep.subr.bf16.mxu0 0
    %1872 = vmatpush2.bf16.msra.mxu0 0
    %1873 = vmatprep.subr.bf16.mxu0 0
    %1874 = vmatpush2.bf16.msra.mxu0 0
    %1875 = vmatprep.subr.bf16.mxu0 0
    %1876 = vmatpush2.bf16.msra.mxu0 0
    %1877 = vmatprep.subr.bf16.mxu0 0
    %1878 = vmatpush2.bf16.msra.mxu0 0
    %1879 = vmatprep.subr.bf16.mxu0 0
    %1880 = vmatpush2.bf16.msra.mxu0 0
    %1881 = vmatprep.subr.bf16.mxu0 0
    %1882 = vmatpush2.bf16.msra.mxu0 0
    %1883 = vmatprep.subr.bf16.mxu0 0
    %1884 = vmatpush2.bf16.msra.mxu0 0
    %1885 = vmatprep.mubr.bf16.mxu0 0
    %1886 = vmatmul.mubr.bf16.gmra.mxu0 %v1653
    %v1887 = vpop.f32.mrf.mxu0
    %v1888 = vadd.f32 %v1689, %v1887
    %v1889 = vpop.f32.mrf.mxu0
    %v1890 = vadd.f32 %v1690, %v1889
    %v1891 = vpop.f32.mrf.mxu0
    %v1892 = vpop.f32.mrf.mxu0
    %1893 = vdwg.mxu0
    %1894 = vmatprep.subr.bf16.mxu0 %v1820
    %1895 = vmatpush1.bf16.msra.mxu0 %v1819
    %1896 = vmatprep.subr.bf16.mxu0 %v1816
    %1897 = vmatpush1.bf16.msra.mxu0 %v1815
    %1898 = vmatprep.subr.bf16.mxu0 %v1812
    %1899 = vmatpush1.bf16.msra.mxu0 %v1811
    %1900 = vmatprep.subr.bf16.mxu0 %v1808
    %1901 = vmatpush1.bf16.msra.mxu0 %v1807
    %1902 = vmatprep.subr.bf16.mxu0 %v1804
    %1903 = vmatpush1.bf16.msra.mxu0 %v1803
    %1904 = vmatprep.subr.bf16.mxu0 %v1800
    %1905 = vmatpush1.bf16.msra.mxu0 %v1799
    %1906 = vmatprep.subr.bf16.mxu0 %v1796
    %1907 = vmatpush1.bf16.msra.mxu0 %v1795
    %1908 = vmatprep.subr.bf16.mxu0 %v1792
    %1909 = vmatpush1.bf16.msra.mxu0 %v1791
    %1910 = vmatprep.subr.bf16.mxu0 0
    %1911 = vmatpush2.bf16.msra.mxu0 0
    %1912 = vmatprep.subr.bf16.mxu0 0
    %1913 = vmatpush2.bf16.msra.mxu0 0
    %1914 = vmatprep.subr.bf16.mxu0 0
    %1915 = vmatpush2.bf16.msra.mxu0 0
    %1916 = vmatprep.subr.bf16.mxu0 0
    %1917 = vmatpush2.bf16.msra.mxu0 0
    %1918 = vmatprep.subr.bf16.mxu0 0
    %1919 = vmatpush2.bf16.msra.mxu0 0
    %1920 = vmatprep.subr.bf16.mxu0 0
    %1921 = vmatpush2.bf16.msra.mxu0 0
    %1922 = vmatprep.subr.bf16.mxu0 0
    %1923 = vmatpush2.bf16.msra.mxu0 0
    %1924 = vmatprep.subr.bf16.mxu0 0
    %1925 = vmatpush2.bf16.msra.mxu0 0
    %1926 = vmatprep.mubr.bf16.mxu0 0
    %1927 = vmatmul.mubr.bf16.gmra.mxu0 %v1653
    %v1928 = vpop.f32.mrf.mxu0
    %v1929 = vadd.f32 %v1691, %v1928
    %v1930 = vpop.f32.mrf.mxu0
    %v1931 = vadd.f32 %v1692, %v1930
    %v1932 = vpop.f32.mrf.mxu0
    %v1933 = vpop.f32.mrf.mxu0
    %1934 = vdwg.mxu0
    %v1935 = vmul.f32 %v1888, 0.5
    %v1936 = vtanh.pop %v1935
    %v1937 = vmul.f32 %v1936, 0.5
    %v1938 = vadd.f32 %v1937, 0.5
    %v1939 = vmul.f32 %v1890, 0.5
    %v1940 = vtanh.pop %v1939
    %v1941 = vmul.f32 %v1940, 0.5
    %v1942 = vadd.f32 %v1941, 0.5
    %v1943 = vtanh.pop %v1929
    %v1944 = vmul.f32 %v1931, 0.5
    %v1945 = vtanh.pop %v1944
    %v1946 = vmul.f32 %v1945, 0.5
    %v1947 = vadd.f32 %v1946, 0.5
    %v1948 = vmul.f32 %v1942, %v1646
    %v1949 = vmul.f32 %v1938, %v1943
    %v1950 = vadd.f32 %v1948, %v1949
    %v1951 = vtanh.pop %v1950
    %v1952 = vmul.f32 %v1947, %v1951
    %s1953 = scalar_lea.vmem [#allocation3], 32
    %1954 = vst [vmem:[%s1953] sm:$0xff] %v1952
    %s1955 = scalar_lea.vmem [#allocation4], 40
    %1956 = vst [vmem:[%s1955] sm:$0xff] %v1952
    %v1957 = vpack.c.bf16 %v1952, %v1952
    %v1958 = vld [vmem:[%s3] sm:$0xff]
    %v1959 = vld [vmem:[%s3 + $0x8] sm:$0xff]
    %v1960 = vld [vmem:[%s3 + $0x10] sm:$0xff]
    %v1961 = vld [vmem:[%s3 + $0x18] sm:$0xff]
    %v1962 = vld [vmem:[%s3 + $0x20] sm:$0xff]
    %v1963 = vld [vmem:[%s3 + $0x28] sm:$0xff]
    %v1964 = vld [vmem:[%s3 + $0x30] sm:$0xff]
    %v1965 = vld [vmem:[%s3 + $0x38] sm:$0xff]
    %v1966 = vld [vmem:[%s3 + $0x40] sm:$0xff]
    %v1967 = vld [vmem:[%s3 + $0x48] sm:$0xff]
    %v1968 = vld [vmem:[%s3 + $0x50] sm:$0xff]
    %v1969 = vld [vmem:[%s3 + $0x58] sm:$0xff]
    %v1970 = vld [vmem:[%s3 + $0x60] sm:$0xff]
    %v1971 = vld [vmem:[%s3 + $0x68] sm:$0xff]
    %v1972 = vld [vmem:[%s3 + $0x70] sm:$0xff]
    %v1973 = vld [vmem:[%s3 + $0x78] sm:$0xff]
    %v1974 = vld [vmem:[%s3 + $0x80] sm:$0xff]
    %v1975 = vld [vmem:[%s3 + $0x88] sm:$0xff]
    %v1976 = vld [vmem:[%s3 + $0x90] sm:$0xff]
    %v1977 = vld [vmem:[%s3 + $0x98] sm:$0xff]
    %v1978 = vld [vmem:[%s3 + $0xa0] sm:$0xff]
    %v1979 = vld [vmem:[%s3 + $0xa8] sm:$0xff]
    %v1980 = vld [vmem:[%s3 + $0xb0] sm:$0xff]
    %v1981 = vld [vmem:[%s3 + $0xb8] sm:$0xff]
    %v1982 = vld [vmem:[%s3 + $0xc0] sm:$0xff]
    %v1983 = vld [vmem:[%s3 + $0xc8] sm:$0xff]
    %v1984 = vld [vmem:[%s3 + $0xd0] sm:$0xff]
    %v1985 = vld [vmem:[%s3 + $0xd8] sm:$0xff]
    %v1986 = vld [vmem:[%s3 + $0xe0] sm:$0xff]
    %v1987 = vld [vmem:[%s3 + $0xe8] sm:$0xff]
    %v1988 = vld [vmem:[%s3 + $0xf0] sm:$0xff]
    %v1989 = vld [vmem:[%s3 + $0xf8] sm:$0xff]
    %s1990 = smul.u32 5, 4
    %s1991 = smul.addr %s1990, 8
    %s1992 = scalar_lea.vmem [#allocation2], %s1991
    %v1993 = vld [vmem:[%s1992] sm:$0xff]
    %v1994 = vld [vmem:[%s1992 + $0x8] sm:$0xff]
    %v1995 = vld [vmem:[%s1992 + $0x10] sm:$0xff]
    %v1996 = vld [vmem:[%s1992 + $0x18] sm:$0xff]
    %v2029 = vunpack.c.l.b16 %v1958
    %v2030 = vunpack.c.h.b16 %v1958
    %v2031 = vunpack.c.l.b16 %v1959
    %v2032 = vunpack.c.h.b16 %v1959
    %v2033 = vunpack.c.l.b16 %v1960
    %v2034 = vunpack.c.h.b16 %v1960
    %v2035 = vunpack.c.l.b16 %v1961
    %v2036 = vunpack.c.h.b16 %v1961
    %v2037 = vunpack.c.l.b16 %v1962
    %v2038 = vunpack.c.h.b16 %v1962
    %v2039 = vunpack.c.l.b16 %v1963
    %v2040 = vunpack.c.h.b16 %v1963
    %v2041 = vunpack.c.l.b16 %v1964
    %v2042 = vunpack.c.h.b16 %v1964
    %v2043 = vunpack.c.l.b16 %v1965
    %v2044 = vunpack.c.h.b16 %v1965
    %v2045 = vunpack.c.l.b16 %v1966
    %v2046 = vunpack.c.h.b16 %v1966
    %v2047 = vunpack.c.l.b16 %v1967
    %v2048 = vunpack.c.h.b16 %v1967
    %v2049 = vunpack.c.l.b16 %v1968
    %v2050 = vunpack.c.h.b16 %v1968
    %v2051 = vunpack.c.l.b16 %v1969
    %v2052 = vunpack.c.h.b16 %v1969
    %v2053 = vunpack.c.l.b16 %v1970
    %v2054 = vunpack.c.h.b16 %v1970
    %v2055 = vunpack.c.l.b16 %v1971
    %v2056 = vunpack.c.h.b16 %v1971
    %v2057 = vunpack.c.l.b16 %v1972
    %v2058 = vunpack.c.h.b16 %v1972
    %v2059 = vunpack.c.l.b16 %v1973
    %v2060 = vunpack.c.h.b16 %v1973
    %v2061 = vunpack.c.l.b16 %v1974
    %v2062 = vunpack.c.h.b16 %v1974
    %v2063 = vunpack.c.l.b16 %v1975
    %v2064 = vunpack.c.h.b16 %v1975
    %v2065 = vunpack.c.l.b16 %v1976
    %v2066 = vunpack.c.h.b16 %v1976
    %v2067 = vunpack.c.l.b16 %v1977
    %v2068 = vunpack.c.h.b16 %v1977
    %v2069 = vunpack.c.l.b16 %v1978
    %v2070 = vunpack.c.h.b16 %v1978
    %v2071 = vunpack.c.l.b16 %v1979
    %v2072 = vunpack.c.h.b16 %v1979
    %v2073 = vunpack.c.l.b16 %v1980
    %v2074 = vunpack.c.h.b16 %v1980
    %v2075 = vunpack.c.l.b16 %v1981
    %v2076 = vunpack.c.h.b16 %v1981
    %v2077 = vunpack.c.l.b16 %v1982
    %v2078 = vunpack.c.h.b16 %v1982
    %v2079 = vunpack.c.l.b16 %v1983
    %v2080 = vunpack.c.h.b16 %v1983
    %v2081 = vunpack.c.l.b16 %v1984
    %v2082 = vunpack.c.h.b16 %v1984
    %v2083 = vunpack.c.l.b16 %v1985
    %v2084 = vunpack.c.h.b16 %v1985
    %v2085 = vunpack.c.l.b16 %v1986
    %v2086 = vunpack.c.h.b16 %v1986
    %v2087 = vunpack.c.l.b16 %v1987
    %v2088 = vunpack.c.h.b16 %v1987
    %v2089 = vunpack.c.l.b16 %v1988
    %v2090 = vunpack.c.h.b16 %v1988
    %v2091 = vunpack.c.l.b16 %v1989
    %v2092 = vunpack.c.h.b16 %v1989
    %v2093 = vpack.c.b16 %v2033, %v2029
    %v2094 = vpack.c.b16 %v2034, %v2030
    %v2095 = vpack.c.b16 %v2035, %v2031
    %v2096 = vpack.c.b16 %v2036, %v2032
    %v2097 = vpack.c.b16 %v2041, %v2037
    %v2098 = vpack.c.b16 %v2042, %v2038
    %v2099 = vpack.c.b16 %v2043, %v2039
    %v2100 = vpack.c.b16 %v2044, %v2040
    %v2101 = vpack.c.b16 %v2049, %v2045
    %v2102 = vpack.c.b16 %v2050, %v2046
    %v2103 = vpack.c.b16 %v2051, %v2047
    %v2104 = vpack.c.b16 %v2052, %v2048
    %v2105 = vpack.c.b16 %v2057, %v2053
    %v2106 = vpack.c.b16 %v2058, %v2054
    %v2107 = vpack.c.b16 %v2059, %v2055
    %v2108 = vpack.c.b16 %v2060, %v2056
    %v2109 = vpack.c.b16 %v2065, %v2061
    %v2110 = vpack.c.b16 %v2066, %v2062
    %v2111 = vpack.c.b16 %v2067, %v2063
    %v2112 = vpack.c.b16 %v2068, %v2064
    %v2113 = vpack.c.b16 %v2073, %v2069
    %v2114 = vpack.c.b16 %v2074, %v2070
    %v2115 = vpack.c.b16 %v2075, %v2071
    %v2116 = vpack.c.b16 %v2076, %v2072
    %v2117 = vpack.c.b16 %v2081, %v2077
    %v2118 = vpack.c.b16 %v2082, %v2078
    %v2119 = vpack.c.b16 %v2083, %v2079
    %v2120 = vpack.c.b16 %v2084, %v2080
    %v2121 = vpack.c.b16 %v2089, %v2085
    %v2122 = vpack.c.b16 %v2090, %v2086
    %v2123 = vpack.c.b16 %v2091, %v2087
    %v2124 = vpack.c.b16 %v2092, %v2088
    %2157 = vmatprep.subr.bf16.mxu0 %v2122
    %2158 = vmatpush1.bf16.msra.mxu0 %v2121
    %2159 = vmatprep.subr.bf16.mxu0 %v2118
    %2160 = vmatpush1.bf16.msra.mxu0 %v2117
    %2161 = vmatprep.subr.bf16.mxu0 %v2114
    %2162 = vmatpush1.bf16.msra.mxu0 %v2113
    %2163 = vmatprep.subr.bf16.mxu0 %v2110
    %2164 = vmatpush1.bf16.msra.mxu0 %v2109
    %2165 = vmatprep.subr.bf16.mxu0 %v2106
    %2166 = vmatpush1.bf16.msra.mxu0 %v2105
    %2167 = vmatprep.subr.bf16.mxu0 %v2102
    %2168 = vmatpush1.bf16.msra.mxu0 %v2101
    %2169 = vmatprep.subr.bf16.mxu0 %v2098
    %2170 = vmatpush1.bf16.msra.mxu0 %v2097
    %2171 = vmatprep.subr.bf16.mxu0 %v2094
    %2172 = vmatpush1.bf16.msra.mxu0 %v2093
    %2173 = vmatprep.subr.bf16.mxu0 0
    %2174 = vmatpush2.bf16.msra.mxu0 0
    %2175 = vmatprep.subr.bf16.mxu0 0
    %2176 = vmatpush2.bf16.msra.mxu0 0
    %2177 = vmatprep.subr.bf16.mxu0 0
    %2178 = vmatpush2.bf16.msra.mxu0 0
    %2179 = vmatprep.subr.bf16.mxu0 0
    %2180 = vmatpush2.bf16.msra.mxu0 0
    %2181 = vmatprep.subr.bf16.mxu0 0
    %2182 = vmatpush2.bf16.msra.mxu0 0
    %2183 = vmatprep.subr.bf16.mxu0 0
    %2184 = vmatpush2.bf16.msra.mxu0 0
    %2185 = vmatprep.subr.bf16.mxu0 0
    %2186 = vmatpush2.bf16.msra.mxu0 0
    %2187 = vmatprep.subr.bf16.mxu0 0
    %2188 = vmatpush2.bf16.msra.mxu0 0
    %2189 = vmatprep.mubr.bf16.mxu0 0
    %2190 = vmatmul.mubr.bf16.gmra.mxu0 %v1957
    %v2191 = vpop.f32.mrf.mxu0
    %v2192 = vadd.f32 %v1993, %v2191
    %v2193 = vpop.f32.mrf.mxu0
    %v2194 = vadd.f32 %v1994, %v2193
    %v2195 = vpop.f32.mrf.mxu0
    %v2196 = vpop.f32.mrf.mxu0
    %2197 = vdwg.mxu0
    %2198 = vmatprep.subr.bf16.mxu0 %v2124
    %2199 = vmatpush1.bf16.msra.mxu0 %v2123
    %2200 = vmatprep.subr.bf16.mxu0 %v2120
    %2201 = vmatpush1.bf16.msra.mxu0 %v2119
    %2202 = vmatprep.subr.bf16.mxu0 %v2116
    %2203 = vmatpush1.bf16.msra.mxu0 %v2115
    %2204 = vmatprep.subr.bf16.mxu0 %v2112
    %2205 = vmatpush1.bf16.msra.mxu0 %v2111
    %2206 = vmatprep.subr.bf16.mxu0 %v2108
    %2207 = vmatpush1.bf16.msra.mxu0 %v2107
    %2208 = vmatprep.subr.bf16.mxu0 %v2104
    %2209 = vmatpush1.bf16.msra.mxu0 %v2103
    %2210 = vmatprep.subr.bf16.mxu0 %v2100
    %2211 = vmatpush1.bf16.msra.mxu0 %v2099
    %2212 = vmatprep.subr.bf16.mxu0 %v2096
    %2213 = vmatpush1.bf16.msra.mxu0 %v2095
    %2214 = vmatprep.subr.bf16.mxu0 0
    %2215 = vmatpush2.bf16.msra.mxu0 0
    %2216 = vmatprep.subr.bf16.mxu0 0
    %2217 = vmatpush2.bf16.msra.mxu0 0
    %2218 = vmatprep.subr.bf16.mxu0 0
    %2219 = vmatpush2.bf16.msra.mxu0 0
    %2220 = vmatprep.subr.bf16.mxu0 0
    %2221 = vmatpush2.bf16.msra.mxu0 0
    %2222 = vmatprep.subr.bf16.mxu0 0
    %2223 = vmatpush2.bf16.msra.mxu0 0
    %2224 = vmatprep.subr.bf16.mxu0 0
    %2225 = vmatpush2.bf16.msra.mxu0 0
    %2226 = vmatprep.subr.bf16.mxu0 0
    %2227 = vmatpush2.bf16.msra.mxu0 0
    %2228 = vmatprep.subr.bf16.mxu0 0
    %2229 = vmatpush2.bf16.msra.mxu0 0
    %2230 = vmatprep.mubr.bf16.mxu0 0
    %2231 = vmatmul.mubr.bf16.gmra.mxu0 %v1957
    %v2232 = vpop.f32.mrf.mxu0
    %v2233 = vadd.f32 %v1995, %v2232
    %v2234 = vpop.f32.mrf.mxu0
    %v2235 = vadd.f32 %v1996, %v2234
    %v2236 = vpop.f32.mrf.mxu0
    %v2237 = vpop.f32.mrf.mxu0
    %2238 = vdwg.mxu0
    %v2239 = vmul.f32 %v2192, 0.5
    %v2240 = vtanh.pop %v2239
    %v2241 = vmul.f32 %v2240, 0.5
    %v2242 = vadd.f32 %v2241, 0.5
    %v2243 = vmul.f32 %v2194, 0.5
    %v2244 = vtanh.pop %v2243
    %v2245 = vmul.f32 %v2244, 0.5
    %v2246 = vadd.f32 %v2245, 0.5
    %v2247 = vtanh.pop %v2233
    %v2248 = vmul.f32 %v2235, 0.5
    %v2249 = vtanh.pop %v2248
    %v2250 = vmul.f32 %v2249, 0.5
    %v2251 = vadd.f32 %v2250, 0.5
    %v2252 = vmul.f32 %v2246, %v1950
    %v2253 = vmul.f32 %v2242, %v2247
    %v2254 = vadd.f32 %v2252, %v2253
    %v2255 = vtanh.pop %v2254
    %v2256 = vmul.f32 %v2251, %v2255
    %s2257 = scalar_lea.vmem [#allocation3], 40
    %2258 = vst [vmem:[%s2257] sm:$0xff] %v2256
    %s2259 = scalar_lea.vmem [#allocation4], 32
    %2260 = vst [vmem:[%s2259] sm:$0xff] %v2256
    %v2261 = vpack.c.bf16 %v2256, %v2256
    %v2262 = vld [vmem:[%s3] sm:$0xff]
    %v2263 = vld [vmem:[%s3 + $0x8] sm:$0xff]
    %v2264 = vld [vmem:[%s3 + $0x10] sm:$0xff]
    %v2265 = vld [vmem:[%s3 + $0x18] sm:$0xff]
    %v2266 = vld [vmem:[%s3 + $0x20] sm:$0xff]
    %v2267 = vld [vmem:[%s3 + $0x28] sm:$0xff]
    %v2268 = vld [vmem:[%s3 + $0x30] sm:$0xff]
    %v2269 = vld [vmem:[%s3 + $0x38] sm:$0xff]
    %v2270 = vld [vmem:[%s3 + $0x40] sm:$0xff]
    %v2271 = vld [vmem:[%s3 + $0x48] sm:$0xff]
    %v2272 = vld [vmem:[%s3 + $0x50] sm:$0xff]
    %v2273 = vld [vmem:[%s3 + $0x58] sm:$0xff]
    %v2274 = vld [vmem:[%s3 + $0x60] sm:$0xff]
    %v2275 = vld [vmem:[%s3 + $0x68] sm:$0xff]
    %v2276 = vld [vmem:[%s3 + $0x70] sm:$0xff]
    %v2277 = vld [vmem:[%s3 + $0x78] sm:$0xff]
    %v2278 = vld [vmem:[%s3 + $0x80] sm:$0xff]
    %v2279 = vld [vmem:[%s3 + $0x88] sm:$0xff]
    %v2280 = vld [vmem:[%s3 + $0x90] sm:$0xff]
    %v2281 = vld [vmem:[%s3 + $0x98] sm:$0xff]
    %v2282 = vld [vmem:[%s3 + $0xa0] sm:$0xff]
    %v2283 = vld [vmem:[%s3 + $0xa8] sm:$0xff]
    %v2284 = vld [vmem:[%s3 + $0xb0] sm:$0xff]
    %v2285 = vld [vmem:[%s3 + $0xb8] sm:$0xff]
    %v2286 = vld [vmem:[%s3 + $0xc0] sm:$0xff]
    %v2287 = vld [vmem:[%s3 + $0xc8] sm:$0xff]
    %v2288 = vld [vmem:[%s3 + $0xd0] sm:$0xff]
    %v2289 = vld [vmem:[%s3 + $0xd8] sm:$0xff]
    %v2290 = vld [vmem:[%s3 + $0xe0] sm:$0xff]
    %v2291 = vld [vmem:[%s3 + $0xe8] sm:$0xff]
    %v2292 = vld [vmem:[%s3 + $0xf0] sm:$0xff]
    %v2293 = vld [vmem:[%s3 + $0xf8] sm:$0xff]
    %s2294 = smul.u32 6, 4
    %s2295 = smul.addr %s2294, 8
    %s2296 = scalar_lea.vmem [#allocation2], %s2295
    %v2297 = vld [vmem:[%s2296] sm:$0xff]
    %v2298 = vld [vmem:[%s2296 + $0x8] sm:$0xff]
    %v2299 = vld [vmem:[%s2296 + $0x10] sm:$0xff]
    %v2300 = vld [vmem:[%s2296 + $0x18] sm:$0xff]
    %v2333 = vunpack.c.l.b16 %v2262
    %v2334 = vunpack.c.h.b16 %v2262
    %v2335 = vunpack.c.l.b16 %v2263
    %v2336 = vunpack.c.h.b16 %v2263
    %v2337 = vunpack.c.l.b16 %v2264
    %v2338 = vunpack.c.h.b16 %v2264
    %v2339 = vunpack.c.l.b16 %v2265
    %v2340 = vunpack.c.h.b16 %v2265
    %v2341 = vunpack.c.l.b16 %v2266
    %v2342 = vunpack.c.h.b16 %v2266
    %v2343 = vunpack.c.l.b16 %v2267
    %v2344 = vunpack.c.h.b16 %v2267
    %v2345 = vunpack.c.l.b16 %v2268
    %v2346 = vunpack.c.h.b16 %v2268
    %v2347 = vunpack.c.l.b16 %v2269
    %v2348 = vunpack.c.h.b16 %v2269
    %v2349 = vunpack.c.l.b16 %v2270
    %v2350 = vunpack.c.h.b16 %v2270
    %v2351 = vunpack.c.l.b16 %v2271
    %v2352 = vunpack.c.h.b16 %v2271
    %v2353 = vunpack.c.l.b16 %v2272
    %v2354 = vunpack.c.h.b16 %v2272
    %v2355 = vunpack.c.l.b16 %v2273
    %v2356 = vunpack.c.h.b16 %v2273
    %v2357 = vunpack.c.l.b16 %v2274
    %v2358 = vunpack.c.h.b16 %v2274
    %v2359 = vunpack.c.l.b16 %v2275
    %v2360 = vunpack.c.h.b16 %v2275
    %v2361 = vunpack.c.l.b16 %v2276
    %v2362 = vunpack.c.h.b16 %v2276
    %v2363 = vunpack.c.l.b16 %v2277
    %v2364 = vunpack.c.h.b16 %v2277
    %v2365 = vunpack.c.l.b16 %v2278
    %v2366 = vunpack.c.h.b16 %v2278
    %v2367 = vunpack.c.l.b16 %v2279
    %v2368 = vunpack.c.h.b16 %v2279
    %v2369 = vunpack.c.l.b16 %v2280
    %v2370 = vunpack.c.h.b16 %v2280
    %v2371 = vunpack.c.l.b16 %v2281
    %v2372 = vunpack.c.h.b16 %v2281
    %v2373 = vunpack.c.l.b16 %v2282
    %v2374 = vunpack.c.h.b16 %v2282
    %v2375 = vunpack.c.l.b16 %v2283
    %v2376 = vunpack.c.h.b16 %v2283
    %v2377 = vunpack.c.l.b16 %v2284
    %v2378 = vunpack.c.h.b16 %v2284
    %v2379 = vunpack.c.l.b16 %v2285
    %v2380 = vunpack.c.h.b16 %v2285
    %v2381 = vunpack.c.l.b16 %v2286
    %v2382 = vunpack.c.h.b16 %v2286
    %v2383 = vunpack.c.l.b16 %v2287
    %v2384 = vunpack.c.h.b16 %v2287
    %v2385 = vunpack.c.l.b16 %v2288
    %v2386 = vunpack.c.h.b16 %v2288
    %v2387 = vunpack.c.l.b16 %v2289
    %v2388 = vunpack.c.h.b16 %v2289
    %v2389 = vunpack.c.l.b16 %v2290
    %v2390 = vunpack.c.h.b16 %v2290
    %v2391 = vunpack.c.l.b16 %v2291
    %v2392 = vunpack.c.h.b16 %v2291
    %v2393 = vunpack.c.l.b16 %v2292
    %v2394 = vunpack.c.h.b16 %v2292
    %v2395 = vunpack.c.l.b16 %v2293
    %v2396 = vunpack.c.h.b16 %v2293
    %v2397 = vpack.c.b16 %v2337, %v2333
    %v2398 = vpack.c.b16 %v2338, %v2334
    %v2399 = vpack.c.b16 %v2339, %v2335
    %v2400 = vpack.c.b16 %v2340, %v2336
    %v2401 = vpack.c.b16 %v2345, %v2341
    %v2402 = vpack.c.b16 %v2346, %v2342
    %v2403 = vpack.c.b16 %v2347, %v2343
    %v2404 = vpack.c.b16 %v2348, %v2344
    %v2405 = vpack.c.b16 %v2353, %v2349
    %v2406 = vpack.c.b16 %v2354, %v2350
    %v2407 = vpack.c.b16 %v2355, %v2351
    %v2408 = vpack.c.b16 %v2356, %v2352
    %v2409 = vpack.c.b16 %v2361, %v2357
    %v2410 = vpack.c.b16 %v2362, %v2358
    %v2411 = vpack.c.b16 %v2363, %v2359
    %v2412 = vpack.c.b16 %v2364, %v2360
    %v2413 = vpack.c.b16 %v2369, %v2365
    %v2414 = vpack.c.b16 %v2370, %v2366
    %v2415 = vpack.c.b16 %v2371, %v2367
    %v2416 = vpack.c.b16 %v2372, %v2368
    %v2417 = vpack.c.b16 %v2377, %v2373
    %v2418 = vpack.c.b16 %v2378, %v2374
    %v2419 = vpack.c.b16 %v2379, %v2375
    %v2420 = vpack.c.b16 %v2380, %v2376
    %v2421 = vpack.c.b16 %v2385, %v2381
    %v2422 = vpack.c.b16 %v2386, %v2382
    %v2423 = vpack.c.b16 %v2387, %v2383
    %v2424 = vpack.c.b16 %v2388, %v2384
    %v2425 = vpack.c.b16 %v2393, %v2389
    %v2426 = vpack.c.b16 %v2394, %v2390
    %v2427 = vpack.c.b16 %v2395, %v2391
    %v2428 = vpack.c.b16 %v2396, %v2392
    %2461 = vmatprep.subr.bf16.mxu0 %v2426
    %2462 = vmatpush1.bf16.msra.mxu0 %v2425
    %2463 = vmatprep.subr.bf16.mxu0 %v2422
    %2464 = vmatpush1.bf16.msra.mxu0 %v2421
    %2465 = vmatprep.subr.bf16.mxu0 %v2418
    %2466 = vmatpush1.bf16.msra.mxu0 %v2417
    %2467 = vmatprep.subr.bf16.mxu0 %v2414
    %2468 = vmatpush1.bf16.msra.mxu0 %v2413
    %2469 = vmatprep.subr.bf16.mxu0 %v2410
    %2470 = vmatpush1.bf16.msra.mxu0 %v2409
    %2471 = vmatprep.subr.bf16.mxu0 %v2406
    %2472 = vmatpush1.bf16.msra.mxu0 %v2405
    %2473 = vmatprep.subr.bf16.mxu0 %v2402
    %2474 = vmatpush1.bf16.msra.mxu0 %v2401
    %2475 = vmatprep.subr.bf16.mxu0 %v2398
    %2476 = vmatpush1.bf16.msra.mxu0 %v2397
    %2477 = vmatprep.subr.bf16.mxu0 0
    %2478 = vmatpush2.bf16.msra.mxu0 0
    %2479 = vmatprep.subr.bf16.mxu0 0
    %2480 = vmatpush2.bf16.msra.mxu0 0
    %2481 = vmatprep.subr.bf16.mxu0 0
    %2482 = vmatpush2.bf16.msra.mxu0 0
    %2483 = vmatprep.subr.bf16.mxu0 0
    %2484 = vmatpush2.bf16.msra.mxu0 0
    %2485 = vmatprep.subr.bf16.mxu0 0
    %2486 = vmatpush2.bf16.msra.mxu0 0
    %2487 = vmatprep.subr.bf16.mxu0 0
    %2488 = vmatpush2.bf16.msra.mxu0 0
    %2489 = vmatprep.subr.bf16.mxu0 0
    %2490 = vmatpush2.bf16.msra.mxu0 0
    %2491 = vmatprep.subr.bf16.mxu0 0
    %2492 = vmatpush2.bf16.msra.mxu0 0
    %2493 = vmatprep.mubr.bf16.mxu0 0
    %2494 = vmatmul.mubr.bf16.gmra.mxu0 %v2261
    %v2495 = vpop.f32.mrf.mxu0
    %v2496 = vadd.f32 %v2297, %v2495
    %v2497 = vpop.f32.mrf.mxu0
    %v2498 = vadd.f32 %v2298, %v2497
    %v2499 = vpop.f32.mrf.mxu0
    %v2500 = vpop.f32.mrf.mxu0
    %2501 = vdwg.mxu0
    %2502 = vmatprep.subr.bf16.mxu0 %v2428
    %2503 = vmatpush1.bf16.msra.mxu0 %v2427
    %2504 = vmatprep.subr.bf16.mxu0 %v2424
    %2505 = vmatpush1.bf16.msra.mxu0 %v2423
    %2506 = vmatprep.subr.bf16.mxu0 %v2420
    %2507 = vmatpush1.bf16.msra.mxu0 %v2419
    %2508 = vmatprep.subr.bf16.mxu0 %v2416
    %2509 = vmatpush1.bf16.msra.mxu0 %v2415
    %2510 = vmatprep.subr.bf16.mxu0 %v2412
    %2511 = vmatpush1.bf16.msra.mxu0 %v2411
    %2512 = vmatprep.subr.bf16.mxu0 %v2408
    %2513 = vmatpush1.bf16.msra.mxu0 %v2407
    %2514 = vmatprep.subr.bf16.mxu0 %v2404
    %2515 = vmatpush1.bf16.msra.mxu0 %v2403
    %2516 = vmatprep.subr.bf16.mxu0 %v2400
    %2517 = vmatpush1.bf16.msra.mxu0 %v2399
    %2518 = vmatprep.subr.bf16.mxu0 0
    %2519 = vmatpush2.bf16.msra.mxu0 0
    %2520 = vmatprep.subr.bf16.mxu0 0
    %2521 = vmatpush2.bf16.msra.mxu0 0
    %2522 = vmatprep.subr.bf16.mxu0 0
    %2523 = vmatpush2.bf16.msra.mxu0 0
    %2524 = vmatprep.subr.bf16.mxu0 0
    %2525 = vmatpush2.bf16.msra.mxu0 0
    %2526 = vmatprep.subr.bf16.mxu0 0
    %2527 = vmatpush2.bf16.msra.mxu0 0
    %2528 = vmatprep.subr.bf16.mxu0 0
    %2529 = vmatpush2.bf16.msra.mxu0 0
    %2530 = vmatprep.subr.bf16.mxu0 0
    %2531 = vmatpush2.bf16.msra.mxu0 0
    %2532 = vmatprep.subr.bf16.mxu0 0
    %2533 = vmatpush2.bf16.msra.mxu0 0
    %2534 = vmatprep.mubr.bf16.mxu0 0
    %2535 = vmatmul.mubr.bf16.gmra.mxu0 %v2261
    %v2536 = vpop.f32.mrf.mxu0
    %v2537 = vadd.f32 %v2299, %v2536
    %v2538 = vpop.f32.mrf.mxu0
    %v2539 = vadd.f32 %v2300, %v2538
    %v2540 = vpop.f32.mrf.mxu0
    %v2541 = vpop.f32.mrf.mxu0
    %2542 = vdwg.mxu0
    %v2543 = vmul.f32 %v2496, 0.5
    %v2544 = vtanh.pop %v2543
    %v2545 = vmul.f32 %v2544, 0.5
    %v2546 = vadd.f32 %v2545, 0.5
    %v2547 = vmul.f32 %v2498, 0.5
    %v2548 = vtanh.pop %v2547
    %v2549 = vmul.f32 %v2548, 0.5
    %v2550 = vadd.f32 %v2549, 0.5
    %v2551 = vtanh.pop %v2537
    %v2552 = vmul.f32 %v2539, 0.5
    %v2553 = vtanh.pop %v2552
    %v2554 = vmul.f32 %v2553, 0.5
    %v2555 = vadd.f32 %v2554, 0.5
    %v2556 = vmul.f32 %v2550, %v2254
    %v2557 = vmul.f32 %v2546, %v2551
    %v2558 = vadd.f32 %v2556, %v2557
    %v2559 = vtanh.pop %v2558
    %v2560 = vmul.f32 %v2555, %v2559
    %s2561 = scalar_lea.vmem [#allocation3], 48
    %2562 = vst [vmem:[%s2561] sm:$0xff] %v2560
    %s2563 = scalar_lea.vmem [#allocation4], 24
    %2564 = vst [vmem:[%s2563] sm:$0xff] %v2560
    %v2565 = vpack.c.bf16 %v2560, %v2560
    %v2566 = vld [vmem:[%s3] sm:$0xff]
    %v2567 = vld [vmem:[%s3 + $0x8] sm:$0xff]
    %v2568 = vld [vmem:[%s3 + $0x10] sm:$0xff]
    %v2569 = vld [vmem:[%s3 + $0x18] sm:$0xff]
    %v2570 = vld [vmem:[%s3 + $0x20] sm:$0xff]
    %v2571 = vld [vmem:[%s3 + $0x28] sm:$0xff]
    %v2572 = vld [vmem:[%s3 + $0x30] sm:$0xff]
    %v2573 = vld [vmem:[%s3 + $0x38] sm:$0xff]
    %v2574 = vld [vmem:[%s3 + $0x40] sm:$0xff]
    %v2575 = vld [vmem:[%s3 + $0x48] sm:$0xff]
    %v2576 = vld [vmem:[%s3 + $0x50] sm:$0xff]
    %v2577 = vld [vmem:[%s3 + $0x58] sm:$0xff]
    %v2578 = vld [vmem:[%s3 + $0x60] sm:$0xff]
    %v2579 = vld [vmem:[%s3 + $0x68] sm:$0xff]
    %v2580 = vld [vmem:[%s3 + $0x70] sm:$0xff]
    %v2581 = vld [vmem:[%s3 + $0x78] sm:$0xff]
    %v2582 = vld [vmem:[%s3 + $0x80] sm:$0xff]
    %v2583 = vld [vmem:[%s3 + $0x88] sm:$0xff]
    %v2584 = vld [vmem:[%s3 + $0x90] sm:$0xff]
    %v2585 = vld [vmem:[%s3 + $0x98] sm:$0xff]
    %v2586 = vld [vmem:[%s3 + $0xa0] sm:$0xff]
    %v2587 = vld [vmem:[%s3 + $0xa8] sm:$0xff]
    %v2588 = vld [vmem:[%s3 + $0xb0] sm:$0xff]
    %v2589 = vld [vmem:[%s3 + $0xb8] sm:$0xff]
    %v2590 = vld [vmem:[%s3 + $0xc0] sm:$0xff]
    %v2591 = vld [vmem:[%s3 + $0xc8] sm:$0xff]
    %v2592 = vld [vmem:[%s3 + $0xd0] sm:$0xff]
    %v2593 = vld [vmem:[%s3 + $0xd8] sm:$0xff]
    %v2594 = vld [vmem:[%s3 + $0xe0] sm:$0xff]
    %v2595 = vld [vmem:[%s3 + $0xe8] sm:$0xff]
    %v2596 = vld [vmem:[%s3 + $0xf0] sm:$0xff]
    %v2597 = vld [vmem:[%s3 + $0xf8] sm:$0xff]
    %s2598 = smul.u32 7, 4
    %s2599 = smul.addr %s2598, 8
    %s2600 = scalar_lea.vmem [#allocation2], %s2599
    %v2601 = vld [vmem:[%s2600] sm:$0xff]
    %v2602 = vld [vmem:[%s2600 + $0x8] sm:$0xff]
    %v2603 = vld [vmem:[%s2600 + $0x10] sm:$0xff]
    %v2604 = vld [vmem:[%s2600 + $0x18] sm:$0xff]
    %v2637 = vunpack.c.l.b16 %v2566
    %v2638 = vunpack.c.h.b16 %v2566
    %v2639 = vunpack.c.l.b16 %v2567
    %v2640 = vunpack.c.h.b16 %v2567
    %v2641 = vunpack.c.l.b16 %v2568
    %v2642 = vunpack.c.h.b16 %v2568
    %v2643 = vunpack.c.l.b16 %v2569
    %v2644 = vunpack.c.h.b16 %v2569
    %v2645 = vunpack.c.l.b16 %v2570
    %v2646 = vunpack.c.h.b16 %v2570
    %v2647 = vunpack.c.l.b16 %v2571
    %v2648 = vunpack.c.h.b16 %v2571
    %v2649 = vunpack.c.l.b16 %v2572
    %v2650 = vunpack.c.h.b16 %v2572
    %v2651 = vunpack.c.l.b16 %v2573
    %v2652 = vunpack.c.h.b16 %v2573
    %v2653 = vunpack.c.l.b16 %v2574
    %v2654 = vunpack.c.h.b16 %v2574
    %v2655 = vunpack.c.l.b16 %v2575
    %v2656 = vunpack.c.h.b16 %v2575
    %v2657 = vunpack.c.l.b16 %v2576
    %v2658 = vunpack.c.h.b16 %v2576
    %v2659 = vunpack.c.l.b16 %v2577
    %v2660 = vunpack.c.h.b16 %v2577
    %v2661 = vunpack.c.l.b16 %v2578
    %v2662 = vunpack.c.h.b16 %v2578
    %v2663 = vunpack.c.l.b16 %v2579
    %v2664 = vunpack.c.h.b16 %v2579
    %v2665 = vunpack.c.l.b16 %v2580
    %v2666 = vunpack.c.h.b16 %v2580
    %v2667 = vunpack.c.l.b16 %v2581
    %v2668 = vunpack.c.h.b16 %v2581
    %v2669 = vunpack.c.l.b16 %v2582
    %v2670 = vunpack.c.h.b16 %v2582
    %v2671 = vunpack.c.l.b16 %v2583
    %v2672 = vunpack.c.h.b16 %v2583
    %v2673 = vunpack.c.l.b16 %v2584
    %v2674 = vunpack.c.h.b16 %v2584
    %v2675 = vunpack.c.l.b16 %v2585
    %v2676 = vunpack.c.h.b16 %v2585
    %v2677 = vunpack.c.l.b16 %v2586
    %v2678 = vunpack.c.h.b16 %v2586
    %v2679 = vunpack.c.l.b16 %v2587
    %v2680 = vunpack.c.h.b16 %v2587
    %v2681 = vunpack.c.l.b16 %v2588
    %v2682 = vunpack.c.h.b16 %v2588
    %v2683 = vunpack.c.l.b16 %v2589
    %v2684 = vunpack.c.h.b16 %v2589
    %v2685 = vunpack.c.l.b16 %v2590
    %v2686 = vunpack.c.h.b16 %v2590
    %v2687 = vunpack.c.l.b16 %v2591
    %v2688 = vunpack.c.h.b16 %v2591
    %v2689 = vunpack.c.l.b16 %v2592
    %v2690 = vunpack.c.h.b16 %v2592
    %v2691 = vunpack.c.l.b16 %v2593
    %v2692 = vunpack.c.h.b16 %v2593
    %v2693 = vunpack.c.l.b16 %v2594
    %v2694 = vunpack.c.h.b16 %v2594
    %v2695 = vunpack.c.l.b16 %v2595
    %v2696 = vunpack.c.h.b16 %v2595
    %v2697 = vunpack.c.l.b16 %v2596
    %v2698 = vunpack.c.h.b16 %v2596
    %v2699 = vunpack.c.l.b16 %v2597
    %v2700 = vunpack.c.h.b16 %v2597
    %v2701 = vpack.c.b16 %v2641, %v2637
    %v2702 = vpack.c.b16 %v2642, %v2638
    %v2703 = vpack.c.b16 %v2643, %v2639
    %v2704 = vpack.c.b16 %v2644, %v2640
    %v2705 = vpack.c.b16 %v2649, %v2645
    %v2706 = vpack.c.b16 %v2650, %v2646
    %v2707 = vpack.c.b16 %v2651, %v2647
    %v2708 = vpack.c.b16 %v2652, %v2648
    %v2709 = vpack.c.b16 %v2657, %v2653
    %v2710 = vpack.c.b16 %v2658, %v2654
    %v2711 = vpack.c.b16 %v2659, %v2655
    %v2712 = vpack.c.b16 %v2660, %v2656
    %v2713 = vpack.c.b16 %v2665, %v2661
    %v2714 = vpack.c.b16 %v2666, %v2662
    %v2715 = vpack.c.b16 %v2667, %v2663
    %v2716 = vpack.c.b16 %v2668, %v2664
    %v2717 = vpack.c.b16 %v2673, %v2669
    %v2718 = vpack.c.b16 %v2674, %v2670
    %v2719 = vpack.c.b16 %v2675, %v2671
    %v2720 = vpack.c.b16 %v2676, %v2672
    %v2721 = vpack.c.b16 %v2681, %v2677
    %v2722 = vpack.c.b16 %v2682, %v2678
    %v2723 = vpack.c.b16 %v2683, %v2679
    %v2724 = vpack.c.b16 %v2684, %v2680
    %v2725 = vpack.c.b16 %v2689, %v2685
    %v2726 = vpack.c.b16 %v2690, %v2686
    %v2727 = vpack.c.b16 %v2691, %v2687
    %v2728 = vpack.c.b16 %v2692, %v2688
    %v2729 = vpack.c.b16 %v2697, %v2693
    %v2730 = vpack.c.b16 %v2698, %v2694
    %v2731 = vpack.c.b16 %v2699, %v2695
    %v2732 = vpack.c.b16 %v2700, %v2696
    %2765 = vmatprep.subr.bf16.mxu0 %v2730
    %2766 = vmatpush1.bf16.msra.mxu0 %v2729
    %2767 = vmatprep.subr.bf16.mxu0 %v2726
    %2768 = vmatpush1.bf16.msra.mxu0 %v2725
    %2769 = vmatprep.subr.bf16.mxu0 %v2722
    %2770 = vmatpush1.bf16.msra.mxu0 %v2721
    %2771 = vmatprep.subr.bf16.mxu0 %v2718
    %2772 = vmatpush1.bf16.msra.mxu0 %v2717
    %2773 = vmatprep.subr.bf16.mxu0 %v2714
    %2774 = vmatpush1.bf16.msra.mxu0 %v2713
    %2775 = vmatprep.subr.bf16.mxu0 %v2710
    %2776 = vmatpush1.bf16.msra.mxu0 %v2709
    %2777 = vmatprep.subr.bf16.mxu0 %v2706
    %2778 = vmatpush1.bf16.msra.mxu0 %v2705
    %2779 = vmatprep.subr.bf16.mxu0 %v2702
    %2780 = vmatpush1.bf16.msra.mxu0 %v2701
    %2781 = vmatprep.subr.bf16.mxu0 0
    %2782 = vmatpush2.bf16.msra.mxu0 0
    %2783 = vmatprep.subr.bf16.mxu0 0
    %2784 = vmatpush2.bf16.msra.mxu0 0
    %2785 = vmatprep.subr.bf16.mxu0 0
    %2786 = vmatpush2.bf16.msra.mxu0 0
    %2787 = vmatprep.subr.bf16.mxu0 0
    %2788 = vmatpush2.bf16.msra.mxu0 0
    %2789 = vmatprep.subr.bf16.mxu0 0
    %2790 = vmatpush2.bf16.msra.mxu0 0
    %2791 = vmatprep.subr.bf16.mxu0 0
    %2792 = vmatpush2.bf16.msra.mxu0 0
    %2793 = vmatprep.subr.bf16.mxu0 0
    %2794 = vmatpush2.bf16.msra.mxu0 0
    %2795 = vmatprep.subr.bf16.mxu0 0
    %2796 = vmatpush2.bf16.msra.mxu0 0
    %2797 = vmatprep.mubr.bf16.mxu0 0
    %2798 = vmatmul.mubr.bf16.gmra.mxu0 %v2565
    %v2799 = vpop.f32.mrf.mxu0
    %v2800 = vadd.f32 %v2601, %v2799
    %v2801 = vpop.f32.mrf.mxu0
    %v2802 = vadd.f32 %v2602, %v2801
    %v2803 = vpop.f32.mrf.mxu0
    %v2804 = vpop.f32.mrf.mxu0
    %2805 = vdwg.mxu0
    %2806 = vmatprep.subr.bf16.mxu0 %v2732
    %2807 = vmatpush1.bf16.msra.mxu0 %v2731
    %2808 = vmatprep.subr.bf16.mxu0 %v2728
    %2809 = vmatpush1.bf16.msra.mxu0 %v2727
    %2810 = vmatprep.subr.bf16.mxu0 %v2724
    %2811 = vmatpush1.bf16.msra.mxu0 %v2723
    %2812 = vmatprep.subr.bf16.mxu0 %v2720
    %2813 = vmatpush1.bf16.msra.mxu0 %v2719
    %2814 = vmatprep.subr.bf16.mxu0 %v2716
    %2815 = vmatpush1.bf16.msra.mxu0 %v2715
    %2816 = vmatprep.subr.bf16.mxu0 %v2712
    %2817 = vmatpush1.bf16.msra.mxu0 %v2711
    %2818 = vmatprep.subr.bf16.mxu0 %v2708
    %2819 = vmatpush1.bf16.msra.mxu0 %v2707
    %2820 = vmatprep.subr.bf16.mxu0 %v2704
    %2821 = vmatpush1.bf16.msra.mxu0 %v2703
    %2822 = vmatprep.subr.bf16.mxu0 0
    %2823 = vmatpush2.bf16.msra.mxu0 0
    %2824 = vmatprep.subr.bf16.mxu0 0
    %2825 = vmatpush2.bf16.msra.mxu0 0
    %2826 = vmatprep.subr.bf16.mxu0 0
    %2827 = vmatpush2.bf16.msra.mxu0 0
    %2828 = vmatprep.subr.bf16.mxu0 0
    %2829 = vmatpush2.bf16.msra.mxu0 0
    %2830 = vmatprep.subr.bf16.mxu0 0
    %2831 = vmatpush2.bf16.msra.mxu0 0
    %2832 = vmatprep.subr.bf16.mxu0 0
    %2833 = vmatpush2.bf16.msra.mxu0 0
    %2834 = vmatprep.subr.bf16.mxu0 0
    %2835 = vmatpush2.bf16.msra.mxu0 0
    %2836 = vmatprep.subr.bf16.mxu0 0
    %2837 = vmatpush2.bf16.msra.mxu0 0
    %2838 = vmatprep.mubr.bf16.mxu0 0
    %2839 = vmatmul.mubr.bf16.gmra.mxu0 %v2565
    %v2840 = vpop.f32.mrf.mxu0
    %v2841 = vadd.f32 %v2603, %v2840
    %v2842 = vpop.f32.mrf.mxu0
    %v2843 = vadd.f32 %v2604, %v2842
    %v2844 = vpop.f32.mrf.mxu0
    %v2845 = vpop.f32.mrf.mxu0
    %2846 = vdwg.mxu0
    %v2847 = vmul.f32 %v2800, 0.5
    %v2848 = vtanh.pop %v2847
    %v2849 = vmul.f32 %v2848, 0.5
    %v2850 = vadd.f32 %v2849, 0.5
    %v2851 = vmul.f32 %v2802, 0.5
    %v2852 = vtanh.pop %v2851
    %v2853 = vmul.f32 %v2852, 0.5
    %v2854 = vadd.f32 %v2853, 0.5
    %v2855 = vtanh.pop %v2841
    %v2856 = vmul.f32 %v2843, 0.5
    %v2857 = vtanh.pop %v2856
    %v2858 = vmul.f32 %v2857, 0.5
    %v2859 = vadd.f32 %v2858, 0.5
    %v2860 = vmul.f32 %v2854, %v2558
    %v2861 = vmul.f32 %v2850, %v2855
    %v2862 = vadd.f32 %v2860, %v2861
    %v2863 = vtanh.pop %v2862
    %v2864 = vmul.f32 %v2859, %v2863
    %s2865 = scalar_lea.vmem [#allocation3], 56
    %2866 = vst [vmem:[%s2865] sm:$0xff] %v2864
    %s2867 = scalar_lea.vmem [#allocation4], 16
    %2868 = vst [vmem:[%s2867] sm:$0xff] %v2864
    %v2869 = vpack.c.bf16 %v2864, %v2864
    %v2870 = vld [vmem:[%s3] sm:$0xff]
    %v2871 = vld [vmem:[%s3 + $0x8] sm:$0xff]
    %v2872 = vld [vmem:[%s3 + $0x10] sm:$0xff]
    %v2873 = vld [vmem:[%s3 + $0x18] sm:$0xff]
    %v2874 = vld [vmem:[%s3 + $0x20] sm:$0xff]
    %v2875 = vld [vmem:[%s3 + $0x28] sm:$0xff]
    %v2876 = vld [vmem:[%s3 + $0x30] sm:$0xff]
    %v2877 = vld [vmem:[%s3 + $0x38] sm:$0xff]
    %v2878 = vld [vmem:[%s3 + $0x40] sm:$0xff]
    %v2879 = vld [vmem:[%s3 + $0x48] sm:$0xff]
    %v2880 = vld [vmem:[%s3 + $0x50] sm:$0xff]
    %v2881 = vld [vmem:[%s3 + $0x58] sm:$0xff]
    %v2882 = vld [vmem:[%s3 + $0x60] sm:$0xff]
    %v2883 = vld [vmem:[%s3 + $0x68] sm:$0xff]
    %v2884 = vld [vmem:[%s3 + $0x70] sm:$0xff]
    %v2885 = vld [vmem:[%s3 + $0x78] sm:$0xff]
    %v2886 = vld [vmem:[%s3 + $0x80] sm:$0xff]
    %v2887 = vld [vmem:[%s3 + $0x88] sm:$0xff]
    %v2888 = vld [vmem:[%s3 + $0x90] sm:$0xff]
    %v2889 = vld [vmem:[%s3 + $0x98] sm:$0xff]
    %v2890 = vld [vmem:[%s3 + $0xa0] sm:$0xff]
    %v2891 = vld [vmem:[%s3 + $0xa8] sm:$0xff]
    %v2892 = vld [vmem:[%s3 + $0xb0] sm:$0xff]
    %v2893 = vld [vmem:[%s3 + $0xb8] sm:$0xff]
    %v2894 = vld [vmem:[%s3 + $0xc0] sm:$0xff]
    %v2895 = vld [vmem:[%s3 + $0xc8] sm:$0xff]
    %v2896 = vld [vmem:[%s3 + $0xd0] sm:$0xff]
    %v2897 = vld [vmem:[%s3 + $0xd8] sm:$0xff]
    %v2898 = vld [vmem:[%s3 + $0xe0] sm:$0xff]
    %v2899 = vld [vmem:[%s3 + $0xe8] sm:$0xff]
    %v2900 = vld [vmem:[%s3 + $0xf0] sm:$0xff]
    %v2901 = vld [vmem:[%s3 + $0xf8] sm:$0xff]
    %s2902 = smul.u32 8, 4
    %s2903 = smul.addr %s2902, 8
    %s2904 = scalar_lea.vmem [#allocation2], %s2903
    %v2905 = vld [vmem:[%s2904] sm:$0xff]
    %v2906 = vld [vmem:[%s2904 + $0x8] sm:$0xff]
    %v2907 = vld [vmem:[%s2904 + $0x10] sm:$0xff]
    %v2908 = vld [vmem:[%s2904 + $0x18] sm:$0xff]
    %v2941 = vunpack.c.l.b16 %v2870
    %v2942 = vunpack.c.h.b16 %v2870
    %v2943 = vunpack.c.l.b16 %v2871
    %v2944 = vunpack.c.h.b16 %v2871
    %v2945 = vunpack.c.l.b16 %v2872
    %v2946 = vunpack.c.h.b16 %v2872
    %v2947 = vunpack.c.l.b16 %v2873
    %v2948 = vunpack.c.h.b16 %v2873
    %v2949 = vunpack.c.l.b16 %v2874
    %v2950 = vunpack.c.h.b16 %v2874
    %v2951 = vunpack.c.l.b16 %v2875
    %v2952 = vunpack.c.h.b16 %v2875
    %v2953 = vunpack.c.l.b16 %v2876
    %v2954 = vunpack.c.h.b16 %v2876
    %v2955 = vunpack.c.l.b16 %v2877
    %v2956 = vunpack.c.h.b16 %v2877
    %v2957 = vunpack.c.l.b16 %v2878
    %v2958 = vunpack.c.h.b16 %v2878
    %v2959 = vunpack.c.l.b16 %v2879
    %v2960 = vunpack.c.h.b16 %v2879
    %v2961 = vunpack.c.l.b16 %v2880
    %v2962 = vunpack.c.h.b16 %v2880
    %v2963 = vunpack.c.l.b16 %v2881
    %v2964 = vunpack.c.h.b16 %v2881
    %v2965 = vunpack.c.l.b16 %v2882
    %v2966 = vunpack.c.h.b16 %v2882
    %v2967 = vunpack.c.l.b16 %v2883
    %v2968 = vunpack.c.h.b16 %v2883
    %v2969 = vunpack.c.l.b16 %v2884
    %v2970 = vunpack.c.h.b16 %v2884
    %v2971 = vunpack.c.l.b16 %v2885
    %v2972 = vunpack.c.h.b16 %v2885
    %v2973 = vunpack.c.l.b16 %v2886
    %v2974 = vunpack.c.h.b16 %v2886
    %v2975 = vunpack.c.l.b16 %v2887
    %v2976 = vunpack.c.h.b16 %v2887
    %v2977 = vunpack.c.l.b16 %v2888
    %v2978 = vunpack.c.h.b16 %v2888
    %v2979 = vunpack.c.l.b16 %v2889
    %v2980 = vunpack.c.h.b16 %v2889
    %v2981 = vunpack.c.l.b16 %v2890
    %v2982 = vunpack.c.h.b16 %v2890
    %v2983 = vunpack.c.l.b16 %v2891
    %v2984 = vunpack.c.h.b16 %v2891
    %v2985 = vunpack.c.l.b16 %v2892
    %v2986 = vunpack.c.h.b16 %v2892
    %v2987 = vunpack.c.l.b16 %v2893
    %v2988 = vunpack.c.h.b16 %v2893
    %v2989 = vunpack.c.l.b16 %v2894
    %v2990 = vunpack.c.h.b16 %v2894
    %v2991 = vunpack.c.l.b16 %v2895
    %v2992 = vunpack.c.h.b16 %v2895
    %v2993 = vunpack.c.l.b16 %v2896
    %v2994 = vunpack.c.h.b16 %v2896
    %v2995 = vunpack.c.l.b16 %v2897
    %v2996 = vunpack.c.h.b16 %v2897
    %v2997 = vunpack.c.l.b16 %v2898
    %v2998 = vunpack.c.h.b16 %v2898
    %v2999 = vunpack.c.l.b16 %v2899
    %v3000 = vunpack.c.h.b16 %v2899
    %v3001 = vunpack.c.l.b16 %v2900
    %v3002 = vunpack.c.h.b16 %v2900
    %v3003 = vunpack.c.l.b16 %v2901
    %v3004 = vunpack.c.h.b16 %v2901
    %v3005 = vpack.c.b16 %v2945, %v2941
    %v3006 = vpack.c.b16 %v2946, %v2942
    %v3007 = vpack.c.b16 %v2947, %v2943
    %v3008 = vpack.c.b16 %v2948, %v2944
    %v3009 = vpack.c.b16 %v2953, %v2949
    %v3010 = vpack.c.b16 %v2954, %v2950
    %v3011 = vpack.c.b16 %v2955, %v2951
    %v3012 = vpack.c.b16 %v2956, %v2952
    %v3013 = vpack.c.b16 %v2961, %v2957
    %v3014 = vpack.c.b16 %v2962, %v2958
    %v3015 = vpack.c.b16 %v2963, %v2959
    %v3016 = vpack.c.b16 %v2964, %v2960
    %v3017 = vpack.c.b16 %v2969, %v2965
    %v3018 = vpack.c.b16 %v2970, %v2966
    %v3019 = vpack.c.b16 %v2971, %v2967
    %v3020 = vpack.c.b16 %v2972, %v2968
    %v3021 = vpack.c.b16 %v2977, %v2973
    %v3022 = vpack.c.b16 %v2978, %v2974
    %v3023 = vpack.c.b16 %v2979, %v2975
    %v3024 = vpack.c.b16 %v2980, %v2976
    %v3025 = vpack.c.b16 %v2985, %v2981
    %v3026 = vpack.c.b16 %v2986, %v2982
    %v3027 = vpack.c.b16 %v2987, %v2983
    %v3028 = vpack.c.b16 %v2988, %v2984
    %v3029 = vpack.c.b16 %v2993, %v2989
    %v3030 = vpack.c.b16 %v2994, %v2990
    %v3031 = vpack.c.b16 %v2995, %v2991
    %v3032 = vpack.c.b16 %v2996, %v2992
    %v3033 = vpack.c.b16 %v3001, %v2997
    %v3034 = vpack.c.b16 %v3002, %v2998
    %v3035 = vpack.c.b16 %v3003, %v2999
    %v3036 = vpack.c.b16 %v3004, %v3000
    %3069 = vmatprep.subr.bf16.mxu0 %v3034
    %3070 = vmatpush1.bf16.msra.mxu0 %v3033
    %3071 = vmatprep.subr.bf16.mxu0 %v3030
    %3072 = vmatpush1.bf16.msra.mxu0 %v3029
    %3073 = vmatprep.subr.bf16.mxu0 %v3026
    %3074 = vmatpush1.bf16.msra.mxu0 %v3025
    %3075 = vmatprep.subr.bf16.mxu0 %v3022
    %3076 = vmatpush1.bf16.msra.mxu0 %v3021
    %3077 = vmatprep.subr.bf16.mxu0 %v3018
    %3078 = vmatpush1.bf16.msra.mxu0 %v3017
    %3079 = vmatprep.subr.bf16.mxu0 %v3014
    %3080 = vmatpush1.bf16.msra.mxu0 %v3013
    %3081 = vmatprep.subr.bf16.mxu0 %v3010
    %3082 = vmatpush1.bf16.msra.mxu0 %v3009
    %3083 = vmatprep.subr.bf16.mxu0 %v3006
    %3084 = vmatpush1.bf16.msra.mxu0 %v3005
    %3085 = vmatprep.subr.bf16.mxu0 0
    %3086 = vmatpush2.bf16.msra.mxu0 0
    %3087 = vmatprep.subr.bf16.mxu0 0
    %3088 = vmatpush2.bf16.msra.mxu0 0
    %3089 = vmatprep.subr.bf16.mxu0 0
    %3090 = vmatpush2.bf16.msra.mxu0 0
    %3091 = vmatprep.subr.bf16.mxu0 0
    %3092 = vmatpush2.bf16.msra.mxu0 0
    %3093 = vmatprep.subr.bf16.mxu0 0
    %3094 = vmatpush2.bf16.msra.mxu0 0
    %3095 = vmatprep.subr.bf16.mxu0 0
    %3096 = vmatpush2.bf16.msra.mxu0 0
    %3097 = vmatprep.subr.bf16.mxu0 0
    %3098 = vmatpush2.bf16.msra.mxu0 0
    %3099 = vmatprep.subr.bf16.mxu0 0
    %3100 = vmatpush2.bf16.msra.mxu0 0
    %3101 = vmatprep.mubr.bf16.mxu0 0
    %3102 = vmatmul.mubr.bf16.gmra.mxu0 %v2869
    %v3103 = vpop.f32.mrf.mxu0
    %v3104 = vadd.f32 %v2905, %v3103
    %v3105 = vpop.f32.mrf.mxu0
    %v3106 = vadd.f32 %v2906, %v3105
    %v3107 = vpop.f32.mrf.mxu0
    %v3108 = vpop.f32.mrf.mxu0
    %3109 = vdwg.mxu0
    %3110 = vmatprep.subr.bf16.mxu0 %v3036
    %3111 = vmatpush1.bf16.msra.mxu0 %v3035
    %3112 = vmatprep.subr.bf16.mxu0 %v3032
    %3113 = vmatpush1.bf16.msra.mxu0 %v3031
    %3114 = vmatprep.subr.bf16.mxu0 %v3028
    %3115 = vmatpush1.bf16.msra.mxu0 %v3027
    %3116 = vmatprep.subr.bf16.mxu0 %v3024
    %3117 = vmatpush1.bf16.msra.mxu0 %v3023
    %3118 = vmatprep.subr.bf16.mxu0 %v3020
    %3119 = vmatpush1.bf16.msra.mxu0 %v3019
    %3120 = vmatprep.subr.bf16.mxu0 %v3016
    %3121 = vmatpush1.bf16.msra.mxu0 %v3015
    %3122 = vmatprep.subr.bf16.mxu0 %v3012
    %3123 = vmatpush1.bf16.msra.mxu0 %v3011
    %3124 = vmatprep.subr.bf16.mxu0 %v3008
    %3125 = vmatpush1.bf16.msra.mxu0 %v3007
    %3126 = vmatprep.subr.bf16.mxu0 0
    %3127 = vmatpush2.bf16.msra.mxu0 0
    %3128 = vmatprep.subr.bf16.mxu0 0
    %3129 = vmatpush2.bf16.msra.mxu0 0
    %3130 = vmatprep.subr.bf16.mxu0 0
    %3131 = vmatpush2.bf16.msra.mxu0 0
    %3132 = vmatprep.subr.bf16.mxu0 0
    %3133 = vmatpush2.bf16.msra.mxu0 0
    %3134 = vmatprep.subr.bf16.mxu0 0
    %3135 = vmatpush2.bf16.msra.mxu0 0
    %3136 = vmatprep.subr.bf16.mxu0 0
    %3137 = vmatpush2.bf16.msra.mxu0 0
    %3138 = vmatprep.subr.bf16.mxu0 0
    %3139 = vmatpush2.bf16.msra.mxu0 0
    %3140 = vmatprep.subr.bf16.mxu0 0
    %3141 = vmatpush2.bf16.msra.mxu0 0
    %3142 = vmatprep.mubr.bf16.mxu0 0
    %3143 = vmatmul.mubr.bf16.gmra.mxu0 %v2869
    %v3144 = vpop.f32.mrf.mxu0
    %v3145 = vadd.f32 %v2907, %v3144
    %v3146 = vpop.f32.mrf.mxu0
    %v3147 = vadd.f32 %v2908, %v3146
    %v3148 = vpop.f32.mrf.mxu0
    %v3149 = vpop.f32.mrf.mxu0
    %3150 = vdwg.mxu0
    %v3151 = vmul.f32 %v3104, 0.5
    %v3152 = vtanh.pop %v3151
    %v3153 = vmul.f32 %v3152, 0.5
    %v3154 = vadd.f32 %v3153, 0.5
    %v3155 = vmul.f32 %v3106, 0.5
    %v3156 = vtanh.pop %v3155
    %v3157 = vmul.f32 %v3156, 0.5
    %v3158 = vadd.f32 %v3157, 0.5
    %v3159 = vtanh.pop %v3145
    %v3160 = vmul.f32 %v3147, 0.5
    %v3161 = vtanh.pop %v3160
    %v3162 = vmul.f32 %v3161, 0.5
    %v3163 = vadd.f32 %v3162, 0.5
    %v3164 = vmul.f32 %v3158, %v2862
    %v3165 = vmul.f32 %v3154, %v3159
    %v3166 = vadd.f32 %v3164, %v3165
    %v3167 = vtanh.pop %v3166
    %v3168 = vmul.f32 %v3163, %v3167
    %s3169 = scalar_lea.vmem [#allocation3], 64
    %3170 = vst [vmem:[%s3169] sm:$0xff] %v3168
    %s3171 = scalar_lea.vmem [#allocation4], 8
    %3172 = vst [vmem:[%s3171] sm:$0xff] %v3168
    %v3173 = vpack.c.bf16 %v3168, %v3168
    %v3174 = vld [vmem:[%s3] sm:$0xff]
    %v3175 = vld [vmem:[%s3 + $0x8] sm:$0xff]
    %v3176 = vld [vmem:[%s3 + $0x10] sm:$0xff]
    %v3177 = vld [vmem:[%s3 + $0x18] sm:$0xff]
    %v3178 = vld [vmem:[%s3 + $0x20] sm:$0xff]
    %v3179 = vld [vmem:[%s3 + $0x28] sm:$0xff]
    %v3180 = vld [vmem:[%s3 + $0x30] sm:$0xff]
    %v3181 = vld [vmem:[%s3 + $0x38] sm:$0xff]
    %v3182 = vld [vmem:[%s3 + $0x40] sm:$0xff]
    %v3183 = vld [vmem:[%s3 + $0x48] sm:$0xff]
    %v3184 = vld [vmem:[%s3 + $0x50] sm:$0xff]
    %v3185 = vld [vmem:[%s3 + $0x58] sm:$0xff]
    %v3186 = vld [vmem:[%s3 + $0x60] sm:$0xff]
    %v3187 = vld [vmem:[%s3 + $0x68] sm:$0xff]
    %v3188 = vld [vmem:[%s3 + $0x70] sm:$0xff]
    %v3189 = vld [vmem:[%s3 + $0x78] sm:$0xff]
    %v3190 = vld [vmem:[%s3 + $0x80] sm:$0xff]
    %v3191 = vld [vmem:[%s3 + $0x88] sm:$0xff]
    %v3192 = vld [vmem:[%s3 + $0x90] sm:$0xff]
    %v3193 = vld [vmem:[%s3 + $0x98] sm:$0xff]
    %v3194 = vld [vmem:[%s3 + $0xa0] sm:$0xff]
    %v3195 = vld [vmem:[%s3 + $0xa8] sm:$0xff]
    %v3196 = vld [vmem:[%s3 + $0xb0] sm:$0xff]
    %v3197 = vld [vmem:[%s3 + $0xb8] sm:$0xff]
    %v3198 = vld [vmem:[%s3 + $0xc0] sm:$0xff]
    %v3199 = vld [vmem:[%s3 + $0xc8] sm:$0xff]
    %v3200 = vld [vmem:[%s3 + $0xd0] sm:$0xff]
    %v3201 = vld [vmem:[%s3 + $0xd8] sm:$0xff]
    %v3202 = vld [vmem:[%s3 + $0xe0] sm:$0xff]
    %v3203 = vld [vmem:[%s3 + $0xe8] sm:$0xff]
    %v3204 = vld [vmem:[%s3 + $0xf0] sm:$0xff]
    %v3205 = vld [vmem:[%s3 + $0xf8] sm:$0xff]
    %s3206 = smul.u32 9, 4
    %s3207 = smul.addr %s3206, 8
    %s3208 = scalar_lea.vmem [#allocation2], %s3207
    %v3209 = vld [vmem:[%s3208] sm:$0xff]
    %v3210 = vld [vmem:[%s3208 + $0x8] sm:$0xff]
    %v3211 = vld [vmem:[%s3208 + $0x10] sm:$0xff]
    %v3212 = vld [vmem:[%s3208 + $0x18] sm:$0xff]
    %v3245 = vunpack.c.l.b16 %v3174
    %v3246 = vunpack.c.h.b16 %v3174
    %v3247 = vunpack.c.l.b16 %v3175
    %v3248 = vunpack.c.h.b16 %v3175
    %v3249 = vunpack.c.l.b16 %v3176
    %v3250 = vunpack.c.h.b16 %v3176
    %v3251 = vunpack.c.l.b16 %v3177
    %v3252 = vunpack.c.h.b16 %v3177
    %v3253 = vunpack.c.l.b16 %v3178
    %v3254 = vunpack.c.h.b16 %v3178
    %v3255 = vunpack.c.l.b16 %v3179
    %v3256 = vunpack.c.h.b16 %v3179
    %v3257 = vunpack.c.l.b16 %v3180
    %v3258 = vunpack.c.h.b16 %v3180
    %v3259 = vunpack.c.l.b16 %v3181
    %v3260 = vunpack.c.h.b16 %v3181
    %v3261 = vunpack.c.l.b16 %v3182
    %v3262 = vunpack.c.h.b16 %v3182
    %v3263 = vunpack.c.l.b16 %v3183
    %v3264 = vunpack.c.h.b16 %v3183
    %v3265 = vunpack.c.l.b16 %v3184
    %v3266 = vunpack.c.h.b16 %v3184
    %v3267 = vunpack.c.l.b16 %v3185
    %v3268 = vunpack.c.h.b16 %v3185
    %v3269 = vunpack.c.l.b16 %v3186
    %v3270 = vunpack.c.h.b16 %v3186
    %v3271 = vunpack.c.l.b16 %v3187
    %v3272 = vunpack.c.h.b16 %v3187
    %v3273 = vunpack.c.l.b16 %v3188
    %v3274 = vunpack.c.h.b16 %v3188
    %v3275 = vunpack.c.l.b16 %v3189
    %v3276 = vunpack.c.h.b16 %v3189
    %v3277 = vunpack.c.l.b16 %v3190
    %v3278 = vunpack.c.h.b16 %v3190
    %v3279 = vunpack.c.l.b16 %v3191
    %v3280 = vunpack.c.h.b16 %v3191
    %v3281 = vunpack.c.l.b16 %v3192
    %v3282 = vunpack.c.h.b16 %v3192
    %v3283 = vunpack.c.l.b16 %v3193
    %v3284 = vunpack.c.h.b16 %v3193
    %v3285 = vunpack.c.l.b16 %v3194
    %v3286 = vunpack.c.h.b16 %v3194
    %v3287 = vunpack.c.l.b16 %v3195
    %v3288 = vunpack.c.h.b16 %v3195
    %v3289 = vunpack.c.l.b16 %v3196
    %v3290 = vunpack.c.h.b16 %v3196
    %v3291 = vunpack.c.l.b16 %v3197
    %v3292 = vunpack.c.h.b16 %v3197
    %v3293 = vunpack.c.l.b16 %v3198
    %v3294 = vunpack.c.h.b16 %v3198
    %v3295 = vunpack.c.l.b16 %v3199
    %v3296 = vunpack.c.h.b16 %v3199
    %v3297 = vunpack.c.l.b16 %v3200
    %v3298 = vunpack.c.h.b16 %v3200
    %v3299 = vunpack.c.l.b16 %v3201
    %v3300 = vunpack.c.h.b16 %v3201
    %v3301 = vunpack.c.l.b16 %v3202
    %v3302 = vunpack.c.h.b16 %v3202
    %v3303 = vunpack.c.l.b16 %v3203
    %v3304 = vunpack.c.h.b16 %v3203
    %v3305 = vunpack.c.l.b16 %v3204
    %v3306 = vunpack.c.h.b16 %v3204
    %v3307 = vunpack.c.l.b16 %v3205
    %v3308 = vunpack.c.h.b16 %v3205
    %v3309 = vpack.c.b16 %v3249, %v3245
    %v3310 = vpack.c.b16 %v3250, %v3246
    %v3311 = vpack.c.b16 %v3251, %v3247
    %v3312 = vpack.c.b16 %v3252, %v3248
    %v3313 = vpack.c.b16 %v3257, %v3253
    %v3314 = vpack.c.b16 %v3258, %v3254
    %v3315 = vpack.c.b16 %v3259, %v3255
    %v3316 = vpack.c.b16 %v3260, %v3256
    %v3317 = vpack.c.b16 %v3265, %v3261
    %v3318 = vpack.c.b16 %v3266, %v3262
    %v3319 = vpack.c.b16 %v3267, %v3263
    %v3320 = vpack.c.b16 %v3268, %v3264
    %v3321 = vpack.c.b16 %v3273, %v3269
    %v3322 = vpack.c.b16 %v3274, %v3270
    %v3323 = vpack.c.b16 %v3275, %v3271
    %v3324 = vpack.c.b16 %v3276, %v3272
    %v3325 = vpack.c.b16 %v3281, %v3277
    %v3326 = vpack.c.b16 %v3282, %v3278
    %v3327 = vpack.c.b16 %v3283, %v3279
    %v3328 = vpack.c.b16 %v3284, %v3280
    %v3329 = vpack.c.b16 %v3289, %v3285
    %v3330 = vpack.c.b16 %v3290, %v3286
    %v3331 = vpack.c.b16 %v3291, %v3287
    %v3332 = vpack.c.b16 %v3292, %v3288
    %v3333 = vpack.c.b16 %v3297, %v3293
    %v3334 = vpack.c.b16 %v3298, %v3294
    %v3335 = vpack.c.b16 %v3299, %v3295
    %v3336 = vpack.c.b16 %v3300, %v3296
    %v3337 = vpack.c.b16 %v3305, %v3301
    %v3338 = vpack.c.b16 %v3306, %v3302
    %v3339 = vpack.c.b16 %v3307, %v3303
    %v3340 = vpack.c.b16 %v3308, %v3304
    %3373 = vmatprep.subr.bf16.mxu0 %v3338
    %3374 = vmatpush1.bf16.msra.mxu0 %v3337
    %3375 = vmatprep.subr.bf16.mxu0 %v3334
    %3376 = vmatpush1.bf16.msra.mxu0 %v3333
    %3377 = vmatprep.subr.bf16.mxu0 %v3330
    %3378 = vmatpush1.bf16.msra.mxu0 %v3329
    %3379 = vmatprep.subr.bf16.mxu0 %v3326
    %3380 = vmatpush1.bf16.msra.mxu0 %v3325
    %3381 = vmatprep.subr.bf16.mxu0 %v3322
    %3382 = vmatpush1.bf16.msra.mxu0 %v3321
    %3383 = vmatprep.subr.bf16.mxu0 %v3318
    %3384 = vmatpush1.bf16.msra.mxu0 %v3317
    %3385 = vmatprep.subr.bf16.mxu0 %v3314
    %3386 = vmatpush1.bf16.msra.mxu0 %v3313
    %3387 = vmatprep.subr.bf16.mxu0 %v3310
    %3388 = vmatpush1.bf16.msra.mxu0 %v3309
    %3389 = vmatprep.subr.bf16.mxu0 0
    %3390 = vmatpush2.bf16.msra.mxu0 0
    %3391 = vmatprep.subr.bf16.mxu0 0
    %3392 = vmatpush2.bf16.msra.mxu0 0
    %3393 = vmatprep.subr.bf16.mxu0 0
    %3394 = vmatpush2.bf16.msra.mxu0 0
    %3395 = vmatprep.subr.bf16.mxu0 0
    %3396 = vmatpush2.bf16.msra.mxu0 0
    %3397 = vmatprep.subr.bf16.mxu0 0
    %3398 = vmatpush2.bf16.msra.mxu0 0
    %3399 = vmatprep.subr.bf16.mxu0 0
    %3400 = vmatpush2.bf16.msra.mxu0 0
    %3401 = vmatprep.subr.bf16.mxu0 0
    %3402 = vmatpush2.bf16.msra.mxu0 0
    %3403 = vmatprep.subr.bf16.mxu0 0
    %3404 = vmatpush2.bf16.msra.mxu0 0
    %3405 = vmatprep.mubr.bf16.mxu0 0
    %3406 = vmatmul.mubr.bf16.gmra.mxu0 %v3173
    %v3407 = vpop.f32.mrf.mxu0
    %v3408 = vadd.f32 %v3209, %v3407
    %v3409 = vpop.f32.mrf.mxu0
    %v3410 = vadd.f32 %v3210, %v3409
    %v3411 = vpop.f32.mrf.mxu0
    %v3412 = vpop.f32.mrf.mxu0
    %3413 = vdwg.mxu0
    %3414 = vmatprep.subr.bf16.mxu0 %v3340
    %3415 = vmatpush1.bf16.msra.mxu0 %v3339
    %3416 = vmatprep.subr.bf16.mxu0 %v3336
    %3417 = vmatpush1.bf16.msra.mxu0 %v3335
    %3418 = vmatprep.subr.bf16.mxu0 %v3332
    %3419 = vmatpush1.bf16.msra.mxu0 %v3331
    %3420 = vmatprep.subr.bf16.mxu0 %v3328
    %3421 = vmatpush1.bf16.msra.mxu0 %v3327
    %3422 = vmatprep.subr.bf16.mxu0 %v3324
    %3423 = vmatpush1.bf16.msra.mxu0 %v3323
    %3424 = vmatprep.subr.bf16.mxu0 %v3320
    %3425 = vmatpush1.bf16.msra.mxu0 %v3319
    %3426 = vmatprep.subr.bf16.mxu0 %v3316
    %3427 = vmatpush1.bf16.msra.mxu0 %v3315
    %3428 = vmatprep.subr.bf16.mxu0 %v3312
    %3429 = vmatpush1.bf16.msra.mxu0 %v3311
    %3430 = vmatprep.subr.bf16.mxu0 0
    %3431 = vmatpush2.bf16.msra.mxu0 0
    %3432 = vmatprep.subr.bf16.mxu0 0
    %3433 = vmatpush2.bf16.msra.mxu0 0
    %3434 = vmatprep.subr.bf16.mxu0 0
    %3435 = vmatpush2.bf16.msra.mxu0 0
    %3436 = vmatprep.subr.bf16.mxu0 0
    %3437 = vmatpush2.bf16.msra.mxu0 0
    %3438 = vmatprep.subr.bf16.mxu0 0
    %3439 = vmatpush2.bf16.msra.mxu0 0
    %3440 = vmatprep.subr.bf16.mxu0 0
    %3441 = vmatpush2.bf16.msra.mxu0 0
    %3442 = vmatprep.subr.bf16.mxu0 0
    %3443 = vmatpush2.bf16.msra.mxu0 0
    %3444 = vmatprep.subr.bf16.mxu0 0
    %3445 = vmatpush2.bf16.msra.mxu0 0
    %3446 = vmatprep.mubr.bf16.mxu0 0
    %3447 = vmatmul.mubr.bf16.gmra.mxu0 %v3173
    %v3448 = vpop.f32.mrf.mxu0
    %v3449 = vadd.f32 %v3211, %v3448
    %v3450 = vpop.f32.mrf.mxu0
    %v3451 = vadd.f32 %v3212, %v3450
    %v3452 = vpop.f32.mrf.mxu0
    %v3453 = vpop.f32.mrf.mxu0
    %3454 = vdwg.mxu0
    %v3455 = vmul.f32 %v3408, 0.5
    %v3456 = vtanh.pop %v3455
    %v3457 = vmul.f32 %v3456, 0.5
    %v3458 = vadd.f32 %v3457, 0.5
    %v3459 = vmul.f32 %v3410, 0.5
    %v3460 = vtanh.pop %v3459
    %v3461 = vmul.f32 %v3460, 0.5
    %v3462 = vadd.f32 %v3461, 0.5
    %v3463 = vtanh.pop %v3449
    %v3464 = vmul.f32 %v3451, 0.5
    %v3465 = vtanh.pop %v3464
    %v3466 = vmul.f32 %v3465, 0.5
    %v3467 = vadd.f32 %v3466, 0.5
    %v3468 = vmul.f32 %v3462, %v3166
    %v3469 = vmul.f32 %v3458, %v3463
    %v3470 = vadd.f32 %v3468, %v3469
    %v3471 = vtanh.pop %v3470
    %v3472 = vmul.f32 %v3467, %v3471
    %s3473 = scalar_lea.vmem [#allocation3], 72
    %3474 = vst [vmem:[%s3473] sm:$0xff] %v3472
    %3475 = vst [vmem:[#allocation4] sm:$0xff] %v3472
    %v3476 = vld [vmem:[#allocation3] sm:$0xff]
    %v3477 = vld [vmem:[#allocation3 + $0x8] sm:$0xff]
    %v3478 = vld [vmem:[#allocation3 + $0x10] sm:$0xff]
    %v3479 = vld [vmem:[#allocation3 + $0x18] sm:$0xff]
    %v3480 = vld [vmem:[#allocation3 + $0x20] sm:$0xff]
    %v3481 = vld [vmem:[#allocation3 + $0x28] sm:$0xff]
    %v3482 = vld [vmem:[#allocation3 + $0x30] sm:$0xff]
    %v3483 = vld [vmem:[#allocation3 + $0x38] sm:$0xff]
    %v3484 = vld [vmem:[#allocation3 + $0x40] sm:$0xff]
    %v3485 = vld [vmem:[#allocation3 + $0x48] sm:$0xff]
    %v3486 = vpack.c.bf16 %v3477, %v3476
    %v3487 = vpack.c.bf16 %v3479, %v3478
    %v3488 = vpack.c.bf16 %v3481, %v3480
    %v3489 = vpack.c.bf16 %v3483, %v3482
    %v3490 = vpack.c.bf16 %v3485, %v3484
    %v3491 = vld [vmem:[#allocation4] sm:$0xff]
    %v3492 = vld [vmem:[#allocation4 + $0x8] sm:$0xff]
    %v3493 = vld [vmem:[#allocation4 + $0x10] sm:$0xff]
    %v3494 = vld [vmem:[#allocation4 + $0x18] sm:$0xff]
    %v3495 = vld [vmem:[#allocation4 + $0x20] sm:$0xff]
    %v3496 = vld [vmem:[#allocation4 + $0x28] sm:$0xff]
    %v3497 = vld [vmem:[#allocation4 + $0x30] sm:$0xff]
    %v3498 = vld [vmem:[#allocation4 + $0x38] sm:$0xff]
    %v3499 = vld [vmem:[#allocation4 + $0x40] sm:$0xff]
    %v3500 = vld [vmem:[#allocation4 + $0x48] sm:$0xff]
    %v3501 = vpack.c.bf16 %v3492, %v3491
    %v3502 = vpack.c.bf16 %v3494, %v3493
    %v3503 = vpack.c.bf16 %v3496, %v3495
    %v3504 = vpack.c.bf16 %v3498, %v3497
    %v3505 = vpack.c.bf16 %v3500, %v3499
    %v3506 = vld [vmem:[%s5] sm:$0xff]
    %v3507 = vld [vmem:[%s5 + $0x8] sm:$0xff]
    %v3508 = vld [vmem:[%s5 + $0x10] sm:$0xff]
    %v3509 = vld [vmem:[%s5 + $0x18] sm:$0xff]
    %v3510 = vld [vmem:[%s5 + $0x20] sm:$0xff]
    %v3511 = vld [vmem:[%s5 + $0x28] sm:$0xff]
    %v3512 = vld [vmem:[%s5 + $0x30] sm:$0xff]
    %v3513 = vld [vmem:[%s5 + $0x38] sm:$0xff]
    %v3514 = vld [vmem:[%s5 + $0x40] sm:$0xff]
    %v3515 = vld [vmem:[%s5 + $0x48] sm:$0xff]
    %v3516 = vld [vmem:[%s5 + $0x50] sm:$0xff]
    %v3517 = vld [vmem:[%s5 + $0x58] sm:$0xff]
    %v3518 = vld [vmem:[%s5 + $0x60] sm:$0xff]
    %v3519 = vld [vmem:[%s5 + $0x68] sm:$0xff]
    %v3520 = vld [vmem:[%s5 + $0x70] sm:$0xff]
    %v3521 = vld [vmem:[%s5 + $0x78] sm:$0xff]
    %v3522 = vld [vmem:[%s5 + $0x80] sm:$0xff]
    %v3523 = vld [vmem:[%s5 + $0x88] sm:$0xff]
    %v3524 = vld [vmem:[%s5 + $0x90] sm:$0xff]
    %v3525 = vld [vmem:[%s5 + $0x98] sm:$0xff]
    %v3526 = vld [vmem:[%s5 + $0xa0] sm:$0xff]
    %v3527 = vld [vmem:[%s5 + $0xa8] sm:$0xff]
    %v3528 = vld [vmem:[%s5 + $0xb0] sm:$0xff]
    %v3529 = vld [vmem:[%s5 + $0xb8] sm:$0xff]
    %v3530 = vld [vmem:[%s5 + $0xc0] sm:$0xff]
    %v3531 = vld [vmem:[%s5 + $0xc8] sm:$0xff]
    %v3532 = vld [vmem:[%s5 + $0xd0] sm:$0xff]
    %v3533 = vld [vmem:[%s5 + $0xd8] sm:$0xff]
    %v3534 = vld [vmem:[%s5 + $0xe0] sm:$0xff]
    %v3535 = vld [vmem:[%s5 + $0xe8] sm:$0xff]
    %v3536 = vld [vmem:[%s5 + $0xf0] sm:$0xff]
    %v3537 = vld [vmem:[%s5 + $0xf8] sm:$0xff]
    %v3538 = vld [vmem:[%s6] sm:$0xff]
    %v3539 = vld [vmem:[%s6 + $0x8] sm:$0xff]
    %v3540 = vld [vmem:[%s6 + $0x10] sm:$0xff]
    %v3541 = vld [vmem:[%s6 + $0x18] sm:$0xff]
    %v3542 = vld [vmem:[%s6 + $0x20] sm:$0xff]
    %v3543 = vld [vmem:[%s6 + $0x28] sm:$0xff]
    %v3544 = vld [vmem:[%s6 + $0x30] sm:$0xff]
    %v3545 = vld [vmem:[%s6 + $0x38] sm:$0xff]
    %v3546 = vld [vmem:[%s6 + $0x40] sm:$0xff]
    %v3547 = vld [vmem:[%s6 + $0x48] sm:$0xff]
    %v3548 = vld [vmem:[%s6 + $0x50] sm:$0xff]
    %v3549 = vld [vmem:[%s6 + $0x58] sm:$0xff]
    %v3550 = vld [vmem:[%s6 + $0x60] sm:$0xff]
    %v3551 = vld [vmem:[%s6 + $0x68] sm:$0xff]
    %v3552 = vld [vmem:[%s6 + $0x70] sm:$0xff]
    %v3553 = vld [vmem:[%s6 + $0x78] sm:$0xff]
    %v3554 = vld [vmem:[%s6 + $0x80] sm:$0xff]
    %v3555 = vld [vmem:[%s6 + $0x88] sm:$0xff]
    %v3556 = vld [vmem:[%s6 + $0x90] sm:$0xff]
    %v3557 = vld [vmem:[%s6 + $0x98] sm:$0xff]
    %v3558 = vld [vmem:[%s6 + $0xa0] sm:$0xff]
    %v3559 = vld [vmem:[%s6 + $0xa8] sm:$0xff]
    %v3560 = vld [vmem:[%s6 + $0xb0] sm:$0xff]
    %v3561 = vld [vmem:[%s6 + $0xb8] sm:$0xff]
    %v3562 = vld [vmem:[%s6 + $0xc0] sm:$0xff]
    %v3563 = vld [vmem:[%s6 + $0xc8] sm:$0xff]
    %v3564 = vld [vmem:[%s6 + $0xd0] sm:$0xff]
    %v3565 = vld [vmem:[%s6 + $0xd8] sm:$0xff]
    %v3566 = vld [vmem:[%s6 + $0xe0] sm:$0xff]
    %v3567 = vld [vmem:[%s6 + $0xe8] sm:$0xff]
    %v3568 = vld [vmem:[%s6 + $0xf0] sm:$0xff]
    %v3569 = vld [vmem:[%s6 + $0xf8] sm:$0xff]
    %v3602 = vunpack.c.l.b16 %v3538
    %v3603 = vunpack.c.h.b16 %v3538
    %v3604 = vunpack.c.l.b16 %v3539
    %v3605 = vunpack.c.h.b16 %v3539
    %v3606 = vunpack.c.l.b16 %v3540
    %v3607 = vunpack.c.h.b16 %v3540
    %v3608 = vunpack.c.l.b16 %v3541
    %v3609 = vunpack.c.h.b16 %v3541
    %v3610 = vunpack.c.l.b16 %v3542
    %v3611 = vunpack.c.h.b16 %v3542
    %v3612 = vunpack.c.l.b16 %v3543
    %v3613 = vunpack.c.h.b16 %v3543
    %v3614 = vunpack.c.l.b16 %v3544
    %v3615 = vunpack.c.h.b16 %v3544
    %v3616 = vunpack.c.l.b16 %v3545
    %v3617 = vunpack.c.h.b16 %v3545
    %v3618 = vunpack.c.l.b16 %v3546
    %v3619 = vunpack.c.h.b16 %v3546
    %v3620 = vunpack.c.l.b16 %v3547
    %v3621 = vunpack.c.h.b16 %v3547
    %v3622 = vunpack.c.l.b16 %v3548
    %v3623 = vunpack.c.h.b16 %v3548
    %v3624 = vunpack.c.l.b16 %v3549
    %v3625 = vunpack.c.h.b16 %v3549
    %v3626 = vunpack.c.l.b16 %v3550
    %v3627 = vunpack.c.h.b16 %v3550
    %v3628 = vunpack.c.l.b16 %v3551
    %v3629 = vunpack.c.h.b16 %v3551
    %v3630 = vunpack.c.l.b16 %v3552
    %v3631 = vunpack.c.h.b16 %v3552
    %v3632 = vunpack.c.l.b16 %v3553
    %v3633 = vunpack.c.h.b16 %v3553
    %v3634 = vunpack.c.l.b16 %v3554
    %v3635 = vunpack.c.h.b16 %v3554
    %v3636 = vunpack.c.l.b16 %v3555
    %v3637 = vunpack.c.h.b16 %v3555
    %v3638 = vunpack.c.l.b16 %v3556
    %v3639 = vunpack.c.h.b16 %v3556
    %v3640 = vunpack.c.l.b16 %v3557
    %v3641 = vunpack.c.h.b16 %v3557
    %v3642 = vunpack.c.l.b16 %v3558
    %v3643 = vunpack.c.h.b16 %v3558
    %v3644 = vunpack.c.l.b16 %v3559
    %v3645 = vunpack.c.h.b16 %v3559
    %v3646 = vunpack.c.l.b16 %v3560
    %v3647 = vunpack.c.h.b16 %v3560
    %v3648 = vunpack.c.l.b16 %v3561
    %v3649 = vunpack.c.h.b16 %v3561
    %v3650 = vunpack.c.l.b16 %v3562
    %v3651 = vunpack.c.h.b16 %v3562
    %v3652 = vunpack.c.l.b16 %v3563
    %v3653 = vunpack.c.h.b16 %v3563
    %v3654 = vunpack.c.l.b16 %v3564
    %v3655 = vunpack.c.h.b16 %v3564
    %v3656 = vunpack.c.l.b16 %v3565
    %v3657 = vunpack.c.h.b16 %v3565
    %v3658 = vunpack.c.l.b16 %v3566
    %v3659 = vunpack.c.h.b16 %v3566
    %v3660 = vunpack.c.l.b16 %v3567
    %v3661 = vunpack.c.h.b16 %v3567
    %v3662 = vunpack.c.l.b16 %v3568
    %v3663 = vunpack.c.h.b16 %v3568
    %v3664 = vunpack.c.l.b16 %v3569
    %v3665 = vunpack.c.h.b16 %v3569
    %v3666 = vpack.c.b16 %v3606, %v3602
    %v3667 = vpack.c.b16 %v3607, %v3603
    %v3668 = vpack.c.b16 %v3608, %v3604
    %v3669 = vpack.c.b16 %v3609, %v3605
    %v3670 = vpack.c.b16 %v3614, %v3610
    %v3671 = vpack.c.b16 %v3615, %v3611
    %v3672 = vpack.c.b16 %v3616, %v3612
    %v3673 = vpack.c.b16 %v3617, %v3613
    %v3674 = vpack.c.b16 %v3622, %v3618
    %v3675 = vpack.c.b16 %v3623, %v3619
    %v3676 = vpack.c.b16 %v3624, %v3620
    %v3677 = vpack.c.b16 %v3625, %v3621
    %v3678 = vpack.c.b16 %v3630, %v3626
    %v3679 = vpack.c.b16 %v3631, %v3627
    %v3680 = vpack.c.b16 %v3632, %v3628
    %v3681 = vpack.c.b16 %v3633, %v3629
    %v3682 = vpack.c.b16 %v3638, %v3634
    %v3683 = vpack.c.b16 %v3639, %v3635
    %v3684 = vpack.c.b16 %v3640, %v3636
    %v3685 = vpack.c.b16 %v3641, %v3637
    %v3686 = vpack.c.b16 %v3646, %v3642
    %v3687 = vpack.c.b16 %v3647, %v3643
    %v3688 = vpack.c.b16 %v3648, %v3644
    %v3689 = vpack.c.b16 %v3649, %v3645
    %v3690 = vpack.c.b16 %v3654, %v3650
    %v3691 = vpack.c.b16 %v3655, %v3651
    %v3692 = vpack.c.b16 %v3656, %v3652
    %v3693 = vpack.c.b16 %v3657, %v3653
    %v3694 = vpack.c.b16 %v3662, %v3658
    %v3695 = vpack.c.b16 %v3663, %v3659
    %v3696 = vpack.c.b16 %v3664, %v3660
    %v3697 = vpack.c.b16 %v3665, %v3661
    %3730 = vmatprep.subr.bf16.mxu0 %v3695
    %3731 = vmatpush1.bf16.msra.mxu0 %v3694
    %3732 = vmatprep.subr.bf16.mxu0 %v3691
    %3733 = vmatpush1.bf16.msra.mxu0 %v3690
    %3734 = vmatprep.subr.bf16.mxu0 %v3687
    %3735 = vmatpush1.bf16.msra.mxu0 %v3686
    %3736 = vmatprep.subr.bf16.mxu0 %v3683
    %3737 = vmatpush1.bf16.msra.mxu0 %v3682
    %3738 = vmatprep.subr.bf16.mxu0 %v3679
    %3739 = vmatpush1.bf16.msra.mxu0 %v3678
    %3740 = vmatprep.subr.bf16.mxu0 %v3675
    %3741 = vmatpush1.bf16.msra.mxu0 %v3674
    %3742 = vmatprep.subr.bf16.mxu0 %v3671
    %3743 = vmatpush1.bf16.msra.mxu0 %v3670
    %3744 = vmatprep.subr.bf16.mxu0 %v3667
    %3745 = vmatpush1.bf16.msra.mxu0 %v3666
    %3746 = vmatprep.subr.bf16.mxu0 0
    %3747 = vmatpush2.bf16.msra.mxu0 0
    %3748 = vmatprep.subr.bf16.mxu0 0
    %3749 = vmatpush2.bf16.msra.mxu0 0
    %3750 = vmatprep.subr.bf16.mxu0 0
    %3751 = vmatpush2.bf16.msra.mxu0 0
    %3752 = vmatprep.subr.bf16.mxu0 0
    %3753 = vmatpush2.bf16.msra.mxu0 0
    %3754 = vmatprep.subr.bf16.mxu0 0
    %3755 = vmatpush2.bf16.msra.mxu0 0
    %3756 = vmatprep.subr.bf16.mxu0 0
    %3757 = vmatpush2.bf16.msra.mxu0 0
    %3758 = vmatprep.subr.bf16.mxu0 0
    %3759 = vmatpush2.bf16.msra.mxu0 0
    %3760 = vmatprep.subr.bf16.mxu0 0
    %3761 = vmatpush2.bf16.msra.mxu0 0
    %3762 = vmatprep.mubr.bf16.mxu0 0
    %3763 = vmatmul.mubr.bf16.gmra.mxu0 %v3501
    %v3764 = vpop.f32.mrf.mxu0
    %v3765 = vadd.f32 0.0, %v3764
    %v3766 = vpop.f32.mrf.mxu0
    %v3767 = vadd.f32 0.0, %v3766
    %v3768 = vpop.f32.mrf.mxu0
    %v3769 = vadd.f32 0.0, %v3768
    %v3770 = vpop.f32.mrf.mxu0
    %v3771 = vadd.f32 0.0, %v3770
    %3772 = vmatprep.mubr.bf16.mxu0 0
    %3773 = vmatmul.mubr.bf16.gmra.mxu0 %v3502
    %v3774 = vpop.f32.mrf.mxu0
    %v3775 = vadd.f32 0.0, %v3774
    %v3776 = vpop.f32.mrf.mxu0
    %v3777 = vadd.f32 0.0, %v3776
    %v3778 = vpop.f32.mrf.mxu0
    %v3779 = vadd.f32 0.0, %v3778
    %v3780 = vpop.f32.mrf.mxu0
    %v3781 = vadd.f32 0.0, %v3780
    %3782 = vmatprep.mubr.bf16.mxu0 0
    %3783 = vmatmul.mubr.bf16.gmra.mxu0 %v3503
    %v3784 = vpop.f32.mrf.mxu0
    %v3785 = vadd.f32 0.0, %v3784
    %v3786 = vpop.f32.mrf.mxu0
    %v3787 = vadd.f32 0.0, %v3786
    %v3788 = vpop.f32.mrf.mxu0
    %v3789 = vadd.f32 0.0, %v3788
    %v3790 = vpop.f32.mrf.mxu0
    %v3791 = vadd.f32 0.0, %v3790
    %3792 = vmatprep.mubr.bf16.mxu0 0
    %3793 = vmatmul.mubr.bf16.gmra.mxu0 %v3504
    %v3794 = vpop.f32.mrf.mxu0
    %v3795 = vadd.f32 0.0, %v3794
    %v3796 = vpop.f32.mrf.mxu0
    %v3797 = vadd.f32 0.0, %v3796
    %v3798 = vpop.f32.mrf.mxu0
    %v3799 = vadd.f32 0.0, %v3798
    %v3800 = vpop.f32.mrf.mxu0
    %v3801 = vadd.f32 0.0, %v3800
    %3802 = vmatprep.mubr.bf16.mxu0 0
    %3803 = vmatmul.mubr.bf16.gmra.mxu0 %v3505
    %v3804 = vpop.f32.mrf.mxu0
    %v3805 = vadd.f32 0.0, %v3804
    %v3806 = vpop.f32.mrf.mxu0
    %v3807 = vadd.f32 0.0, %v3806
    %v3808 = vpop.f32.mrf.mxu0
    %v3809 = vadd.f32 0.0, %v3808
    %v3810 = vpop.f32.mrf.mxu0
    %v3811 = vadd.f32 0.0, %v3810
    %3812 = vdwg.mxu0
    %3813 = vmatprep.subr.bf16.mxu0 %v3697
    %3814 = vmatpush1.bf16.msra.mxu0 %v3696
    %3815 = vmatprep.subr.bf16.mxu0 %v3693
    %3816 = vmatpush1.bf16.msra.mxu0 %v3692
    %3817 = vmatprep.subr.bf16.mxu0 %v3689
    %3818 = vmatpush1.bf16.msra.mxu0 %v3688
    %3819 = vmatprep.subr.bf16.mxu0 %v3685
    %3820 = vmatpush1.bf16.msra.mxu0 %v3684
    %3821 = vmatprep.subr.bf16.mxu0 %v3681
    %3822 = vmatpush1.bf16.msra.mxu0 %v3680
    %3823 = vmatprep.subr.bf16.mxu0 %v3677
    %3824 = vmatpush1.bf16.msra.mxu0 %v3676
    %3825 = vmatprep.subr.bf16.mxu0 %v3673
    %3826 = vmatpush1.bf16.msra.mxu0 %v3672
    %3827 = vmatprep.subr.bf16.mxu0 %v3669
    %3828 = vmatpush1.bf16.msra.mxu0 %v3668
    %3829 = vmatprep.subr.bf16.mxu0 0
    %3830 = vmatpush2.bf16.msra.mxu0 0
    %3831 = vmatprep.subr.bf16.mxu0 0
    %3832 = vmatpush2.bf16.msra.mxu0 0
    %3833 = vmatprep.subr.bf16.mxu0 0
    %3834 = vmatpush2.bf16.msra.mxu0 0
    %3835 = vmatprep.subr.bf16.mxu0 0
    %3836 = vmatpush2.bf16.msra.mxu0 0
    %3837 = vmatprep.subr.bf16.mxu0 0
    %3838 = vmatpush2.bf16.msra.mxu0 0
    %3839 = vmatprep.subr.bf16.mxu0 0
    %3840 = vmatpush2.bf16.msra.mxu0 0
    %3841 = vmatprep.subr.bf16.mxu0 0
    %3842 = vmatpush2.bf16.msra.mxu0 0
    %3843 = vmatprep.subr.bf16.mxu0 0
    %3844 = vmatpush2.bf16.msra.mxu0 0
    %3845 = vmatprep.mubr.bf16.mxu0 0
    %3846 = vmatmul.mubr.bf16.gmra.mxu0 %v3501
    %v3847 = vpop.f32.mrf.mxu0
    %v3848 = vadd.f32 0.0, %v3847
    %v3849 = vpop.f32.mrf.mxu0
    %v3850 = vadd.f32 0.0, %v3849
    %v3851 = vpop.f32.mrf.mxu0
    %v3852 = vadd.f32 0.0, %v3851
    %v3853 = vpop.f32.mrf.mxu0
    %v3854 = vadd.f32 0.0, %v3853
    %3855 = vmatprep.mubr.bf16.mxu0 0
    %3856 = vmatmul.mubr.bf16.gmra.mxu0 %v3502
    %v3857 = vpop.f32.mrf.mxu0
    %v3858 = vadd.f32 0.0, %v3857
    %v3859 = vpop.f32.mrf.mxu0
    %v3860 = vadd.f32 0.0, %v3859
    %v3861 = vpop.f32.mrf.mxu0
    %v3862 = vadd.f32 0.0, %v3861
    %v3863 = vpop.f32.mrf.mxu0
    %v3864 = vadd.f32 0.0, %v3863
    %3865 = vmatprep.mubr.bf16.mxu0 0
    %3866 = vmatmul.mubr.bf16.gmra.mxu0 %v3503
    %v3867 = vpop.f32.mrf.mxu0
    %v3868 = vadd.f32 0.0, %v3867
    %v3869 = vpop.f32.mrf.mxu0
    %v3870 = vadd.f32 0.0, %v3869
    %v3871 = vpop.f32.mrf.mxu0
    %v3872 = vadd.f32 0.0, %v3871
    %v3873 = vpop.f32.mrf.mxu0
    %v3874 = vadd.f32 0.0, %v3873
    %3875 = vmatprep.mubr.bf16.mxu0 0
    %3876 = vmatmul.mubr.bf16.gmra.mxu0 %v3504
    %v3877 = vpop.f32.mrf.mxu0
    %v3878 = vadd.f32 0.0, %v3877
    %v3879 = vpop.f32.mrf.mxu0
    %v3880 = vadd.f32 0.0, %v3879
    %v3881 = vpop.f32.mrf.mxu0
    %v3882 = vadd.f32 0.0, %v3881
    %v3883 = vpop.f32.mrf.mxu0
    %v3884 = vadd.f32 0.0, %v3883
    %3885 = vmatprep.mubr.bf16.mxu0 0
    %3886 = vmatmul.mubr.bf16.gmra.mxu0 %v3505
    %v3887 = vpop.f32.mrf.mxu0
    %v3888 = vadd.f32 0.0, %v3887
    %v3889 = vpop.f32.mrf.mxu0
    %v3890 = vadd.f32 0.0, %v3889
    %v3891 = vpop.f32.mrf.mxu0
    %v3892 = vadd.f32 0.0, %v3891
    %v3893 = vpop.f32.mrf.mxu0
    %v3894 = vadd.f32 0.0, %v3893
    %3895 = vdwg.mxu0
    %v3928 = vunpack.c.l.b16 %v3506
    %v3929 = vunpack.c.h.b16 %v3506
    %v3930 = vunpack.c.l.b16 %v3507
    %v3931 = vunpack.c.h.b16 %v3507
    %v3932 = vunpack.c.l.b16 %v3508
    %v3933 = vunpack.c.h.b16 %v3508
    %v3934 = vunpack.c.l.b16 %v3509
    %v3935 = vunpack.c.h.b16 %v3509
    %v3936 = vunpack.c.l.b16 %v3510
    %v3937 = vunpack.c.h.b16 %v3510
    %v3938 = vunpack.c.l.b16 %v3511
    %v3939 = vunpack.c.h.b16 %v3511
    %v3940 = vunpack.c.l.b16 %v3512
    %v3941 = vunpack.c.h.b16 %v3512
    %v3942 = vunpack.c.l.b16 %v3513
    %v3943 = vunpack.c.h.b16 %v3513
    %v3944 = vunpack.c.l.b16 %v3514
    %v3945 = vunpack.c.h.b16 %v3514
    %v3946 = vunpack.c.l.b16 %v3515
    %v3947 = vunpack.c.h.b16 %v3515
    %v3948 = vunpack.c.l.b16 %v3516
    %v3949 = vunpack.c.h.b16 %v3516
    %v3950 = vunpack.c.l.b16 %v3517
    %v3951 = vunpack.c.h.b16 %v3517
    %v3952 = vunpack.c.l.b16 %v3518
    %v3953 = vunpack.c.h.b16 %v3518
    %v3954 = vunpack.c.l.b16 %v3519
    %v3955 = vunpack.c.h.b16 %v3519
    %v3956 = vunpack.c.l.b16 %v3520
    %v3957 = vunpack.c.h.b16 %v3520
    %v3958 = vunpack.c.l.b16 %v3521
    %v3959 = vunpack.c.h.b16 %v3521
    %v3960 = vunpack.c.l.b16 %v3522
    %v3961 = vunpack.c.h.b16 %v3522
    %v3962 = vunpack.c.l.b16 %v3523
    %v3963 = vunpack.c.h.b16 %v3523
    %v3964 = vunpack.c.l.b16 %v3524
    %v3965 = vunpack.c.h.b16 %v3524
    %v3966 = vunpack.c.l.b16 %v3525
    %v3967 = vunpack.c.h.b16 %v3525
    %v3968 = vunpack.c.l.b16 %v3526
    %v3969 = vunpack.c.h.b16 %v3526
    %v3970 = vunpack.c.l.b16 %v3527
    %v3971 = vunpack.c.h.b16 %v3527
    %v3972 = vunpack.c.l.b16 %v3528
    %v3973 = vunpack.c.h.b16 %v3528
    %v3974 = vunpack.c.l.b16 %v3529
    %v3975 = vunpack.c.h.b16 %v3529
    %v3976 = vunpack.c.l.b16 %v3530
    %v3977 = vunpack.c.h.b16 %v3530
    %v3978 = vunpack.c.l.b16 %v3531
    %v3979 = vunpack.c.h.b16 %v3531
    %v3980 = vunpack.c.l.b16 %v3532
    %v3981 = vunpack.c.h.b16 %v3532
    %v3982 = vunpack.c.l.b16 %v3533
    %v3983 = vunpack.c.h.b16 %v3533
    %v3984 = vunpack.c.l.b16 %v3534
    %v3985 = vunpack.c.h.b16 %v3534
    %v3986 = vunpack.c.l.b16 %v3535
    %v3987 = vunpack.c.h.b16 %v3535
    %v3988 = vunpack.c.l.b16 %v3536
    %v3989 = vunpack.c.h.b16 %v3536
    %v3990 = vunpack.c.l.b16 %v3537
    %v3991 = vunpack.c.h.b16 %v3537
    %v3992 = vpack.c.b16 %v3932, %v3928
    %v3993 = vpack.c.b16 %v3933, %v3929
    %v3994 = vpack.c.b16 %v3934, %v3930
    %v3995 = vpack.c.b16 %v3935, %v3931
    %v3996 = vpack.c.b16 %v3940, %v3936
    %v3997 = vpack.c.b16 %v3941, %v3937
    %v3998 = vpack.c.b16 %v3942, %v3938
    %v3999 = vpack.c.b16 %v3943, %v3939
    %v4000 = vpack.c.b16 %v3948, %v3944
    %v4001 = vpack.c.b16 %v3949, %v3945
    %v4002 = vpack.c.b16 %v3950, %v3946
    %v4003 = vpack.c.b16 %v3951, %v3947
    %v4004 = vpack.c.b16 %v3956, %v3952
    %v4005 = vpack.c.b16 %v3957, %v3953
    %v4006 = vpack.c.b16 %v3958, %v3954
    %v4007 = vpack.c.b16 %v3959, %v3955
    %v4008 = vpack.c.b16 %v3964, %v3960
    %v4009 = vpack.c.b16 %v3965, %v3961
    %v4010 = vpack.c.b16 %v3966, %v3962
    %v4011 = vpack.c.b16 %v3967, %v3963
    %v4012 = vpack.c.b16 %v3972, %v3968
    %v4013 = vpack.c.b16 %v3973, %v3969
    %v4014 = vpack.c.b16 %v3974, %v3970
    %v4015 = vpack.c.b16 %v3975, %v3971
    %v4016 = vpack.c.b16 %v3980, %v3976
    %v4017 = vpack.c.b16 %v3981, %v3977
    %v4018 = vpack.c.b16 %v3982, %v3978
    %v4019 = vpack.c.b16 %v3983, %v3979
    %v4020 = vpack.c.b16 %v3988, %v3984
    %v4021 = vpack.c.b16 %v3989, %v3985
    %v4022 = vpack.c.b16 %v3990, %v3986
    %v4023 = vpack.c.b16 %v3991, %v3987
    %4056 = vmatprep.subr.bf16.mxu0 %v4021
    %4057 = vmatpush1.bf16.msra.mxu0 %v4020
    %4058 = vmatprep.subr.bf16.mxu0 %v4017
    %4059 = vmatpush1.bf16.msra.mxu0 %v4016
    %4060 = vmatprep.subr.bf16.mxu0 %v4013
    %4061 = vmatpush1.bf16.msra.mxu0 %v4012
    %4062 = vmatprep.subr.bf16.mxu0 %v4009
    %4063 = vmatpush1.bf16.msra.mxu0 %v4008
    %4064 = vmatprep.subr.bf16.mxu0 %v4005
    %4065 = vmatpush1.bf16.msra.mxu0 %v4004
    %4066 = vmatprep.subr.bf16.mxu0 %v4001
    %4067 = vmatpush1.bf16.msra.mxu0 %v4000
    %4068 = vmatprep.subr.bf16.mxu0 %v3997
    %4069 = vmatpush1.bf16.msra.mxu0 %v3996
    %4070 = vmatprep.subr.bf16.mxu0 %v3993
    %4071 = vmatpush1.bf16.msra.mxu0 %v3992
    %4072 = vmatprep.subr.bf16.mxu0 0
    %4073 = vmatpush2.bf16.msra.mxu0 0
    %4074 = vmatprep.subr.bf16.mxu0 0
    %4075 = vmatpush2.bf16.msra.mxu0 0
    %4076 = vmatprep.subr.bf16.mxu0 0
    %4077 = vmatpush2.bf16.msra.mxu0 0
    %4078 = vmatprep.subr.bf16.mxu0 0
    %4079 = vmatpush2.bf16.msra.mxu0 0
    %4080 = vmatprep.subr.bf16.mxu0 0
    %4081 = vmatpush2.bf16.msra.mxu0 0
    %4082 = vmatprep.subr.bf16.mxu0 0
    %4083 = vmatpush2.bf16.msra.mxu0 0
    %4084 = vmatprep.subr.bf16.mxu0 0
    %4085 = vmatpush2.bf16.msra.mxu0 0
    %4086 = vmatprep.subr.bf16.mxu0 0
    %4087 = vmatpush2.bf16.msra.mxu0 0
    %4088 = vmatprep.mubr.bf16.mxu0 0
    %4089 = vmatmul.mubr.bf16.gmra.mxu0 %v3486
    %v4090 = vpop.f32.mrf.mxu0
    %v4091 = vadd.f32 %v3765, %v4090
    %v4092 = vpop.f32.mrf.mxu0
    %v4093 = vadd.f32 %v3767, %v4092
    %v4094 = vpop.f32.mrf.mxu0
    %v4095 = vadd.f32 %v3769, %v4094
    %v4096 = vpop.f32.mrf.mxu0
    %v4097 = vadd.f32 %v3771, %v4096
    %4098 = vmatprep.mubr.bf16.mxu0 0
    %4099 = vmatmul.mubr.bf16.gmra.mxu0 %v3487
    %v4100 = vpop.f32.mrf.mxu0
    %v4101 = vadd.f32 %v3775, %v4100
    %v4102 = vpop.f32.mrf.mxu0
    %v4103 = vadd.f32 %v3777, %v4102
    %v4104 = vpop.f32.mrf.mxu0
    %v4105 = vadd.f32 %v3779, %v4104
    %v4106 = vpop.f32.mrf.mxu0
    %v4107 = vadd.f32 %v3781, %v4106
    %4108 = vmatprep.mubr.bf16.mxu0 0
    %4109 = vmatmul.mubr.bf16.gmra.mxu0 %v3488
    %v4110 = vpop.f32.mrf.mxu0
    %v4111 = vadd.f32 %v3785, %v4110
    %v4112 = vpop.f32.mrf.mxu0
    %v4113 = vadd.f32 %v3787, %v4112
    %v4114 = vpop.f32.mrf.mxu0
    %v4115 = vadd.f32 %v3789, %v4114
    %v4116 = vpop.f32.mrf.mxu0
    %v4117 = vadd.f32 %v3791, %v4116
    %4118 = vmatprep.mubr.bf16.mxu0 0
    %4119 = vmatmul.mubr.bf16.gmra.mxu0 %v3489
    %v4120 = vpop.f32.mrf.mxu0
    %v4121 = vadd.f32 %v3795, %v4120
    %v4122 = vpop.f32.mrf.mxu0
    %v4123 = vadd.f32 %v3797, %v4122
    %v4124 = vpop.f32.mrf.mxu0
    %v4125 = vadd.f32 %v3799, %v4124
    %v4126 = vpop.f32.mrf.mxu0
    %v4127 = vadd.f32 %v3801, %v4126
    %4128 = vmatprep.mubr.bf16.mxu0 0
    %4129 = vmatmul.mubr.bf16.gmra.mxu0 %v3490
    %v4130 = vpop.f32.mrf.mxu0
    %v4131 = vadd.f32 %v3805, %v4130
    %v4132 = vpop.f32.mrf.mxu0
    %v4133 = vadd.f32 %v3807, %v4132
    %v4134 = vpop.f32.mrf.mxu0
    %v4135 = vadd.f32 %v3809, %v4134
    %v4136 = vpop.f32.mrf.mxu0
    %v4137 = vadd.f32 %v3811, %v4136
    %4138 = vdwg.mxu0
    %4139 = vmatprep.subr.bf16.mxu0 %v4023
    %4140 = vmatpush1.bf16.msra.mxu0 %v4022
    %4141 = vmatprep.subr.bf16.mxu0 %v4019
    %4142 = vmatpush1.bf16.msra.mxu0 %v4018
    %4143 = vmatprep.subr.bf16.mxu0 %v4015
    %4144 = vmatpush1.bf16.msra.mxu0 %v4014
    %4145 = vmatprep.subr.bf16.mxu0 %v4011
    %4146 = vmatpush1.bf16.msra.mxu0 %v4010
    %4147 = vmatprep.subr.bf16.mxu0 %v4007
    %4148 = vmatpush1.bf16.msra.mxu0 %v4006
    %4149 = vmatprep.subr.bf16.mxu0 %v4003
    %4150 = vmatpush1.bf16.msra.mxu0 %v4002
    %4151 = vmatprep.subr.bf16.mxu0 %v3999
    %4152 = vmatpush1.bf16.msra.mxu0 %v3998
    %4153 = vmatprep.subr.bf16.mxu0 %v3995
    %4154 = vmatpush1.bf16.msra.mxu0 %v3994
    %4155 = vmatprep.subr.bf16.mxu0 0
    %4156 = vmatpush2.bf16.msra.mxu0 0
    %4157 = vmatprep.subr.bf16.mxu0 0
    %4158 = vmatpush2.bf16.msra.mxu0 0
    %4159 = vmatprep.subr.bf16.mxu0 0
    %4160 = vmatpush2.bf16.msra.mxu0 0
    %4161 = vmatprep.subr.bf16.mxu0 0
    %4162 = vmatpush2.bf16.msra.mxu0 0
    %4163 = vmatprep.subr.bf16.mxu0 0
    %4164 = vmatpush2.bf16.msra.mxu0 0
    %4165 = vmatprep.subr.bf16.mxu0 0
    %4166 = vmatpush2.bf16.msra.mxu0 0
    %4167 = vmatprep.subr.bf16.mxu0 0
    %4168 = vmatpush2.bf16.msra.mxu0 0
    %4169 = vmatprep.subr.bf16.mxu0 0
    %4170 = vmatpush2.bf16.msra.mxu0 0
    %4171 = vmatprep.mubr.bf16.mxu0 0
    %4172 = vmatmul.mubr.bf16.gmra.mxu0 %v3486
    %v4173 = vpop.f32.mrf.mxu0
    %v4174 = vadd.f32 %v3848, %v4173
    %v4175 = vpop.f32.mrf.mxu0
    %v4176 = vadd.f32 %v3850, %v4175
    %v4177 = vpop.f32.mrf.mxu0
    %v4178 = vadd.f32 %v3852, %v4177
    %v4179 = vpop.f32.mrf.mxu0
    %v4180 = vadd.f32 %v3854, %v4179
    %4181 = vmatprep.mubr.bf16.mxu0 0
    %4182 = vmatmul.mubr.bf16.gmra.mxu0 %v3487
    %v4183 = vpop.f32.mrf.mxu0
    %v4184 = vadd.f32 %v3858, %v4183
    %v4185 = vpop.f32.mrf.mxu0
    %v4186 = vadd.f32 %v3860, %v4185
    %v4187 = vpop.f32.mrf.mxu0
    %v4188 = vadd.f32 %v3862, %v4187
    %v4189 = vpop.f32.mrf.mxu0
    %v4190 = vadd.f32 %v3864, %v4189
    %4191 = vmatprep.mubr.bf16.mxu0 0
    %4192 = vmatmul.mubr.bf16.gmra.mxu0 %v3488
    %v4193 = vpop.f32.mrf.mxu0
    %v4194 = vadd.f32 %v3868, %v4193
    %v4195 = vpop.f32.mrf.mxu0
    %v4196 = vadd.f32 %v3870, %v4195
    %v4197 = vpop.f32.mrf.mxu0
    %v4198 = vadd.f32 %v3872, %v4197
    %v4199 = vpop.f32.mrf.mxu0
    %v4200 = vadd.f32 %v3874, %v4199
    %4201 = vmatprep.mubr.bf16.mxu0 0
    %4202 = vmatmul.mubr.bf16.gmra.mxu0 %v3489
    %v4203 = vpop.f32.mrf.mxu0
    %v4204 = vadd.f32 %v3878, %v4203
    %v4205 = vpop.f32.mrf.mxu0
    %v4206 = vadd.f32 %v3880, %v4205
    %v4207 = vpop.f32.mrf.mxu0
    %v4208 = vadd.f32 %v3882, %v4207
    %v4209 = vpop.f32.mrf.mxu0
    %v4210 = vadd.f32 %v3884, %v4209
    %4211 = vmatprep.mubr.bf16.mxu0 0
    %4212 = vmatmul.mubr.bf16.gmra.mxu0 %v3490
    %v4213 = vpop.f32.mrf.mxu0
    %v4214 = vadd.f32 %v3888, %v4213
    %v4215 = vpop.f32.mrf.mxu0
    %v4216 = vadd.f32 %v3890, %v4215
    %v4217 = vpop.f32.mrf.mxu0
    %v4218 = vadd.f32 %v3892, %v4217
    %v4219 = vpop.f32.mrf.mxu0
    %v4220 = vadd.f32 %v3894, %v4219
    %4221 = vdwg.mxu0
    %v4222 = vld [vmem:[#allocation9] sm:$0xf]
    %v4224 = vlaneseq
    %v4225 = vshrl.u32 %v4224, 7
    %v4226 = vsub.s32 0, %v4225
    %v4227 = vrot.slane %v4222, %v4226
    %v4228 = vlaneseq
    %v4229 = vshrl.u32 %v4228, 7
    %v4230 = vsub.s32 1, %v4229
    %v4231 = vrot.slane %v4222, %v4230
    %v4232 = vlaneseq
    %v4233 = vshrl.u32 %v4232, 7
    %v4234 = vsub.s32 2, %v4233
    %v4235 = vrot.slane %v4222, %v4234
    %v4236 = vlaneseq
    %v4237 = vshrl.u32 %v4236, 7
    %v4238 = vsub.s32 3, %v4237
    %v4239 = vrot.slane %v4222, %v4238
    %v4244 = vadd.f32 %v4091, %v4227
    %v4245 = vadd.f32 %v4093, %v4231
    %v4246 = vadd.f32 %v4174, %v4235
    %v4247 = vadd.f32 %v4176, %v4239
    %v4248 = vadd.f32 %v4095, %v4227
    %v4249 = vadd.f32 %v4097, %v4231
    %v4250 = vadd.f32 %v4178, %v4235
    %v4251 = vadd.f32 %v4180, %v4239
    %v4252 = vadd.f32 %v4101, %v4227
    %v4253 = vadd.f32 %v4103, %v4231
    %v4254 = vadd.f32 %v4184, %v4235
    %v4255 = vadd.f32 %v4186, %v4239
    %v4256 = vadd.f32 %v4105, %v4227
    %v4257 = vadd.f32 %v4107, %v4231
    %v4258 = vadd.f32 %v4188, %v4235
    %v4259 = vadd.f32 %v4190, %v4239
    %v4260 = vadd.f32 %v4111, %v4227
    %v4261 = vadd.f32 %v4113, %v4231
    %v4262 = vadd.f32 %v4194, %v4235
    %v4263 = vadd.f32 %v4196, %v4239
    %v4264 = vadd.f32 %v4115, %v4227
    %v4265 = vadd.f32 %v4117, %v4231
    %v4266 = vadd.f32 %v4198, %v4235
    %v4267 = vadd.f32 %v4200, %v4239
    %v4268 = vadd.f32 %v4121, %v4227
    %v4269 = vadd.f32 %v4123, %v4231
    %v4270 = vadd.f32 %v4204, %v4235
    %v4271 = vadd.f32 %v4206, %v4239
    %v4272 = vadd.f32 %v4125, %v4227
    %v4273 = vadd.f32 %v4127, %v4231
    %v4274 = vadd.f32 %v4208, %v4235
    %v4275 = vadd.f32 %v4210, %v4239
    %v4276 = vadd.f32 %v4131, %v4227
    %v4277 = vadd.f32 %v4133, %v4231
    %v4278 = vadd.f32 %v4214, %v4235
    %v4279 = vadd.f32 %v4216, %v4239
    %v4280 = vadd.f32 %v4135, %v4227
    %v4281 = vadd.f32 %v4137, %v4231
    %v4282 = vadd.f32 %v4218, %v4235
    %v4283 = vadd.f32 %v4220, %v4239
    %4284 = vst [vmem:[#allocation2] sm:$0xff] %v4244
    %4285 = vst [vmem:[#allocation2 + $0x8] sm:$0xff] %v4245
    %4286 = vst [vmem:[#allocation2 + $0x10] sm:$0xff] %v4246
    %4287 = vst [vmem:[#allocation2 + $0x18] sm:$0xff] %v4247
    %4288 = vst [vmem:[#allocation2 + $0x20] sm:$0xff] %v4248
    %4289 = vst [vmem:[#allocation2 + $0x28] sm:$0xff] %v4249
    %4290 = vst [vmem:[#allocation2 + $0x30] sm:$0xff] %v4250
    %4291 = vst [vmem:[#allocation2 + $0x38] sm:$0xff] %v4251
    %4292 = vst [vmem:[#allocation2 + $0x40] sm:$0xff] %v4252
    %4293 = vst [vmem:[#allocation2 + $0x48] sm:$0xff] %v4253
    %4294 = vst [vmem:[#allocation2 + $0x50] sm:$0xff] %v4254
    %4295 = vst [vmem:[#allocation2 + $0x58] sm:$0xff] %v4255
    %4296 = vst [vmem:[#allocation2 + $0x60] sm:$0xff] %v4256
    %4297 = vst [vmem:[#allocation2 + $0x68] sm:$0xff] %v4257
    %4298 = vst [vmem:[#allocation2 + $0x70] sm:$0xff] %v4258
    %4299 = vst [vmem:[#allocation2 + $0x78] sm:$0xff] %v4259
    %4300 = vst [vmem:[#allocation2 + $0x80] sm:$0xff] %v4260
    %4301 = vst [vmem:[#allocation2 + $0x88] sm:$0xff] %v4261
    %4302 = vst [vmem:[#allocation2 + $0x90] sm:$0xff] %v4262
    %4303 = vst [vmem:[#allocation2 + $0x98] sm:$0xff] %v4263
    %4304 = vst [vmem:[#allocation2 + $0xa0] sm:$0xff] %v4264
    %4305 = vst [vmem:[#allocation2 + $0xa8] sm:$0xff] %v4265
    %4306 = vst [vmem:[#allocation2 + $0xb0] sm:$0xff] %v4266
    %4307 = vst [vmem:[#allocation2 + $0xb8] sm:$0xff] %v4267
    %4308 = vst [vmem:[#allocation2 + $0xc0] sm:$0xff] %v4268
    %4309 = vst [vmem:[#allocation2 + $0xc8] sm:$0xff] %v4269
    %4310 = vst [vmem:[#allocation2 + $0xd0] sm:$0xff] %v4270
    %4311 = vst [vmem:[#allocation2 + $0xd8] sm:$0xff] %v4271
    %4312 = vst [vmem:[#allocation2 + $0xe0] sm:$0xff] %v4272
    %4313 = vst [vmem:[#allocation2 + $0xe8] sm:$0xff] %v4273
    %4314 = vst [vmem:[#allocation2 + $0xf0] sm:$0xff] %v4274
    %4315 = vst [vmem:[#allocation2 + $0xf8] sm:$0xff] %v4275
    %4316 = vst [vmem:[#allocation2 + $0x100] sm:$0xff] %v4276
    %4317 = vst [vmem:[#allocation2 + $0x108] sm:$0xff] %v4277
    %4318 = vst [vmem:[#allocation2 + $0x110] sm:$0xff] %v4278
    %4319 = vst [vmem:[#allocation2 + $0x118] sm:$0xff] %v4279
    %4320 = vst [vmem:[#allocation2 + $0x120] sm:$0xff] %v4280
    %4321 = vst [vmem:[#allocation2 + $0x128] sm:$0xff] %v4281
    %4322 = vst [vmem:[#allocation2 + $0x130] sm:$0xff] %v4282
    %4323 = vst [vmem:[#allocation2 + $0x138] sm:$0xff] %v4283
    %v4324 = vld [vmem:[#allocation7] sm:$0xff]
    %v4325 = vld [vmem:[#allocation7 + $0x8] sm:$0xff]
    %v4326 = vld [vmem:[#allocation7 + $0x10] sm:$0xff]
    %v4327 = vld [vmem:[#allocation7 + $0x18] sm:$0xff]
    %v4328 = vld [vmem:[#allocation7 + $0x20] sm:$0xff]
    %v4329 = vld [vmem:[#allocation7 + $0x28] sm:$0xff]
    %v4330 = vld [vmem:[#allocation7 + $0x30] sm:$0xff]
    %v4331 = vld [vmem:[#allocation7 + $0x38] sm:$0xff]
    %v4332 = vld [vmem:[#allocation7 + $0x40] sm:$0xff]
    %v4333 = vld [vmem:[#allocation7 + $0x48] sm:$0xff]
    %v4334 = vld [vmem:[#allocation7 + $0x50] sm:$0xff]
    %v4335 = vld [vmem:[#allocation7 + $0x58] sm:$0xff]
    %v4336 = vld [vmem:[#allocation7 + $0x60] sm:$0xff]
    %v4337 = vld [vmem:[#allocation7 + $0x68] sm:$0xff]
    %v4338 = vld [vmem:[#allocation7 + $0x70] sm:$0xff]
    %v4339 = vld [vmem:[#allocation7 + $0x78] sm:$0xff]
    %v4340 = vld [vmem:[#allocation7 + $0x80] sm:$0xff]
    %v4341 = vld [vmem:[#allocation7 + $0x88] sm:$0xff]
    %v4342 = vld [vmem:[#allocation7 + $0x90] sm:$0xff]
    %v4343 = vld [vmem:[#allocation7 + $0x98] sm:$0xff]
    %v4344 = vld [vmem:[#allocation7 + $0xa0] sm:$0xff]
    %v4345 = vld [vmem:[#allocation7 + $0xa8] sm:$0xff]
    %v4346 = vld [vmem:[#allocation7 + $0xb0] sm:$0xff]
    %v4347 = vld [vmem:[#allocation7 + $0xb8] sm:$0xff]
    %v4348 = vld [vmem:[#allocation7 + $0xc0] sm:$0xff]
    %v4349 = vld [vmem:[#allocation7 + $0xc8] sm:$0xff]
    %v4350 = vld [vmem:[#allocation7 + $0xd0] sm:$0xff]
    %v4351 = vld [vmem:[#allocation7 + $0xd8] sm:$0xff]
    %v4352 = vld [vmem:[#allocation7 + $0xe0] sm:$0xff]
    %v4353 = vld [vmem:[#allocation7 + $0xe8] sm:$0xff]
    %v4354 = vld [vmem:[#allocation7 + $0xf0] sm:$0xff]
    %v4355 = vld [vmem:[#allocation7 + $0xf8] sm:$0xff]
    %v4356 = vld [vmem:[%s473] sm:$0xff]
    %v4357 = vld [vmem:[%s473 + $0x8] sm:$0xff]
    %v4358 = vld [vmem:[%s473 + $0x10] sm:$0xff]
    %v4359 = vld [vmem:[%s473 + $0x18] sm:$0xff]
    %v4392 = vunpack.c.l.b16 %v4324
    %v4393 = vunpack.c.h.b16 %v4324
    %v4394 = vunpack.c.l.b16 %v4325
    %v4395 = vunpack.c.h.b16 %v4325
    %v4396 = vunpack.c.l.b16 %v4326
    %v4397 = vunpack.c.h.b16 %v4326
    %v4398 = vunpack.c.l.b16 %v4327
    %v4399 = vunpack.c.h.b16 %v4327
    %v4400 = vunpack.c.l.b16 %v4328
    %v4401 = vunpack.c.h.b16 %v4328
    %v4402 = vunpack.c.l.b16 %v4329
    %v4403 = vunpack.c.h.b16 %v4329
    %v4404 = vunpack.c.l.b16 %v4330
    %v4405 = vunpack.c.h.b16 %v4330
    %v4406 = vunpack.c.l.b16 %v4331
    %v4407 = vunpack.c.h.b16 %v4331
    %v4408 = vunpack.c.l.b16 %v4332
    %v4409 = vunpack.c.h.b16 %v4332
    %v4410 = vunpack.c.l.b16 %v4333
    %v4411 = vunpack.c.h.b16 %v4333
    %v4412 = vunpack.c.l.b16 %v4334
    %v4413 = vunpack.c.h.b16 %v4334
    %v4414 = vunpack.c.l.b16 %v4335
    %v4415 = vunpack.c.h.b16 %v4335
    %v4416 = vunpack.c.l.b16 %v4336
    %v4417 = vunpack.c.h.b16 %v4336
    %v4418 = vunpack.c.l.b16 %v4337
    %v4419 = vunpack.c.h.b16 %v4337
    %v4420 = vunpack.c.l.b16 %v4338
    %v4421 = vunpack.c.h.b16 %v4338
    %v4422 = vunpack.c.l.b16 %v4339
    %v4423 = vunpack.c.h.b16 %v4339
    %v4424 = vunpack.c.l.b16 %v4340
    %v4425 = vunpack.c.h.b16 %v4340
    %v4426 = vunpack.c.l.b16 %v4341
    %v4427 = vunpack.c.h.b16 %v4341
    %v4428 = vunpack.c.l.b16 %v4342
    %v4429 = vunpack.c.h.b16 %v4342
    %v4430 = vunpack.c.l.b16 %v4343
    %v4431 = vunpack.c.h.b16 %v4343
    %v4432 = vunpack.c.l.b16 %v4344
    %v4433 = vunpack.c.h.b16 %v4344
    %v4434 = vunpack.c.l.b16 %v4345
    %v4435 = vunpack.c.h.b16 %v4345
    %v4436 = vunpack.c.l.b16 %v4346
    %v4437 = vunpack.c.h.b16 %v4346
    %v4438 = vunpack.c.l.b16 %v4347
    %v4439 = vunpack.c.h.b16 %v4347
    %v4440 = vunpack.c.l.b16 %v4348
    %v4441 = vunpack.c.h.b16 %v4348
    %v4442 = vunpack.c.l.b16 %v4349
    %v4443 = vunpack.c.h.b16 %v4349
    %v4444 = vunpack.c.l.b16 %v4350
    %v4445 = vunpack.c.h.b16 %v4350
    %v4446 = vunpack.c.l.b16 %v4351
    %v4447 = vunpack.c.h.b16 %v4351
    %v4448 = vunpack.c.l.b16 %v4352
    %v4449 = vunpack.c.h.b16 %v4352
    %v4450 = vunpack.c.l.b16 %v4353
    %v4451 = vunpack.c.h.b16 %v4353
    %v4452 = vunpack.c.l.b16 %v4354
    %v4453 = vunpack.c.h.b16 %v4354
    %v4454 = vunpack.c.l.b16 %v4355
    %v4455 = vunpack.c.h.b16 %v4355
    %v4456 = vpack.c.b16 %v4396, %v4392
    %v4457 = vpack.c.b16 %v4397, %v4393
    %v4458 = vpack.c.b16 %v4398, %v4394
    %v4459 = vpack.c.b16 %v4399, %v4395
    %v4460 = vpack.c.b16 %v4404, %v4400
    %v4461 = vpack.c.b16 %v4405, %v4401
    %v4462 = vpack.c.b16 %v4406, %v4402
    %v4463 = vpack.c.b16 %v4407, %v4403
    %v4464 = vpack.c.b16 %v4412, %v4408
    %v4465 = vpack.c.b16 %v4413, %v4409
    %v4466 = vpack.c.b16 %v4414, %v4410
    %v4467 = vpack.c.b16 %v4415, %v4411
    %v4468 = vpack.c.b16 %v4420, %v4416
    %v4469 = vpack.c.b16 %v4421, %v4417
    %v4470 = vpack.c.b16 %v4422, %v4418
    %v4471 = vpack.c.b16 %v4423, %v4419
    %v4472 = vpack.c.b16 %v4428, %v4424
    %v4473 = vpack.c.b16 %v4429, %v4425
    %v4474 = vpack.c.b16 %v4430, %v4426
    %v4475 = vpack.c.b16 %v4431, %v4427
    %v4476 = vpack.c.b16 %v4436, %v4432
    %v4477 = vpack.c.b16 %v4437, %v4433
    %v4478 = vpack.c.b16 %v4438, %v4434
    %v4479 = vpack.c.b16 %v4439, %v4435
    %v4480 = vpack.c.b16 %v4444, %v4440
    %v4481 = vpack.c.b16 %v4445, %v4441
    %v4482 = vpack.c.b16 %v4446, %v4442
    %v4483 = vpack.c.b16 %v4447, %v4443
    %v4484 = vpack.c.b16 %v4452, %v4448
    %v4485 = vpack.c.b16 %v4453, %v4449
    %v4486 = vpack.c.b16 %v4454, %v4450
    %v4487 = vpack.c.b16 %v4455, %v4451
    %4520 = vmatprep.subr.bf16.mxu0 %v4485
    %4521 = vmatpush1.bf16.msra.mxu0 %v4484
    %4522 = vmatprep.subr.bf16.mxu0 %v4481
    %4523 = vmatpush1.bf16.msra.mxu0 %v4480
    %4524 = vmatprep.subr.bf16.mxu0 %v4477
    %4525 = vmatpush1.bf16.msra.mxu0 %v4476
    %4526 = vmatprep.subr.bf16.mxu0 %v4473
    %4527 = vmatpush1.bf16.msra.mxu0 %v4472
    %4528 = vmatprep.subr.bf16.mxu0 %v4469
    %4529 = vmatpush1.bf16.msra.mxu0 %v4468
    %4530 = vmatprep.subr.bf16.mxu0 %v4465
    %4531 = vmatpush1.bf16.msra.mxu0 %v4464
    %4532 = vmatprep.subr.bf16.mxu0 %v4461
    %4533 = vmatpush1.bf16.msra.mxu0 %v4460
    %4534 = vmatprep.subr.bf16.mxu0 %v4457
    %4535 = vmatpush1.bf16.msra.mxu0 %v4456
    %4536 = vmatprep.subr.bf16.mxu0 0
    %4537 = vmatpush2.bf16.msra.mxu0 0
    %4538 = vmatprep.subr.bf16.mxu0 0
    %4539 = vmatpush2.bf16.msra.mxu0 0
    %4540 = vmatprep.subr.bf16.mxu0 0
    %4541 = vmatpush2.bf16.msra.mxu0 0
    %4542 = vmatprep.subr.bf16.mxu0 0
    %4543 = vmatpush2.bf16.msra.mxu0 0
    %4544 = vmatprep.subr.bf16.mxu0 0
    %4545 = vmatpush2.bf16.msra.mxu0 0
    %4546 = vmatprep.subr.bf16.mxu0 0
    %4547 = vmatpush2.bf16.msra.mxu0 0
    %4548 = vmatprep.subr.bf16.mxu0 0
    %4549 = vmatpush2.bf16.msra.mxu0 0
    %4550 = vmatprep.subr.bf16.mxu0 0
    %4551 = vmatpush2.bf16.msra.mxu0 0
    %4552 = vmatprep.mubr.bf16.mxu0 0
    %4553 = vmatmul.mubr.bf16.gmra.mxu0 0
    %v4554 = vpop.f32.mrf.mxu0
    %v4555 = vadd.f32 %v4356, %v4554
    %v4556 = vpop.f32.mrf.mxu0
    %v4557 = vadd.f32 %v4357, %v4556
    %v4558 = vpop.f32.mrf.mxu0
    %v4559 = vpop.f32.mrf.mxu0
    %4560 = vdwg.mxu0
    %4561 = vmatprep.subr.bf16.mxu0 %v4487
    %4562 = vmatpush1.bf16.msra.mxu0 %v4486
    %4563 = vmatprep.subr.bf16.mxu0 %v4483
    %4564 = vmatpush1.bf16.msra.mxu0 %v4482
    %4565 = vmatprep.subr.bf16.mxu0 %v4479
    %4566 = vmatpush1.bf16.msra.mxu0 %v4478
    %4567 = vmatprep.subr.bf16.mxu0 %v4475
    %4568 = vmatpush1.bf16.msra.mxu0 %v4474
    %4569 = vmatprep.subr.bf16.mxu0 %v4471
    %4570 = vmatpush1.bf16.msra.mxu0 %v4470
    %4571 = vmatprep.subr.bf16.mxu0 %v4467
    %4572 = vmatpush1.bf16.msra.mxu0 %v4466
    %4573 = vmatprep.subr.bf16.mxu0 %v4463
    %4574 = vmatpush1.bf16.msra.mxu0 %v4462
    %4575 = vmatprep.subr.bf16.mxu0 %v4459
    %4576 = vmatpush1.bf16.msra.mxu0 %v4458
    %4577 = vmatprep.subr.bf16.mxu0 0
    %4578 = vmatpush2.bf16.msra.mxu0 0
    %4579 = vmatprep.subr.bf16.mxu0 0
    %4580 = vmatpush2.bf16.msra.mxu0 0
    %4581 = vmatprep.subr.bf16.mxu0 0
    %4582 = vmatpush2.bf16.msra.mxu0 0
    %4583 = vmatprep.subr.bf16.mxu0 0
    %4584 = vmatpush2.bf16.msra.mxu0 0
    %4585 = vmatprep.subr.bf16.mxu0 0
    %4586 = vmatpush2.bf16.msra.mxu0 0
    %4587 = vmatprep.subr.bf16.mxu0 0
    %4588 = vmatpush2.bf16.msra.mxu0 0
    %4589 = vmatprep.subr.bf16.mxu0 0
    %4590 = vmatpush2.bf16.msra.mxu0 0
    %4591 = vmatprep.subr.bf16.mxu0 0
    %4592 = vmatpush2.bf16.msra.mxu0 0
    %4593 = vmatprep.mubr.bf16.mxu0 0
    %4594 = vmatmul.mubr.bf16.gmra.mxu0 0
    %v4595 = vpop.f32.mrf.mxu0
    %v4596 = vadd.f32 %v4358, %v4595
    %v4597 = vpop.f32.mrf.mxu0
    %v4598 = vadd.f32 %v4359, %v4597
    %v4599 = vpop.f32.mrf.mxu0
    %v4600 = vpop.f32.mrf.mxu0
    %4601 = vdwg.mxu0
    %v4602 = vmul.f32 %v4555, 0.5
    %v4603 = vtanh.pop %v4602
    %v4604 = vmul.f32 %v4603, 0.5
    %v4605 = vadd.f32 %v4604, 0.5
    %v4606 = vmul.f32 %v4557, 0.5
    %v4607 = vtanh.pop %v4606
    %v4608 = vmul.f32 %v4607, 0.5
    %v4609 = vadd.f32 %v4608, 0.5
    %v4610 = vtanh.pop %v4596
    %v4611 = vmul.f32 %v4598, 0.5
    %v4612 = vtanh.pop %v4611
    %v4613 = vmul.f32 %v4612, 0.5
    %v4614 = vadd.f32 %v4613, 0.5
    %v4615 = vmul.f32 %v4609, 0.0
    %v4616 = vmul.f32 %v4605, %v4610
    %v4617 = vadd.f32 %v4615, %v4616
    %v4618 = vtanh.pop %v4617
    %v4619 = vmul.f32 %v4614, %v4618
    %4620 = vst [vmem:[#allocation3] sm:$0xff] %v4619
    %v4621 = vpack.c.bf16 %v4619, %v4619
    %v4622 = vld [vmem:[#allocation7] sm:$0xff]
    %v4623 = vld [vmem:[#allocation7 + $0x8] sm:$0xff]
    %v4624 = vld [vmem:[#allocation7 + $0x10] sm:$0xff]
    %v4625 = vld [vmem:[#allocation7 + $0x18] sm:$0xff]
    %v4626 = vld [vmem:[#allocation7 + $0x20] sm:$0xff]
    %v4627 = vld [vmem:[#allocation7 + $0x28] sm:$0xff]
    %v4628 = vld [vmem:[#allocation7 + $0x30] sm:$0xff]
    %v4629 = vld [vmem:[#allocation7 + $0x38] sm:$0xff]
    %v4630 = vld [vmem:[#allocation7 + $0x40] sm:$0xff]
    %v4631 = vld [vmem:[#allocation7 + $0x48] sm:$0xff]
    %v4632 = vld [vmem:[#allocation7 + $0x50] sm:$0xff]
    %v4633 = vld [vmem:[#allocation7 + $0x58] sm:$0xff]
    %v4634 = vld [vmem:[#allocation7 + $0x60] sm:$0xff]
    %v4635 = vld [vmem:[#allocation7 + $0x68] sm:$0xff]
    %v4636 = vld [vmem:[#allocation7 + $0x70] sm:$0xff]
    %v4637 = vld [vmem:[#allocation7 + $0x78] sm:$0xff]
    %v4638 = vld [vmem:[#allocation7 + $0x80] sm:$0xff]
    %v4639 = vld [vmem:[#allocation7 + $0x88] sm:$0xff]
    %v4640 = vld [vmem:[#allocation7 + $0x90] sm:$0xff]
    %v4641 = vld [vmem:[#allocation7 + $0x98] sm:$0xff]
    %v4642 = vld [vmem:[#allocation7 + $0xa0] sm:$0xff]
    %v4643 = vld [vmem:[#allocation7 + $0xa8] sm:$0xff]
    %v4644 = vld [vmem:[#allocation7 + $0xb0] sm:$0xff]
    %v4645 = vld [vmem:[#allocation7 + $0xb8] sm:$0xff]
    %v4646 = vld [vmem:[#allocation7 + $0xc0] sm:$0xff]
    %v4647 = vld [vmem:[#allocation7 + $0xc8] sm:$0xff]
    %v4648 = vld [vmem:[#allocation7 + $0xd0] sm:$0xff]
    %v4649 = vld [vmem:[#allocation7 + $0xd8] sm:$0xff]
    %v4650 = vld [vmem:[#allocation7 + $0xe0] sm:$0xff]
    %v4651 = vld [vmem:[#allocation7 + $0xe8] sm:$0xff]
    %v4652 = vld [vmem:[#allocation7 + $0xf0] sm:$0xff]
    %v4653 = vld [vmem:[#allocation7 + $0xf8] sm:$0xff]
    %v4654 = vld [vmem:[%s776] sm:$0xff]
    %v4655 = vld [vmem:[%s776 + $0x8] sm:$0xff]
    %v4656 = vld [vmem:[%s776 + $0x10] sm:$0xff]
    %v4657 = vld [vmem:[%s776 + $0x18] sm:$0xff]
    %v4690 = vunpack.c.l.b16 %v4622
    %v4691 = vunpack.c.h.b16 %v4622
    %v4692 = vunpack.c.l.b16 %v4623
    %v4693 = vunpack.c.h.b16 %v4623
    %v4694 = vunpack.c.l.b16 %v4624
    %v4695 = vunpack.c.h.b16 %v4624
    %v4696 = vunpack.c.l.b16 %v4625
    %v4697 = vunpack.c.h.b16 %v4625
    %v4698 = vunpack.c.l.b16 %v4626
    %v4699 = vunpack.c.h.b16 %v4626
    %v4700 = vunpack.c.l.b16 %v4627
    %v4701 = vunpack.c.h.b16 %v4627
    %v4702 = vunpack.c.l.b16 %v4628
    %v4703 = vunpack.c.h.b16 %v4628
    %v4704 = vunpack.c.l.b16 %v4629
    %v4705 = vunpack.c.h.b16 %v4629
    %v4706 = vunpack.c.l.b16 %v4630
    %v4707 = vunpack.c.h.b16 %v4630
    %v4708 = vunpack.c.l.b16 %v4631
    %v4709 = vunpack.c.h.b16 %v4631
    %v4710 = vunpack.c.l.b16 %v4632
    %v4711 = vunpack.c.h.b16 %v4632
    %v4712 = vunpack.c.l.b16 %v4633
    %v4713 = vunpack.c.h.b16 %v4633
    %v4714 = vunpack.c.l.b16 %v4634
    %v4715 = vunpack.c.h.b16 %v4634
    %v4716 = vunpack.c.l.b16 %v4635
    %v4717 = vunpack.c.h.b16 %v4635
    %v4718 = vunpack.c.l.b16 %v4636
    %v4719 = vunpack.c.h.b16 %v4636
    %v4720 = vunpack.c.l.b16 %v4637
    %v4721 = vunpack.c.h.b16 %v4637
    %v4722 = vunpack.c.l.b16 %v4638
    %v4723 = vunpack.c.h.b16 %v4638
    %v4724 = vunpack.c.l.b16 %v4639
    %v4725 = vunpack.c.h.b16 %v4639
    %v4726 = vunpack.c.l.b16 %v4640
    %v4727 = vunpack.c.h.b16 %v4640
    %v4728 = vunpack.c.l.b16 %v4641
    %v4729 = vunpack.c.h.b16 %v4641
    %v4730 = vunpack.c.l.b16 %v4642
    %v4731 = vunpack.c.h.b16 %v4642
    %v4732 = vunpack.c.l.b16 %v4643
    %v4733 = vunpack.c.h.b16 %v4643
    %v4734 = vunpack.c.l.b16 %v4644
    %v4735 = vunpack.c.h.b16 %v4644
    %v4736 = vunpack.c.l.b16 %v4645
    %v4737 = vunpack.c.h.b16 %v4645
    %v4738 = vunpack.c.l.b16 %v4646
    %v4739 = vunpack.c.h.b16 %v4646
    %v4740 = vunpack.c.l.b16 %v4647
    %v4741 = vunpack.c.h.b16 %v4647
    %v4742 = vunpack.c.l.b16 %v4648
    %v4743 = vunpack.c.h.b16 %v4648
    %v4744 = vunpack.c.l.b16 %v4649
    %v4745 = vunpack.c.h.b16 %v4649
    %v4746 = vunpack.c.l.b16 %v4650
    %v4747 = vunpack.c.h.b16 %v4650
    %v4748 = vunpack.c.l.b16 %v4651
    %v4749 = vunpack.c.h.b16 %v4651
    %v4750 = vunpack.c.l.b16 %v4652
    %v4751 = vunpack.c.h.b16 %v4652
    %v4752 = vunpack.c.l.b16 %v4653
    %v4753 = vunpack.c.h.b16 %v4653
    %v4754 = vpack.c.b16 %v4694, %v4690
    %v4755 = vpack.c.b16 %v4695, %v4691
    %v4756 = vpack.c.b16 %v4696, %v4692
    %v4757 = vpack.c.b16 %v4697, %v4693
    %v4758 = vpack.c.b16 %v4702, %v4698
    %v4759 = vpack.c.b16 %v4703, %v4699
    %v4760 = vpack.c.b16 %v4704, %v4700
    %v4761 = vpack.c.b16 %v4705, %v4701
    %v4762 = vpack.c.b16 %v4710, %v4706
    %v4763 = vpack.c.b16 %v4711, %v4707
    %v4764 = vpack.c.b16 %v4712, %v4708
    %v4765 = vpack.c.b16 %v4713, %v4709
    %v4766 = vpack.c.b16 %v4718, %v4714
    %v4767 = vpack.c.b16 %v4719, %v4715
    %v4768 = vpack.c.b16 %v4720, %v4716
    %v4769 = vpack.c.b16 %v4721, %v4717
    %v4770 = vpack.c.b16 %v4726, %v4722
    %v4771 = vpack.c.b16 %v4727, %v4723
    %v4772 = vpack.c.b16 %v4728, %v4724
    %v4773 = vpack.c.b16 %v4729, %v4725
    %v4774 = vpack.c.b16 %v4734, %v4730
    %v4775 = vpack.c.b16 %v4735, %v4731
    %v4776 = vpack.c.b16 %v4736, %v4732
    %v4777 = vpack.c.b16 %v4737, %v4733
    %v4778 = vpack.c.b16 %v4742, %v4738
    %v4779 = vpack.c.b16 %v4743, %v4739
    %v4780 = vpack.c.b16 %v4744, %v4740
    %v4781 = vpack.c.b16 %v4745, %v4741
    %v4782 = vpack.c.b16 %v4750, %v4746
    %v4783 = vpack.c.b16 %v4751, %v4747
    %v4784 = vpack.c.b16 %v4752, %v4748
    %v4785 = vpack.c.b16 %v4753, %v4749
    %4818 = vmatprep.subr.bf16.mxu0 %v4783
    %4819 = vmatpush1.bf16.msra.mxu0 %v4782
    %4820 = vmatprep.subr.bf16.mxu0 %v4779
    %4821 = vmatpush1.bf16.msra.mxu0 %v4778
    %4822 = vmatprep.subr.bf16.mxu0 %v4775
    %4823 = vmatpush1.bf16.msra.mxu0 %v4774
    %4824 = vmatprep.subr.bf16.mxu0 %v4771
    %4825 = vmatpush1.bf16.msra.mxu0 %v4770
    %4826 = vmatprep.subr.bf16.mxu0 %v4767
    %4827 = vmatpush1.bf16.msra.mxu0 %v4766
    %4828 = vmatprep.subr.bf16.mxu0 %v4763
    %4829 = vmatpush1.bf16.msra.mxu0 %v4762
    %4830 = vmatprep.subr.bf16.mxu0 %v4759
    %4831 = vmatpush1.bf16.msra.mxu0 %v4758
    %4832 = vmatprep.subr.bf16.mxu0 %v4755
    %4833 = vmatpush1.bf16.msra.mxu0 %v4754
    %4834 = vmatprep.subr.bf16.mxu0 0
    %4835 = vmatpush2.bf16.msra.mxu0 0
    %4836 = vmatprep.subr.bf16.mxu0 0
    %4837 = vmatpush2.bf16.msra.mxu0 0
    %4838 = vmatprep.subr.bf16.mxu0 0
    %4839 = vmatpush2.bf16.msra.mxu0 0
    %4840 = vmatprep.subr.bf16.mxu0 0
    %4841 = vmatpush2.bf16.msra.mxu0 0
    %4842 = vmatprep.subr.bf16.mxu0 0
    %4843 = vmatpush2.bf16.msra.mxu0 0
    %4844 = vmatprep.subr.bf16.mxu0 0
    %4845 = vmatpush2.bf16.msra.mxu0 0
    %4846 = vmatprep.subr.bf16.mxu0 0
    %4847 = vmatpush2.bf16.msra.mxu0 0
    %4848 = vmatprep.subr.bf16.mxu0 0
    %4849 = vmatpush2.bf16.msra.mxu0 0
    %4850 = vmatprep.mubr.bf16.mxu0 0
    %4851 = vmatmul.mubr.bf16.gmra.mxu0 %v4621
    %v4852 = vpop.f32.mrf.mxu0
    %v4853 = vadd.f32 %v4654, %v4852
    %v4854 = vpop.f32.mrf.mxu0
    %v4855 = vadd.f32 %v4655, %v4854
    %v4856 = vpop.f32.mrf.mxu0
    %v4857 = vpop.f32.mrf.mxu0
    %4858 = vdwg.mxu0
    %4859 = vmatprep.subr.bf16.mxu0 %v4785
    %4860 = vmatpush1.bf16.msra.mxu0 %v4784
    %4861 = vmatprep.subr.bf16.mxu0 %v4781
    %4862 = vmatpush1.bf16.msra.mxu0 %v4780
    %4863 = vmatprep.subr.bf16.mxu0 %v4777
    %4864 = vmatpush1.bf16.msra.mxu0 %v4776
    %4865 = vmatprep.subr.bf16.mxu0 %v4773
    %4866 = vmatpush1.bf16.msra.mxu0 %v4772
    %4867 = vmatprep.subr.bf16.mxu0 %v4769
    %4868 = vmatpush1.bf16.msra.mxu0 %v4768
    %4869 = vmatprep.subr.bf16.mxu0 %v4765
    %4870 = vmatpush1.bf16.msra.mxu0 %v4764
    %4871 = vmatprep.subr.bf16.mxu0 %v4761
    %4872 = vmatpush1.bf16.msra.mxu0 %v4760
    %4873 = vmatprep.subr.bf16.mxu0 %v4757
    %4874 = vmatpush1.bf16.msra.mxu0 %v4756
    %4875 = vmatprep.subr.bf16.mxu0 0
    %4876 = vmatpush2.bf16.msra.mxu0 0
    %4877 = vmatprep.subr.bf16.mxu0 0
    %4878 = vmatpush2.bf16.msra.mxu0 0
    %4879 = vmatprep.subr.bf16.mxu0 0
    %4880 = vmatpush2.bf16.msra.mxu0 0
    %4881 = vmatprep.subr.bf16.mxu0 0
    %4882 = vmatpush2.bf16.msra.mxu0 0
    %4883 = vmatprep.subr.bf16.mxu0 0
    %4884 = vmatpush2.bf16.msra.mxu0 0
    %4885 = vmatprep.subr.bf16.mxu0 0
    %4886 = vmatpush2.bf16.msra.mxu0 0
    %4887 = vmatprep.subr.bf16.mxu0 0
    %4888 = vmatpush2.bf16.msra.mxu0 0
    %4889 = vmatprep.subr.bf16.mxu0 0
    %4890 = vmatpush2.bf16.msra.mxu0 0
    %4891 = vmatprep.mubr.bf16.mxu0 0
    %4892 = vmatmul.mubr.bf16.gmra.mxu0 %v4621
    %v4893 = vpop.f32.mrf.mxu0
    %v4894 = vadd.f32 %v4656, %v4893
    %v4895 = vpop.f32.mrf.mxu0
    %v4896 = vadd.f32 %v4657, %v4895
    %v4897 = vpop.f32.mrf.mxu0
    %v4898 = vpop.f32.mrf.mxu0
    %4899 = vdwg.mxu0
    %v4900 = vmul.f32 %v4853, 0.5
    %v4901 = vtanh.pop %v4900
    %v4902 = vmul.f32 %v4901, 0.5
    %v4903 = vadd.f32 %v4902, 0.5
    %v4904 = vmul.f32 %v4855, 0.5
    %v4905 = vtanh.pop %v4904
    %v4906 = vmul.f32 %v4905, 0.5
    %v4907 = vadd.f32 %v4906, 0.5
    %v4908 = vtanh.pop %v4894
    %v4909 = vmul.f32 %v4896, 0.5
    %v4910 = vtanh.pop %v4909
    %v4911 = vmul.f32 %v4910, 0.5
    %v4912 = vadd.f32 %v4911, 0.5
    %v4913 = vmul.f32 %v4907, %v4617
    %v4914 = vmul.f32 %v4903, %v4908
    %v4915 = vadd.f32 %v4913, %v4914
    %v4916 = vtanh.pop %v4915
    %v4917 = vmul.f32 %v4912, %v4916
    %4918 = vst [vmem:[%s1041] sm:$0xff] %v4917
    %v4919 = vpack.c.bf16 %v4917, %v4917
    %v4920 = vld [vmem:[#allocation7] sm:$0xff]
    %v4921 = vld [vmem:[#allocation7 + $0x8] sm:$0xff]
    %v4922 = vld [vmem:[#allocation7 + $0x10] sm:$0xff]
    %v4923 = vld [vmem:[#allocation7 + $0x18] sm:$0xff]
    %v4924 = vld [vmem:[#allocation7 + $0x20] sm:$0xff]
    %v4925 = vld [vmem:[#allocation7 + $0x28] sm:$0xff]
    %v4926 = vld [vmem:[#allocation7 + $0x30] sm:$0xff]
    %v4927 = vld [vmem:[#allocation7 + $0x38] sm:$0xff]
    %v4928 = vld [vmem:[#allocation7 + $0x40] sm:$0xff]
    %v4929 = vld [vmem:[#allocation7 + $0x48] sm:$0xff]
    %v4930 = vld [vmem:[#allocation7 + $0x50] sm:$0xff]
    %v4931 = vld [vmem:[#allocation7 + $0x58] sm:$0xff]
    %v4932 = vld [vmem:[#allocation7 + $0x60] sm:$0xff]
    %v4933 = vld [vmem:[#allocation7 + $0x68] sm:$0xff]
    %v4934 = vld [vmem:[#allocation7 + $0x70] sm:$0xff]
    %v4935 = vld [vmem:[#allocation7 + $0x78] sm:$0xff]
    %v4936 = vld [vmem:[#allocation7 + $0x80] sm:$0xff]
    %v4937 = vld [vmem:[#allocation7 + $0x88] sm:$0xff]
    %v4938 = vld [vmem:[#allocation7 + $0x90] sm:$0xff]
    %v4939 = vld [vmem:[#allocation7 + $0x98] sm:$0xff]
    %v4940 = vld [vmem:[#allocation7 + $0xa0] sm:$0xff]
    %v4941 = vld [vmem:[#allocation7 + $0xa8] sm:$0xff]
    %v4942 = vld [vmem:[#allocation7 + $0xb0] sm:$0xff]
    %v4943 = vld [vmem:[#allocation7 + $0xb8] sm:$0xff]
    %v4944 = vld [vmem:[#allocation7 + $0xc0] sm:$0xff]
    %v4945 = vld [vmem:[#allocation7 + $0xc8] sm:$0xff]
    %v4946 = vld [vmem:[#allocation7 + $0xd0] sm:$0xff]
    %v4947 = vld [vmem:[#allocation7 + $0xd8] sm:$0xff]
    %v4948 = vld [vmem:[#allocation7 + $0xe0] sm:$0xff]
    %v4949 = vld [vmem:[#allocation7 + $0xe8] sm:$0xff]
    %v4950 = vld [vmem:[#allocation7 + $0xf0] sm:$0xff]
    %v4951 = vld [vmem:[#allocation7 + $0xf8] sm:$0xff]
    %v4952 = vld [vmem:[%s1080] sm:$0xff]
    %v4953 = vld [vmem:[%s1080 + $0x8] sm:$0xff]
    %v4954 = vld [vmem:[%s1080 + $0x10] sm:$0xff]
    %v4955 = vld [vmem:[%s1080 + $0x18] sm:$0xff]
    %v4988 = vunpack.c.l.b16 %v4920
    %v4989 = vunpack.c.h.b16 %v4920
    %v4990 = vunpack.c.l.b16 %v4921
    %v4991 = vunpack.c.h.b16 %v4921
    %v4992 = vunpack.c.l.b16 %v4922
    %v4993 = vunpack.c.h.b16 %v4922
    %v4994 = vunpack.c.l.b16 %v4923
    %v4995 = vunpack.c.h.b16 %v4923
    %v4996 = vunpack.c.l.b16 %v4924
    %v4997 = vunpack.c.h.b16 %v4924
    %v4998 = vunpack.c.l.b16 %v4925
    %v4999 = vunpack.c.h.b16 %v4925
    %v5000 = vunpack.c.l.b16 %v4926
    %v5001 = vunpack.c.h.b16 %v4926
    %v5002 = vunpack.c.l.b16 %v4927
    %v5003 = vunpack.c.h.b16 %v4927
    %v5004 = vunpack.c.l.b16 %v4928
    %v5005 = vunpack.c.h.b16 %v4928
    %v5006 = vunpack.c.l.b16 %v4929
    %v5007 = vunpack.c.h.b16 %v4929
    %v5008 = vunpack.c.l.b16 %v4930
    %v5009 = vunpack.c.h.b16 %v4930
    %v5010 = vunpack.c.l.b16 %v4931
    %v5011 = vunpack.c.h.b16 %v4931
    %v5012 = vunpack.c.l.b16 %v4932
    %v5013 = vunpack.c.h.b16 %v4932
    %v5014 = vunpack.c.l.b16 %v4933
    %v5015 = vunpack.c.h.b16 %v4933
    %v5016 = vunpack.c.l.b16 %v4934
    %v5017 = vunpack.c.h.b16 %v4934
    %v5018 = vunpack.c.l.b16 %v4935
    %v5019 = vunpack.c.h.b16 %v4935
    %v5020 = vunpack.c.l.b16 %v4936
    %v5021 = vunpack.c.h.b16 %v4936
    %v5022 = vunpack.c.l.b16 %v4937
    %v5023 = vunpack.c.h.b16 %v4937
    %v5024 = vunpack.c.l.b16 %v4938
    %v5025 = vunpack.c.h.b16 %v4938
    %v5026 = vunpack.c.l.b16 %v4939
    %v5027 = vunpack.c.h.b16 %v4939
    %v5028 = vunpack.c.l.b16 %v4940
    %v5029 = vunpack.c.h.b16 %v4940
    %v5030 = vunpack.c.l.b16 %v4941
    %v5031 = vunpack.c.h.b16 %v4941
    %v5032 = vunpack.c.l.b16 %v4942
    %v5033 = vunpack.c.h.b16 %v4942
    %v5034 = vunpack.c.l.b16 %v4943
    %v5035 = vunpack.c.h.b16 %v4943
    %v5036 = vunpack.c.l.b16 %v4944
    %v5037 = vunpack.c.h.b16 %v4944
    %v5038 = vunpack.c.l.b16 %v4945
    %v5039 = vunpack.c.h.b16 %v4945
    %v5040 = vunpack.c.l.b16 %v4946
    %v5041 = vunpack.c.h.b16 %v4946
    %v5042 = vunpack.c.l.b16 %v4947
    %v5043 = vunpack.c.h.b16 %v4947
    %v5044 = vunpack.c.l.b16 %v4948
    %v5045 = vunpack.c.h.b16 %v4948
    %v5046 = vunpack.c.l.b16 %v4949
    %v5047 = vunpack.c.h.b16 %v4949
    %v5048 = vunpack.c.l.b16 %v4950
    %v5049 = vunpack.c.h.b16 %v4950
    %v5050 = vunpack.c.l.b16 %v4951
    %v5051 = vunpack.c.h.b16 %v4951
    %v5052 = vpack.c.b16 %v4992, %v4988
    %v5053 = vpack.c.b16 %v4993, %v4989
    %v5054 = vpack.c.b16 %v4994, %v4990
    %v5055 = vpack.c.b16 %v4995, %v4991
    %v5056 = vpack.c.b16 %v5000, %v4996
    %v5057 = vpack.c.b16 %v5001, %v4997
    %v5058 = vpack.c.b16 %v5002, %v4998
    %v5059 = vpack.c.b16 %v5003, %v4999
    %v5060 = vpack.c.b16 %v5008, %v5004
    %v5061 = vpack.c.b16 %v5009, %v5005
    %v5062 = vpack.c.b16 %v5010, %v5006
    %v5063 = vpack.c.b16 %v5011, %v5007
    %v5064 = vpack.c.b16 %v5016, %v5012
    %v5065 = vpack.c.b16 %v5017, %v5013
    %v5066 = vpack.c.b16 %v5018, %v5014
    %v5067 = vpack.c.b16 %v5019, %v5015
    %v5068 = vpack.c.b16 %v5024, %v5020
    %v5069 = vpack.c.b16 %v5025, %v5021
    %v5070 = vpack.c.b16 %v5026, %v5022
    %v5071 = vpack.c.b16 %v5027, %v5023
    %v5072 = vpack.c.b16 %v5032, %v5028
    %v5073 = vpack.c.b16 %v5033, %v5029
    %v5074 = vpack.c.b16 %v5034, %v5030
    %v5075 = vpack.c.b16 %v5035, %v5031
    %v5076 = vpack.c.b16 %v5040, %v5036
    %v5077 = vpack.c.b16 %v5041, %v5037
    %v5078 = vpack.c.b16 %v5042, %v5038
    %v5079 = vpack.c.b16 %v5043, %v5039
    %v5080 = vpack.c.b16 %v5048, %v5044
    %v5081 = vpack.c.b16 %v5049, %v5045
    %v5082 = vpack.c.b16 %v5050, %v5046
    %v5083 = vpack.c.b16 %v5051, %v5047
    %5116 = vmatprep.subr.bf16.mxu0 %v5081
    %5117 = vmatpush1.bf16.msra.mxu0 %v5080
    %5118 = vmatprep.subr.bf16.mxu0 %v5077
    %5119 = vmatpush1.bf16.msra.mxu0 %v5076
    %5120 = vmatprep.subr.bf16.mxu0 %v5073
    %5121 = vmatpush1.bf16.msra.mxu0 %v5072
    %5122 = vmatprep.subr.bf16.mxu0 %v5069
    %5123 = vmatpush1.bf16.msra.mxu0 %v5068
    %5124 = vmatprep.subr.bf16.mxu0 %v5065
    %5125 = vmatpush1.bf16.msra.mxu0 %v5064
    %5126 = vmatprep.subr.bf16.mxu0 %v5061
    %5127 = vmatpush1.bf16.msra.mxu0 %v5060
    %5128 = vmatprep.subr.bf16.mxu0 %v5057
    %5129 = vmatpush1.bf16.msra.mxu0 %v5056
    %5130 = vmatprep.subr.bf16.mxu0 %v5053
    %5131 = vmatpush1.bf16.msra.mxu0 %v5052
    %5132 = vmatprep.subr.bf16.mxu0 0
    %5133 = vmatpush2.bf16.msra.mxu0 0
    %5134 = vmatprep.subr.bf16.mxu0 0
    %5135 = vmatpush2.bf16.msra.mxu0 0
    %5136 = vmatprep.subr.bf16.mxu0 0
    %5137 = vmatpush2.bf16.msra.mxu0 0
    %5138 = vmatprep.subr.bf16.mxu0 0
    %5139 = vmatpush2.bf16.msra.mxu0 0
    %5140 = vmatprep.subr.bf16.mxu0 0
    %5141 = vmatpush2.bf16.msra.mxu0 0
    %5142 = vmatprep.subr.bf16.mxu0 0
    %5143 = vmatpush2.bf16.msra.mxu0 0
    %5144 = vmatprep.subr.bf16.mxu0 0
    %5145 = vmatpush2.bf16.msra.mxu0 0
    %5146 = vmatprep.subr.bf16.mxu0 0
    %5147 = vmatpush2.bf16.msra.mxu0 0
    %5148 = vmatprep.mubr.bf16.mxu0 0
    %5149 = vmatmul.mubr.bf16.gmra.mxu0 %v4919
    %v5150 = vpop.f32.mrf.mxu0
    %v5151 = vadd.f32 %v4952, %v5150
    %v5152 = vpop.f32.mrf.mxu0
    %v5153 = vadd.f32 %v4953, %v5152
    %v5154 = vpop.f32.mrf.mxu0
    %v5155 = vpop.f32.mrf.mxu0
    %5156 = vdwg.mxu0
    %5157 = vmatprep.subr.bf16.mxu0 %v5083
    %5158 = vmatpush1.bf16.msra.mxu0 %v5082
    %5159 = vmatprep.subr.bf16.mxu0 %v5079
    %5160 = vmatpush1.bf16.msra.mxu0 %v5078
    %5161 = vmatprep.subr.bf16.mxu0 %v5075
    %5162 = vmatpush1.bf16.msra.mxu0 %v5074
    %5163 = vmatprep.subr.bf16.mxu0 %v5071
    %5164 = vmatpush1.bf16.msra.mxu0 %v5070
    %5165 = vmatprep.subr.bf16.mxu0 %v5067
    %5166 = vmatpush1.bf16.msra.mxu0 %v5066
    %5167 = vmatprep.subr.bf16.mxu0 %v5063
    %5168 = vmatpush1.bf16.msra.mxu0 %v5062
    %5169 = vmatprep.subr.bf16.mxu0 %v5059
    %5170 = vmatpush1.bf16.msra.mxu0 %v5058
    %5171 = vmatprep.subr.bf16.mxu0 %v5055
    %5172 = vmatpush1.bf16.msra.mxu0 %v5054
    %5173 = vmatprep.subr.bf16.mxu0 0
    %5174 = vmatpush2.bf16.msra.mxu0 0
    %5175 = vmatprep.subr.bf16.mxu0 0
    %5176 = vmatpush2.bf16.msra.mxu0 0
    %5177 = vmatprep.subr.bf16.mxu0 0
    %5178 = vmatpush2.bf16.msra.mxu0 0
    %5179 = vmatprep.subr.bf16.mxu0 0
    %5180 = vmatpush2.bf16.msra.mxu0 0
    %5181 = vmatprep.subr.bf16.mxu0 0
    %5182 = vmatpush2.bf16.msra.mxu0 0
    %5183 = vmatprep.subr.bf16.mxu0 0
    %5184 = vmatpush2.bf16.msra.mxu0 0
    %5185 = vmatprep.subr.bf16.mxu0 0
    %5186 = vmatpush2.bf16.msra.mxu0 0
    %5187 = vmatprep.subr.bf16.mxu0 0
    %5188 = vmatpush2.bf16.msra.mxu0 0
    %5189 = vmatprep.mubr.bf16.mxu0 0
    %5190 = vmatmul.mubr.bf16.gmra.mxu0 %v4919
    %v5191 = vpop.f32.mrf.mxu0
    %v5192 = vadd.f32 %v4954, %v5191
    %v5193 = vpop.f32.mrf.mxu0
    %v5194 = vadd.f32 %v4955, %v5193
    %v5195 = vpop.f32.mrf.mxu0
    %v5196 = vpop.f32.mrf.mxu0
    %5197 = vdwg.mxu0
    %v5198 = vmul.f32 %v5151, 0.5
    %v5199 = vtanh.pop %v5198
    %v5200 = vmul.f32 %v5199, 0.5
    %v5201 = vadd.f32 %v5200, 0.5
    %v5202 = vmul.f32 %v5153, 0.5
    %v5203 = vtanh.pop %v5202
    %v5204 = vmul.f32 %v5203, 0.5
    %v5205 = vadd.f32 %v5204, 0.5
    %v5206 = vtanh.pop %v5192
    %v5207 = vmul.f32 %v5194, 0.5
    %v5208 = vtanh.pop %v5207
    %v5209 = vmul.f32 %v5208, 0.5
    %v5210 = vadd.f32 %v5209, 0.5
    %v5211 = vmul.f32 %v5205, %v4915
    %v5212 = vmul.f32 %v5201, %v5206
    %v5213 = vadd.f32 %v5211, %v5212
    %v5214 = vtanh.pop %v5213
    %v5215 = vmul.f32 %v5210, %v5214
    %5216 = vst [vmem:[%s1345] sm:$0xff] %v5215
    %v5217 = vpack.c.bf16 %v5215, %v5215
    %v5218 = vld [vmem:[#allocation7] sm:$0xff]
    %v5219 = vld [vmem:[#allocation7 + $0x8] sm:$0xff]
    %v5220 = vld [vmem:[#allocation7 + $0x10] sm:$0xff]
    %v5221 = vld [vmem:[#allocation7 + $0x18] sm:$0xff]
    %v5222 = vld [vmem:[#allocation7 + $0x20] sm:$0xff]
    %v5223 = vld [vmem:[#allocation7 + $0x28] sm:$0xff]
    %v5224 = vld [vmem:[#allocation7 + $0x30] sm:$0xff]
    %v5225 = vld [vmem:[#allocation7 + $0x38] sm:$0xff]
    %v5226 = vld [vmem:[#allocation7 + $0x40] sm:$0xff]
    %v5227 = vld [vmem:[#allocation7 + $0x48] sm:$0xff]
    %v5228 = vld [vmem:[#allocation7 + $0x50] sm:$0xff]
    %v5229 = vld [vmem:[#allocation7 + $0x58] sm:$0xff]
    %v5230 = vld [vmem:[#allocation7 + $0x60] sm:$0xff]
    %v5231 = vld [vmem:[#allocation7 + $0x68] sm:$0xff]
    %v5232 = vld [vmem:[#allocation7 + $0x70] sm:$0xff]
    %v5233 = vld [vmem:[#allocation7 + $0x78] sm:$0xff]
    %v5234 = vld [vmem:[#allocation7 + $0x80] sm:$0xff]
    %v5235 = vld [vmem:[#allocation7 + $0x88] sm:$0xff]
    %v5236 = vld [vmem:[#allocation7 + $0x90] sm:$0xff]
    %v5237 = vld [vmem:[#allocation7 + $0x98] sm:$0xff]
    %v5238 = vld [vmem:[#allocation7 + $0xa0] sm:$0xff]
    %v5239 = vld [vmem:[#allocation7 + $0xa8] sm:$0xff]
    %v5240 = vld [vmem:[#allocation7 + $0xb0] sm:$0xff]
    %v5241 = vld [vmem:[#allocation7 + $0xb8] sm:$0xff]
    %v5242 = vld [vmem:[#allocation7 + $0xc0] sm:$0xff]
    %v5243 = vld [vmem:[#allocation7 + $0xc8] sm:$0xff]
    %v5244 = vld [vmem:[#allocation7 + $0xd0] sm:$0xff]
    %v5245 = vld [vmem:[#allocation7 + $0xd8] sm:$0xff]
    %v5246 = vld [vmem:[#allocation7 + $0xe0] sm:$0xff]
    %v5247 = vld [vmem:[#allocation7 + $0xe8] sm:$0xff]
    %v5248 = vld [vmem:[#allocation7 + $0xf0] sm:$0xff]
    %v5249 = vld [vmem:[#allocation7 + $0xf8] sm:$0xff]
    %v5250 = vld [vmem:[%s1384] sm:$0xff]
    %v5251 = vld [vmem:[%s1384 + $0x8] sm:$0xff]
    %v5252 = vld [vmem:[%s1384 + $0x10] sm:$0xff]
    %v5253 = vld [vmem:[%s1384 + $0x18] sm:$0xff]
    %v5286 = vunpack.c.l.b16 %v5218
    %v5287 = vunpack.c.h.b16 %v5218
    %v5288 = vunpack.c.l.b16 %v5219
    %v5289 = vunpack.c.h.b16 %v5219
    %v5290 = vunpack.c.l.b16 %v5220
    %v5291 = vunpack.c.h.b16 %v5220
    %v5292 = vunpack.c.l.b16 %v5221
    %v5293 = vunpack.c.h.b16 %v5221
    %v5294 = vunpack.c.l.b16 %v5222
    %v5295 = vunpack.c.h.b16 %v5222
    %v5296 = vunpack.c.l.b16 %v5223
    %v5297 = vunpack.c.h.b16 %v5223
    %v5298 = vunpack.c.l.b16 %v5224
    %v5299 = vunpack.c.h.b16 %v5224
    %v5300 = vunpack.c.l.b16 %v5225
    %v5301 = vunpack.c.h.b16 %v5225
    %v5302 = vunpack.c.l.b16 %v5226
    %v5303 = vunpack.c.h.b16 %v5226
    %v5304 = vunpack.c.l.b16 %v5227
    %v5305 = vunpack.c.h.b16 %v5227
    %v5306 = vunpack.c.l.b16 %v5228
    %v5307 = vunpack.c.h.b16 %v5228
    %v5308 = vunpack.c.l.b16 %v5229
    %v5309 = vunpack.c.h.b16 %v5229
    %v5310 = vunpack.c.l.b16 %v5230
    %v5311 = vunpack.c.h.b16 %v5230
    %v5312 = vunpack.c.l.b16 %v5231
    %v5313 = vunpack.c.h.b16 %v5231
    %v5314 = vunpack.c.l.b16 %v5232
    %v5315 = vunpack.c.h.b16 %v5232
    %v5316 = vunpack.c.l.b16 %v5233
    %v5317 = vunpack.c.h.b16 %v5233
    %v5318 = vunpack.c.l.b16 %v5234
    %v5319 = vunpack.c.h.b16 %v5234
    %v5320 = vunpack.c.l.b16 %v5235
    %v5321 = vunpack.c.h.b16 %v5235
    %v5322 = vunpack.c.l.b16 %v5236
    %v5323 = vunpack.c.h.b16 %v5236
    %v5324 = vunpack.c.l.b16 %v5237
    %v5325 = vunpack.c.h.b16 %v5237
    %v5326 = vunpack.c.l.b16 %v5238
    %v5327 = vunpack.c.h.b16 %v5238
    %v5328 = vunpack.c.l.b16 %v5239
    %v5329 = vunpack.c.h.b16 %v5239
    %v5330 = vunpack.c.l.b16 %v5240
    %v5331 = vunpack.c.h.b16 %v5240
    %v5332 = vunpack.c.l.b16 %v5241
    %v5333 = vunpack.c.h.b16 %v5241
    %v5334 = vunpack.c.l.b16 %v5242
    %v5335 = vunpack.c.h.b16 %v5242
    %v5336 = vunpack.c.l.b16 %v5243
    %v5337 = vunpack.c.h.b16 %v5243
    %v5338 = vunpack.c.l.b16 %v5244
    %v5339 = vunpack.c.h.b16 %v5244
    %v5340 = vunpack.c.l.b16 %v5245
    %v5341 = vunpack.c.h.b16 %v5245
    %v5342 = vunpack.c.l.b16 %v5246
    %v5343 = vunpack.c.h.b16 %v5246
    %v5344 = vunpack.c.l.b16 %v5247
    %v5345 = vunpack.c.h.b16 %v5247
    %v5346 = vunpack.c.l.b16 %v5248
    %v5347 = vunpack.c.h.b16 %v5248
    %v5348 = vunpack.c.l.b16 %v5249
    %v5349 = vunpack.c.h.b16 %v5249
    %v5350 = vpack.c.b16 %v5290, %v5286
    %v5351 = vpack.c.b16 %v5291, %v5287
    %v5352 = vpack.c.b16 %v5292, %v5288
    %v5353 = vpack.c.b16 %v5293, %v5289
    %v5354 = vpack.c.b16 %v5298, %v5294
    %v5355 = vpack.c.b16 %v5299, %v5295
    %v5356 = vpack.c.b16 %v5300, %v5296
    %v5357 = vpack.c.b16 %v5301, %v5297
    %v5358 = vpack.c.b16 %v5306, %v5302
    %v5359 = vpack.c.b16 %v5307, %v5303
    %v5360 = vpack.c.b16 %v5308, %v5304
    %v5361 = vpack.c.b16 %v5309, %v5305
    %v5362 = vpack.c.b16 %v5314, %v5310
    %v5363 = vpack.c.b16 %v5315, %v5311
    %v5364 = vpack.c.b16 %v5316, %v5312
    %v5365 = vpack.c.b16 %v5317, %v5313
    %v5366 = vpack.c.b16 %v5322, %v5318
    %v5367 = vpack.c.b16 %v5323, %v5319
    %v5368 = vpack.c.b16 %v5324, %v5320
    %v5369 = vpack.c.b16 %v5325, %v5321
    %v5370 = vpack.c.b16 %v5330, %v5326
    %v5371 = vpack.c.b16 %v5331, %v5327
    %v5372 = vpack.c.b16 %v5332, %v5328
    %v5373 = vpack.c.b16 %v5333, %v5329
    %v5374 = vpack.c.b16 %v5338, %v5334
    %v5375 = vpack.c.b16 %v5339, %v5335
    %v5376 = vpack.c.b16 %v5340, %v5336
    %v5377 = vpack.c.b16 %v5341, %v5337
    %v5378 = vpack.c.b16 %v5346, %v5342
    %v5379 = vpack.c.b16 %v5347, %v5343
    %v5380 = vpack.c.b16 %v5348, %v5344
    %v5381 = vpack.c.b16 %v5349, %v5345
    %5414 = vmatprep.subr.bf16.mxu0 %v5379
    %5415 = vmatpush1.bf16.msra.mxu0 %v5378
    %5416 = vmatprep.subr.bf16.mxu0 %v5375
    %5417 = vmatpush1.bf16.msra.mxu0 %v5374
    %5418 = vmatprep.subr.bf16.mxu0 %v5371
    %5419 = vmatpush1.bf16.msra.mxu0 %v5370
    %5420 = vmatprep.subr.bf16.mxu0 %v5367
    %5421 = vmatpush1.bf16.msra.mxu0 %v5366
    %5422 = vmatprep.subr.bf16.mxu0 %v5363
    %5423 = vmatpush1.bf16.msra.mxu0 %v5362
    %5424 = vmatprep.subr.bf16.mxu0 %v5359
    %5425 = vmatpush1.bf16.msra.mxu0 %v5358
    %5426 = vmatprep.subr.bf16.mxu0 %v5355
    %5427 = vmatpush1.bf16.msra.mxu0 %v5354
    %5428 = vmatprep.subr.bf16.mxu0 %v5351
    %5429 = vmatpush1.bf16.msra.mxu0 %v5350
    %5430 = vmatprep.subr.bf16.mxu0 0
    %5431 = vmatpush2.bf16.msra.mxu0 0
    %5432 = vmatprep.subr.bf16.mxu0 0
    %5433 = vmatpush2.bf16.msra.mxu0 0
    %5434 = vmatprep.subr.bf16.mxu0 0
    %5435 = vmatpush2.bf16.msra.mxu0 0
    %5436 = vmatprep.subr.bf16.mxu0 0
    %5437 = vmatpush2.bf16.msra.mxu0 0
    %5438 = vmatprep.subr.bf16.mxu0 0
    %5439 = vmatpush2.bf16.msra.mxu0 0
    %5440 = vmatprep.subr.bf16.mxu0 0
    %5441 = vmatpush2.bf16.msra.mxu0 0
    %5442 = vmatprep.subr.bf16.mxu0 0
    %5443 = vmatpush2.bf16.msra.mxu0 0
    %5444 = vmatprep.subr.bf16.mxu0 0
    %5445 = vmatpush2.bf16.msra.mxu0 0
    %5446 = vmatprep.mubr.bf16.mxu0 0
    %5447 = vmatmul.mubr.bf16.gmra.mxu0 %v5217
    %v5448 = vpop.f32.mrf.mxu0
    %v5449 = vadd.f32 %v5250, %v5448
    %v5450 = vpop.f32.mrf.mxu0
    %v5451 = vadd.f32 %v5251, %v5450
    %v5452 = vpop.f32.mrf.mxu0
    %v5453 = vpop.f32.mrf.mxu0
    %5454 = vdwg.mxu0
    %5455 = vmatprep.subr.bf16.mxu0 %v5381
    %5456 = vmatpush1.bf16.msra.mxu0 %v5380
    %5457 = vmatprep.subr.bf16.mxu0 %v5377
    %5458 = vmatpush1.bf16.msra.mxu0 %v5376
    %5459 = vmatprep.subr.bf16.mxu0 %v5373
    %5460 = vmatpush1.bf16.msra.mxu0 %v5372
    %5461 = vmatprep.subr.bf16.mxu0 %v5369
    %5462 = vmatpush1.bf16.msra.mxu0 %v5368
    %5463 = vmatprep.subr.bf16.mxu0 %v5365
    %5464 = vmatpush1.bf16.msra.mxu0 %v5364
    %5465 = vmatprep.subr.bf16.mxu0 %v5361
    %5466 = vmatpush1.bf16.msra.mxu0 %v5360
    %5467 = vmatprep.subr.bf16.mxu0 %v5357
    %5468 = vmatpush1.bf16.msra.mxu0 %v5356
    %5469 = vmatprep.subr.bf16.mxu0 %v5353
    %5470 = vmatpush1.bf16.msra.mxu0 %v5352
    %5471 = vmatprep.subr.bf16.mxu0 0
    %5472 = vmatpush2.bf16.msra.mxu0 0
    %5473 = vmatprep.subr.bf16.mxu0 0
    %5474 = vmatpush2.bf16.msra.mxu0 0
    %5475 = vmatprep.subr.bf16.mxu0 0
    %5476 = vmatpush2.bf16.msra.mxu0 0
    %5477 = vmatprep.subr.bf16.mxu0 0
    %5478 = vmatpush2.bf16.msra.mxu0 0
    %5479 = vmatprep.subr.bf16.mxu0 0
    %5480 = vmatpush2.bf16.msra.mxu0 0
    %5481 = vmatprep.subr.bf16.mxu0 0
    %5482 = vmatpush2.bf16.msra.mxu0 0
    %5483 = vmatprep.subr.bf16.mxu0 0
    %5484 = vmatpush2.bf16.msra.mxu0 0
    %5485 = vmatprep.subr.bf16.mxu0 0
    %5486 = vmatpush2.bf16.msra.mxu0 0
    %5487 = vmatprep.mubr.bf16.mxu0 0
    %5488 = vmatmul.mubr.bf16.gmra.mxu0 %v5217
    %v5489 = vpop.f32.mrf.mxu0
    %v5490 = vadd.f32 %v5252, %v5489
    %v5491 = vpop.f32.mrf.mxu0
    %v5492 = vadd.f32 %v5253, %v5491
    %v5493 = vpop.f32.mrf.mxu0
    %v5494 = vpop.f32.mrf.mxu0
    %5495 = vdwg.mxu0
    %v5496 = vmul.f32 %v5449, 0.5
    %v5497 = vtanh.pop %v5496
    %v5498 = vmul.f32 %v5497, 0.5
    %v5499 = vadd.f32 %v5498, 0.5
    %v5500 = vmul.f32 %v5451, 0.5
    %v5501 = vtanh.pop %v5500
    %v5502 = vmul.f32 %v5501, 0.5
    %v5503 = vadd.f32 %v5502, 0.5
    %v5504 = vtanh.pop %v5490
    %v5505 = vmul.f32 %v5492, 0.5
    %v5506 = vtanh.pop %v5505
    %v5507 = vmul.f32 %v5506, 0.5
    %v5508 = vadd.f32 %v5507, 0.5
    %v5509 = vmul.f32 %v5503, %v5213
    %v5510 = vmul.f32 %v5499, %v5504
    %v5511 = vadd.f32 %v5509, %v5510
    %v5512 = vtanh.pop %v5511
    %v5513 = vmul.f32 %v5508, %v5512
    %5514 = vst [vmem:[%s1649] sm:$0xff] %v5513
    %v5515 = vpack.c.bf16 %v5513, %v5513
    %v5516 = vld [vmem:[#allocation7] sm:$0xff]
    %v5517 = vld [vmem:[#allocation7 + $0x8] sm:$0xff]
    %v5518 = vld [vmem:[#allocation7 + $0x10] sm:$0xff]
    %v5519 = vld [vmem:[#allocation7 + $0x18] sm:$0xff]
    %v5520 = vld [vmem:[#allocation7 + $0x20] sm:$0xff]
    %v5521 = vld [vmem:[#allocation7 + $0x28] sm:$0xff]
    %v5522 = vld [vmem:[#allocation7 + $0x30] sm:$0xff]
    %v5523 = vld [vmem:[#allocation7 + $0x38] sm:$0xff]
    %v5524 = vld [vmem:[#allocation7 + $0x40] sm:$0xff]
    %v5525 = vld [vmem:[#allocation7 + $0x48] sm:$0xff]
    %v5526 = vld [vmem:[#allocation7 + $0x50] sm:$0xff]
    %v5527 = vld [vmem:[#allocation7 + $0x58] sm:$0xff]
    %v5528 = vld [vmem:[#allocation7 + $0x60] sm:$0xff]
    %v5529 = vld [vmem:[#allocation7 + $0x68] sm:$0xff]
    %v5530 = vld [vmem:[#allocation7 + $0x70] sm:$0xff]
    %v5531 = vld [vmem:[#allocation7 + $0x78] sm:$0xff]
    %v5532 = vld [vmem:[#allocation7 + $0x80] sm:$0xff]
    %v5533 = vld [vmem:[#allocation7 + $0x88] sm:$0xff]
    %v5534 = vld [vmem:[#allocation7 + $0x90] sm:$0xff]
    %v5535 = vld [vmem:[#allocation7 + $0x98] sm:$0xff]
    %v5536 = vld [vmem:[#allocation7 + $0xa0] sm:$0xff]
    %v5537 = vld [vmem:[#allocation7 + $0xa8] sm:$0xff]
    %v5538 = vld [vmem:[#allocation7 + $0xb0] sm:$0xff]
    %v5539 = vld [vmem:[#allocation7 + $0xb8] sm:$0xff]
    %v5540 = vld [vmem:[#allocation7 + $0xc0] sm:$0xff]
    %v5541 = vld [vmem:[#allocation7 + $0xc8] sm:$0xff]
    %v5542 = vld [vmem:[#allocation7 + $0xd0] sm:$0xff]
    %v5543 = vld [vmem:[#allocation7 + $0xd8] sm:$0xff]
    %v5544 = vld [vmem:[#allocation7 + $0xe0] sm:$0xff]
    %v5545 = vld [vmem:[#allocation7 + $0xe8] sm:$0xff]
    %v5546 = vld [vmem:[#allocation7 + $0xf0] sm:$0xff]
    %v5547 = vld [vmem:[#allocation7 + $0xf8] sm:$0xff]
    %v5548 = vld [vmem:[%s1688] sm:$0xff]
    %v5549 = vld [vmem:[%s1688 + $0x8] sm:$0xff]
    %v5550 = vld [vmem:[%s1688 + $0x10] sm:$0xff]
    %v5551 = vld [vmem:[%s1688 + $0x18] sm:$0xff]
    %v5584 = vunpack.c.l.b16 %v5516
    %v5585 = vunpack.c.h.b16 %v5516
    %v5586 = vunpack.c.l.b16 %v5517
    %v5587 = vunpack.c.h.b16 %v5517
    %v5588 = vunpack.c.l.b16 %v5518
    %v5589 = vunpack.c.h.b16 %v5518
    %v5590 = vunpack.c.l.b16 %v5519
    %v5591 = vunpack.c.h.b16 %v5519
    %v5592 = vunpack.c.l.b16 %v5520
    %v5593 = vunpack.c.h.b16 %v5520
    %v5594 = vunpack.c.l.b16 %v5521
    %v5595 = vunpack.c.h.b16 %v5521
    %v5596 = vunpack.c.l.b16 %v5522
    %v5597 = vunpack.c.h.b16 %v5522
    %v5598 = vunpack.c.l.b16 %v5523
    %v5599 = vunpack.c.h.b16 %v5523
    %v5600 = vunpack.c.l.b16 %v5524
    %v5601 = vunpack.c.h.b16 %v5524
    %v5602 = vunpack.c.l.b16 %v5525
    %v5603 = vunpack.c.h.b16 %v5525
    %v5604 = vunpack.c.l.b16 %v5526
    %v5605 = vunpack.c.h.b16 %v5526
    %v5606 = vunpack.c.l.b16 %v5527
    %v5607 = vunpack.c.h.b16 %v5527
    %v5608 = vunpack.c.l.b16 %v5528
    %v5609 = vunpack.c.h.b16 %v5528
    %v5610 = vunpack.c.l.b16 %v5529
    %v5611 = vunpack.c.h.b16 %v5529
    %v5612 = vunpack.c.l.b16 %v5530
    %v5613 = vunpack.c.h.b16 %v5530
    %v5614 = vunpack.c.l.b16 %v5531
    %v5615 = vunpack.c.h.b16 %v5531
    %v5616 = vunpack.c.l.b16 %v5532
    %v5617 = vunpack.c.h.b16 %v5532
    %v5618 = vunpack.c.l.b16 %v5533
    %v5619 = vunpack.c.h.b16 %v5533
    %v5620 = vunpack.c.l.b16 %v5534
    %v5621 = vunpack.c.h.b16 %v5534
    %v5622 = vunpack.c.l.b16 %v5535
    %v5623 = vunpack.c.h.b16 %v5535
    %v5624 = vunpack.c.l.b16 %v5536
    %v5625 = vunpack.c.h.b16 %v5536
    %v5626 = vunpack.c.l.b16 %v5537
    %v5627 = vunpack.c.h.b16 %v5537
    %v5628 = vunpack.c.l.b16 %v5538
    %v5629 = vunpack.c.h.b16 %v5538
    %v5630 = vunpack.c.l.b16 %v5539
    %v5631 = vunpack.c.h.b16 %v5539
    %v5632 = vunpack.c.l.b16 %v5540
    %v5633 = vunpack.c.h.b16 %v5540
    %v5634 = vunpack.c.l.b16 %v5541
    %v5635 = vunpack.c.h.b16 %v5541
    %v5636 = vunpack.c.l.b16 %v5542
    %v5637 = vunpack.c.h.b16 %v5542
    %v5638 = vunpack.c.l.b16 %v5543
    %v5639 = vunpack.c.h.b16 %v5543
    %v5640 = vunpack.c.l.b16 %v5544
    %v5641 = vunpack.c.h.b16 %v5544
    %v5642 = vunpack.c.l.b16 %v5545
    %v5643 = vunpack.c.h.b16 %v5545
    %v5644 = vunpack.c.l.b16 %v5546
    %v5645 = vunpack.c.h.b16 %v5546
    %v5646 = vunpack.c.l.b16 %v5547
    %v5647 = vunpack.c.h.b16 %v5547
    %v5648 = vpack.c.b16 %v5588, %v5584
    %v5649 = vpack.c.b16 %v5589, %v5585
    %v5650 = vpack.c.b16 %v5590, %v5586
    %v5651 = vpack.c.b16 %v5591, %v5587
    %v5652 = vpack.c.b16 %v5596, %v5592
    %v5653 = vpack.c.b16 %v5597, %v5593
    %v5654 = vpack.c.b16 %v5598, %v5594
    %v5655 = vpack.c.b16 %v5599, %v5595
    %v5656 = vpack.c.b16 %v5604, %v5600
    %v5657 = vpack.c.b16 %v5605, %v5601
    %v5658 = vpack.c.b16 %v5606, %v5602
    %v5659 = vpack.c.b16 %v5607, %v5603
    %v5660 = vpack.c.b16 %v5612, %v5608
    %v5661 = vpack.c.b16 %v5613, %v5609
    %v5662 = vpack.c.b16 %v5614, %v5610
    %v5663 = vpack.c.b16 %v5615, %v5611
    %v5664 = vpack.c.b16 %v5620, %v5616
    %v5665 = vpack.c.b16 %v5621, %v5617
    %v5666 = vpack.c.b16 %v5622, %v5618
    %v5667 = vpack.c.b16 %v5623, %v5619
    %v5668 = vpack.c.b16 %v5628, %v5624
    %v5669 = vpack.c.b16 %v5629, %v5625
    %v5670 = vpack.c.b16 %v5630, %v5626
    %v5671 = vpack.c.b16 %v5631, %v5627
    %v5672 = vpack.c.b16 %v5636, %v5632
    %v5673 = vpack.c.b16 %v5637, %v5633
    %v5674 = vpack.c.b16 %v5638, %v5634
    %v5675 = vpack.c.b16 %v5639, %v5635
    %v5676 = vpack.c.b16 %v5644, %v5640
    %v5677 = vpack.c.b16 %v5645, %v5641
    %v5678 = vpack.c.b16 %v5646, %v5642
    %v5679 = vpack.c.b16 %v5647, %v5643
    %5712 = vmatprep.subr.bf16.mxu0 %v5677
    %5713 = vmatpush1.bf16.msra.mxu0 %v5676
    %5714 = vmatprep.subr.bf16.mxu0 %v5673
    %5715 = vmatpush1.bf16.msra.mxu0 %v5672
    %5716 = vmatprep.subr.bf16.mxu0 %v5669
    %5717 = vmatpush1.bf16.msra.mxu0 %v5668
    %5718 = vmatprep.subr.bf16.mxu0 %v5665
    %5719 = vmatpush1.bf16.msra.mxu0 %v5664
    %5720 = vmatprep.subr.bf16.mxu0 %v5661
    %5721 = vmatpush1.bf16.msra.mxu0 %v5660
    %5722 = vmatprep.subr.bf16.mxu0 %v5657
    %5723 = vmatpush1.bf16.msra.mxu0 %v5656
    %5724 = vmatprep.subr.bf16.mxu0 %v5653
    %5725 = vmatpush1.bf16.msra.mxu0 %v5652
    %5726 = vmatprep.subr.bf16.mxu0 %v5649
    %5727 = vmatpush1.bf16.msra.mxu0 %v5648
    %5728 = vmatprep.subr.bf16.mxu0 0
    %5729 = vmatpush2.bf16.msra.mxu0 0
    %5730 = vmatprep.subr.bf16.mxu0 0
    %5731 = vmatpush2.bf16.msra.mxu0 0
    %5732 = vmatprep.subr.bf16.mxu0 0
    %5733 = vmatpush2.bf16.msra.mxu0 0
    %5734 = vmatprep.subr.bf16.mxu0 0
    %5735 = vmatpush2.bf16.msra.mxu0 0
    %5736 = vmatprep.subr.bf16.mxu0 0
    %5737 = vmatpush2.bf16.msra.mxu0 0
    %5738 = vmatprep.subr.bf16.mxu0 0
    %5739 = vmatpush2.bf16.msra.mxu0 0
    %5740 = vmatprep.subr.bf16.mxu0 0
    %5741 = vmatpush2.bf16.msra.mxu0 0
    %5742 = vmatprep.subr.bf16.mxu0 0
    %5743 = vmatpush2.bf16.msra.mxu0 0
    %5744 = vmatprep.mubr.bf16.mxu0 0
    %5745 = vmatmul.mubr.bf16.gmra.mxu0 %v5515
    %v5746 = vpop.f32.mrf.mxu0
    %v5747 = vadd.f32 %v5548, %v5746
    %v5748 = vpop.f32.mrf.mxu0
    %v5749 = vadd.f32 %v5549, %v5748
    %v5750 = vpop.f32.mrf.mxu0
    %v5751 = vpop.f32.mrf.mxu0
    %5752 = vdwg.mxu0
    %5753 = vmatprep.subr.bf16.mxu0 %v5679
    %5754 = vmatpush1.bf16.msra.mxu0 %v5678
    %5755 = vmatprep.subr.bf16.mxu0 %v5675
    %5756 = vmatpush1.bf16.msra.mxu0 %v5674
    %5757 = vmatprep.subr.bf16.mxu0 %v5671
    %5758 = vmatpush1.bf16.msra.mxu0 %v5670
    %5759 = vmatprep.subr.bf16.mxu0 %v5667
    %5760 = vmatpush1.bf16.msra.mxu0 %v5666
    %5761 = vmatprep.subr.bf16.mxu0 %v5663
    %5762 = vmatpush1.bf16.msra.mxu0 %v5662
    %5763 = vmatprep.subr.bf16.mxu0 %v5659
    %5764 = vmatpush1.bf16.msra.mxu0 %v5658
    %5765 = vmatprep.subr.bf16.mxu0 %v5655
    %5766 = vmatpush1.bf16.msra.mxu0 %v5654
    %5767 = vmatprep.subr.bf16.mxu0 %v5651
    %5768 = vmatpush1.bf16.msra.mxu0 %v5650
    %5769 = vmatprep.subr.bf16.mxu0 0
    %5770 = vmatpush2.bf16.msra.mxu0 0
    %5771 = vmatprep.subr.bf16.mxu0 0
    %5772 = vmatpush2.bf16.msra.mxu0 0
    %5773 = vmatprep.subr.bf16.mxu0 0
    %5774 = vmatpush2.bf16.msra.mxu0 0
    %5775 = vmatprep.subr.bf16.mxu0 0
    %5776 = vmatpush2.bf16.msra.mxu0 0
    %5777 = vmatprep.subr.bf16.mxu0 0
    %5778 = vmatpush2.bf16.msra.mxu0 0
    %5779 = vmatprep.subr.bf16.mxu0 0
    %5780 = vmatpush2.bf16.msra.mxu0 0
    %5781 = vmatprep.subr.bf16.mxu0 0
    %5782 = vmatpush2.bf16.msra.mxu0 0
    %5783 = vmatprep.subr.bf16.mxu0 0
    %5784 = vmatpush2.bf16.msra.mxu0 0
    %5785 = vmatprep.mubr.bf16.mxu0 0
    %5786 = vmatmul.mubr.bf16.gmra.mxu0 %v5515
    %v5787 = vpop.f32.mrf.mxu0
    %v5788 = vadd.f32 %v5550, %v5787
    %v5789 = vpop.f32.mrf.mxu0
    %v5790 = vadd.f32 %v5551, %v5789
    %v5791 = vpop.f32.mrf.mxu0
    %v5792 = vpop.f32.mrf.mxu0
    %5793 = vdwg.mxu0
    %v5794 = vmul.f32 %v5747, 0.5
    %v5795 = vtanh.pop %v5794
    %v5796 = vmul.f32 %v5795, 0.5
    %v5797 = vadd.f32 %v5796, 0.5
    %v5798 = vmul.f32 %v5749, 0.5
    %v5799 = vtanh.pop %v5798
    %v5800 = vmul.f32 %v5799, 0.5
    %v5801 = vadd.f32 %v5800, 0.5
    %v5802 = vtanh.pop %v5788
    %v5803 = vmul.f32 %v5790, 0.5
    %v5804 = vtanh.pop %v5803
    %v5805 = vmul.f32 %v5804, 0.5
    %v5806 = vadd.f32 %v5805, 0.5
    %v5807 = vmul.f32 %v5801, %v5511
    %v5808 = vmul.f32 %v5797, %v5802
    %v5809 = vadd.f32 %v5807, %v5808
    %v5810 = vtanh.pop %v5809
    %v5811 = vmul.f32 %v5806, %v5810
    %5812 = vst [vmem:[%s1953] sm:$0xff] %v5811
    %v5813 = vpack.c.bf16 %v5811, %v5811
    %v5814 = vld [vmem:[#allocation7] sm:$0xff]
    %v5815 = vld [vmem:[#allocation7 + $0x8] sm:$0xff]
    %v5816 = vld [vmem:[#allocation7 + $0x10] sm:$0xff]
    %v5817 = vld [vmem:[#allocation7 + $0x18] sm:$0xff]
    %v5818 = vld [vmem:[#allocation7 + $0x20] sm:$0xff]
    %v5819 = vld [vmem:[#allocation7 + $0x28] sm:$0xff]
    %v5820 = vld [vmem:[#allocation7 + $0x30] sm:$0xff]
    %v5821 = vld [vmem:[#allocation7 + $0x38] sm:$0xff]
    %v5822 = vld [vmem:[#allocation7 + $0x40] sm:$0xff]
    %v5823 = vld [vmem:[#allocation7 + $0x48] sm:$0xff]
    %v5824 = vld [vmem:[#allocation7 + $0x50] sm:$0xff]
    %v5825 = vld [vmem:[#allocation7 + $0x58] sm:$0xff]
    %v5826 = vld [vmem:[#allocation7 + $0x60] sm:$0xff]
    %v5827 = vld [vmem:[#allocation7 + $0x68] sm:$0xff]
    %v5828 = vld [vmem:[#allocation7 + $0x70] sm:$0xff]
    %v5829 = vld [vmem:[#allocation7 + $0x78] sm:$0xff]
    %v5830 = vld [vmem:[#allocation7 + $0x80] sm:$0xff]
    %v5831 = vld [vmem:[#allocation7 + $0x88] sm:$0xff]
    %v5832 = vld [vmem:[#allocation7 + $0x90] sm:$0xff]
    %v5833 = vld [vmem:[#allocation7 + $0x98] sm:$0xff]
    %v5834 = vld [vmem:[#allocation7 + $0xa0] sm:$0xff]
    %v5835 = vld [vmem:[#allocation7 + $0xa8] sm:$0xff]
    %v5836 = vld [vmem:[#allocation7 + $0xb0] sm:$0xff]
    %v5837 = vld [vmem:[#allocation7 + $0xb8] sm:$0xff]
    %v5838 = vld [vmem:[#allocation7 + $0xc0] sm:$0xff]
    %v5839 = vld [vmem:[#allocation7 + $0xc8] sm:$0xff]
    %v5840 = vld [vmem:[#allocation7 + $0xd0] sm:$0xff]
    %v5841 = vld [vmem:[#allocation7 + $0xd8] sm:$0xff]
    %v5842 = vld [vmem:[#allocation7 + $0xe0] sm:$0xff]
    %v5843 = vld [vmem:[#allocation7 + $0xe8] sm:$0xff]
    %v5844 = vld [vmem:[#allocation7 + $0xf0] sm:$0xff]
    %v5845 = vld [vmem:[#allocation7 + $0xf8] sm:$0xff]
    %v5846 = vld [vmem:[%s1992] sm:$0xff]
    %v5847 = vld [vmem:[%s1992 + $0x8] sm:$0xff]
    %v5848 = vld [vmem:[%s1992 + $0x10] sm:$0xff]
    %v5849 = vld [vmem:[%s1992 + $0x18] sm:$0xff]
    %v5882 = vunpack.c.l.b16 %v5814
    %v5883 = vunpack.c.h.b16 %v5814
    %v5884 = vunpack.c.l.b16 %v5815
    %v5885 = vunpack.c.h.b16 %v5815
    %v5886 = vunpack.c.l.b16 %v5816
    %v5887 = vunpack.c.h.b16 %v5816
    %v5888 = vunpack.c.l.b16 %v5817
    %v5889 = vunpack.c.h.b16 %v5817
    %v5890 = vunpack.c.l.b16 %v5818
    %v5891 = vunpack.c.h.b16 %v5818
    %v5892 = vunpack.c.l.b16 %v5819
    %v5893 = vunpack.c.h.b16 %v5819
    %v5894 = vunpack.c.l.b16 %v5820
    %v5895 = vunpack.c.h.b16 %v5820
    %v5896 = vunpack.c.l.b16 %v5821
    %v5897 = vunpack.c.h.b16 %v5821
    %v5898 = vunpack.c.l.b16 %v5822
    %v5899 = vunpack.c.h.b16 %v5822
    %v5900 = vunpack.c.l.b16 %v5823
    %v5901 = vunpack.c.h.b16 %v5823
    %v5902 = vunpack.c.l.b16 %v5824
    %v5903 = vunpack.c.h.b16 %v5824
    %v5904 = vunpack.c.l.b16 %v5825
    %v5905 = vunpack.c.h.b16 %v5825
    %v5906 = vunpack.c.l.b16 %v5826
    %v5907 = vunpack.c.h.b16 %v5826
    %v5908 = vunpack.c.l.b16 %v5827
    %v5909 = vunpack.c.h.b16 %v5827
    %v5910 = vunpack.c.l.b16 %v5828
    %v5911 = vunpack.c.h.b16 %v5828
    %v5912 = vunpack.c.l.b16 %v5829
    %v5913 = vunpack.c.h.b16 %v5829
    %v5914 = vunpack.c.l.b16 %v5830
    %v5915 = vunpack.c.h.b16 %v5830
    %v5916 = vunpack.c.l.b16 %v5831
    %v5917 = vunpack.c.h.b16 %v5831
    %v5918 = vunpack.c.l.b16 %v5832
    %v5919 = vunpack.c.h.b16 %v5832
    %v5920 = vunpack.c.l.b16 %v5833
    %v5921 = vunpack.c.h.b16 %v5833
    %v5922 = vunpack.c.l.b16 %v5834
    %v5923 = vunpack.c.h.b16 %v5834
    %v5924 = vunpack.c.l.b16 %v5835
    %v5925 = vunpack.c.h.b16 %v5835
    %v5926 = vunpack.c.l.b16 %v5836
    %v5927 = vunpack.c.h.b16 %v5836
    %v5928 = vunpack.c.l.b16 %v5837
    %v5929 = vunpack.c.h.b16 %v5837
    %v5930 = vunpack.c.l.b16 %v5838
    %v5931 = vunpack.c.h.b16 %v5838
    %v5932 = vunpack.c.l.b16 %v5839
    %v5933 = vunpack.c.h.b16 %v5839
    %v5934 = vunpack.c.l.b16 %v5840
    %v5935 = vunpack.c.h.b16 %v5840
    %v5936 = vunpack.c.l.b16 %v5841
    %v5937 = vunpack.c.h.b16 %v5841
    %v5938 = vunpack.c.l.b16 %v5842
    %v5939 = vunpack.c.h.b16 %v5842
    %v5940 = vunpack.c.l.b16 %v5843
    %v5941 = vunpack.c.h.b16 %v5843
    %v5942 = vunpack.c.l.b16 %v5844
    %v5943 = vunpack.c.h.b16 %v5844
    %v5944 = vunpack.c.l.b16 %v5845
    %v5945 = vunpack.c.h.b16 %v5845
    %v5946 = vpack.c.b16 %v5886, %v5882
    %v5947 = vpack.c.b16 %v5887, %v5883
    %v5948 = vpack.c.b16 %v5888, %v5884
    %v5949 = vpack.c.b16 %v5889, %v5885
    %v5950 = vpack.c.b16 %v5894, %v5890
    %v5951 = vpack.c.b16 %v5895, %v5891
    %v5952 = vpack.c.b16 %v5896, %v5892
    %v5953 = vpack.c.b16 %v5897, %v5893
    %v5954 = vpack.c.b16 %v5902, %v5898
    %v5955 = vpack.c.b16 %v5903, %v5899
    %v5956 = vpack.c.b16 %v5904, %v5900
    %v5957 = vpack.c.b16 %v5905, %v5901
    %v5958 = vpack.c.b16 %v5910, %v5906
    %v5959 = vpack.c.b16 %v5911, %v5907
    %v5960 = vpack.c.b16 %v5912, %v5908
    %v5961 = vpack.c.b16 %v5913, %v5909
    %v5962 = vpack.c.b16 %v5918, %v5914
    %v5963 = vpack.c.b16 %v5919, %v5915
    %v5964 = vpack.c.b16 %v5920, %v5916
    %v5965 = vpack.c.b16 %v5921, %v5917
    %v5966 = vpack.c.b16 %v5926, %v5922
    %v5967 = vpack.c.b16 %v5927, %v5923
    %v5968 = vpack.c.b16 %v5928, %v5924
    %v5969 = vpack.c.b16 %v5929, %v5925
    %v5970 = vpack.c.b16 %v5934, %v5930
    %v5971 = vpack.c.b16 %v5935, %v5931
    %v5972 = vpack.c.b16 %v5936, %v5932
    %v5973 = vpack.c.b16 %v5937, %v5933
    %v5974 = vpack.c.b16 %v5942, %v5938
    %v5975 = vpack.c.b16 %v5943, %v5939
    %v5976 = vpack.c.b16 %v5944, %v5940
    %v5977 = vpack.c.b16 %v5945, %v5941
    %6010 = vmatprep.subr.bf16.mxu0 %v5975
    %6011 = vmatpush1.bf16.msra.mxu0 %v5974
    %6012 = vmatprep.subr.bf16.mxu0 %v5971
    %6013 = vmatpush1.bf16.msra.mxu0 %v5970
    %6014 = vmatprep.subr.bf16.mxu0 %v5967
    %6015 = vmatpush1.bf16.msra.mxu0 %v5966
    %6016 = vmatprep.subr.bf16.mxu0 %v5963
    %6017 = vmatpush1.bf16.msra.mxu0 %v5962
    %6018 = vmatprep.subr.bf16.mxu0 %v5959
    %6019 = vmatpush1.bf16.msra.mxu0 %v5958
    %6020 = vmatprep.subr.bf16.mxu0 %v5955
    %6021 = vmatpush1.bf16.msra.mxu0 %v5954
    %6022 = vmatprep.subr.bf16.mxu0 %v5951
    %6023 = vmatpush1.bf16.msra.mxu0 %v5950
    %6024 = vmatprep.subr.bf16.mxu0 %v5947
    %6025 = vmatpush1.bf16.msra.mxu0 %v5946
    %6026 = vmatprep.subr.bf16.mxu0 0
    %6027 = vmatpush2.bf16.msra.mxu0 0
    %6028 = vmatprep.subr.bf16.mxu0 0
    %6029 = vmatpush2.bf16.msra.mxu0 0
    %6030 = vmatprep.subr.bf16.mxu0 0
    %6031 = vmatpush2.bf16.msra.mxu0 0
    %6032 = vmatprep.subr.bf16.mxu0 0
    %6033 = vmatpush2.bf16.msra.mxu0 0
    %6034 = vmatprep.subr.bf16.mxu0 0
    %6035 = vmatpush2.bf16.msra.mxu0 0
    %6036 = vmatprep.subr.bf16.mxu0 0
    %6037 = vmatpush2.bf16.msra.mxu0 0
    %6038 = vmatprep.subr.bf16.mxu0 0
    %6039 = vmatpush2.bf16.msra.mxu0 0
    %6040 = vmatprep.subr.bf16.mxu0 0
    %6041 = vmatpush2.bf16.msra.mxu0 0
    %6042 = vmatprep.mubr.bf16.mxu0 0
    %6043 = vmatmul.mubr.bf16.gmra.mxu0 %v5813
    %v6044 = vpop.f32.mrf.mxu0
    %v6045 = vadd.f32 %v5846, %v6044
    %v6046 = vpop.f32.mrf.mxu0
    %v6047 = vadd.f32 %v5847, %v6046
    %v6048 = vpop.f32.mrf.mxu0
    %v6049 = vpop.f32.mrf.mxu0
    %6050 = vdwg.mxu0
    %6051 = vmatprep.subr.bf16.mxu0 %v5977
    %6052 = vmatpush1.bf16.msra.mxu0 %v5976
    %6053 = vmatprep.subr.bf16.mxu0 %v5973
    %6054 = vmatpush1.bf16.msra.mxu0 %v5972
    %6055 = vmatprep.subr.bf16.mxu0 %v5969
    %6056 = vmatpush1.bf16.msra.mxu0 %v5968
    %6057 = vmatprep.subr.bf16.mxu0 %v5965
    %6058 = vmatpush1.bf16.msra.mxu0 %v5964
    %6059 = vmatprep.subr.bf16.mxu0 %v5961
    %6060 = vmatpush1.bf16.msra.mxu0 %v5960
    %6061 = vmatprep.subr.bf16.mxu0 %v5957
    %6062 = vmatpush1.bf16.msra.mxu0 %v5956
    %6063 = vmatprep.subr.bf16.mxu0 %v5953
    %6064 = vmatpush1.bf16.msra.mxu0 %v5952
    %6065 = vmatprep.subr.bf16.mxu0 %v5949
    %6066 = vmatpush1.bf16.msra.mxu0 %v5948
    %6067 = vmatprep.subr.bf16.mxu0 0
    %6068 = vmatpush2.bf16.msra.mxu0 0
    %6069 = vmatprep.subr.bf16.mxu0 0
    %6070 = vmatpush2.bf16.msra.mxu0 0
    %6071 = vmatprep.subr.bf16.mxu0 0
    %6072 = vmatpush2.bf16.msra.mxu0 0
    %6073 = vmatprep.subr.bf16.mxu0 0
    %6074 = vmatpush2.bf16.msra.mxu0 0
    %6075 = vmatprep.subr.bf16.mxu0 0
    %6076 = vmatpush2.bf16.msra.mxu0 0
    %6077 = vmatprep.subr.bf16.mxu0 0
    %6078 = vmatpush2.bf16.msra.mxu0 0
    %6079 = vmatprep.subr.bf16.mxu0 0
    %6080 = vmatpush2.bf16.msra.mxu0 0
    %6081 = vmatprep.subr.bf16.mxu0 0
    %6082 = vmatpush2.bf16.msra.mxu0 0
    %6083 = vmatprep.mubr.bf16.mxu0 0
    %6084 = vmatmul.mubr.bf16.gmra.mxu0 %v5813
    %v6085 = vpop.f32.mrf.mxu0
    %v6086 = vadd.f32 %v5848, %v6085
    %v6087 = vpop.f32.mrf.mxu0
    %v6088 = vadd.f32 %v5849, %v6087
    %v6089 = vpop.f32.mrf.mxu0
    %v6090 = vpop.f32.mrf.mxu0
    %6091 = vdwg.mxu0
    %v6092 = vmul.f32 %v6045, 0.5
    %v6093 = vtanh.pop %v6092
    %v6094 = vmul.f32 %v6093, 0.5
    %v6095 = vadd.f32 %v6094, 0.5
    %v6096 = vmul.f32 %v6047, 0.5
    %v6097 = vtanh.pop %v6096
    %v6098 = vmul.f32 %v6097, 0.5
    %v6099 = vadd.f32 %v6098, 0.5
    %v6100 = vtanh.pop %v6086
    %v6101 = vmul.f32 %v6088, 0.5
    %v6102 = vtanh.pop %v6101
    %v6103 = vmul.f32 %v6102, 0.5
    %v6104 = vadd.f32 %v6103, 0.5
    %v6105 = vmul.f32 %v6099, %v5809
    %v6106 = vmul.f32 %v6095, %v6100
    %v6107 = vadd.f32 %v6105, %v6106
    %v6108 = vtanh.pop %v6107
    %v6109 = vmul.f32 %v6104, %v6108
    %6110 = vst [vmem:[%s2257] sm:$0xff] %v6109
    %v6111 = vpack.c.bf16 %v6109, %v6109
    %v6112 = vld [vmem:[#allocation7] sm:$0xff]
    %v6113 = vld [vmem:[#allocation7 + $0x8] sm:$0xff]
    %v6114 = vld [vmem:[#allocation7 + $0x10] sm:$0xff]
    %v6115 = vld [vmem:[#allocation7 + $0x18] sm:$0xff]
    %v6116 = vld [vmem:[#allocation7 + $0x20] sm:$0xff]
    %v6117 = vld [vmem:[#allocation7 + $0x28] sm:$0xff]
    %v6118 = vld [vmem:[#allocation7 + $0x30] sm:$0xff]
    %v6119 = vld [vmem:[#allocation7 + $0x38] sm:$0xff]
    %v6120 = vld [vmem:[#allocation7 + $0x40] sm:$0xff]
    %v6121 = vld [vmem:[#allocation7 + $0x48] sm:$0xff]
    %v6122 = vld [vmem:[#allocation7 + $0x50] sm:$0xff]
    %v6123 = vld [vmem:[#allocation7 + $0x58] sm:$0xff]
    %v6124 = vld [vmem:[#allocation7 + $0x60] sm:$0xff]
    %v6125 = vld [vmem:[#allocation7 + $0x68] sm:$0xff]
    %v6126 = vld [vmem:[#allocation7 + $0x70] sm:$0xff]
    %v6127 = vld [vmem:[#allocation7 + $0x78] sm:$0xff]
    %v6128 = vld [vmem:[#allocation7 + $0x80] sm:$0xff]
    %v6129 = vld [vmem:[#allocation7 + $0x88] sm:$0xff]
    %v6130 = vld [vmem:[#allocation7 + $0x90] sm:$0xff]
    %v6131 = vld [vmem:[#allocation7 + $0x98] sm:$0xff]
    %v6132 = vld [vmem:[#allocation7 + $0xa0] sm:$0xff]
    %v6133 = vld [vmem:[#allocation7 + $0xa8] sm:$0xff]
    %v6134 = vld [vmem:[#allocation7 + $0xb0] sm:$0xff]
    %v6135 = vld [vmem:[#allocation7 + $0xb8] sm:$0xff]
    %v6136 = vld [vmem:[#allocation7 + $0xc0] sm:$0xff]
    %v6137 = vld [vmem:[#allocation7 + $0xc8] sm:$0xff]
    %v6138 = vld [vmem:[#allocation7 + $0xd0] sm:$0xff]
    %v6139 = vld [vmem:[#allocation7 + $0xd8] sm:$0xff]
    %v6140 = vld [vmem:[#allocation7 + $0xe0] sm:$0xff]
    %v6141 = vld [vmem:[#allocation7 + $0xe8] sm:$0xff]
    %v6142 = vld [vmem:[#allocation7 + $0xf0] sm:$0xff]
    %v6143 = vld [vmem:[#allocation7 + $0xf8] sm:$0xff]
    %v6144 = vld [vmem:[%s2296] sm:$0xff]
    %v6145 = vld [vmem:[%s2296 + $0x8] sm:$0xff]
    %v6146 = vld [vmem:[%s2296 + $0x10] sm:$0xff]
    %v6147 = vld [vmem:[%s2296 + $0x18] sm:$0xff]
    %v6180 = vunpack.c.l.b16 %v6112
    %v6181 = vunpack.c.h.b16 %v6112
    %v6182 = vunpack.c.l.b16 %v6113
    %v6183 = vunpack.c.h.b16 %v6113
    %v6184 = vunpack.c.l.b16 %v6114
    %v6185 = vunpack.c.h.b16 %v6114
    %v6186 = vunpack.c.l.b16 %v6115
    %v6187 = vunpack.c.h.b16 %v6115
    %v6188 = vunpack.c.l.b16 %v6116
    %v6189 = vunpack.c.h.b16 %v6116
    %v6190 = vunpack.c.l.b16 %v6117
    %v6191 = vunpack.c.h.b16 %v6117
    %v6192 = vunpack.c.l.b16 %v6118
    %v6193 = vunpack.c.h.b16 %v6118
    %v6194 = vunpack.c.l.b16 %v6119
    %v6195 = vunpack.c.h.b16 %v6119
    %v6196 = vunpack.c.l.b16 %v6120
    %v6197 = vunpack.c.h.b16 %v6120
    %v6198 = vunpack.c.l.b16 %v6121
    %v6199 = vunpack.c.h.b16 %v6121
    %v6200 = vunpack.c.l.b16 %v6122
    %v6201 = vunpack.c.h.b16 %v6122
    %v6202 = vunpack.c.l.b16 %v6123
    %v6203 = vunpack.c.h.b16 %v6123
    %v6204 = vunpack.c.l.b16 %v6124
    %v6205 = vunpack.c.h.b16 %v6124
    %v6206 = vunpack.c.l.b16 %v6125
    %v6207 = vunpack.c.h.b16 %v6125
    %v6208 = vunpack.c.l.b16 %v6126
    %v6209 = vunpack.c.h.b16 %v6126
    %v6210 = vunpack.c.l.b16 %v6127
    %v6211 = vunpack.c.h.b16 %v6127
    %v6212 = vunpack.c.l.b16 %v6128
    %v6213 = vunpack.c.h.b16 %v6128
    %v6214 = vunpack.c.l.b16 %v6129
    %v6215 = vunpack.c.h.b16 %v6129
    %v6216 = vunpack.c.l.b16 %v6130
    %v6217 = vunpack.c.h.b16 %v6130
    %v6218 = vunpack.c.l.b16 %v6131
    %v6219 = vunpack.c.h.b16 %v6131
    %v6220 = vunpack.c.l.b16 %v6132
    %v6221 = vunpack.c.h.b16 %v6132
    %v6222 = vunpack.c.l.b16 %v6133
    %v6223 = vunpack.c.h.b16 %v6133
    %v6224 = vunpack.c.l.b16 %v6134
    %v6225 = vunpack.c.h.b16 %v6134
    %v6226 = vunpack.c.l.b16 %v6135
    %v6227 = vunpack.c.h.b16 %v6135
    %v6228 = vunpack.c.l.b16 %v6136
    %v6229 = vunpack.c.h.b16 %v6136
    %v6230 = vunpack.c.l.b16 %v6137
    %v6231 = vunpack.c.h.b16 %v6137
    %v6232 = vunpack.c.l.b16 %v6138
    %v6233 = vunpack.c.h.b16 %v6138
    %v6234 = vunpack.c.l.b16 %v6139
    %v6235 = vunpack.c.h.b16 %v6139
    %v6236 = vunpack.c.l.b16 %v6140
    %v6237 = vunpack.c.h.b16 %v6140
    %v6238 = vunpack.c.l.b16 %v6141
    %v6239 = vunpack.c.h.b16 %v6141
    %v6240 = vunpack.c.l.b16 %v6142
    %v6241 = vunpack.c.h.b16 %v6142
    %v6242 = vunpack.c.l.b16 %v6143
    %v6243 = vunpack.c.h.b16 %v6143
    %v6244 = vpack.c.b16 %v6184, %v6180
    %v6245 = vpack.c.b16 %v6185, %v6181
    %v6246 = vpack.c.b16 %v6186, %v6182
    %v6247 = vpack.c.b16 %v6187, %v6183
    %v6248 = vpack.c.b16 %v6192, %v6188
    %v6249 = vpack.c.b16 %v6193, %v6189
    %v6250 = vpack.c.b16 %v6194, %v6190
    %v6251 = vpack.c.b16 %v6195, %v6191
    %v6252 = vpack.c.b16 %v6200, %v6196
    %v6253 = vpack.c.b16 %v6201, %v6197
    %v6254 = vpack.c.b16 %v6202, %v6198
    %v6255 = vpack.c.b16 %v6203, %v6199
    %v6256 = vpack.c.b16 %v6208, %v6204
    %v6257 = vpack.c.b16 %v6209, %v6205
    %v6258 = vpack.c.b16 %v6210, %v6206
    %v6259 = vpack.c.b16 %v6211, %v6207
    %v6260 = vpack.c.b16 %v6216, %v6212
    %v6261 = vpack.c.b16 %v6217, %v6213
    %v6262 = vpack.c.b16 %v6218, %v6214
    %v6263 = vpack.c.b16 %v6219, %v6215
    %v6264 = vpack.c.b16 %v6224, %v6220
    %v6265 = vpack.c.b16 %v6225, %v6221
    %v6266 = vpack.c.b16 %v6226, %v6222
    %v6267 = vpack.c.b16 %v6227, %v6223
    %v6268 = vpack.c.b16 %v6232, %v6228
    %v6269 = vpack.c.b16 %v6233, %v6229
    %v6270 = vpack.c.b16 %v6234, %v6230
    %v6271 = vpack.c.b16 %v6235, %v6231
    %v6272 = vpack.c.b16 %v6240, %v6236
    %v6273 = vpack.c.b16 %v6241, %v6237
    %v6274 = vpack.c.b16 %v6242, %v6238
    %v6275 = vpack.c.b16 %v6243, %v6239
    %6308 = vmatprep.subr.bf16.mxu0 %v6273
    %6309 = vmatpush1.bf16.msra.mxu0 %v6272
    %6310 = vmatprep.subr.bf16.mxu0 %v6269
    %6311 = vmatpush1.bf16.msra.mxu0 %v6268
    %6312 = vmatprep.subr.bf16.mxu0 %v6265
    %6313 = vmatpush1.bf16.msra.mxu0 %v6264
    %6314 = vmatprep.subr.bf16.mxu0 %v6261
    %6315 = vmatpush1.bf16.msra.mxu0 %v6260
    %6316 = vmatprep.subr.bf16.mxu0 %v6257
    %6317 = vmatpush1.bf16.msra.mxu0 %v6256
    %6318 = vmatprep.subr.bf16.mxu0 %v6253
    %6319 = vmatpush1.bf16.msra.mxu0 %v6252
    %6320 = vmatprep.subr.bf16.mxu0 %v6249
    %6321 = vmatpush1.bf16.msra.mxu0 %v6248
    %6322 = vmatprep.subr.bf16.mxu0 %v6245
    %6323 = vmatpush1.bf16.msra.mxu0 %v6244
    %6324 = vmatprep.subr.bf16.mxu0 0
    %6325 = vmatpush2.bf16.msra.mxu0 0
    %6326 = vmatprep.subr.bf16.mxu0 0
    %6327 = vmatpush2.bf16.msra.mxu0 0
    %6328 = vmatprep.subr.bf16.mxu0 0
    %6329 = vmatpush2.bf16.msra.mxu0 0
    %6330 = vmatprep.subr.bf16.mxu0 0
    %6331 = vmatpush2.bf16.msra.mxu0 0
    %6332 = vmatprep.subr.bf16.mxu0 0
    %6333 = vmatpush2.bf16.msra.mxu0 0
    %6334 = vmatprep.subr.bf16.mxu0 0
    %6335 = vmatpush2.bf16.msra.mxu0 0
    %6336 = vmatprep.subr.bf16.mxu0 0
    %6337 = vmatpush2.bf16.msra.mxu0 0
    %6338 = vmatprep.subr.bf16.mxu0 0
    %6339 = vmatpush2.bf16.msra.mxu0 0
    %6340 = vmatprep.mubr.bf16.mxu0 0
    %6341 = vmatmul.mubr.bf16.gmra.mxu0 %v6111
    %v6342 = vpop.f32.mrf.mxu0
    %v6343 = vadd.f32 %v6144, %v6342
    %v6344 = vpop.f32.mrf.mxu0
    %v6345 = vadd.f32 %v6145, %v6344
    %v6346 = vpop.f32.mrf.mxu0
    %v6347 = vpop.f32.mrf.mxu0
    %6348 = vdwg.mxu0
    %6349 = vmatprep.subr.bf16.mxu0 %v6275
    %6350 = vmatpush1.bf16.msra.mxu0 %v6274
    %6351 = vmatprep.subr.bf16.mxu0 %v6271
    %6352 = vmatpush1.bf16.msra.mxu0 %v6270
    %6353 = vmatprep.subr.bf16.mxu0 %v6267
    %6354 = vmatpush1.bf16.msra.mxu0 %v6266
    %6355 = vmatprep.subr.bf16.mxu0 %v6263
    %6356 = vmatpush1.bf16.msra.mxu0 %v6262
    %6357 = vmatprep.subr.bf16.mxu0 %v6259
    %6358 = vmatpush1.bf16.msra.mxu0 %v6258
    %6359 = vmatprep.subr.bf16.mxu0 %v6255
    %6360 = vmatpush1.bf16.msra.mxu0 %v6254
    %6361 = vmatprep.subr.bf16.mxu0 %v6251
    %6362 = vmatpush1.bf16.msra.mxu0 %v6250
    %6363 = vmatprep.subr.bf16.mxu0 %v6247
    %6364 = vmatpush1.bf16.msra.mxu0 %v6246
    %6365 = vmatprep.subr.bf16.mxu0 0
    %6366 = vmatpush2.bf16.msra.mxu0 0
    %6367 = vmatprep.subr.bf16.mxu0 0
    %6368 = vmatpush2.bf16.msra.mxu0 0
    %6369 = vmatprep.subr.bf16.mxu0 0
    %6370 = vmatpush2.bf16.msra.mxu0 0
    %6371 = vmatprep.subr.bf16.mxu0 0
    %6372 = vmatpush2.bf16.msra.mxu0 0
    %6373 = vmatprep.subr.bf16.mxu0 0
    %6374 = vmatpush2.bf16.msra.mxu0 0
    %6375 = vmatprep.subr.bf16.mxu0 0
    %6376 = vmatpush2.bf16.msra.mxu0 0
    %6377 = vmatprep.subr.bf16.mxu0 0
    %6378 = vmatpush2.bf16.msra.mxu0 0
    %6379 = vmatprep.subr.bf16.mxu0 0
    %6380 = vmatpush2.bf16.msra.mxu0 0
    %6381 = vmatprep.mubr.bf16.mxu0 0
    %6382 = vmatmul.mubr.bf16.gmra.mxu0 %v6111
    %v6383 = vpop.f32.mrf.mxu0
    %v6384 = vadd.f32 %v6146, %v6383
    %v6385 = vpop.f32.mrf.mxu0
    %v6386 = vadd.f32 %v6147, %v6385
    %v6387 = vpop.f32.mrf.mxu0
    %v6388 = vpop.f32.mrf.mxu0
    %6389 = vdwg.mxu0
    %v6390 = vmul.f32 %v6343, 0.5
    %v6391 = vtanh.pop %v6390
    %v6392 = vmul.f32 %v6391, 0.5
    %v6393 = vadd.f32 %v6392, 0.5
    %v6394 = vmul.f32 %v6345, 0.5
    %v6395 = vtanh.pop %v6394
    %v6396 = vmul.f32 %v6395, 0.5
    %v6397 = vadd.f32 %v6396, 0.5
    %v6398 = vtanh.pop %v6384
    %v6399 = vmul.f32 %v6386, 0.5
    %v6400 = vtanh.pop %v6399
    %v6401 = vmul.f32 %v6400, 0.5
    %v6402 = vadd.f32 %v6401, 0.5
    %v6403 = vmul.f32 %v6397, %v6107
    %v6404 = vmul.f32 %v6393, %v6398
    %v6405 = vadd.f32 %v6403, %v6404
    %v6406 = vtanh.pop %v6405
    %v6407 = vmul.f32 %v6402, %v6406
    %6408 = vst [vmem:[%s2561] sm:$0xff] %v6407
    %v6409 = vpack.c.bf16 %v6407, %v6407
    %v6410 = vld [vmem:[#allocation7] sm:$0xff]
    %v6411 = vld [vmem:[#allocation7 + $0x8] sm:$0xff]
    %v6412 = vld [vmem:[#allocation7 + $0x10] sm:$0xff]
    %v6413 = vld [vmem:[#allocation7 + $0x18] sm:$0xff]
    %v6414 = vld [vmem:[#allocation7 + $0x20] sm:$0xff]
    %v6415 = vld [vmem:[#allocation7 + $0x28] sm:$0xff]
    %v6416 = vld [vmem:[#allocation7 + $0x30] sm:$0xff]
    %v6417 = vld [vmem:[#allocation7 + $0x38] sm:$0xff]
    %v6418 = vld [vmem:[#allocation7 + $0x40] sm:$0xff]
    %v6419 = vld [vmem:[#allocation7 + $0x48] sm:$0xff]
    %v6420 = vld [vmem:[#allocation7 + $0x50] sm:$0xff]
    %v6421 = vld [vmem:[#allocation7 + $0x58] sm:$0xff]
    %v6422 = vld [vmem:[#allocation7 + $0x60] sm:$0xff]
    %v6423 = vld [vmem:[#allocation7 + $0x68] sm:$0xff]
    %v6424 = vld [vmem:[#allocation7 + $0x70] sm:$0xff]
    %v6425 = vld [vmem:[#allocation7 + $0x78] sm:$0xff]
    %v6426 = vld [vmem:[#allocation7 + $0x80] sm:$0xff]
    %v6427 = vld [vmem:[#allocation7 + $0x88] sm:$0xff]
    %v6428 = vld [vmem:[#allocation7 + $0x90] sm:$0xff]
    %v6429 = vld [vmem:[#allocation7 + $0x98] sm:$0xff]
    %v6430 = vld [vmem:[#allocation7 + $0xa0] sm:$0xff]
    %v6431 = vld [vmem:[#allocation7 + $0xa8] sm:$0xff]
    %v6432 = vld [vmem:[#allocation7 + $0xb0] sm:$0xff]
    %v6433 = vld [vmem:[#allocation7 + $0xb8] sm:$0xff]
    %v6434 = vld [vmem:[#allocation7 + $0xc0] sm:$0xff]
    %v6435 = vld [vmem:[#allocation7 + $0xc8] sm:$0xff]
    %v6436 = vld [vmem:[#allocation7 + $0xd0] sm:$0xff]
    %v6437 = vld [vmem:[#allocation7 + $0xd8] sm:$0xff]
    %v6438 = vld [vmem:[#allocation7 + $0xe0] sm:$0xff]
    %v6439 = vld [vmem:[#allocation7 + $0xe8] sm:$0xff]
    %v6440 = vld [vmem:[#allocation7 + $0xf0] sm:$0xff]
    %v6441 = vld [vmem:[#allocation7 + $0xf8] sm:$0xff]
    %v6442 = vld [vmem:[%s2600] sm:$0xff]
    %v6443 = vld [vmem:[%s2600 + $0x8] sm:$0xff]
    %v6444 = vld [vmem:[%s2600 + $0x10] sm:$0xff]
    %v6445 = vld [vmem:[%s2600 + $0x18] sm:$0xff]
    %v6478 = vunpack.c.l.b16 %v6410
    %v6479 = vunpack.c.h.b16 %v6410
    %v6480 = vunpack.c.l.b16 %v6411
    %v6481 = vunpack.c.h.b16 %v6411
    %v6482 = vunpack.c.l.b16 %v6412
    %v6483 = vunpack.c.h.b16 %v6412
    %v6484 = vunpack.c.l.b16 %v6413
    %v6485 = vunpack.c.h.b16 %v6413
    %v6486 = vunpack.c.l.b16 %v6414
    %v6487 = vunpack.c.h.b16 %v6414
    %v6488 = vunpack.c.l.b16 %v6415
    %v6489 = vunpack.c.h.b16 %v6415
    %v6490 = vunpack.c.l.b16 %v6416
    %v6491 = vunpack.c.h.b16 %v6416
    %v6492 = vunpack.c.l.b16 %v6417
    %v6493 = vunpack.c.h.b16 %v6417
    %v6494 = vunpack.c.l.b16 %v6418
    %v6495 = vunpack.c.h.b16 %v6418
    %v6496 = vunpack.c.l.b16 %v6419
    %v6497 = vunpack.c.h.b16 %v6419
    %v6498 = vunpack.c.l.b16 %v6420
    %v6499 = vunpack.c.h.b16 %v6420
    %v6500 = vunpack.c.l.b16 %v6421
    %v6501 = vunpack.c.h.b16 %v6421
    %v6502 = vunpack.c.l.b16 %v6422
    %v6503 = vunpack.c.h.b16 %v6422
    %v6504 = vunpack.c.l.b16 %v6423
    %v6505 = vunpack.c.h.b16 %v6423
    %v6506 = vunpack.c.l.b16 %v6424
    %v6507 = vunpack.c.h.b16 %v6424
    %v6508 = vunpack.c.l.b16 %v6425
    %v6509 = vunpack.c.h.b16 %v6425
    %v6510 = vunpack.c.l.b16 %v6426
    %v6511 = vunpack.c.h.b16 %v6426
    %v6512 = vunpack.c.l.b16 %v6427
    %v6513 = vunpack.c.h.b16 %v6427
    %v6514 = vunpack.c.l.b16 %v6428
    %v6515 = vunpack.c.h.b16 %v6428
    %v6516 = vunpack.c.l.b16 %v6429
    %v6517 = vunpack.c.h.b16 %v6429
    %v6518 = vunpack.c.l.b16 %v6430
    %v6519 = vunpack.c.h.b16 %v6430
    %v6520 = vunpack.c.l.b16 %v6431
    %v6521 = vunpack.c.h.b16 %v6431
    %v6522 = vunpack.c.l.b16 %v6432
    %v6523 = vunpack.c.h.b16 %v6432
    %v6524 = vunpack.c.l.b16 %v6433
    %v6525 = vunpack.c.h.b16 %v6433
    %v6526 = vunpack.c.l.b16 %v6434
    %v6527 = vunpack.c.h.b16 %v6434
    %v6528 = vunpack.c.l.b16 %v6435
    %v6529 = vunpack.c.h.b16 %v6435
    %v6530 = vunpack.c.l.b16 %v6436
    %v6531 = vunpack.c.h.b16 %v6436
    %v6532 = vunpack.c.l.b16 %v6437
    %v6533 = vunpack.c.h.b16 %v6437
    %v6534 = vunpack.c.l.b16 %v6438
    %v6535 = vunpack.c.h.b16 %v6438
    %v6536 = vunpack.c.l.b16 %v6439
    %v6537 = vunpack.c.h.b16 %v6439
    %v6538 = vunpack.c.l.b16 %v6440
    %v6539 = vunpack.c.h.b16 %v6440
    %v6540 = vunpack.c.l.b16 %v6441
    %v6541 = vunpack.c.h.b16 %v6441
    %v6542 = vpack.c.b16 %v6482, %v6478
    %v6543 = vpack.c.b16 %v6483, %v6479
    %v6544 = vpack.c.b16 %v6484, %v6480
    %v6545 = vpack.c.b16 %v6485, %v6481
    %v6546 = vpack.c.b16 %v6490, %v6486
    %v6547 = vpack.c.b16 %v6491, %v6487
    %v6548 = vpack.c.b16 %v6492, %v6488
    %v6549 = vpack.c.b16 %v6493, %v6489
    %v6550 = vpack.c.b16 %v6498, %v6494
    %v6551 = vpack.c.b16 %v6499, %v6495
    %v6552 = vpack.c.b16 %v6500, %v6496
    %v6553 = vpack.c.b16 %v6501, %v6497
    %v6554 = vpack.c.b16 %v6506, %v6502
    %v6555 = vpack.c.b16 %v6507, %v6503
    %v6556 = vpack.c.b16 %v6508, %v6504
    %v6557 = vpack.c.b16 %v6509, %v6505
    %v6558 = vpack.c.b16 %v6514, %v6510
    %v6559 = vpack.c.b16 %v6515, %v6511
    %v6560 = vpack.c.b16 %v6516, %v6512
    %v6561 = vpack.c.b16 %v6517, %v6513
    %v6562 = vpack.c.b16 %v6522, %v6518
    %v6563 = vpack.c.b16 %v6523, %v6519
    %v6564 = vpack.c.b16 %v6524, %v6520
    %v6565 = vpack.c.b16 %v6525, %v6521
    %v6566 = vpack.c.b16 %v6530, %v6526
    %v6567 = vpack.c.b16 %v6531, %v6527
    %v6568 = vpack.c.b16 %v6532, %v6528
    %v6569 = vpack.c.b16 %v6533, %v6529
    %v6570 = vpack.c.b16 %v6538, %v6534
    %v6571 = vpack.c.b16 %v6539, %v6535
    %v6572 = vpack.c.b16 %v6540, %v6536
    %v6573 = vpack.c.b16 %v6541, %v6537
    %6606 = vmatprep.subr.bf16.mxu0 %v6571
    %6607 = vmatpush1.bf16.msra.mxu0 %v6570
    %6608 = vmatprep.subr.bf16.mxu0 %v6567
    %6609 = vmatpush1.bf16.msra.mxu0 %v6566
    %6610 = vmatprep.subr.bf16.mxu0 %v6563
    %6611 = vmatpush1.bf16.msra.mxu0 %v6562
    %6612 = vmatprep.subr.bf16.mxu0 %v6559
    %6613 = vmatpush1.bf16.msra.mxu0 %v6558
    %6614 = vmatprep.subr.bf16.mxu0 %v6555
    %6615 = vmatpush1.bf16.msra.mxu0 %v6554
    %6616 = vmatprep.subr.bf16.mxu0 %v6551
    %6617 = vmatpush1.bf16.msra.mxu0 %v6550
    %6618 = vmatprep.subr.bf16.mxu0 %v6547
    %6619 = vmatpush1.bf16.msra.mxu0 %v6546
    %6620 = vmatprep.subr.bf16.mxu0 %v6543
    %6621 = vmatpush1.bf16.msra.mxu0 %v6542
    %6622 = vmatprep.subr.bf16.mxu0 0
    %6623 = vmatpush2.bf16.msra.mxu0 0
    %6624 = vmatprep.subr.bf16.mxu0 0
    %6625 = vmatpush2.bf16.msra.mxu0 0
    %6626 = vmatprep.subr.bf16.mxu0 0
    %6627 = vmatpush2.bf16.msra.mxu0 0
    %6628 = vmatprep.subr.bf16.mxu0 0
    %6629 = vmatpush2.bf16.msra.mxu0 0
    %6630 = vmatprep.subr.bf16.mxu0 0
    %6631 = vmatpush2.bf16.msra.mxu0 0
    %6632 = vmatprep.subr.bf16.mxu0 0
    %6633 = vmatpush2.bf16.msra.mxu0 0
    %6634 = vmatprep.subr.bf16.mxu0 0
    %6635 = vmatpush2.bf16.msra.mxu0 0
    %6636 = vmatprep.subr.bf16.mxu0 0
    %6637 = vmatpush2.bf16.msra.mxu0 0
    %6638 = vmatprep.mubr.bf16.mxu0 0
    %6639 = vmatmul.mubr.bf16.gmra.mxu0 %v6409
    %v6640 = vpop.f32.mrf.mxu0
    %v6641 = vadd.f32 %v6442, %v6640
    %v6642 = vpop.f32.mrf.mxu0
    %v6643 = vadd.f32 %v6443, %v6642
    %v6644 = vpop.f32.mrf.mxu0
    %v6645 = vpop.f32.mrf.mxu0
    %6646 = vdwg.mxu0
    %6647 = vmatprep.subr.bf16.mxu0 %v6573
    %6648 = vmatpush1.bf16.msra.mxu0 %v6572
    %6649 = vmatprep.subr.bf16.mxu0 %v6569
    %6650 = vmatpush1.bf16.msra.mxu0 %v6568
    %6651 = vmatprep.subr.bf16.mxu0 %v6565
    %6652 = vmatpush1.bf16.msra.mxu0 %v6564
    %6653 = vmatprep.subr.bf16.mxu0 %v6561
    %6654 = vmatpush1.bf16.msra.mxu0 %v6560
    %6655 = vmatprep.subr.bf16.mxu0 %v6557
    %6656 = vmatpush1.bf16.msra.mxu0 %v6556
    %6657 = vmatprep.subr.bf16.mxu0 %v6553
    %6658 = vmatpush1.bf16.msra.mxu0 %v6552
    %6659 = vmatprep.subr.bf16.mxu0 %v6549
    %6660 = vmatpush1.bf16.msra.mxu0 %v6548
    %6661 = vmatprep.subr.bf16.mxu0 %v6545
    %6662 = vmatpush1.bf16.msra.mxu0 %v6544
    %6663 = vmatprep.subr.bf16.mxu0 0
    %6664 = vmatpush2.bf16.msra.mxu0 0
    %6665 = vmatprep.subr.bf16.mxu0 0
    %6666 = vmatpush2.bf16.msra.mxu0 0
    %6667 = vmatprep.subr.bf16.mxu0 0
    %6668 = vmatpush2.bf16.msra.mxu0 0
    %6669 = vmatprep.subr.bf16.mxu0 0
    %6670 = vmatpush2.bf16.msra.mxu0 0
    %6671 = vmatprep.subr.bf16.mxu0 0
    %6672 = vmatpush2.bf16.msra.mxu0 0
    %6673 = vmatprep.subr.bf16.mxu0 0
    %6674 = vmatpush2.bf16.msra.mxu0 0
    %6675 = vmatprep.subr.bf16.mxu0 0
    %6676 = vmatpush2.bf16.msra.mxu0 0
    %6677 = vmatprep.subr.bf16.mxu0 0
    %6678 = vmatpush2.bf16.msra.mxu0 0
    %6679 = vmatprep.mubr.bf16.mxu0 0
    %6680 = vmatmul.mubr.bf16.gmra.mxu0 %v6409
    %v6681 = vpop.f32.mrf.mxu0
    %v6682 = vadd.f32 %v6444, %v6681
    %v6683 = vpop.f32.mrf.mxu0
    %v6684 = vadd.f32 %v6445, %v6683
    %v6685 = vpop.f32.mrf.mxu0
    %v6686 = vpop.f32.mrf.mxu0
    %6687 = vdwg.mxu0
    %v6688 = vmul.f32 %v6641, 0.5
    %v6689 = vtanh.pop %v6688
    %v6690 = vmul.f32 %v6689, 0.5
    %v6691 = vadd.f32 %v6690, 0.5
    %v6692 = vmul.f32 %v6643, 0.5
    %v6693 = vtanh.pop %v6692
    %v6694 = vmul.f32 %v6693, 0.5
    %v6695 = vadd.f32 %v6694, 0.5
    %v6696 = vtanh.pop %v6682
    %v6697 = vmul.f32 %v6684, 0.5
    %v6698 = vtanh.pop %v6697
    %v6699 = vmul.f32 %v6698, 0.5
    %v6700 = vadd.f32 %v6699, 0.5
    %v6701 = vmul.f32 %v6695, %v6405
    %v6702 = vmul.f32 %v6691, %v6696
    %v6703 = vadd.f32 %v6701, %v6702
    %v6704 = vtanh.pop %v6703
    %v6705 = vmul.f32 %v6700, %v6704
    %6706 = vst [vmem:[%s2865] sm:$0xff] %v6705
    %v6707 = vpack.c.bf16 %v6705, %v6705
    %v6708 = vld [vmem:[#allocation7] sm:$0xff]
    %v6709 = vld [vmem:[#allocation7 + $0x8] sm:$0xff]
    %v6710 = vld [vmem:[#allocation7 + $0x10] sm:$0xff]
    %v6711 = vld [vmem:[#allocation7 + $0x18] sm:$0xff]
    %v6712 = vld [vmem:[#allocation7 + $0x20] sm:$0xff]
    %v6713 = vld [vmem:[#allocation7 + $0x28] sm:$0xff]
    %v6714 = vld [vmem:[#allocation7 + $0x30] sm:$0xff]
    %v6715 = vld [vmem:[#allocation7 + $0x38] sm:$0xff]
    %v6716 = vld [vmem:[#allocation7 + $0x40] sm:$0xff]
    %v6717 = vld [vmem:[#allocation7 + $0x48] sm:$0xff]
    %v6718 = vld [vmem:[#allocation7 + $0x50] sm:$0xff]
    %v6719 = vld [vmem:[#allocation7 + $0x58] sm:$0xff]
    %v6720 = vld [vmem:[#allocation7 + $0x60] sm:$0xff]
    %v6721 = vld [vmem:[#allocation7 + $0x68] sm:$0xff]
    %v6722 = vld [vmem:[#allocation7 + $0x70] sm:$0xff]
    %v6723 = vld [vmem:[#allocation7 + $0x78] sm:$0xff]
    %v6724 = vld [vmem:[#allocation7 + $0x80] sm:$0xff]
    %v6725 = vld [vmem:[#allocation7 + $0x88] sm:$0xff]
    %v6726 = vld [vmem:[#allocation7 + $0x90] sm:$0xff]
    %v6727 = vld [vmem:[#allocation7 + $0x98] sm:$0xff]
    %v6728 = vld [vmem:[#allocation7 + $0xa0] sm:$0xff]
    %v6729 = vld [vmem:[#allocation7 + $0xa8] sm:$0xff]
    %v6730 = vld [vmem:[#allocation7 + $0xb0] sm:$0xff]
    %v6731 = vld [vmem:[#allocation7 + $0xb8] sm:$0xff]
    %v6732 = vld [vmem:[#allocation7 + $0xc0] sm:$0xff]
    %v6733 = vld [vmem:[#allocation7 + $0xc8] sm:$0xff]
    %v6734 = vld [vmem:[#allocation7 + $0xd0] sm:$0xff]
    %v6735 = vld [vmem:[#allocation7 + $0xd8] sm:$0xff]
    %v6736 = vld [vmem:[#allocation7 + $0xe0] sm:$0xff]
    %v6737 = vld [vmem:[#allocation7 + $0xe8] sm:$0xff]
    %v6738 = vld [vmem:[#allocation7 + $0xf0] sm:$0xff]
    %v6739 = vld [vmem:[#allocation7 + $0xf8] sm:$0xff]
    %v6740 = vld [vmem:[%s2904] sm:$0xff]
    %v6741 = vld [vmem:[%s2904 + $0x8] sm:$0xff]
    %v6742 = vld [vmem:[%s2904 + $0x10] sm:$0xff]
    %v6743 = vld [vmem:[%s2904 + $0x18] sm:$0xff]
    %v6776 = vunpack.c.l.b16 %v6708
    %v6777 = vunpack.c.h.b16 %v6708
    %v6778 = vunpack.c.l.b16 %v6709
    %v6779 = vunpack.c.h.b16 %v6709
    %v6780 = vunpack.c.l.b16 %v6710
    %v6781 = vunpack.c.h.b16 %v6710
    %v6782 = vunpack.c.l.b16 %v6711
    %v6783 = vunpack.c.h.b16 %v6711
    %v6784 = vunpack.c.l.b16 %v6712
    %v6785 = vunpack.c.h.b16 %v6712
    %v6786 = vunpack.c.l.b16 %v6713
    %v6787 = vunpack.c.h.b16 %v6713
    %v6788 = vunpack.c.l.b16 %v6714
    %v6789 = vunpack.c.h.b16 %v6714
    %v6790 = vunpack.c.l.b16 %v6715
    %v6791 = vunpack.c.h.b16 %v6715
    %v6792 = vunpack.c.l.b16 %v6716
    %v6793 = vunpack.c.h.b16 %v6716
    %v6794 = vunpack.c.l.b16 %v6717
    %v6795 = vunpack.c.h.b16 %v6717
    %v6796 = vunpack.c.l.b16 %v6718
    %v6797 = vunpack.c.h.b16 %v6718
    %v6798 = vunpack.c.l.b16 %v6719
    %v6799 = vunpack.c.h.b16 %v6719
    %v6800 = vunpack.c.l.b16 %v6720
    %v6801 = vunpack.c.h.b16 %v6720
    %v6802 = vunpack.c.l.b16 %v6721
    %v6803 = vunpack.c.h.b16 %v6721
    %v6804 = vunpack.c.l.b16 %v6722
    %v6805 = vunpack.c.h.b16 %v6722
    %v6806 = vunpack.c.l.b16 %v6723
    %v6807 = vunpack.c.h.b16 %v6723
    %v6808 = vunpack.c.l.b16 %v6724
    %v6809 = vunpack.c.h.b16 %v6724
    %v6810 = vunpack.c.l.b16 %v6725
    %v6811 = vunpack.c.h.b16 %v6725
    %v6812 = vunpack.c.l.b16 %v6726
    %v6813 = vunpack.c.h.b16 %v6726
    %v6814 = vunpack.c.l.b16 %v6727
    %v6815 = vunpack.c.h.b16 %v6727
    %v6816 = vunpack.c.l.b16 %v6728
    %v6817 = vunpack.c.h.b16 %v6728
    %v6818 = vunpack.c.l.b16 %v6729
    %v6819 = vunpack.c.h.b16 %v6729
    %v6820 = vunpack.c.l.b16 %v6730
    %v6821 = vunpack.c.h.b16 %v6730
    %v6822 = vunpack.c.l.b16 %v6731
    %v6823 = vunpack.c.h.b16 %v6731
    %v6824 = vunpack.c.l.b16 %v6732
    %v6825 = vunpack.c.h.b16 %v6732
    %v6826 = vunpack.c.l.b16 %v6733
    %v6827 = vunpack.c.h.b16 %v6733
    %v6828 = vunpack.c.l.b16 %v6734
    %v6829 = vunpack.c.h.b16 %v6734
    %v6830 = vunpack.c.l.b16 %v6735
    %v6831 = vunpack.c.h.b16 %v6735
    %v6832 = vunpack.c.l.b16 %v6736
    %v6833 = vunpack.c.h.b16 %v6736
    %v6834 = vunpack.c.l.b16 %v6737
    %v6835 = vunpack.c.h.b16 %v6737
    %v6836 = vunpack.c.l.b16 %v6738
    %v6837 = vunpack.c.h.b16 %v6738
    %v6838 = vunpack.c.l.b16 %v6739
    %v6839 = vunpack.c.h.b16 %v6739
    %v6840 = vpack.c.b16 %v6780, %v6776
    %v6841 = vpack.c.b16 %v6781, %v6777
    %v6842 = vpack.c.b16 %v6782, %v6778
    %v6843 = vpack.c.b16 %v6783, %v6779
    %v6844 = vpack.c.b16 %v6788, %v6784
    %v6845 = vpack.c.b16 %v6789, %v6785
    %v6846 = vpack.c.b16 %v6790, %v6786
    %v6847 = vpack.c.b16 %v6791, %v6787
    %v6848 = vpack.c.b16 %v6796, %v6792
    %v6849 = vpack.c.b16 %v6797, %v6793
    %v6850 = vpack.c.b16 %v6798, %v6794
    %v6851 = vpack.c.b16 %v6799, %v6795
    %v6852 = vpack.c.b16 %v6804, %v6800
    %v6853 = vpack.c.b16 %v6805, %v6801
    %v6854 = vpack.c.b16 %v6806, %v6802
    %v6855 = vpack.c.b16 %v6807, %v6803
    %v6856 = vpack.c.b16 %v6812, %v6808
    %v6857 = vpack.c.b16 %v6813, %v6809
    %v6858 = vpack.c.b16 %v6814, %v6810
    %v6859 = vpack.c.b16 %v6815, %v6811
    %v6860 = vpack.c.b16 %v6820, %v6816
    %v6861 = vpack.c.b16 %v6821, %v6817
    %v6862 = vpack.c.b16 %v6822, %v6818
    %v6863 = vpack.c.b16 %v6823, %v6819
    %v6864 = vpack.c.b16 %v6828, %v6824
    %v6865 = vpack.c.b16 %v6829, %v6825
    %v6866 = vpack.c.b16 %v6830, %v6826
    %v6867 = vpack.c.b16 %v6831, %v6827
    %v6868 = vpack.c.b16 %v6836, %v6832
    %v6869 = vpack.c.b16 %v6837, %v6833
    %v6870 = vpack.c.b16 %v6838, %v6834
    %v6871 = vpack.c.b16 %v6839, %v6835
    %6904 = vmatprep.subr.bf16.mxu0 %v6869
    %6905 = vmatpush1.bf16.msra.mxu0 %v6868
    %6906 = vmatprep.subr.bf16.mxu0 %v6865
    %6907 = vmatpush1.bf16.msra.mxu0 %v6864
    %6908 = vmatprep.subr.bf16.mxu0 %v6861
    %6909 = vmatpush1.bf16.msra.mxu0 %v6860
    %6910 = vmatprep.subr.bf16.mxu0 %v6857
    %6911 = vmatpush1.bf16.msra.mxu0 %v6856
    %6912 = vmatprep.subr.bf16.mxu0 %v6853
    %6913 = vmatpush1.bf16.msra.mxu0 %v6852
    %6914 = vmatprep.subr.bf16.mxu0 %v6849
    %6915 = vmatpush1.bf16.msra.mxu0 %v6848
    %6916 = vmatprep.subr.bf16.mxu0 %v6845
    %6917 = vmatpush1.bf16.msra.mxu0 %v6844
    %6918 = vmatprep.subr.bf16.mxu0 %v6841
    %6919 = vmatpush1.bf16.msra.mxu0 %v6840
    %6920 = vmatprep.subr.bf16.mxu0 0
    %6921 = vmatpush2.bf16.msra.mxu0 0
    %6922 = vmatprep.subr.bf16.mxu0 0
    %6923 = vmatpush2.bf16.msra.mxu0 0
    %6924 = vmatprep.subr.bf16.mxu0 0
    %6925 = vmatpush2.bf16.msra.mxu0 0
    %6926 = vmatprep.subr.bf16.mxu0 0
    %6927 = vmatpush2.bf16.msra.mxu0 0
    %6928 = vmatprep.subr.bf16.mxu0 0
    %6929 = vmatpush2.bf16.msra.mxu0 0
    %6930 = vmatprep.subr.bf16.mxu0 0
    %6931 = vmatpush2.bf16.msra.mxu0 0
    %6932 = vmatprep.subr.bf16.mxu0 0
    %6933 = vmatpush2.bf16.msra.mxu0 0
    %6934 = vmatprep.subr.bf16.mxu0 0
    %6935 = vmatpush2.bf16.msra.mxu0 0
    %6936 = vmatprep.mubr.bf16.mxu0 0
    %6937 = vmatmul.mubr.bf16.gmra.mxu0 %v6707
    %v6938 = vpop.f32.mrf.mxu0
    %v6939 = vadd.f32 %v6740, %v6938
    %v6940 = vpop.f32.mrf.mxu0
    %v6941 = vadd.f32 %v6741, %v6940
    %v6942 = vpop.f32.mrf.mxu0
    %v6943 = vpop.f32.mrf.mxu0
    %6944 = vdwg.mxu0
    %6945 = vmatprep.subr.bf16.mxu0 %v6871
    %6946 = vmatpush1.bf16.msra.mxu0 %v6870
    %6947 = vmatprep.subr.bf16.mxu0 %v6867
    %6948 = vmatpush1.bf16.msra.mxu0 %v6866
    %6949 = vmatprep.subr.bf16.mxu0 %v6863
    %6950 = vmatpush1.bf16.msra.mxu0 %v6862
    %6951 = vmatprep.subr.bf16.mxu0 %v6859
    %6952 = vmatpush1.bf16.msra.mxu0 %v6858
    %6953 = vmatprep.subr.bf16.mxu0 %v6855
    %6954 = vmatpush1.bf16.msra.mxu0 %v6854
    %6955 = vmatprep.subr.bf16.mxu0 %v6851
    %6956 = vmatpush1.bf16.msra.mxu0 %v6850
    %6957 = vmatprep.subr.bf16.mxu0 %v6847
    %6958 = vmatpush1.bf16.msra.mxu0 %v6846
    %6959 = vmatprep.subr.bf16.mxu0 %v6843
    %6960 = vmatpush1.bf16.msra.mxu0 %v6842
    %6961 = vmatprep.subr.bf16.mxu0 0
    %6962 = vmatpush2.bf16.msra.mxu0 0
    %6963 = vmatprep.subr.bf16.mxu0 0
    %6964 = vmatpush2.bf16.msra.mxu0 0
    %6965 = vmatprep.subr.bf16.mxu0 0
    %6966 = vmatpush2.bf16.msra.mxu0 0
    %6967 = vmatprep.subr.bf16.mxu0 0
    %6968 = vmatpush2.bf16.msra.mxu0 0
    %6969 = vmatprep.subr.bf16.mxu0 0
    %6970 = vmatpush2.bf16.msra.mxu0 0
    %6971 = vmatprep.subr.bf16.mxu0 0
    %6972 = vmatpush2.bf16.msra.mxu0 0
    %6973 = vmatprep.subr.bf16.mxu0 0
    %6974 = vmatpush2.bf16.msra.mxu0 0
    %6975 = vmatprep.subr.bf16.mxu0 0
    %6976 = vmatpush2.bf16.msra.mxu0 0
    %6977 = vmatprep.mubr.bf16.mxu0 0
    %6978 = vmatmul.mubr.bf16.gmra.mxu0 %v6707
    %v6979 = vpop.f32.mrf.mxu0
    %v6980 = vadd.f32 %v6742, %v6979
    %v6981 = vpop.f32.mrf.mxu0
    %v6982 = vadd.f32 %v6743, %v6981
    %v6983 = vpop.f32.mrf.mxu0
    %v6984 = vpop.f32.mrf.mxu0
    %6985 = vdwg.mxu0
    %v6986 = vmul.f32 %v6939, 0.5
    %v6987 = vtanh.pop %v6986
    %v6988 = vmul.f32 %v6987, 0.5
    %v6989 = vadd.f32 %v6988, 0.5
    %v6990 = vmul.f32 %v6941, 0.5
    %v6991 = vtanh.pop %v6990
    %v6992 = vmul.f32 %v6991, 0.5
    %v6993 = vadd.f32 %v6992, 0.5
    %v6994 = vtanh.pop %v6980
    %v6995 = vmul.f32 %v6982, 0.5
    %v6996 = vtanh.pop %v6995
    %v6997 = vmul.f32 %v6996, 0.5
    %v6998 = vadd.f32 %v6997, 0.5
    %v6999 = vmul.f32 %v6993, %v6703
    %v7000 = vmul.f32 %v6989, %v6994
    %v7001 = vadd.f32 %v6999, %v7000
    %v7002 = vtanh.pop %v7001
    %v7003 = vmul.f32 %v6998, %v7002
    %7004 = vst [vmem:[%s3169] sm:$0xff] %v7003
    %v7005 = vpack.c.bf16 %v7003, %v7003
    %v7006 = vld [vmem:[#allocation7] sm:$0xff]
    %v7007 = vld [vmem:[#allocation7 + $0x8] sm:$0xff]
    %v7008 = vld [vmem:[#allocation7 + $0x10] sm:$0xff]
    %v7009 = vld [vmem:[#allocation7 + $0x18] sm:$0xff]
    %v7010 = vld [vmem:[#allocation7 + $0x20] sm:$0xff]
    %v7011 = vld [vmem:[#allocation7 + $0x28] sm:$0xff]
    %v7012 = vld [vmem:[#allocation7 + $0x30] sm:$0xff]
    %v7013 = vld [vmem:[#allocation7 + $0x38] sm:$0xff]
    %v7014 = vld [vmem:[#allocation7 + $0x40] sm:$0xff]
    %v7015 = vld [vmem:[#allocation7 + $0x48] sm:$0xff]
    %v7016 = vld [vmem:[#allocation7 + $0x50] sm:$0xff]
    %v7017 = vld [vmem:[#allocation7 + $0x58] sm:$0xff]
    %v7018 = vld [vmem:[#allocation7 + $0x60] sm:$0xff]
    %v7019 = vld [vmem:[#allocation7 + $0x68] sm:$0xff]
    %v7020 = vld [vmem:[#allocation7 + $0x70] sm:$0xff]
    %v7021 = vld [vmem:[#allocation7 + $0x78] sm:$0xff]
    %v7022 = vld [vmem:[#allocation7 + $0x80] sm:$0xff]
    %v7023 = vld [vmem:[#allocation7 + $0x88] sm:$0xff]
    %v7024 = vld [vmem:[#allocation7 + $0x90] sm:$0xff]
    %v7025 = vld [vmem:[#allocation7 + $0x98] sm:$0xff]
    %v7026 = vld [vmem:[#allocation7 + $0xa0] sm:$0xff]
    %v7027 = vld [vmem:[#allocation7 + $0xa8] sm:$0xff]
    %v7028 = vld [vmem:[#allocation7 + $0xb0] sm:$0xff]
    %v7029 = vld [vmem:[#allocation7 + $0xb8] sm:$0xff]
    %v7030 = vld [vmem:[#allocation7 + $0xc0] sm:$0xff]
    %v7031 = vld [vmem:[#allocation7 + $0xc8] sm:$0xff]
    %v7032 = vld [vmem:[#allocation7 + $0xd0] sm:$0xff]
    %v7033 = vld [vmem:[#allocation7 + $0xd8] sm:$0xff]
    %v7034 = vld [vmem:[#allocation7 + $0xe0] sm:$0xff]
    %v7035 = vld [vmem:[#allocation7 + $0xe8] sm:$0xff]
    %v7036 = vld [vmem:[#allocation7 + $0xf0] sm:$0xff]
    %v7037 = vld [vmem:[#allocation7 + $0xf8] sm:$0xff]
    %v7038 = vld [vmem:[%s3208] sm:$0xff]
    %v7039 = vld [vmem:[%s3208 + $0x8] sm:$0xff]
    %v7040 = vld [vmem:[%s3208 + $0x10] sm:$0xff]
    %v7041 = vld [vmem:[%s3208 + $0x18] sm:$0xff]
    %v7074 = vunpack.c.l.b16 %v7006
    %v7075 = vunpack.c.h.b16 %v7006
    %v7076 = vunpack.c.l.b16 %v7007
    %v7077 = vunpack.c.h.b16 %v7007
    %v7078 = vunpack.c.l.b16 %v7008
    %v7079 = vunpack.c.h.b16 %v7008
    %v7080 = vunpack.c.l.b16 %v7009
    %v7081 = vunpack.c.h.b16 %v7009
    %v7082 = vunpack.c.l.b16 %v7010
    %v7083 = vunpack.c.h.b16 %v7010
    %v7084 = vunpack.c.l.b16 %v7011
    %v7085 = vunpack.c.h.b16 %v7011
    %v7086 = vunpack.c.l.b16 %v7012
    %v7087 = vunpack.c.h.b16 %v7012
    %v7088 = vunpack.c.l.b16 %v7013
    %v7089 = vunpack.c.h.b16 %v7013
    %v7090 = vunpack.c.l.b16 %v7014
    %v7091 = vunpack.c.h.b16 %v7014
    %v7092 = vunpack.c.l.b16 %v7015
    %v7093 = vunpack.c.h.b16 %v7015
    %v7094 = vunpack.c.l.b16 %v7016
    %v7095 = vunpack.c.h.b16 %v7016
    %v7096 = vunpack.c.l.b16 %v7017
    %v7097 = vunpack.c.h.b16 %v7017
    %v7098 = vunpack.c.l.b16 %v7018
    %v7099 = vunpack.c.h.b16 %v7018
    %v7100 = vunpack.c.l.b16 %v7019
    %v7101 = vunpack.c.h.b16 %v7019
    %v7102 = vunpack.c.l.b16 %v7020
    %v7103 = vunpack.c.h.b16 %v7020
    %v7104 = vunpack.c.l.b16 %v7021
    %v7105 = vunpack.c.h.b16 %v7021
    %v7106 = vunpack.c.l.b16 %v7022
    %v7107 = vunpack.c.h.b16 %v7022
    %v7108 = vunpack.c.l.b16 %v7023
    %v7109 = vunpack.c.h.b16 %v7023
    %v7110 = vunpack.c.l.b16 %v7024
    %v7111 = vunpack.c.h.b16 %v7024
    %v7112 = vunpack.c.l.b16 %v7025
    %v7113 = vunpack.c.h.b16 %v7025
    %v7114 = vunpack.c.l.b16 %v7026
    %v7115 = vunpack.c.h.b16 %v7026
    %v7116 = vunpack.c.l.b16 %v7027
    %v7117 = vunpack.c.h.b16 %v7027
    %v7118 = vunpack.c.l.b16 %v7028
    %v7119 = vunpack.c.h.b16 %v7028
    %v7120 = vunpack.c.l.b16 %v7029
    %v7121 = vunpack.c.h.b16 %v7029
    %v7122 = vunpack.c.l.b16 %v7030
    %v7123 = vunpack.c.h.b16 %v7030
    %v7124 = vunpack.c.l.b16 %v7031
    %v7125 = vunpack.c.h.b16 %v7031
    %v7126 = vunpack.c.l.b16 %v7032
    %v7127 = vunpack.c.h.b16 %v7032
    %v7128 = vunpack.c.l.b16 %v7033
    %v7129 = vunpack.c.h.b16 %v7033
    %v7130 = vunpack.c.l.b16 %v7034
    %v7131 = vunpack.c.h.b16 %v7034
    %v7132 = vunpack.c.l.b16 %v7035
    %v7133 = vunpack.c.h.b16 %v7035
    %v7134 = vunpack.c.l.b16 %v7036
    %v7135 = vunpack.c.h.b16 %v7036
    %v7136 = vunpack.c.l.b16 %v7037
    %v7137 = vunpack.c.h.b16 %v7037
    %v7138 = vpack.c.b16 %v7078, %v7074
    %v7139 = vpack.c.b16 %v7079, %v7075
    %v7140 = vpack.c.b16 %v7080, %v7076
    %v7141 = vpack.c.b16 %v7081, %v7077
    %v7142 = vpack.c.b16 %v7086, %v7082
    %v7143 = vpack.c.b16 %v7087, %v7083
    %v7144 = vpack.c.b16 %v7088, %v7084
    %v7145 = vpack.c.b16 %v7089, %v7085
    %v7146 = vpack.c.b16 %v7094, %v7090
    %v7147 = vpack.c.b16 %v7095, %v7091
    %v7148 = vpack.c.b16 %v7096, %v7092
    %v7149 = vpack.c.b16 %v7097, %v7093
    %v7150 = vpack.c.b16 %v7102, %v7098
    %v7151 = vpack.c.b16 %v7103, %v7099
    %v7152 = vpack.c.b16 %v7104, %v7100
    %v7153 = vpack.c.b16 %v7105, %v7101
    %v7154 = vpack.c.b16 %v7110, %v7106
    %v7155 = vpack.c.b16 %v7111, %v7107
    %v7156 = vpack.c.b16 %v7112, %v7108
    %v7157 = vpack.c.b16 %v7113, %v7109
    %v7158 = vpack.c.b16 %v7118, %v7114
    %v7159 = vpack.c.b16 %v7119, %v7115
    %v7160 = vpack.c.b16 %v7120, %v7116
    %v7161 = vpack.c.b16 %v7121, %v7117
    %v7162 = vpack.c.b16 %v7126, %v7122
    %v7163 = vpack.c.b16 %v7127, %v7123
    %v7164 = vpack.c.b16 %v7128, %v7124
    %v7165 = vpack.c.b16 %v7129, %v7125
    %v7166 = vpack.c.b16 %v7134, %v7130
    %v7167 = vpack.c.b16 %v7135, %v7131
    %v7168 = vpack.c.b16 %v7136, %v7132
    %v7169 = vpack.c.b16 %v7137, %v7133
    %7202 = vmatprep.subr.bf16.mxu0 %v7167
    %7203 = vmatpush1.bf16.msra.mxu0 %v7166
    %7204 = vmatprep.subr.bf16.mxu0 %v7163
    %7205 = vmatpush1.bf16.msra.mxu0 %v7162
    %7206 = vmatprep.subr.bf16.mxu0 %v7159
    %7207 = vmatpush1.bf16.msra.mxu0 %v7158
    %7208 = vmatprep.subr.bf16.mxu0 %v7155
    %7209 = vmatpush1.bf16.msra.mxu0 %v7154
    %7210 = vmatprep.subr.bf16.mxu0 %v7151
    %7211 = vmatpush1.bf16.msra.mxu0 %v7150
    %7212 = vmatprep.subr.bf16.mxu0 %v7147
    %7213 = vmatpush1.bf16.msra.mxu0 %v7146
    %7214 = vmatprep.subr.bf16.mxu0 %v7143
    %7215 = vmatpush1.bf16.msra.mxu0 %v7142
    %7216 = vmatprep.subr.bf16.mxu0 %v7139
    %7217 = vmatpush1.bf16.msra.mxu0 %v7138
    %7218 = vmatprep.subr.bf16.mxu0 0
    %7219 = vmatpush2.bf16.msra.mxu0 0
    %7220 = vmatprep.subr.bf16.mxu0 0
    %7221 = vmatpush2.bf16.msra.mxu0 0
    %7222 = vmatprep.subr.bf16.mxu0 0
    %7223 = vmatpush2.bf16.msra.mxu0 0
    %7224 = vmatprep.subr.bf16.mxu0 0
    %7225 = vmatpush2.bf16.msra.mxu0 0
    %7226 = vmatprep.subr.bf16.mxu0 0
    %7227 = vmatpush2.bf16.msra.mxu0 0
    %7228 = vmatprep.subr.bf16.mxu0 0
    %7229 = vmatpush2.bf16.msra.mxu0 0
    %7230 = vmatprep.subr.bf16.mxu0 0
    %7231 = vmatpush2.bf16.msra.mxu0 0
    %7232 = vmatprep.subr.bf16.mxu0 0
    %7233 = vmatpush2.bf16.msra.mxu0 0
    %7234 = vmatprep.mubr.bf16.mxu0 0
    %7235 = vmatmul.mubr.bf16.gmra.mxu0 %v7005
    %v7236 = vpop.f32.mrf.mxu0
    %v7237 = vadd.f32 %v7038, %v7236
    %v7238 = vpop.f32.mrf.mxu0
    %v7239 = vadd.f32 %v7039, %v7238
    %v7240 = vpop.f32.mrf.mxu0
    %v7241 = vpop.f32.mrf.mxu0
    %7242 = vdwg.mxu0
    %7243 = vmatprep.subr.bf16.mxu0 %v7169
    %7244 = vmatpush1.bf16.msra.mxu0 %v7168
    %7245 = vmatprep.subr.bf16.mxu0 %v7165
    %7246 = vmatpush1.bf16.msra.mxu0 %v7164
    %7247 = vmatprep.subr.bf16.mxu0 %v7161
    %7248 = vmatpush1.bf16.msra.mxu0 %v7160
    %7249 = vmatprep.subr.bf16.mxu0 %v7157
    %7250 = vmatpush1.bf16.msra.mxu0 %v7156
    %7251 = vmatprep.subr.bf16.mxu0 %v7153
    %7252 = vmatpush1.bf16.msra.mxu0 %v7152
    %7253 = vmatprep.subr.bf16.mxu0 %v7149
    %7254 = vmatpush1.bf16.msra.mxu0 %v7148
    %7255 = vmatprep.subr.bf16.mxu0 %v7145
    %7256 = vmatpush1.bf16.msra.mxu0 %v7144
    %7257 = vmatprep.subr.bf16.mxu0 %v7141
    %7258 = vmatpush1.bf16.msra.mxu0 %v7140
    %7259 = vmatprep.subr.bf16.mxu0 0
    %7260 = vmatpush2.bf16.msra.mxu0 0
    %7261 = vmatprep.subr.bf16.mxu0 0
    %7262 = vmatpush2.bf16.msra.mxu0 0
    %7263 = vmatprep.subr.bf16.mxu0 0
    %7264 = vmatpush2.bf16.msra.mxu0 0
    %7265 = vmatprep.subr.bf16.mxu0 0
    %7266 = vmatpush2.bf16.msra.mxu0 0
    %7267 = vmatprep.subr.bf16.mxu0 0
    %7268 = vmatpush2.bf16.msra.mxu0 0
    %7269 = vmatprep.subr.bf16.mxu0 0
    %7270 = vmatpush2.bf16.msra.mxu0 0
    %7271 = vmatprep.subr.bf16.mxu0 0
    %7272 = vmatpush2.bf16.msra.mxu0 0
    %7273 = vmatprep.subr.bf16.mxu0 0
    %7274 = vmatpush2.bf16.msra.mxu0 0
    %7275 = vmatprep.mubr.bf16.mxu0 0
    %7276 = vmatmul.mubr.bf16.gmra.mxu0 %v7005
    %v7277 = vpop.f32.mrf.mxu0
    %v7278 = vadd.f32 %v7040, %v7277
    %v7279 = vpop.f32.mrf.mxu0
    %v7280 = vadd.f32 %v7041, %v7279
    %v7281 = vpop.f32.mrf.mxu0
    %v7282 = vpop.f32.mrf.mxu0
    %7283 = vdwg.mxu0
    %v7284 = vmul.f32 %v7237, 0.5
    %v7285 = vtanh.pop %v7284
    %v7286 = vmul.f32 %v7285, 0.5
    %v7287 = vadd.f32 %v7286, 0.5
    %v7288 = vmul.f32 %v7239, 0.5
    %v7289 = vtanh.pop %v7288
    %v7290 = vmul.f32 %v7289, 0.5
    %v7291 = vadd.f32 %v7290, 0.5
    %v7292 = vtanh.pop %v7278
    %v7293 = vmul.f32 %v7280, 0.5
    %v7294 = vtanh.pop %v7293
    %v7295 = vmul.f32 %v7294, 0.5
    %v7296 = vadd.f32 %v7295, 0.5
    %v7297 = vmul.f32 %v7291, %v7001
    %v7298 = vmul.f32 %v7287, %v7292
    %v7299 = vadd.f32 %v7297, %v7298
    %v7300 = vtanh.pop %v7299
    %v7301 = vmul.f32 %v7296, %v7300
    %7302 = vst [vmem:[%s3473] sm:$0xff] %v7301
    %v7303 = vld [vmem:[#allocation3 + $0x48] sm:$0xff]
    %v7304 = vld [vmem:[#allocation3] sm:$0xff]
    %v7305 = vpack.c.bf16 %v7303, %v7303
    %v7306 = vpack.c.bf16 %v7304, %v7304
    %v7307 = vld [vmem:[#allocation10] sm:$0xf]
    %v7308 = vld [vmem:[#allocation10 + $0x4] sm:$0xf]
    %v7309 = vld [vmem:[#allocation10 + $0x8] sm:$0xf]
    %v7310 = vld [vmem:[#allocation10 + $0xc] sm:$0xf]
    %v7311 = vld [vmem:[#allocation10 + $0x10] sm:$0xf]
    %v7312 = vld [vmem:[#allocation10 + $0x14] sm:$0xf]
    %v7313 = vld [vmem:[#allocation10 + $0x18] sm:$0xf]
    %v7314 = vld [vmem:[#allocation10 + $0x1c] sm:$0xf]
    %v7315 = vld [vmem:[#allocation12] sm:$0xf]
    %v7316 = vld [vmem:[#allocation12 + $0x4] sm:$0xf]
    %v7317 = vld [vmem:[#allocation12 + $0x8] sm:$0xf]
    %v7318 = vld [vmem:[#allocation12 + $0xc] sm:$0xf]
    %v7319 = vld [vmem:[#allocation12 + $0x10] sm:$0xf]
    %v7320 = vld [vmem:[#allocation12 + $0x14] sm:$0xf]
    %v7321 = vld [vmem:[#allocation12 + $0x18] sm:$0xf]
    %v7322 = vld [vmem:[#allocation12 + $0x1c] sm:$0xf]
    %7324 = vrot.lane.b32.xlu0 %v7306, 64
    %v7325 = vpop.permute.xlu0 %7324
    %v7334 = vunpack.c.l.b16 %v7315
    %v7335 = vunpack.c.l.b16 %v7316
    %v7336 = vunpack.c.l.b16 %v7317
    %v7337 = vunpack.c.l.b16 %v7318
    %v7338 = vunpack.c.l.b16 %v7319
    %v7339 = vunpack.c.l.b16 %v7320
    %v7340 = vunpack.c.l.b16 %v7321
    %v7341 = vunpack.c.l.b16 %v7322
    %v7342 = vpack.c.b16 %v7335, %v7334
    %v7343 = vpack.c.b16 %v7337, %v7336
    %v7344 = vpack.c.b16 %v7339, %v7338
    %v7345 = vpack.c.b16 %v7341, %v7340
    %vm7350 = vcmask 523264
    %v7352 = vsel %vm7350, %v7325, 0
    %7354 = vmatprep.subr.bf16.mxu0 0
    %7355 = vmatpush1.bf16.msra.mxu0 0
    %7356 = vmatprep.subr.bf16.mxu0 0
    %7357 = vmatpush1.bf16.msra.mxu0 0
    %7358 = vmatprep.subr.bf16.mxu0 0
    %7359 = vmatpush1.bf16.msra.mxu0 0
    %7360 = vmatprep.subr.bf16.mxu0 0
    %7361 = vmatpush1.bf16.msra.mxu0 0
    %7362 = vmatprep.subr.bf16.mxu0 0
    %7363 = vmatpush1.bf16.msra.mxu0 %v7345
    %7364 = vmatprep.subr.bf16.mxu0 0
    %7365 = vmatpush1.bf16.msra.mxu0 %v7344
    %7366 = vmatprep.subr.bf16.mxu0 0
    %7367 = vmatpush1.bf16.msra.mxu0 %v7343
    %7368 = vmatprep.subr.bf16.mxu0 0
    %7369 = vmatpush1.bf16.msra.mxu0 %v7342
    %7370 = vmatprep.subr.bf16.mxu0 0
    %7371 = vmatpush2.bf16.msra.mxu0 0
    %7372 = vmatprep.subr.bf16.mxu0 0
    %7373 = vmatpush2.bf16.msra.mxu0 0
    %7374 = vmatprep.subr.bf16.mxu0 0
    %7375 = vmatpush2.bf16.msra.mxu0 0
    %7376 = vmatprep.subr.bf16.mxu0 0
    %7377 = vmatpush2.bf16.msra.mxu0 0
    %7378 = vmatprep.subr.bf16.mxu0 0
    %7379 = vmatpush2.bf16.msra.mxu0 0
    %7380 = vmatprep.subr.bf16.mxu0 0
    %7381 = vmatpush2.bf16.msra.mxu0 0
    %7382 = vmatprep.subr.bf16.mxu0 0
    %7383 = vmatpush2.bf16.msra.mxu0 0
    %7384 = vmatprep.subr.bf16.mxu0 0
    %7385 = vmatpush2.bf16.msra.mxu0 0
    %7386 = vmatprep.mubr.bf16.mxu0 0
    %7387 = vmatmul.mubr.bf16.gmra.mxu0 %v7352
    %v7388 = vpop.f32.mrf.mxu0
    %v7389 = vadd.f32 0.0, %v7388
    %v7390 = vpop.f32.mrf.mxu0
    %v7391 = vpop.f32.mrf.mxu0
    %v7392 = vpop.f32.mrf.mxu0
    %7393 = vdwg.mxu0
    %v7402 = vunpack.c.l.b16 %v7307
    %v7403 = vunpack.c.l.b16 %v7308
    %v7404 = vunpack.c.l.b16 %v7309
    %v7405 = vunpack.c.l.b16 %v7310
    %v7406 = vunpack.c.l.b16 %v7311
    %v7407 = vunpack.c.l.b16 %v7312
    %v7408 = vunpack.c.l.b16 %v7313
    %v7409 = vunpack.c.l.b16 %v7314
    %v7410 = vpack.c.b16 %v7403, %v7402
    %v7411 = vpack.c.b16 %v7405, %v7404
    %v7412 = vpack.c.b16 %v7407, %v7406
    %v7413 = vpack.c.b16 %v7409, %v7408
    %v7419 = vsel %vm7350, %v7305, 0
    %7421 = vmatprep.subr.bf16.mxu0 0
    %7422 = vmatpush1.bf16.msra.mxu0 0
    %7423 = vmatprep.subr.bf16.mxu0 0
    %7424 = vmatpush1.bf16.msra.mxu0 0
    %7425 = vmatprep.subr.bf16.mxu0 0
    %7426 = vmatpush1.bf16.msra.mxu0 0
    %7427 = vmatprep.subr.bf16.mxu0 0
    %7428 = vmatpush1.bf16.msra.mxu0 0
    %7429 = vmatprep.subr.bf16.mxu0 0
    %7430 = vmatpush1.bf16.msra.mxu0 %v7413
    %7431 = vmatprep.subr.bf16.mxu0 0
    %7432 = vmatpush1.bf16.msra.mxu0 %v7412
    %7433 = vmatprep.subr.bf16.mxu0 0
    %7434 = vmatpush1.bf16.msra.mxu0 %v7411
    %7435 = vmatprep.subr.bf16.mxu0 0
    %7436 = vmatpush1.bf16.msra.mxu0 %v7410
    %7437 = vmatprep.subr.bf16.mxu0 0
    %7438 = vmatpush2.bf16.msra.mxu0 0
    %7439 = vmatprep.subr.bf16.mxu0 0
    %7440 = vmatpush2.bf16.msra.mxu0 0
    %7441 = vmatprep.subr.bf16.mxu0 0
    %7442 = vmatpush2.bf16.msra.mxu0 0
    %7443 = vmatprep.subr.bf16.mxu0 0
    %7444 = vmatpush2.bf16.msra.mxu0 0
    %7445 = vmatprep.subr.bf16.mxu0 0
    %7446 = vmatpush2.bf16.msra.mxu0 0
    %7447 = vmatprep.subr.bf16.mxu0 0
    %7448 = vmatpush2.bf16.msra.mxu0 0
    %7449 = vmatprep.subr.bf16.mxu0 0
    %7450 = vmatpush2.bf16.msra.mxu0 0
    %7451 = vmatprep.subr.bf16.mxu0 0
    %7452 = vmatpush2.bf16.msra.mxu0 0
    %7453 = vmatprep.mubr.bf16.mxu0 0
    %7454 = vmatmul.mubr.bf16.gmra.mxu0 %v7419
    %v7455 = vpop.f32.mrf.mxu0
    %v7456 = vadd.f32 %v7389, %v7455
    %v7457 = vpop.f32.mrf.mxu0
    %v7458 = vpop.f32.mrf.mxu0
    %v7459 = vpop.f32.mrf.mxu0
    %7460 = vdwg.mxu0
    %v7461 = vld [vmem:[%s1] sm:$0xff]
    %v7462 = vld [vmem:[#allocation13] sm:$0x3]
    %vm7463 = vcmask 15360
    %v7465 = vsel %vm7463, %v7461, 0
    %vm7467 = vcmask 1041408
    %v7469 = vsel %vm7467, %v7462, 0
    %7471 = vmatprep.subr.mxu0 0.0
    %7472 = vmatpush1.msra.mxu0 0.0
    %7473 = vmatprep.subr.mxu0 0.0
    %7474 = vmatpush1.msra.mxu0 0.0
    %7475 = vmatprep.subr.mxu0 0.0
    %7476 = vmatpush1.msra.mxu0 0.0
    %7477 = vmatprep.subr.mxu0 0.0
    %7478 = vmatpush1.msra.mxu0 0.0
    %7479 = vmatprep.subr.mxu0 0.0
    %7480 = vmatpush1.msra.mxu0 0.0
    %7481 = vmatprep.subr.mxu0 0.0
    %7482 = vmatpush1.msra.mxu0 0.0
    %7483 = vmatprep.subr.mxu0 0.0
    %7484 = vmatpush1.msra.mxu0 0.0
    %7485 = vmatprep.subr.mxu0 0.0
    %7486 = vmatpush1.msra.mxu0 0.0
    %7487 = vmatprep.subr.mxu0 0.0
    %7488 = vmatpush1.msra.mxu0 0.0
    %7489 = vmatprep.subr.mxu0 0.0
    %7490 = vmatpush1.msra.mxu0 0.0
    %7491 = vmatprep.subr.mxu0 0.0
    %7492 = vmatpush1.msra.mxu0 0.0
    %7493 = vmatprep.subr.mxu0 0.0
    %7494 = vmatpush1.msra.mxu0 0.0
    %7495 = vmatprep.subr.mxu0 0.0
    %7496 = vmatpush1.msra.mxu0 0.0
    %7497 = vmatprep.subr.mxu0 0.0
    %7498 = vmatpush1.msra.mxu0 0.0
    %7499 = vmatprep.subr.mxu0 0.0
    %7500 = vmatpush1.msra.mxu0 0.0
    %7501 = vmatprep.subr.mxu0 0.0
    %7502 = vmatpush1.msra.mxu0 %v7469
    %7503 = vmatprep.subr.mxu0 0.0
    %7504 = vmatpush2.msra.mxu0 0.0
    %7505 = vmatprep.subr.mxu0 0.0
    %7506 = vmatpush2.msra.mxu0 0.0
    %7507 = vmatprep.subr.mxu0 0.0
    %7508 = vmatpush2.msra.mxu0 0.0
    %7509 = vmatprep.subr.mxu0 0.0
    %7510 = vmatpush2.msra.mxu0 0.0
    %7511 = vmatprep.subr.mxu0 0.0
    %7512 = vmatpush2.msra.mxu0 0.0
    %7513 = vmatprep.subr.mxu0 0.0
    %7514 = vmatpush2.msra.mxu0 0.0
    %7515 = vmatprep.subr.mxu0 0.0
    %7516 = vmatpush2.msra.mxu0 0.0
    %7517 = vmatprep.subr.mxu0 0.0
    %7518 = vmatpush2.msra.mxu0 0.0
    %7519 = vmatprep.subr.mxu0 0.0
    %7520 = vmatpush2.msra.mxu0 0.0
    %7521 = vmatprep.subr.mxu0 0.0
    %7522 = vmatpush2.msra.mxu0 0.0
    %7523 = vmatprep.subr.mxu0 0.0
    %7524 = vmatpush2.msra.mxu0 0.0
    %7525 = vmatprep.subr.mxu0 0.0
    %7526 = vmatpush2.msra.mxu0 0.0
    %7527 = vmatprep.subr.mxu0 0.0
    %7528 = vmatpush2.msra.mxu0 0.0
    %7529 = vmatprep.subr.mxu0 0.0
    %7530 = vmatpush2.msra.mxu0 0.0
    %7531 = vmatprep.subr.mxu0 0.0
    %7532 = vmatpush2.msra.mxu0 0.0
    %7533 = vmatprep.subr.mxu0 0.0
    %7534 = vmatpush2.msra.mxu0 0.0
    %7535 = vmatprep.mubr.f32.mxu0 0.0
    %7536 = vmatmul.mubr.f32.gmra.mxu0 %v7465
    %v7537 = vpop.f32.mrf.mxu0
    %v7538 = vadd.f32 0.0, %v7537
    %v7539 = vpop.f32.mrf.mxu0
    %7540 = vdwg.mxu0
    %v7541 = vadd.f32 %v7456, %v7538
    %v7542 = vld [vmem:[#allocation15] sm:$0x1]
    %v7544 = vlaneseq
    %v7545 = vshrl.u32 %v7544, 7
    %v7546 = vsub.s32 0, %v7545
    %v7547 = vrot.slane %v7542, %v7546
    %v7549 = vadd.f32 %v7541, %v7547
    %vm7550 = vcmp.gt.f32.partialorder %v7549, 0.0
    %v7551 = vmul.f32 %v7549, 0.2
    %v7552 = vsel %vm7550, %v7549, %v7551
    %v7553 = vpack.c.bf16 %v7552, %v7552
    %v7554 = vld [vmem:[%s13] sm:$0xf]
    %v7555 = vld [vmem:[%s13 + $0x4] sm:$0xf]
    %v7556 = vld [vmem:[%s13 + $0x8] sm:$0xf]
    %v7557 = vld [vmem:[%s13 + $0xc] sm:$0xf]
    %v7558 = vld [vmem:[%s13 + $0x10] sm:$0xf]
    %v7559 = vld [vmem:[%s13 + $0x14] sm:$0xf]
    %v7560 = vld [vmem:[%s13 + $0x18] sm:$0xf]
    %v7561 = vld [vmem:[%s13 + $0x1c] sm:$0xf]
    %v7562 = vld [vmem:[%s13 + $0x20] sm:$0xf]
    %v7563 = vld [vmem:[%s13 + $0x24] sm:$0xf]
    %v7564 = vld [vmem:[%s13 + $0x28] sm:$0xf]
    %v7565 = vld [vmem:[%s13 + $0x2c] sm:$0xf]
    %v7566 = vld [vmem:[%s13 + $0x30] sm:$0xf]
    %v7567 = vld [vmem:[%s13 + $0x34] sm:$0xf]
    %v7568 = vld [vmem:[%s13 + $0x38] sm:$0xf]
    %v7569 = vld [vmem:[%s13 + $0x3c] sm:$0xf]
    %v7570 = vld [vmem:[#allocation16] sm:$0x1]
    %v7572 = vlaneseq
    %v7573 = vshrl.u32 %v7572, 7
    %v7574 = vsub.s32 0, %v7573
    %v7575 = vrot.slane %v7570, %v7574
    %v7593 = vunpack.c.l.b16 %v7554
    %v7594 = vunpack.c.l.b16 %v7555
    %v7595 = vunpack.c.l.b16 %v7556
    %v7596 = vunpack.c.l.b16 %v7557
    %v7597 = vunpack.c.l.b16 %v7558
    %v7598 = vunpack.c.l.b16 %v7559
    %v7599 = vunpack.c.l.b16 %v7560
    %v7600 = vunpack.c.l.b16 %v7561
    %v7601 = vunpack.c.l.b16 %v7562
    %v7602 = vunpack.c.l.b16 %v7563
    %v7603 = vunpack.c.l.b16 %v7564
    %v7604 = vunpack.c.l.b16 %v7565
    %v7605 = vunpack.c.l.b16 %v7566
    %v7606 = vunpack.c.l.b16 %v7567
    %v7607 = vunpack.c.l.b16 %v7568
    %v7608 = vunpack.c.l.b16 %v7569
    %v7609 = vpack.c.b16 %v7594, %v7593
    %v7610 = vpack.c.b16 %v7596, %v7595
    %v7611 = vpack.c.b16 %v7598, %v7597
    %v7612 = vpack.c.b16 %v7600, %v7599
    %v7613 = vpack.c.b16 %v7602, %v7601
    %v7614 = vpack.c.b16 %v7604, %v7603
    %v7615 = vpack.c.b16 %v7606, %v7605
    %v7616 = vpack.c.b16 %v7608, %v7607
    %7625 = vmatprep.subr.bf16.mxu0 0
    %7626 = vmatpush1.bf16.msra.mxu0 %v7616
    %7627 = vmatprep.subr.bf16.mxu0 0
    %7628 = vmatpush1.bf16.msra.mxu0 %v7615
    %7629 = vmatprep.subr.bf16.mxu0 0
    %7630 = vmatpush1.bf16.msra.mxu0 %v7614
    %7631 = vmatprep.subr.bf16.mxu0 0
    %7632 = vmatpush1.bf16.msra.mxu0 %v7613
    %7633 = vmatprep.subr.bf16.mxu0 0
    %7634 = vmatpush1.bf16.msra.mxu0 %v7612
    %7635 = vmatprep.subr.bf16.mxu0 0
    %7636 = vmatpush1.bf16.msra.mxu0 %v7611
    %7637 = vmatprep.subr.bf16.mxu0 0
    %7638 = vmatpush1.bf16.msra.mxu0 %v7610
    %7639 = vmatprep.subr.bf16.mxu0 0
    %7640 = vmatpush1.bf16.msra.mxu0 %v7609
    %7641 = vmatprep.subr.bf16.mxu0 0
    %7642 = vmatpush2.bf16.msra.mxu0 0
    %7643 = vmatprep.subr.bf16.mxu0 0
    %7644 = vmatpush2.bf16.msra.mxu0 0
    %7645 = vmatprep.subr.bf16.mxu0 0
    %7646 = vmatpush2.bf16.msra.mxu0 0
    %7647 = vmatprep.subr.bf16.mxu0 0
    %7648 = vmatpush2.bf16.msra.mxu0 0
    %7649 = vmatprep.subr.bf16.mxu0 0
    %7650 = vmatpush2.bf16.msra.mxu0 0
    %7651 = vmatprep.subr.bf16.mxu0 0
    %7652 = vmatpush2.bf16.msra.mxu0 0
    %7653 = vmatprep.subr.bf16.mxu0 0
    %7654 = vmatpush2.bf16.msra.mxu0 0
    %7655 = vmatprep.subr.bf16.mxu0 0
    %7656 = vmatpush2.bf16.msra.mxu0 0
    %7657 = vmatprep.mubr.bf16.mxu0 0
    %7658 = vmatmul.mubr.bf16.gmra.mxu0 %v7553
    %v7659 = vpop.f32.mrf.mxu0
    %v7660 = vadd.f32 %v7575, %v7659
    %v7661 = vpop.f32.mrf.mxu0
    %v7662 = vpop.f32.mrf.mxu0
    %v7663 = vpop.f32.mrf.mxu0
    %7664 = vdwg.mxu0
    %vm7665 = vcmp.gt.f32.partialorder %v7660, 0.0
    %v7666 = vmul.f32 %v7660, 0.2
    %v7667 = vsel %vm7665, %v7660, %v7666
    %v7668 = vpack.c.bf16 %v7667, %v7667
    %v7669 = vld [vmem:[%s15] sm:$0xf]
    %v7670 = vld [vmem:[%s15 + $0x4] sm:$0xf]
    %v7671 = vld [vmem:[%s15 + $0x8] sm:$0xf]
    %v7672 = vld [vmem:[%s15 + $0xc] sm:$0xf]
    %v7673 = vld [vmem:[%s15 + $0x10] sm:$0xf]
    %v7674 = vld [vmem:[%s15 + $0x14] sm:$0xf]
    %v7675 = vld [vmem:[%s15 + $0x18] sm:$0xf]
    %v7676 = vld [vmem:[%s15 + $0x1c] sm:$0xf]
    %v7677 = vld [vmem:[%s16] sm:$0x1]
    %v7679 = vlaneseq
    %v7680 = vshrl.u32 %v7679, 7
    %v7681 = vsub.s32 0, %v7680
    %v7682 = vrot.slane %v7677, %v7681
    %v7692 = vunpack.c.l.b16 %v7669
    %v7693 = vunpack.c.l.b16 %v7670
    %v7694 = vunpack.c.l.b16 %v7671
    %v7695 = vunpack.c.l.b16 %v7672
    %v7696 = vunpack.c.l.b16 %v7673
    %v7697 = vunpack.c.l.b16 %v7674
    %v7698 = vunpack.c.l.b16 %v7675
    %v7699 = vunpack.c.l.b16 %v7676
    %v7700 = vpack.c.b16 %v7693, %v7692
    %v7701 = vpack.c.b16 %v7695, %v7694
    %v7702 = vpack.c.b16 %v7697, %v7696
    %v7703 = vpack.c.b16 %v7699, %v7698
    %v7709 = vsel %vm7350, %v7668, 0
    %7711 = vmatprep.subr.bf16.mxu0 0
    %7712 = vmatpush1.bf16.msra.mxu0 0
    %7713 = vmatprep.subr.bf16.mxu0 0
    %7714 = vmatpush1.bf16.msra.mxu0 0
    %7715 = vmatprep.subr.bf16.mxu0 0
    %7716 = vmatpush1.bf16.msra.mxu0 0
    %7717 = vmatprep.subr.bf16.mxu0 0
    %7718 = vmatpush1.bf16.msra.mxu0 0
    %7719 = vmatprep.subr.bf16.mxu0 0
    %7720 = vmatpush1.bf16.msra.mxu0 %v7703
    %7721 = vmatprep.subr.bf16.mxu0 0
    %7722 = vmatpush1.bf16.msra.mxu0 %v7702
    %7723 = vmatprep.subr.bf16.mxu0 0
    %7724 = vmatpush1.bf16.msra.mxu0 %v7701
    %7725 = vmatprep.subr.bf16.mxu0 0
    %7726 = vmatpush1.bf16.msra.mxu0 %v7700
    %7727 = vmatprep.subr.bf16.mxu0 0
    %7728 = vmatpush2.bf16.msra.mxu0 0
    %7729 = vmatprep.subr.bf16.mxu0 0
    %7730 = vmatpush2.bf16.msra.mxu0 0
    %7731 = vmatprep.subr.bf16.mxu0 0
    %7732 = vmatpush2.bf16.msra.mxu0 0
    %7733 = vmatprep.subr.bf16.mxu0 0
    %7734 = vmatpush2.bf16.msra.mxu0 0
    %7735 = vmatprep.subr.bf16.mxu0 0
    %7736 = vmatpush2.bf16.msra.mxu0 0
    %7737 = vmatprep.subr.bf16.mxu0 0
    %7738 = vmatpush2.bf16.msra.mxu0 0
    %7739 = vmatprep.subr.bf16.mxu0 0
    %7740 = vmatpush2.bf16.msra.mxu0 0
    %7741 = vmatprep.subr.bf16.mxu0 0
    %7742 = vmatpush2.bf16.msra.mxu0 0
    %7743 = vmatprep.mubr.bf16.mxu0 0
    %7744 = vmatmul.mubr.bf16.gmra.mxu0 %v7709
    %v7745 = vpop.f32.mrf.mxu0
    %v7746 = vadd.f32 %v7682, %v7745
    %v7747 = vpop.f32.mrf.mxu0
    %v7748 = vpop.f32.mrf.mxu0
    %v7749 = vpop.f32.mrf.mxu0
    %7750 = vdwg.mxu0
    %7751 = vst.msk [vmem:[%s17] sm:$0xff] %vm7463, %v7746
    // Predicated region
    $region102: #{lstm_sac_actor_forward.1} parent=1 // pred_check
      _
    $region103: #{lstm_sac_actor_forward.1} parent=1 // pred_check_branch
      %7753 = sbr.rel (0) target = $region105
    $region104: #{lstm_sac_actor_forward.1} parent=1 // pred_region
      _
    $region105: #{lstm_sac_actor_forward.1} parent=1 // pred_fallthru
      _
    // Predicated region
    $region106: #{lstm_sac_actor_forward.1} parent=1 // pred_check
      _
    $region107: #{lstm_sac_actor_forward.1} parent=1 // pred_check_branch
      %7755 = sbr.rel (0) target = $region109
    $region108: #{lstm_sac_actor_forward.1} parent=1 // pred_region
      _
    $region109: #{lstm_sac_actor_forward.1} parent=1 // pred_fallthru
      _
    %7756 = vsyncpa [#allocation6], 1
    %7757 = vsyncpa [#allocation8], 1
    %7758 = vsyncpa [#allocation11], 1
    %7759 = vsyncpa [#allocation14], 1
    %7760 = vsyncpa [#allocation17], 1

</llo_original>
